<compile_context>
chip_gen: v6e
topology: v6e:2x2x1
jax: 0.10.0
libtpu: 0.0.40
codegen_flags: <defaults>
</compile_context>

<pallas_src>
import functools

import jax
import jax.numpy as jnp
import numpy as np
from jax.experimental import pallas as pl
from jax.experimental.pallas import tpu as pltpu


# ---------------------------------------------------------------------------
# In-kernel helpers
# ---------------------------------------------------------------------------
def _fill_padded(pad_ref, val):
    """Zero the 1-pixel halo of `pad_ref` and write `val` into the interior."""
    Hp, Wp, C = pad_ref.shape
    dt = pad_ref.dtype
    pad_ref[0:1, :, :] = jnp.zeros((1, Wp, C), dt)
    pad_ref[Hp - 1:Hp, :, :] = jnp.zeros((1, Wp, C), dt)
    pad_ref[:, 0:1, :] = jnp.zeros((Hp, 1, C), dt)
    pad_ref[:, Wp - 1:Wp, :] = jnp.zeros((Hp, 1, C), dt)
    pad_ref[1:Hp - 1, 1:Wp - 1, :] = val.astype(dt)


def _im2col_3x3(pad_ref, patch_ref, Ho, Wo, C):
    """Build (Ho*Wo, 9*C) im2col patches from a zero-padded (Ho+2, Wo+2, C) ref."""
    for kh in range(3):
        for kw in range(3):
            k = kh * 3 + kw
            win = pad_ref[kh:kh + Ho, kw:kw + Wo, :]          # (Ho, Wo, C)
            patch_ref[:, k * C:(k + 1) * C] = win.reshape(Ho * Wo, C)


def _conv1_bn_relu(x, xsc, p1, w1_ref, s1_ref, b1_ref):
    """stride-1 3x3 conv (single im2col matmul) + folded BN + ReLU -> f32."""
    H, W, Cin = x.shape
    _fill_padded(xsc, x)
    _im2col_3x3(xsc, p1, H, W, Cin)
    y = jnp.dot(p1[...], w1_ref[...], preferred_element_type=jnp.float32)
    return jnp.maximum(y * s1_ref[...] + b1_ref[...], 0.0)   # (H*W, Cout) f32


def _conv2_bn(y_f32, ysc, p2, w2_ref, s2_ref, b2_ref):
    """3x3 conv on the (VMEM-resident) conv1 output + folded BN -> f32."""
    Ho, Wo = ysc.shape[0] - 2, ysc.shape[1] - 2
    Cmid = ysc.shape[2]
    _fill_padded(ysc, y_f32.reshape(Ho, Wo, Cmid))           # f32 -> bf16 scratch
    _im2col_3x3(ysc, p2, Ho, Wo, Cmid)
    out = jnp.dot(p2[...], w2_ref[...], preferred_element_type=jnp.float32)
    return out * s2_ref[...] + b2_ref[...]                   # (Ho*Wo, Cout) f32


# ---------------------------------------------------------------------------
# Fused kernels (one grid step == one batch element, whole block in VMEM)
# ---------------------------------------------------------------------------
def _resblock_s1_proj_kernel(x_ref, w1_ref, s1_ref, b1_ref,
                             w2_ref, s2_ref, b2_ref,
                             wsc_ref, ssc_ref, bsc_ref,
                             o_ref, xsc, ysc, p1, p2):
    H, W, Cin = x_ref.shape
    Ho, Wo, Cout = o_ref.shape
    x = x_ref[...]
    y = _conv1_bn_relu(x, xsc, p1, w1_ref, s1_ref, b1_ref)
    out = _conv2_bn(y, ysc, p2, w2_ref, s2_ref, b2_ref)
    sc = jnp.dot(x.reshape(H * W, Cin), wsc_ref[...],
                 preferred_element_type=jnp.float32)
    sc = sc * ssc_ref[...] + bsc_ref[...]
    o_ref[...] = jnp.maximum(out + sc, 0.0).reshape(Ho, Wo, Cout).astype(o_ref.dtype)


def _resblock_s1_identity_kernel(x_ref, w1_ref, s1_ref, b1_ref,
                                 w2_ref, s2_ref, b2_ref,
                                 o_ref, xsc, ysc, p1, p2):
    H, W, Cin = x_ref.shape
    Ho, Wo, Cout = o_ref.shape
    x = x_ref[...]
    y = _conv1_bn_relu(x, xsc, p1, w1_ref, s1_ref, b1_ref)
    out = _conv2_bn(y, ysc, p2, w2_ref, s2_ref, b2_ref)
    sc = x.reshape(H * W, Cin).astype(jnp.float32)   # identity shortcut: no matmul
    o_ref[...] = jnp.maximum(out + sc, 0.0).reshape(Ho, Wo, Cout).astype(o_ref.dtype)


def _resblock_strided_proj_kernel(xg_ref, xs_ref, w1_ref, s1_ref, b1_ref,
                                  w2_ref, s2_ref, b2_ref,
                                  wsc_ref, ssc_ref, bsc_ref,
                                  o_ref, ysc, p2):
    # conv1 patches were pre-gathered at strided output positions in the
    # wrapper, so conv1 only computes the Ho*Wo outputs that are actually used.
    Ho, Wo, Cout = o_ref.shape
    K1 = xg_ref.shape[-1]
    Cin = xs_ref.shape[-1]
    patches = xg_ref[...].reshape(Ho * Wo, K1)
    y = jnp.dot(patches, w1_ref[...], preferred_element_type=jnp.float32)
    y = jnp.maximum(y * s1_ref[...] + b1_ref[...], 0.0)
    out = _conv2_bn(y, ysc, p2, w2_ref, s2_ref, b2_ref)
    sc = jnp.dot(xs_ref[...].reshape(Ho * Wo, Cin), wsc_ref[...],
                 preferred_element_type=jnp.float32)
    sc = sc * ssc_ref[...] + bsc_ref[...]
    o_ref[...] = jnp.maximum(out + sc, 0.0).reshape(Ho, Wo, Cout).astype(o_ref.dtype)


# ---------------------------------------------------------------------------
# Wrapper (PyTorch-like NCHW interface)
# ---------------------------------------------------------------------------
def _fold_bn(gamma, beta, mean, var, eps=1e-5):
    scale = gamma / jnp.sqrt(var + eps)
    bias = beta - mean * scale
    return scale.reshape(1, -1).astype(jnp.float32), bias.reshape(1, -1).astype(jnp.float32)


@functools.partial(jax.jit, static_argnames=("stride",))
def residual_block_forward(x_nchw, params, stride=1):
    """ResidualBlock forward.  x_nchw: (N, Cin, H, W) like PyTorch."""
    (w1, s1, b1, w2, s2, b2, wsc, ssc, bsc) = params
    N, Cin, H, W = x_nchw.shape
    Cout = w1.shape[-1]
    Ho = (H - 1) // stride + 1
    Wo = (W - 1) // stride + 1

    # Layout / dtype prep (bf16 activations & weights for the MXU, f32 accum).
    x = jnp.transpose(x_nchw, (0, 2, 3, 1)).astype(jnp.bfloat16)   # NHWC
    w1r = w1.reshape(9 * Cin, Cout).astype(jnp.bfloat16)           # (kh,kw,cin) major
    w2r = w2.reshape(9 * Cout, Cout).astype(jnp.bfloat16)
    s1f, b1f = s1.astype(jnp.float32), b1.astype(jnp.float32)
    s2f, b2f = s2.astype(jnp.float32), b2.astype(jnp.float32)

    bn_spec = pl.BlockSpec((1, Cout), lambda n: (0, 0))
    cp = pltpu.CompilerParams(dimension_semantics=("parallel",),
                              vmem_limit_bytes=32 * 1024 * 1024)

    if stride == 1:
        in_specs = [
            pl.BlockSpec((pl.Squeezed(), H, W, Cin), lambda n: (n, 0, 0, 0)),
            pl.BlockSpec((9 * Cin, Cout), lambda n: (0, 0)),
            bn_spec, bn_spec,
            pl.BlockSpec((9 * Cout, Cout), lambda n: (0, 0)),
            bn_spec, bn_spec,
        ]
        scratch = [
            pltpu.VMEM((H + 2, W + 2, Cin), jnp.bfloat16),    # padded input
            pltpu.VMEM((H + 2, W + 2, Cout), jnp.bfloat16),   # padded conv1 output
            pltpu.VMEM((H * W, 9 * Cin), jnp.bfloat16),       # im2col patches conv1
            pltpu.VMEM((H * W, 9 * Cout), jnp.bfloat16),      # im2col patches conv2
        ]
        out_spec = pl.BlockSpec((pl.Squeezed(), H, W, Cout), lambda n: (n, 0, 0, 0))

        if wsc is None:   # identity shortcut (stride==1 and Cin==Cout)
            out = pl.pallas_call(
                _resblock_s1_identity_kernel,
                out_shape=jax.ShapeDtypeStruct((N, H, W, Cout), jnp.float32),
                grid=(N,),
                in_specs=in_specs,
                out_specs=out_spec,
                scratch_shapes=scratch,
                compiler_params=cp,
            )(x, w1r, s1f, b1f, w2r, s2f, b2f)
        else:             # 1x1-conv projection shortcut
            wscb = wsc.astype(jnp.bfloat16)
            sscf, bscf = ssc.astype(jnp.float32), bsc.astype(jnp.float32)
            out = pl.pallas_call(
                _resblock_s1_proj_kernel,
                out_shape=jax.ShapeDtypeStruct((N, H, W, Cout), jnp.float32),
                grid=(N,),
                in_specs=in_specs + [
                    pl.BlockSpec((Cin, Cout), lambda n: (0, 0)), bn_spec, bn_spec],
                out_specs=out_spec,
                scratch_shapes=scratch,
                compiler_params=cp,
            )(x, w1r, s1f, b1f, w2r, s2f, b2f, wscb, sscf, bscf)
    else:
        # Stride fused into conv1: pre-gather the 3x3 strided patches once in
        # the wrapper (plain XLA strided slices; ~9/s^2 of the input in bytes),
        # so the kernel only computes the Ho x Wo outputs it keeps.
        xpad = jnp.pad(x, ((0, 0), (1, 1), (1, 1), (0, 0)))
        cols = []
        for kh in range(3):
            for kw in range(3):
                cols.append(xpad[:,
                                 kh:kh + stride * (Ho - 1) + 1:stride,
                                 kw:kw + stride * (Wo - 1) + 1:stride, :])
        xg = jnp.concatenate(cols, axis=-1)              # (N, Ho, Wo, 9*Cin)
        xs = x[:, ::stride, ::stride, :]                 # shortcut 1x1 conv input
        wscb = wsc.astype(jnp.bfloat16)
        sscf, bscf = ssc.astype(jnp.float32), bsc.astype(jnp.float32)

        out = pl.pallas_call(
            _resblock_strided_proj_kernel,
            out_shape=jax.ShapeDtypeStruct((N, Ho, Wo, Cout), jnp.float32),
            grid=(N,),
            in_specs=[
                pl.BlockSpec((pl.Squeezed(), Ho, Wo, 9 * Cin), lambda n: (n, 0, 0, 0)),
                pl.BlockSpec((pl.Squeezed(), Ho, Wo, Cin), lambda n: (n, 0, 0, 0)),
                pl.BlockSpec((9 * Cin, Cout), lambda n: (0, 0)),
                bn_spec, bn_spec,
                pl.BlockSpec((9 * Cout, Cout), lambda n: (0, 0)),
                bn_spec, bn_spec,
                pl.BlockSpec((Cin, Cout), lambda n: (0, 0)),
                bn_spec, bn_spec,
            ],
            out_specs=pl.BlockSpec((pl.Squeezed(), Ho, Wo, Cout), lambda n: (n, 0, 0, 0)),
            scratch_shapes=[
                pltpu.VMEM((Ho + 2, Wo + 2, Cout), jnp.bfloat16),
                pltpu.VMEM((Ho * Wo, 9 * Cout), jnp.bfloat16),
            ],
            compiler_params=cp,
        )(xg, xs, w1r, s1f, b1f, w2r, s2f, b2f, wscb, sscf, bscf)

    return jnp.transpose(out, (0, 3, 1, 2))              # NHWC -> NCHW


# ---------------------------------------------------------------------------
# Pure-JAX reference (mirrors the kernel's bf16-input / f32-accum behavior)
# ---------------------------------------------------------------------------
def _ref_forward(x_nchw, params, stride=1):
    (w1, s1, b1, w2, s2, b2, wsc, ssc, bsc) = params
    x = jnp.transpose(x_nchw, (0, 2, 3, 1)).astype(jnp.bfloat16)

    def conv(inp, w, s, pad):
        return jax.lax.conv_general_dilated(
            inp.astype(jnp.bfloat16), w.astype(jnp.bfloat16), (s, s), pad,
            dimension_numbers=("NHWC", "HWIO", "NHWC"),
            preferred_element_type=jnp.float32)

    y = conv(x, w1, stride, [(1, 1), (1, 1)]) * s1.reshape(-1) + b1.reshape(-1)
    y = jnp.maximum(y, 0.0)
    o = conv(y, w2, 1, [(1, 1), (1, 1)]) * s2.reshape(-1) + b2.reshape(-1)
    if wsc is None:
        sc = x.astype(jnp.float32)
    else:
        sc = conv(x, wsc[None, None], stride, [(0, 0), (0, 0)])
        sc = sc * ssc.reshape(-1) + bsc.reshape(-1)
    o = jnp.maximum(o + sc, 0.0)
    return jnp.transpose(o, (0, 3, 1, 2))


# ---------------------------------------------------------------------------
# Deterministic parameters (shapes follow ResidualBlock.__init__)
# ---------------------------------------------------------------------------
def make_params(key, in_channels, out_channels, stride=1):
    ks = jax.random.split(key, 8)
    w1 = jax.random.normal(ks[0], (out_channels, in_channels, 3, 3)) * 0.1
    w2 = jax.random.normal(ks[1], (out_channels, out_channels, 3, 3)) * 0.1
    w1 = jnp.transpose(w1, (2, 3, 1, 0)).astype(jnp.float32)   # OIHW -> HWIO
    w2 = jnp.transpose(w2, (2, 3, 1, 0)).astype(jnp.float32)

    def bn(k):
        kk = jax.random.split(k, 4)
        gamma = 1.0 + 0.1 * jax.random.normal(kk[0], (out_channels,))
        beta = 0.1 * jax.random.normal(kk[1], (out_channels,))
        mean = 0.1 * jax.random.normal(kk[2], (out_channels,))
        var = 0.5 + jnp.abs(jax.random.normal(kk[3], (out_channels,))) * 0.5
        return _fold_bn(gamma, beta, mean, var)

    s1, b1 = bn(ks[3])
    s2, b2 = bn(ks[4])
    if stride != 1 or in_channels != out_channels:
        wsc = jax.random.normal(ks[2], (out_channels, in_channels, 1, 1)) * 0.1
        wsc = jnp.transpose(wsc, (2, 3, 1, 0))[0, 0].astype(jnp.float32)  # (Cin, Cout)
        ssc, bsc = bn(ks[5])
    else:
        wsc = ssc = bsc = None        # identity shortcut, matches nn.Sequential()
    return (w1, s1, b1, w2, s2, b2, wsc, ssc, bsc)


if __name__ == "__main__":
    key = jax.random.PRNGKey(0)
    configs = [
        dict(N=2, Cin=4, Cout=8, H=16, W=16, stride=1),   # projection shortcut
        dict(N=2, Cin=8, Cout=8, H=16, W=16, stride=1),   # identity shortcut
        dict(N=2, Cin=4, Cout=8, H=16, W=16, stride=2),   # strided + projection
    ]
    for cfg in configs:
        kx, kp, key = jax.random.split(key, 3)
        x = jax.random.normal(kx, (cfg["N"], cfg["Cin"], cfg["H"], cfg["W"]),
                              jnp.float32)
        params = make_params(kp, cfg["Cin"], cfg["Cout"], cfg["stride"])
        out = jax.block_until_ready(
            residual_block_forward(x, params, stride=cfg["stride"]))
        ref = jax.block_until_ready(
            _ref_forward(x, params, stride=cfg["stride"]))
        np.testing.assert_allclose(np.asarray(out), np.asarray(ref),
                                   rtol=1e-3, atol=1e-3)
    print("KERNEL_OK")
</pallas_src>

<mosaic_0001>
module attributes {stable_mosaic.version = 11 : i64} {
  func.func @_resblock_s1_proj_kernel(%arg0: i32, %arg1: memref<1x16x16x4xbf16, #tpu.memory_space<vmem>>, %arg2: memref<36x8xbf16, #tpu.memory_space<vmem>>, %arg3: memref<1x8xf32, #tpu.memory_space<vmem>>, %arg4: memref<1x8xf32, #tpu.memory_space<vmem>>, %arg5: memref<72x8xbf16, #tpu.memory_space<vmem>>, %arg6: memref<1x8xf32, #tpu.memory_space<vmem>>, %arg7: memref<1x8xf32, #tpu.memory_space<vmem>>, %arg8: memref<4x8xbf16, #tpu.memory_space<vmem>>, %arg9: memref<1x8xf32, #tpu.memory_space<vmem>>, %arg10: memref<1x8xf32, #tpu.memory_space<vmem>>, %arg11: memref<1x16x16x8xf32, #tpu.memory_space<vmem>>, %arg12: memref<18x18x4xbf16, #tpu.memory_space<vmem>>, %arg13: memref<18x18x8xbf16, #tpu.memory_space<vmem>>, %arg14: memref<256x36xbf16, #tpu.memory_space<vmem>>, %arg15: memref<256x72xbf16, #tpu.memory_space<vmem>>) attributes {dimension_semantics = [#tpu.dimension_semantics<parallel>], iteration_bounds = array<i64: 2>, scalar_prefetch = 0 : i64, scratch_operands = 4 : i64, tpu.core_type = #tpu.core_type<tc>, window_params = [{transform_indices = @transform_0, window_bounds = array<i64: 1, 16, 16, 4>}, {pipeline_mode = #tpu.pipeline_mode<synchronous>, transform_indices = @transform_1, window_bounds = array<i64: 36, 8>}, {pipeline_mode = #tpu.pipeline_mode<synchronous>, transform_indices = @transform_2, window_bounds = array<i64: 1, 8>}, {pipeline_mode = #tpu.pipeline_mode<synchronous>, transform_indices = @transform_3, window_bounds = array<i64: 1, 8>}, {pipeline_mode = #tpu.pipeline_mode<synchronous>, transform_indices = @transform_4, window_bounds = array<i64: 72, 8>}, {pipeline_mode = #tpu.pipeline_mode<synchronous>, transform_indices = @transform_5, window_bounds = array<i64: 1, 8>}, {pipeline_mode = #tpu.pipeline_mode<synchronous>, transform_indices = @transform_6, window_bounds = array<i64: 1, 8>}, {pipeline_mode = #tpu.pipeline_mode<synchronous>, transform_indices = @transform_7, window_bounds = array<i64: 4, 8>}, {pipeline_mode = #tpu.pipeline_mode<synchronous>, transform_indices = @transform_8, window_bounds = array<i64: 1, 8>}, {pipeline_mode = #tpu.pipeline_mode<synchronous>, transform_indices = @transform_9, window_bounds = array<i64: 1, 8>}, {transform_indices = @transform_10, window_bounds = array<i64: 1, 16, 16, 8>}]} {
    %c0 = arith.constant 0 : index
    %c0_0 = arith.constant 0 : index
    %c0_1 = arith.constant 0 : index
    %c0_2 = arith.constant 0 : index
    %0 = vector.load %arg1[%c0, %c0_0, %c0_1, %c0_2] : memref<1x16x16x4xbf16, #tpu.memory_space<vmem>>, vector<1x16x16x4xbf16>
    %1 = vector.shape_cast %0 : vector<1x16x16x4xbf16> to vector<16x16x4xbf16>
    %cst = arith.constant 0.000000e+00 : bf16
    %2 = vector.broadcast %cst : bf16 to vector<1x18x4xbf16>
    %c0_3 = arith.constant 0 : index
    %c0_4 = arith.constant 0 : index
    %c0_5 = arith.constant 0 : index
    %3 = vector.load %arg12[%c0_3, %c0_4, %c0_5] : memref<18x18x4xbf16, #tpu.memory_space<vmem>>, vector<1x18x4xbf16>
    tpu.vector_store %arg12[%c0_3, %c0_4, %c0_5], %2 {strides = array<i32>} : memref<18x18x4xbf16, #tpu.memory_space<vmem>>, vector<1x18x4xbf16>,
    %cst_6 = arith.constant 0.000000e+00 : bf16
    %4 = vector.broadcast %cst_6 : bf16 to vector<1x18x4xbf16>
    %c17 = arith.constant 17 : index
    %c0_7 = arith.constant 0 : index
    %c0_8 = arith.constant 0 : index
    %5 = vector.load %arg12[%c17, %c0_7, %c0_8] : memref<18x18x4xbf16, #tpu.memory_space<vmem>>, vector<1x18x4xbf16>
    tpu.vector_store %arg12[%c17, %c0_7, %c0_8], %4 {strides = array<i32>} : memref<18x18x4xbf16, #tpu.memory_space<vmem>>, vector<1x18x4xbf16>,
    %cst_9 = arith.constant 0.000000e+00 : bf16
    %6 = vector.broadcast %cst_9 : bf16 to vector<18x1x4xbf16>
    %c0_10 = arith.constant 0 : index
    %c0_11 = arith.constant 0 : index
    %c0_12 = arith.constant 0 : index
    %7 = vector.load %arg12[%c0_10, %c0_11, %c0_12] : memref<18x18x4xbf16, #tpu.memory_space<vmem>>, vector<18x1x4xbf16>
    tpu.vector_store %arg12[%c0_10, %c0_11, %c0_12], %6 {strides = array<i32>} : memref<18x18x4xbf16, #tpu.memory_space<vmem>>, vector<18x1x4xbf16>,
    %cst_13 = arith.constant 0.000000e+00 : bf16
    %8 = vector.broadcast %cst_13 : bf16 to vector<18x1x4xbf16>
    %c0_14 = arith.constant 0 : index
    %c17_15 = arith.constant 17 : index
    %c0_16 = arith.constant 0 : index
    %9 = vector.load %arg12[%c0_14, %c17_15, %c0_16] : memref<18x18x4xbf16, #tpu.memory_space<vmem>>, vector<18x1x4xbf16>
    tpu.vector_store %arg12[%c0_14, %c17_15, %c0_16], %8 {strides = array<i32>} : memref<18x18x4xbf16, #tpu.memory_space<vmem>>, vector<18x1x4xbf16>,
    %c1 = arith.constant 1 : index
    %c1_17 = arith.constant 1 : index
    %c0_18 = arith.constant 0 : index
    %10 = vector.load %arg12[%c1, %c1_17, %c0_18] : memref<18x18x4xbf16, #tpu.memory_space<vmem>>, vector<16x16x4xbf16>
    tpu.vector_store %arg12[%c1, %c1_17, %c0_18], %1 {strides = array<i32>} : memref<18x18x4xbf16, #tpu.memory_space<vmem>>, vector<16x16x4xbf16>,
    %c0_19 = arith.constant 0 : index
    %c0_20 = arith.constant 0 : index
    %c0_21 = arith.constant 0 : index
    %11 = vector.load %arg12[%c0_19, %c0_20, %c0_21] : memref<18x18x4xbf16, #tpu.memory_space<vmem>>, vector<16x16x4xbf16>
    %12 = vector.shape_cast %11 : vector<16x16x4xbf16> to vector<256x4xbf16>
    %c0_22 = arith.constant 0 : index
    %c0_23 = arith.constant 0 : index
    %13 = vector.load %arg14[%c0_22, %c0_23] : memref<256x36xbf16, #tpu.memory_space<vmem>>, vector<256x4xbf16>
    tpu.vector_store %arg14[%c0_22, %c0_23], %12 {strides = array<i32>} : memref<256x36xbf16, #tpu.memory_space<vmem>>, vector<256x4xbf16>,
    %c0_24 = arith.constant 0 : index
    %c1_25 = arith.constant 1 : index
    %c0_26 = arith.constant 0 : index
    %14 = vector.load %arg12[%c0_24, %c1_25, %c0_26] : memref<18x18x4xbf16, #tpu.memory_space<vmem>>, vector<16x16x4xbf16>
    %15 = vector.shape_cast %14 : vector<16x16x4xbf16> to vector<256x4xbf16>
    %c0_27 = arith.constant 0 : index
    %c4 = arith.constant 4 : index
    %16 = vector.load %arg14[%c0_27, %c4] : memref<256x36xbf16, #tpu.memory_space<vmem>>, vector<256x4xbf16>
    tpu.vector_store %arg14[%c0_27, %c4], %15 {strides = array<i32>} : memref<256x36xbf16, #tpu.memory_space<vmem>>, vector<256x4xbf16>,
    %c0_28 = arith.constant 0 : index
    %c2 = arith.constant 2 : index
    %c0_29 = arith.constant 0 : index
    %17 = vector.load %arg12[%c0_28, %c2, %c0_29] : memref<18x18x4xbf16, #tpu.memory_space<vmem>>, vector<16x16x4xbf16>
    %18 = vector.shape_cast %17 : vector<16x16x4xbf16> to vector<256x4xbf16>
    %c0_30 = arith.constant 0 : index
    %c8 = arith.constant 8 : index
    %19 = vector.load %arg14[%c0_30, %c8] : memref<256x36xbf16, #tpu.memory_space<vmem>>, vector<256x4xbf16>
    tpu.vector_store %arg14[%c0_30, %c8], %18 {strides = array<i32>} : memref<256x36xbf16, #tpu.memory_space<vmem>>, vector<256x4xbf16>,
    %c1_31 = arith.constant 1 : index
    %c0_32 = arith.constant 0 : index
    %c0_33 = arith.constant 0 : index
    %20 = vector.load %arg12[%c1_31, %c0_32, %c0_33] : memref<18x18x4xbf16, #tpu.memory_space<vmem>>, vector<16x16x4xbf16>
    %21 = vector.shape_cast %20 : vector<16x16x4xbf16> to vector<256x4xbf16>
    %c0_34 = arith.constant 0 : index
    %c12 = arith.constant 12 : index
    %22 = vector.load %arg14[%c0_34, %c12] : memref<256x36xbf16, #tpu.memory_space<vmem>>, vector<256x4xbf16>
    tpu.vector_store %arg14[%c0_34, %c12], %21 {strides = array<i32>} : memref<256x36xbf16, #tpu.memory_space<vmem>>, vector<256x4xbf16>,
    %c1_35 = arith.constant 1 : index
    %c1_36 = arith.constant 1 : index
    %c0_37 = arith.constant 0 : index
    %23 = vector.load %arg12[%c1_35, %c1_36, %c0_37] : memref<18x18x4xbf16, #tpu.memory_space<vmem>>, vector<16x16x4xbf16>
    %24 = vector.shape_cast %23 : vector<16x16x4xbf16> to vector<256x4xbf16>
    %c0_38 = arith.constant 0 : index
    %c16 = arith.constant 16 : index
    %25 = vector.load %arg14[%c0_38, %c16] : memref<256x36xbf16, #tpu.memory_space<vmem>>, vector<256x4xbf16>
    tpu.vector_store %arg14[%c0_38, %c16], %24 {strides = array<i32>} : memref<256x36xbf16, #tpu.memory_space<vmem>>, vector<256x4xbf16>,
    %c1_39 = arith.constant 1 : index
    %c2_40 = arith.constant 2 : index
    %c0_41 = arith.constant 0 : index
    %26 = vector.load %arg12[%c1_39, %c2_40, %c0_41] : memref<18x18x4xbf16, #tpu.memory_space<vmem>>, vector<16x16x4xbf16>
    %27 = vector.shape_cast %26 : vector<16x16x4xbf16> to vector<256x4xbf16>
    %c0_42 = arith.constant 0 : index
    %c20 = arith.constant 20 : index
    %28 = vector.load %arg14[%c0_42, %c20] : memref<256x36xbf16, #tpu.memory_space<vmem>>, vector<256x4xbf16>
    tpu.vector_store %arg14[%c0_42, %c20], %27 {strides = array<i32>} : memref<256x36xbf16, #tpu.memory_space<vmem>>, vector<256x4xbf16>,
    %c2_43 = arith.constant 2 : index
    %c0_44 = arith.constant 0 : index
    %c0_45 = arith.constant 0 : index
    %29 = vector.load %arg12[%c2_43, %c0_44, %c0_45] : memref<18x18x4xbf16, #tpu.memory_space<vmem>>, vector<16x16x4xbf16>
    %30 = vector.shape_cast %29 : vector<16x16x4xbf16> to vector<256x4xbf16>
    %c0_46 = arith.constant 0 : index
    %c24 = arith.constant 24 : index
    %31 = vector.load %arg14[%c0_46, %c24] : memref<256x36xbf16, #tpu.memory_space<vmem>>, vector<256x4xbf16>
    tpu.vector_store %arg14[%c0_46, %c24], %30 {strides = array<i32>} : memref<256x36xbf16, #tpu.memory_space<vmem>>, vector<256x4xbf16>,
    %c2_47 = arith.constant 2 : index
    %c1_48 = arith.constant 1 : index
    %c0_49 = arith.constant 0 : index
    %32 = vector.load %arg12[%c2_47, %c1_48, %c0_49] : memref<18x18x4xbf16, #tpu.memory_space<vmem>>, vector<16x16x4xbf16>
    %33 = vector.shape_cast %32 : vector<16x16x4xbf16> to vector<256x4xbf16>
    %c0_50 = arith.constant 0 : index
    %c28 = arith.constant 28 : index
    %34 = vector.load %arg14[%c0_50, %c28] : memref<256x36xbf16, #tpu.memory_space<vmem>>, vector<256x4xbf16>
    tpu.vector_store %arg14[%c0_50, %c28], %33 {strides = array<i32>} : memref<256x36xbf16, #tpu.memory_space<vmem>>, vector<256x4xbf16>,
    %c2_51 = arith.constant 2 : index
    %c2_52 = arith.constant 2 : index
    %c0_53 = arith.constant 0 : index
    %35 = vector.load %arg12[%c2_51, %c2_52, %c0_53] : memref<18x18x4xbf16, #tpu.memory_space<vmem>>, vector<16x16x4xbf16>
    %36 = vector.shape_cast %35 : vector<16x16x4xbf16> to vector<256x4xbf16>
    %c0_54 = arith.constant 0 : index
    %c32 = arith.constant 32 : index
    %37 = vector.load %arg14[%c0_54, %c32] : memref<256x36xbf16, #tpu.memory_space<vmem>>, vector<256x4xbf16>
    tpu.vector_store %arg14[%c0_54, %c32], %36 {strides = array<i32>} : memref<256x36xbf16, #tpu.memory_space<vmem>>, vector<256x4xbf16>,
    %c0_55 = arith.constant 0 : index
    %c0_56 = arith.constant 0 : index
    %38 = vector.load %arg14[%c0_55, %c0_56] : memref<256x36xbf16, #tpu.memory_space<vmem>>, vector<256x36xbf16>
    %c0_57 = arith.constant 0 : index
    %c0_58 = arith.constant 0 : index
    %39 = vector.load %arg2[%c0_57, %c0_58] : memref<36x8xbf16, #tpu.memory_space<vmem>>, vector<36x8xbf16>
    %cst_59 = arith.constant dense<0.000000e+00> : vector<256x8xf32>
    %40 = tpu.matmul %38, %39, %cst_59 {dimension_numbers = #tpu.dot_dimension_numbers<[1], [0], [0], [1], [0, 0, 1, 1], [], []>} : vector<256x36xbf16>, vector<36x8xbf16>, vector<256x8xf32> -> vector<256x8xf32>
    %c0_60 = arith.constant 0 : index
    %c0_61 = arith.constant 0 : index
    %41 = vector.load %arg3[%c0_60, %c0_61] : memref<1x8xf32, #tpu.memory_space<vmem>>, vector<1x8xf32>
    %42 = vector.broadcast %41 : vector<1x8xf32> to vector<256x8xf32>
    %43 = arith.mulf %40, %42 : vector<256x8xf32>
    %c0_62 = arith.constant 0 : index
    %c0_63 = arith.constant 0 : index
    %44 = vector.load %arg4[%c0_62, %c0_63] : memref<1x8xf32, #tpu.memory_space<vmem>>, vector<1x8xf32>
    %45 = vector.broadcast %44 : vector<1x8xf32> to vector<256x8xf32>
    %46 = arith.addf %43, %45 : vector<256x8xf32>
    %cst_64 = arith.constant 0.000000e+00 : f32
    %47 = vector.broadcast %cst_64 : f32 to vector<256x8xf32>
    %48 = arith.maximumf %46, %47 : vector<256x8xf32>
    %49 = vector.shape_cast %48 : vector<256x8xf32> to vector<16x16x8xf32>
    %cst_65 = arith.constant 0.000000e+00 : bf16
    %50 = vector.broadcast %cst_65 : bf16 to vector<1x18x8xbf16>
    %c0_66 = arith.constant 0 : index
    %c0_67 = arith.constant 0 : index
    %c0_68 = arith.constant 0 : index
    %51 = vector.load %arg13[%c0_66, %c0_67, %c0_68] : memref<18x18x8xbf16, #tpu.memory_space<vmem>>, vector<1x18x8xbf16>
    tpu.vector_store %arg13[%c0_66, %c0_67, %c0_68], %50 {strides = array<i32>} : memref<18x18x8xbf16, #tpu.memory_space<vmem>>, vector<1x18x8xbf16>,
    %cst_69 = arith.constant 0.000000e+00 : bf16
    %52 = vector.broadcast %cst_69 : bf16 to vector<1x18x8xbf16>
    %c17_70 = arith.constant 17 : index
    %c0_71 = arith.constant 0 : index
    %c0_72 = arith.constant 0 : index
    %53 = vector.load %arg13[%c17_70, %c0_71, %c0_72] : memref<18x18x8xbf16, #tpu.memory_space<vmem>>, vector<1x18x8xbf16>
    tpu.vector_store %arg13[%c17_70, %c0_71, %c0_72], %52 {strides = array<i32>} : memref<18x18x8xbf16, #tpu.memory_space<vmem>>, vector<1x18x8xbf16>,
    %cst_73 = arith.constant 0.000000e+00 : bf16
    %54 = vector.broadcast %cst_73 : bf16 to vector<18x1x8xbf16>
    %c0_74 = arith.constant 0 : index
    %c0_75 = arith.constant 0 : index
    %c0_76 = arith.constant 0 : index
    %55 = vector.load %arg13[%c0_74, %c0_75, %c0_76] : memref<18x18x8xbf16, #tpu.memory_space<vmem>>, vector<18x1x8xbf16>
    tpu.vector_store %arg13[%c0_74, %c0_75, %c0_76], %54 {strides = array<i32>} : memref<18x18x8xbf16, #tpu.memory_space<vmem>>, vector<18x1x8xbf16>,
    %cst_77 = arith.constant 0.000000e+00 : bf16
    %56 = vector.broadcast %cst_77 : bf16 to vector<18x1x8xbf16>
    %c0_78 = arith.constant 0 : index
    %c17_79 = arith.constant 17 : index
    %c0_80 = arith.constant 0 : index
    %57 = vector.load %arg13[%c0_78, %c17_79, %c0_80] : memref<18x18x8xbf16, #tpu.memory_space<vmem>>, vector<18x1x8xbf16>
    tpu.vector_store %arg13[%c0_78, %c17_79, %c0_80], %56 {strides = array<i32>} : memref<18x18x8xbf16, #tpu.memory_space<vmem>>, vector<18x1x8xbf16>,
    %58 = arith.truncf %49 : vector<16x16x8xf32> to vector<16x16x8xbf16>
    %c1_81 = arith.constant 1 : index
    %c1_82 = arith.constant 1 : index
    %c0_83 = arith.constant 0 : index
    %59 = vector.load %arg13[%c1_81, %c1_82, %c0_83] : memref<18x18x8xbf16, #tpu.memory_space<vmem>>, vector<16x16x8xbf16>
    tpu.vector_store %arg13[%c1_81, %c1_82, %c0_83], %58 {strides = array<i32>} : memref<18x18x8xbf16, #tpu.memory_space<vmem>>, vector<16x16x8xbf16>,
    %c0_84 = arith.constant 0 : index
    %c0_85 = arith.constant 0 : index
    %c0_86 = arith.constant 0 : index
    %60 = vector.load %arg13[%c0_84, %c0_85, %c0_86] : memref<18x18x8xbf16, #tpu.memory_space<vmem>>, vector<16x16x8xbf16>
    %61 = vector.shape_cast %60 : vector<16x16x8xbf16> to vector<256x8xbf16>
    %c0_87 = arith.constant 0 : index
    %c0_88 = arith.constant 0 : index
    %62 = vector.load %arg15[%c0_87, %c0_88] : memref<256x72xbf16, #tpu.memory_space<vmem>>, vector<256x8xbf16>
    tpu.vector_store %arg15[%c0_87, %c0_88], %61 {strides = array<i32>} : memref<256x72xbf16, #tpu.memory_space<vmem>>, vector<256x8xbf16>,
    %c0_89 = arith.constant 0 : index
    %c1_90 = arith.constant 1 : index
    %c0_91 = arith.constant 0 : index
    %63 = vector.load %arg13[%c0_89, %c1_90, %c0_91] : memref<18x18x8xbf16, #tpu.memory_space<vmem>>, vector<16x16x8xbf16>
    %64 = vector.shape_cast %63 : vector<16x16x8xbf16> to vector<256x8xbf16>
    %c0_92 = arith.constant 0 : index
    %c8_93 = arith.constant 8 : index
    %65 = vector.load %arg15[%c0_92, %c8_93] : memref<256x72xbf16, #tpu.memory_space<vmem>>, vector<256x8xbf16>
    tpu.vector_store %arg15[%c0_92, %c8_93], %64 {strides = array<i32>} : memref<256x72xbf16, #tpu.memory_space<vmem>>, vector<256x8xbf16>,
    %c0_94 = arith.constant 0 : index
    %c2_95 = arith.constant 2 : index
    %c0_96 = arith.constant 0 : index
    %66 = vector.load %arg13[%c0_94, %c2_95, %c0_96] : memref<18x18x8xbf16, #tpu.memory_space<vmem>>, vector<16x16x8xbf16>
    %67 = vector.shape_cast %66 : vector<16x16x8xbf16> to vector<256x8xbf16>
    %c0_97 = arith.constant 0 : index
    %c16_98 = arith.constant 16 : index
    %68 = vector.load %arg15[%c0_97, %c16_98] : memref<256x72xbf16, #tpu.memory_space<vmem>>, vector<256x8xbf16>
    tpu.vector_store %arg15[%c0_97, %c16_98], %67 {strides = array<i32>} : memref<256x72xbf16, #tpu.memory_space<vmem>>, vector<256x8xbf16>,
    %c1_99 = arith.constant 1 : index
    %c0_100 = arith.constant 0 : index
    %c0_101 = arith.constant 0 : index
    %69 = vector.load %arg13[%c1_99, %c0_100, %c0_101] : memref<18x18x8xbf16, #tpu.memory_space<vmem>>, vector<16x16x8xbf16>
    %70 = vector.shape_cast %69 : vector<16x16x8xbf16> to vector<256x8xbf16>
    %c0_102 = arith.constant 0 : index
    %c24_103 = arith.constant 24 : index
    %71 = vector.load %arg15[%c0_102, %c24_103] : memref<256x72xbf16, #tpu.memory_space<vmem>>, vector<256x8xbf16>
    tpu.vector_store %arg15[%c0_102, %c24_103], %70 {strides = array<i32>} : memref<256x72xbf16, #tpu.memory_space<vmem>>, vector<256x8xbf16>,
    %c1_104 = arith.constant 1 : index
    %c1_105 = arith.constant 1 : index
    %c0_106 = arith.constant 0 : index
    %72 = vector.load %arg13[%c1_104, %c1_105, %c0_106] : memref<18x18x8xbf16, #tpu.memory_space<vmem>>, vector<16x16x8xbf16>
    %73 = vector.shape_cast %72 : vector<16x16x8xbf16> to vector<256x8xbf16>
    %c0_107 = arith.constant 0 : index
    %c32_108 = arith.constant 32 : index
    %74 = vector.load %arg15[%c0_107, %c32_108] : memref<256x72xbf16, #tpu.memory_space<vmem>>, vector<256x8xbf16>
    tpu.vector_store %arg15[%c0_107, %c32_108], %73 {strides = array<i32>} : memref<256x72xbf16, #tpu.memory_space<vmem>>, vector<256x8xbf16>,
    %c1_109 = arith.constant 1 : index
    %c2_110 = arith.constant 2 : index
    %c0_111 = arith.constant 0 : index
    %75 = vector.load %arg13[%c1_109, %c2_110, %c0_111] : memref<18x18x8xbf16, #tpu.memory_space<vmem>>, vector<16x16x8xbf16>
    %76 = vector.shape_cast %75 : vector<16x16x8xbf16> to vector<256x8xbf16>
    %c0_112 = arith.constant 0 : index
    %c40 = arith.constant 40 : index
    %77 = vector.load %arg15[%c0_112, %c40] : memref<256x72xbf16, #tpu.memory_space<vmem>>, vector<256x8xbf16>
    tpu.vector_store %arg15[%c0_112, %c40], %76 {strides = array<i32>} : memref<256x72xbf16, #tpu.memory_space<vmem>>, vector<256x8xbf16>,
    %c2_113 = arith.constant 2 : index
    %c0_114 = arith.constant 0 : index
    %c0_115 = arith.constant 0 : index
    %78 = vector.load %arg13[%c2_113, %c0_114, %c0_115] : memref<18x18x8xbf16, #tpu.memory_space<vmem>>, vector<16x16x8xbf16>
    %79 = vector.shape_cast %78 : vector<16x16x8xbf16> to vector<256x8xbf16>
    %c0_116 = arith.constant 0 : index
    %c48 = arith.constant 48 : index
    %80 = vector.load %arg15[%c0_116, %c48] : memref<256x72xbf16, #tpu.memory_space<vmem>>, vector<256x8xbf16>
    tpu.vector_store %arg15[%c0_116, %c48], %79 {strides = array<i32>} : memref<256x72xbf16, #tpu.memory_space<vmem>>, vector<256x8xbf16>,
    %c2_117 = arith.constant 2 : index
    %c1_118 = arith.constant 1 : index
    %c0_119 = arith.constant 0 : index
    %81 = vector.load %arg13[%c2_117, %c1_118, %c0_119] : memref<18x18x8xbf16, #tpu.memory_space<vmem>>, vector<16x16x8xbf16>
    %82 = vector.shape_cast %81 : vector<16x16x8xbf16> to vector<256x8xbf16>
    %c0_120 = arith.constant 0 : index
    %c56 = arith.constant 56 : index
    %83 = vector.load %arg15[%c0_120, %c56] : memref<256x72xbf16, #tpu.memory_space<vmem>>, vector<256x8xbf16>
    tpu.vector_store %arg15[%c0_120, %c56], %82 {strides = array<i32>} : memref<256x72xbf16, #tpu.memory_space<vmem>>, vector<256x8xbf16>,
    %c2_121 = arith.constant 2 : index
    %c2_122 = arith.constant 2 : index
    %c0_123 = arith.constant 0 : index
    %84 = vector.load %arg13[%c2_121, %c2_122, %c0_123] : memref<18x18x8xbf16, #tpu.memory_space<vmem>>, vector<16x16x8xbf16>
    %85 = vector.shape_cast %84 : vector<16x16x8xbf16> to vector<256x8xbf16>
    %c0_124 = arith.constant 0 : index
    %c64 = arith.constant 64 : index
    %86 = vector.load %arg15[%c0_124, %c64] : memref<256x72xbf16, #tpu.memory_space<vmem>>, vector<256x8xbf16>
    tpu.vector_store %arg15[%c0_124, %c64], %85 {strides = array<i32>} : memref<256x72xbf16, #tpu.memory_space<vmem>>, vector<256x8xbf16>,
    %c0_125 = arith.constant 0 : index
    %c0_126 = arith.constant 0 : index
    %87 = vector.load %arg15[%c0_125, %c0_126] : memref<256x72xbf16, #tpu.memory_space<vmem>>, vector<256x72xbf16>
    %c0_127 = arith.constant 0 : index
    %c0_128 = arith.constant 0 : index
    %88 = vector.load %arg5[%c0_127, %c0_128] : memref<72x8xbf16, #tpu.memory_space<vmem>>, vector<72x8xbf16>
    %cst_129 = arith.constant dense<0.000000e+00> : vector<256x8xf32>
    %89 = tpu.matmul %87, %88, %cst_129 {dimension_numbers = #tpu.dot_dimension_numbers<[1], [0], [0], [1], [0, 0, 1, 1], [], []>} : vector<256x72xbf16>, vector<72x8xbf16>, vector<256x8xf32> -> vector<256x8xf32>
    %c0_130 = arith.constant 0 : index
    %c0_131 = arith.constant 0 : index
    %90 = vector.load %arg6[%c0_130, %c0_131] : memref<1x8xf32, #tpu.memory_space<vmem>>, vector<1x8xf32>
    %91 = vector.broadcast %90 : vector<1x8xf32> to vector<256x8xf32>
    %92 = arith.mulf %89, %91 : vector<256x8xf32>
    %c0_132 = arith.constant 0 : index
    %c0_133 = arith.constant 0 : index
    %93 = vector.load %arg7[%c0_132, %c0_133] : memref<1x8xf32, #tpu.memory_space<vmem>>, vector<1x8xf32>
    %94 = vector.broadcast %93 : vector<1x8xf32> to vector<256x8xf32>
    %95 = arith.addf %92, %94 : vector<256x8xf32>
    %96 = vector.shape_cast %1 : vector<16x16x4xbf16> to vector<256x4xbf16>
    %c0_134 = arith.constant 0 : index
    %c0_135 = arith.constant 0 : index
    %97 = vector.load %arg8[%c0_134, %c0_135] : memref<4x8xbf16, #tpu.memory_space<vmem>>, vector<4x8xbf16>
    %cst_136 = arith.constant dense<0.000000e+00> : vector<256x8xf32>
    %98 = tpu.matmul %96, %97, %cst_136 {dimension_numbers = #tpu.dot_dimension_numbers<[1], [0], [0], [1], [0, 0, 1, 1], [], []>} : vector<256x4xbf16>, vector<4x8xbf16>, vector<256x8xf32> -> vector<256x8xf32>
    %c0_137 = arith.constant 0 : index
    %c0_138 = arith.constant 0 : index
    %99 = vector.load %arg9[%c0_137, %c0_138] : memref<1x8xf32, #tpu.memory_space<vmem>>, vector<1x8xf32>
    %100 = vector.broadcast %99 : vector<1x8xf32> to vector<256x8xf32>
    %101 = arith.mulf %98, %100 : vector<256x8xf32>
    %c0_139 = arith.constant 0 : index
    %c0_140 = arith.constant 0 : index
    %102 = vector.load %arg10[%c0_139, %c0_140] : memref<1x8xf32, #tpu.memory_space<vmem>>, vector<1x8xf32>
    %103 = vector.broadcast %102 : vector<1x8xf32> to vector<256x8xf32>
    %104 = arith.addf %101, %103 : vector<256x8xf32>
    %105 = arith.addf %95, %104 : vector<256x8xf32>
    %cst_141 = arith.constant 0.000000e+00 : f32
    %106 = vector.broadcast %cst_141 : f32 to vector<256x8xf32>
    %107 = arith.maximumf %105, %106 : vector<256x8xf32>
    %108 = vector.shape_cast %107 : vector<256x8xf32> to vector<16x16x8xf32>
    %c0_142 = arith.constant 0 : index
    %c0_143 = arith.constant 0 : index
    %c0_144 = arith.constant 0 : index
    %c0_145 = arith.constant 0 : index
    %109 = vector.load %arg11[%c0_142, %c0_143, %c0_144, %c0_145] : memref<1x16x16x8xf32, #tpu.memory_space<vmem>>, vector<1x16x16x8xf32>
    %110 = vector.shape_cast %109 : vector<1x16x16x8xf32> to vector<16x16x8xf32>
    %111 = vector.shape_cast %108 : vector<16x16x8xf32> to vector<1x16x16x8xf32>
    tpu.vector_store %arg11[%c0_142, %c0_143, %c0_144, %c0_145], %111 {strides = array<i32>} : memref<1x16x16x8xf32, #tpu.memory_space<vmem>>, vector<1x16x16x8xf32>,
    return
  }
  func.func @transform_0(%arg0: i32) -> (i32, i32, i32, i32) {
    %c0_i32 = arith.constant 0 : i32
    %c0_i32_0 = arith.constant 0 : i32
    %c0_i32_1 = arith.constant 0 : i32
    %c0_i32_2 = arith.constant 0 : i32
    return %arg0, %c0_i32, %c0_i32_0, %c0_i32_1 : i32, i32, i32, i32
  }
  func.func @transform_1(%arg0: i32) -> (i32, i32) {
    %c0_i32 = arith.constant 0 : i32
    %c0_i32_0 = arith.constant 0 : i32
    %c0_i32_1 = arith.constant 0 : i32
    return %c0_i32, %c0_i32_0 : i32, i32
  }
  func.func @transform_2(%arg0: i32) -> (i32, i32) {
    %c0_i32 = arith.constant 0 : i32
    %c0_i32_0 = arith.constant 0 : i32
    %c0_i32_1 = arith.constant 0 : i32
    return %c0_i32, %c0_i32_0 : i32, i32
  }
  func.func @transform_3(%arg0: i32) -> (i32, i32) {
    %c0_i32 = arith.constant 0 : i32
    %c0_i32_0 = arith.constant 0 : i32
    %c0_i32_1 = arith.constant 0 : i32
    return %c0_i32, %c0_i32_0 : i32, i32
  }
  func.func @transform_4(%arg0: i32) -> (i32, i32) {
    %c0_i32 = arith.constant 0 : i32
    %c0_i32_0 = arith.constant 0 : i32
    %c0_i32_1 = arith.constant 0 : i32
    return %c0_i32, %c0_i32_0 : i32, i32
  }
  func.func @transform_5(%arg0: i32) -> (i32, i32) {
    %c0_i32 = arith.constant 0 : i32
    %c0_i32_0 = arith.constant 0 : i32
    %c0_i32_1 = arith.constant 0 : i32
    return %c0_i32, %c0_i32_0 : i32, i32
  }
  func.func @transform_6(%arg0: i32) -> (i32, i32) {
    %c0_i32 = arith.constant 0 : i32
    %c0_i32_0 = arith.constant 0 : i32
    %c0_i32_1 = arith.constant 0 : i32
    return %c0_i32, %c0_i32_0 : i32, i32
  }
  func.func @transform_7(%arg0: i32) -> (i32, i32) {
    %c0_i32 = arith.constant 0 : i32
    %c0_i32_0 = arith.constant 0 : i32
    %c0_i32_1 = arith.constant 0 : i32
    return %c0_i32, %c0_i32_0 : i32, i32
  }
  func.func @transform_8(%arg0: i32) -> (i32, i32) {
    %c0_i32 = arith.constant 0 : i32
    %c0_i32_0 = arith.constant 0 : i32
    %c0_i32_1 = arith.constant 0 : i32
    return %c0_i32, %c0_i32_0 : i32, i32
  }
  func.func @transform_9(%arg0: i32) -> (i32, i32) {
    %c0_i32 = arith.constant 0 : i32
    %c0_i32_0 = arith.constant 0 : i32
    %c0_i32_1 = arith.constant 0 : i32
    return %c0_i32, %c0_i32_0 : i32, i32
  }
  func.func @transform_10(%arg0: i32) -> (i32, i32, i32, i32) {
    %c0_i32 = arith.constant 0 : i32
    %c0_i32_0 = arith.constant 0 : i32
    %c0_i32_1 = arith.constant 0 : i32
    %c0_i32_2 = arith.constant 0 : i32
    return %arg0, %c0_i32, %c0_i32_0, %c0_i32_1 : i32, i32, i32, i32
  }
}

</mosaic_0001>

<llo_original>
// kernel: residual_block_forward.1
$region0: #{residual_block_forward.1}
  #allocation0 [shape = 'u32[]', space=smem, size = 0x4, offset = 0x4, fixed_abs, tag = 'smem constant byte address 0x4 - core index']
  #allocation1 [shape = 'u32[144,128]{1,0:T(1,128)}', space=vmem, size = 0x12000, scoped, tag = 'internal scratch']
  #allocation2 [shape = 'bf16[18,18,4]{2,1,0:T(8,128)(2,1)}', space=vmem, size = 0x1b000, scoped, tag = 'scratch operand']
  #allocation3 [shape = 'bf16[18,18,8]{2,1,0:T(8,128)(2,1)}', space=vmem, size = 0x1b000, scoped, tag = 'scratch operand']
  #allocation4 [shape = 'bf16[256,36]{1,0:T(8,128)(2,1)}', space=vmem, size = 0x10000, scoped, tag = 'scratch operand']
  #allocation5 [shape = 'bf16[256,72]{1,0:T(8,128)(2,1)}', space=vmem, size = 0x10000, scoped, tag = 'scratch operand']
  %s0 = inlined_call_operand.vmem [shape: bf16[2,16,16,4], index: 0, kind: input, shape index: {}]
  %s1 = inlined_call_operand.vmem [shape: bf16[36,8], index: 1, kind: input, shape index: {}]
  %s2 = inlined_call_operand.vmem [shape: f32[1,8], index: 2, kind: input, shape index: {}]
  %s3 = inlined_call_operand.vmem [shape: f32[1,8], index: 3, kind: input, shape index: {}]
  %s4 = inlined_call_operand.vmem [shape: bf16[72,8], index: 4, kind: input, shape index: {}]
  %s5 = inlined_call_operand.vmem [shape: f32[1,8], index: 5, kind: input, shape index: {}]
  %s6 = inlined_call_operand.vmem [shape: f32[1,8], index: 6, kind: input, shape index: {}]
  %s7 = inlined_call_operand.vmem [shape: bf16[4,8], index: 7, kind: input, shape index: {}]
  %s8 = inlined_call_operand.vmem [shape: f32[1,8], index: 8, kind: input, shape index: {}]
  %s9 = inlined_call_operand.vmem [shape: f32[1,8], index: 9, kind: input, shape index: {}]
  %s10 = inlined_call_operand.vmem [shape: f32[2,16,16,8], index: 10, kind: output, shape index: {}]
  %s11 = sld [smem:[#allocation0]]
  $region73: #{residual_block_forward.1} parent=0
    _
  %s13 = ssub.s32 1, %s11
  %s14 = scalar_select 0, %s13, %s11
  loop: start=0, step=1, limit=4
  $region2: #{residual_block_forward.1} parent=0 // loop_pre_header
    _
  $region3: #{residual_block_forward.1} parent=0 // loop_header
    %s16 = sphi 0, %s20
    %p17 = scmp.ge.s32.totalorder %s16, 4
    %s26 = sphi 0, %s28
    %s29 = sphi 0, %s26
    %s30 = sphi 0, %s29
    %s46 = sphi 0, %s30
    %s50 = sphi 0, %s50
    %s52 = sphi 0, %s50
    %s53 = sphi 0, %s52
    %s67 = sphi 0, %s53
    %s71 = sphi 0, %s71
    %s73 = sphi 0, %s71
    %s74 = sphi 0, %s73
    %s88 = sphi 0, %s74
    %s92 = sphi 0, %s92
    %s94 = sphi 0, %s92
    %s95 = sphi 0, %s94
    %s109 = sphi 0, %s95
    %s113 = sphi 0, %s113
    %s115 = sphi 0, %s113
    %s116 = sphi 0, %s115
    %s130 = sphi 0, %s116
    %s134 = sphi 0, %s134
    %s136 = sphi 0, %s134
    %s137 = sphi 0, %s136
    %s151 = sphi 0, %s137
    %s155 = sphi 0, %s155
    %s157 = sphi 0, %s155
    %s158 = sphi 0, %s157
    %s172 = sphi 0, %s158
    %s176 = sphi 0, %s176
    %s178 = sphi 0, %s176
    %s179 = sphi 0, %s178
    %s193 = sphi 0, %s179
    %s197 = sphi 0, %s197
    %s199 = sphi 0, %s197
    %s200 = sphi 0, %s199
    %s214 = sphi 0, %s200
    %s218 = sphi 0, %s218
    %s220 = sphi 0, %s218
    %s221 = sphi 0, %s220
    %s235 = sphi 0, %s221
    %s241 = sphi 0, %s243
    %s244 = sphi 0, %s241
    %s245 = sphi 0, %s244
    %s261 = sphi 0, %s245
  $region4: #{residual_block_forward.1} parent=0 // loop_header_branch
    %19 = sbr.rel (%p17) target = $region8
  $region5: #{residual_block_forward.1} parent=0 // loop_body
    %s21 = ssub.s32 %s16, 1
    %s22 = ssub.s32 %s16, 2
    %s23 = sadd.s32 %s16, 1
    %s24 = ssub.s32 %s16, %s23
    %p25 = scmp.eq.s32.totalorder %s24, 0
    %s27 = sadd.s32 %s26, 1
    %s28 = scalar_select %p25, %s26, %s27
    %p31 = pneg %p25
    %p32 = scmp.eq.s32.totalorder %s16, 1
    %p33 = por %p31, %p32
    %p34 = scmp.ne.s32.totalorder %s26, %s29
    %p35 = scmp.eq.s32.totalorder %s16, 0
    %p36 = por %p34, %p35
    %p37 = scmp.ne.s32.totalorder %s26, %s29
    %p38 = scmp.eq.s32.totalorder %s21, 1
    %p39 = por %p37, %p38
    %p40 = scmp.ne.s32.totalorder %s29, %s30
    %p41 = scmp.eq.s32.totalorder %s21, 0
    %p42 = por %p40, %p41
    %p43 = scmp.ne.s32.totalorder %s29, %s30
    %p44 = scmp.eq.s32.totalorder %s22, 1
    %p45 = por %p43, %p44
    %p47 = scmp.ne.s32.totalorder %s30, %s46
    %p48 = scmp.eq.s32.totalorder %s22, 0
    %p49 = por %p47, %p48
    %s51 = sadd.s32 %s50, 1
    %p54 = scmp.eq.s32.totalorder %s16, 1
    %p55 = scmp.ne.s32.totalorder %s50, %s52
    %p56 = scmp.eq.s32.totalorder %s16, 0
    %p57 = por %p55, %p56
    %p58 = scmp.ne.s32.totalorder %s50, %s52
    %p59 = scmp.eq.s32.totalorder %s21, 1
    %p60 = por %p58, %p59
    %p61 = scmp.ne.s32.totalorder %s52, %s53
    %p62 = scmp.eq.s32.totalorder %s21, 0
    %p63 = por %p61, %p62
    %p64 = scmp.ne.s32.totalorder %s52, %s53
    %p65 = scmp.eq.s32.totalorder %s22, 1
    %p66 = por %p64, %p65
    %p68 = scmp.ne.s32.totalorder %s53, %s67
    %p69 = scmp.eq.s32.totalorder %s22, 0
    %p70 = por %p68, %p69
    %s72 = sadd.s32 %s71, 1
    %p75 = scmp.eq.s32.totalorder %s16, 1
    %p76 = scmp.ne.s32.totalorder %s71, %s73
    %p77 = scmp.eq.s32.totalorder %s16, 0
    %p78 = por %p76, %p77
    %p79 = scmp.ne.s32.totalorder %s71, %s73
    %p80 = scmp.eq.s32.totalorder %s21, 1
    %p81 = por %p79, %p80
    %p82 = scmp.ne.s32.totalorder %s73, %s74
    %p83 = scmp.eq.s32.totalorder %s21, 0
    %p84 = por %p82, %p83
    %p85 = scmp.ne.s32.totalorder %s73, %s74
    %p86 = scmp.eq.s32.totalorder %s22, 1
    %p87 = por %p85, %p86
    %p89 = scmp.ne.s32.totalorder %s74, %s88
    %p90 = scmp.eq.s32.totalorder %s22, 0
    %p91 = por %p89, %p90
    %s93 = sadd.s32 %s92, 1
    %p96 = scmp.eq.s32.totalorder %s16, 1
    %p97 = scmp.ne.s32.totalorder %s92, %s94
    %p98 = scmp.eq.s32.totalorder %s16, 0
    %p99 = por %p97, %p98
    %p100 = scmp.ne.s32.totalorder %s92, %s94
    %p101 = scmp.eq.s32.totalorder %s21, 1
    %p102 = por %p100, %p101
    %p103 = scmp.ne.s32.totalorder %s94, %s95
    %p104 = scmp.eq.s32.totalorder %s21, 0
    %p105 = por %p103, %p104
    %p106 = scmp.ne.s32.totalorder %s94, %s95
    %p107 = scmp.eq.s32.totalorder %s22, 1
    %p108 = por %p106, %p107
    %p110 = scmp.ne.s32.totalorder %s95, %s109
    %p111 = scmp.eq.s32.totalorder %s22, 0
    %p112 = por %p110, %p111
    %s114 = sadd.s32 %s113, 1
    %p117 = scmp.eq.s32.totalorder %s16, 1
    %p118 = scmp.ne.s32.totalorder %s113, %s115
    %p119 = scmp.eq.s32.totalorder %s16, 0
    %p120 = por %p118, %p119
    %p121 = scmp.ne.s32.totalorder %s113, %s115
    %p122 = scmp.eq.s32.totalorder %s21, 1
    %p123 = por %p121, %p122
    %p124 = scmp.ne.s32.totalorder %s115, %s116
    %p125 = scmp.eq.s32.totalorder %s21, 0
    %p126 = por %p124, %p125
    %p127 = scmp.ne.s32.totalorder %s115, %s116
    %p128 = scmp.eq.s32.totalorder %s22, 1
    %p129 = por %p127, %p128
    %p131 = scmp.ne.s32.totalorder %s116, %s130
    %p132 = scmp.eq.s32.totalorder %s22, 0
    %p133 = por %p131, %p132
    %s135 = sadd.s32 %s134, 1
    %p138 = scmp.eq.s32.totalorder %s16, 1
    %p139 = scmp.ne.s32.totalorder %s134, %s136
    %p140 = scmp.eq.s32.totalorder %s16, 0
    %p141 = por %p139, %p140
    %p142 = scmp.ne.s32.totalorder %s134, %s136
    %p143 = scmp.eq.s32.totalorder %s21, 1
    %p144 = por %p142, %p143
    %p145 = scmp.ne.s32.totalorder %s136, %s137
    %p146 = scmp.eq.s32.totalorder %s21, 0
    %p147 = por %p145, %p146
    %p148 = scmp.ne.s32.totalorder %s136, %s137
    %p149 = scmp.eq.s32.totalorder %s22, 1
    %p150 = por %p148, %p149
    %p152 = scmp.ne.s32.totalorder %s137, %s151
    %p153 = scmp.eq.s32.totalorder %s22, 0
    %p154 = por %p152, %p153
    %s156 = sadd.s32 %s155, 1
    %p159 = scmp.eq.s32.totalorder %s16, 1
    %p160 = scmp.ne.s32.totalorder %s155, %s157
    %p161 = scmp.eq.s32.totalorder %s16, 0
    %p162 = por %p160, %p161
    %p163 = scmp.ne.s32.totalorder %s155, %s157
    %p164 = scmp.eq.s32.totalorder %s21, 1
    %p165 = por %p163, %p164
    %p166 = scmp.ne.s32.totalorder %s157, %s158
    %p167 = scmp.eq.s32.totalorder %s21, 0
    %p168 = por %p166, %p167
    %p169 = scmp.ne.s32.totalorder %s157, %s158
    %p170 = scmp.eq.s32.totalorder %s22, 1
    %p171 = por %p169, %p170
    %p173 = scmp.ne.s32.totalorder %s158, %s172
    %p174 = scmp.eq.s32.totalorder %s22, 0
    %p175 = por %p173, %p174
    %s177 = sadd.s32 %s176, 1
    %p180 = scmp.eq.s32.totalorder %s16, 1
    %p181 = scmp.ne.s32.totalorder %s176, %s178
    %p182 = scmp.eq.s32.totalorder %s16, 0
    %p183 = por %p181, %p182
    %p184 = scmp.ne.s32.totalorder %s176, %s178
    %p185 = scmp.eq.s32.totalorder %s21, 1
    %p186 = por %p184, %p185
    %p187 = scmp.ne.s32.totalorder %s178, %s179
    %p188 = scmp.eq.s32.totalorder %s21, 0
    %p189 = por %p187, %p188
    %p190 = scmp.ne.s32.totalorder %s178, %s179
    %p191 = scmp.eq.s32.totalorder %s22, 1
    %p192 = por %p190, %p191
    %p194 = scmp.ne.s32.totalorder %s179, %s193
    %p195 = scmp.eq.s32.totalorder %s22, 0
    %p196 = por %p194, %p195
    %s198 = sadd.s32 %s197, 1
    %p201 = scmp.eq.s32.totalorder %s16, 1
    %p202 = scmp.ne.s32.totalorder %s197, %s199
    %p203 = scmp.eq.s32.totalorder %s16, 0
    %p204 = por %p202, %p203
    %p205 = scmp.ne.s32.totalorder %s197, %s199
    %p206 = scmp.eq.s32.totalorder %s21, 1
    %p207 = por %p205, %p206
    %p208 = scmp.ne.s32.totalorder %s199, %s200
    %p209 = scmp.eq.s32.totalorder %s21, 0
    %p210 = por %p208, %p209
    %p211 = scmp.ne.s32.totalorder %s199, %s200
    %p212 = scmp.eq.s32.totalorder %s22, 1
    %p213 = por %p211, %p212
    %p215 = scmp.ne.s32.totalorder %s200, %s214
    %p216 = scmp.eq.s32.totalorder %s22, 0
    %p217 = por %p215, %p216
    %s219 = sadd.s32 %s218, 1
    %p222 = scmp.eq.s32.totalorder %s16, 1
    %p223 = scmp.ne.s32.totalorder %s218, %s220
    %p224 = scmp.eq.s32.totalorder %s16, 0
    %p225 = por %p223, %p224
    %p226 = scmp.ne.s32.totalorder %s218, %s220
    %p227 = scmp.eq.s32.totalorder %s21, 1
    %p228 = por %p226, %p227
    %p229 = scmp.ne.s32.totalorder %s220, %s221
    %p230 = scmp.eq.s32.totalorder %s21, 0
    %p231 = por %p229, %p230
    %p232 = scmp.ne.s32.totalorder %s220, %s221
    %p233 = scmp.eq.s32.totalorder %s22, 1
    %p234 = por %p232, %p233
    %p236 = scmp.ne.s32.totalorder %s221, %s235
    %p237 = scmp.eq.s32.totalorder %s22, 0
    %p238 = por %p236, %p237
    %s239 = ssub.s32 %s16, %s23
    %p240 = scmp.eq.s32.totalorder %s239, 0
    %s242 = sadd.s32 %s241, 1
    %s243 = scalar_select %p240, %s241, %s242
    %p246 = pneg %p240
    %p247 = scmp.eq.s32.totalorder %s16, 1
    %p248 = por %p246, %p247
    %p249 = scmp.ne.s32.totalorder %s241, %s244
    %p250 = scmp.eq.s32.totalorder %s16, 0
    %p251 = por %p249, %p250
    %p252 = scmp.ne.s32.totalorder %s241, %s244
    %p253 = scmp.eq.s32.totalorder %s21, 1
    %p254 = por %p252, %p253
    %p255 = scmp.ne.s32.totalorder %s244, %s245
    %p256 = scmp.eq.s32.totalorder %s21, 0
    %p257 = por %p255, %p256
    %p258 = scmp.ne.s32.totalorder %s244, %s245
    %p259 = scmp.eq.s32.totalorder %s22, 1
    %p260 = por %p258, %p259
    %p262 = scmp.ne.s32.totalorder %s245, %s261
    %p263 = scmp.eq.s32.totalorder %s22, 0
    %p264 = por %p262, %p263
    %p265 = scmp.le.s32.totalorder 1, %s16
    %p266 = scmp.lt.s32.totalorder %s16, 3
    %p267 = pnand %p265, %p266
    %p268 = pneg %p267
    // Predicated region
    $region9: #{residual_block_forward.1} parent=5 // pred_check
      _
    $region10: #{residual_block_forward.1} parent=5 // pred_check_branch
      %270 = sbr.rel (%p267) target = $region12
    $region11: #{residual_block_forward.1} parent=5 // pred_region
      %s271 = ssub.s32 %s16, 1
      // Predicated region
      $region13: #{residual_block_forward.1} parent=11 // pred_check
        %p272 = pneg %p63
      $region14: #{residual_block_forward.1} parent=11 // pred_check_branch
        %274 = sbr.rel (%p272) target = $region16
      $region15: #{residual_block_forward.1} parent=11 // pred_region
        _
      $region16: #{residual_block_forward.1} parent=11 // pred_fallthru
        _
      // Predicated region
      $region17: #{residual_block_forward.1} parent=11 // pred_check
        %p275 = pneg %p84
      $region18: #{residual_block_forward.1} parent=11 // pred_check_branch
        %277 = sbr.rel (%p275) target = $region20
      $region19: #{residual_block_forward.1} parent=11 // pred_region
        _
      $region20: #{residual_block_forward.1} parent=11 // pred_fallthru
        _
      // Predicated region
      $region21: #{residual_block_forward.1} parent=11 // pred_check
        %p278 = pneg %p105
      $region22: #{residual_block_forward.1} parent=11 // pred_check_branch
        %280 = sbr.rel (%p278) target = $region24
      $region23: #{residual_block_forward.1} parent=11 // pred_region
        _
      $region24: #{residual_block_forward.1} parent=11 // pred_fallthru
        _
      // Predicated region
      $region25: #{residual_block_forward.1} parent=11 // pred_check
        %p281 = pneg %p126
      $region26: #{residual_block_forward.1} parent=11 // pred_check_branch
        %283 = sbr.rel (%p281) target = $region28
      $region27: #{residual_block_forward.1} parent=11 // pred_region
        _
      $region28: #{residual_block_forward.1} parent=11 // pred_fallthru
        _
      // Predicated region
      $region29: #{residual_block_forward.1} parent=11 // pred_check
        %p284 = pneg %p147
      $region30: #{residual_block_forward.1} parent=11 // pred_check_branch
        %286 = sbr.rel (%p284) target = $region32
      $region31: #{residual_block_forward.1} parent=11 // pred_region
        _
      $region32: #{residual_block_forward.1} parent=11 // pred_fallthru
        _
      // Predicated region
      $region33: #{residual_block_forward.1} parent=11 // pred_check
        %p287 = pneg %p168
      $region34: #{residual_block_forward.1} parent=11 // pred_check_branch
        %289 = sbr.rel (%p287) target = $region36
      $region35: #{residual_block_forward.1} parent=11 // pred_region
        _
      $region36: #{residual_block_forward.1} parent=11 // pred_fallthru
        _
      // Predicated region
      $region37: #{residual_block_forward.1} parent=11 // pred_check
        %p290 = pneg %p189
      $region38: #{residual_block_forward.1} parent=11 // pred_check_branch
        %292 = sbr.rel (%p290) target = $region40
      $region39: #{residual_block_forward.1} parent=11 // pred_region
        _
      $region40: #{residual_block_forward.1} parent=11 // pred_fallthru
        _
      // Predicated region
      $region41: #{residual_block_forward.1} parent=11 // pred_check
        %p293 = pneg %p210
      $region42: #{residual_block_forward.1} parent=11 // pred_check_branch
        %295 = sbr.rel (%p293) target = $region44
      $region43: #{residual_block_forward.1} parent=11 // pred_region
        _
      $region44: #{residual_block_forward.1} parent=11 // pred_fallthru
        _
      // Predicated region
      $region45: #{residual_block_forward.1} parent=11 // pred_check
        %p296 = pneg %p231
      $region46: #{residual_block_forward.1} parent=11 // pred_check_branch
        %298 = sbr.rel (%p296) target = $region48
      $region47: #{residual_block_forward.1} parent=11 // pred_region
        _
      $region48: #{residual_block_forward.1} parent=11 // pred_fallthru
        _
    $region12: #{residual_block_forward.1} parent=5 // pred_fallthru
      _
    %p299 = scmp.lt.s32.totalorder %s16, 2
    // Predicated region
    $region49: #{residual_block_forward.1} parent=5 // pred_check
      %p300 = pneg %p299
    $region50: #{residual_block_forward.1} parent=5 // pred_check_branch
      %302 = sbr.rel (%p300) target = $region52
    $region51: #{residual_block_forward.1} parent=5 // pred_region
      // Predicated region
      $region53: #{residual_block_forward.1} parent=51 // pred_check
        %p303 = pneg %p36
      $region54: #{residual_block_forward.1} parent=51 // pred_check_branch
        %305 = sbr.rel (%p303) target = $region56
      $region55: #{residual_block_forward.1} parent=51 // pred_region
        %p306 = scmp.lt.s32.totalorder %s16, 1
        %s307 = scalar_select %p306, %s16, 1
        %s308 = smul.addr %s307, 32
        %s309 = smul.addr %s308, 4
        %s310 = scalar_lea.vmem %s0, %s309
      $region56: #{residual_block_forward.1} parent=51 // pred_fallthru
        _
    $region52: #{residual_block_forward.1} parent=5 // pred_fallthru
      _
    %p311 = scmp.le.s32.totalorder 1, %s16
    %p312 = scmp.lt.s32.totalorder %s16, 3
    %p313 = pnand %p311, %p312
    %p314 = pneg %p313
    // Predicated region
    $region57: #{residual_block_forward.1} parent=5 // pred_check
      _
    $region58: #{residual_block_forward.1} parent=5 // pred_check_branch
      %316 = sbr.rel (%p313) target = $region60
    $region59: #{residual_block_forward.1} parent=5 // pred_region
      %s317 = ssub.s32 %s16, 1
      %p318 = scmp.lt.s32.totalorder %s21, 1
      %s319 = scalar_select %p318, %s21, 1
      %s320 = smul.addr %s319, 32
      %s321 = smul.addr %s320, 4
      %s322 = scalar_lea.vmem %s0, %s321
      %p323 = pneg %p42
      %p324 = pneg %p39
      %p325 = pneg %p63
      %p326 = pneg %p60
      %p327 = pneg %p84
      %p328 = pneg %p81
      %p329 = pneg %p105
      %p330 = pneg %p102
      %p331 = pneg %p126
      %p332 = pneg %p123
      %p333 = pneg %p147
      %p334 = pneg %p144
      %p335 = pneg %p168
      %p336 = pneg %p165
      %p337 = pneg %p189
      %p338 = pneg %p186
      %p339 = pneg %p210
      %p340 = pneg %p207
      %p341 = pneg %p231
      %p342 = pneg %p228
      %p343 = pneg %p257
      %p344 = pneg %p254
      %p345 = scmp.lt.s32.totalorder %s21, 1
      %s346 = scalar_select %p345, %s21, 1
      %s347 = smul.addr %s346, 32
      %s348 = smul.addr %s347, 8
      %s349 = scalar_lea.vmem %s10, %s348
      %p350 = scmp.lt.s32.totalorder %s21, 1
      %s351 = scalar_select %p350, %s21, 1
      %s352 = smul.addr %s351, 32
      %s353 = smul.addr %s352, 4
      %s354 = scalar_lea.vmem %s0, %s353
      %p355 = scmp.lt.s32.totalorder %s21, 1
      %s356 = scalar_select %p355, %s21, 1
      %s357 = smul.addr %s356, 32
      %s358 = smul.addr %s357, 8
      %s359 = scalar_lea.vmem %s10, %s358
      %v361 = vld [vmem:[%s354] sm:$0xf]
      %v362 = vld [vmem:[%s354 + $0x4] sm:$0xf]
      %v363 = vld [vmem:[%s354 + $0x8] sm:$0xf]
      %v364 = vld [vmem:[%s354 + $0xc] sm:$0xf]
      %v365 = vld [vmem:[%s354 + $0x10] sm:$0xf]
      %v366 = vld [vmem:[%s354 + $0x14] sm:$0xf]
      %v367 = vld [vmem:[%s354 + $0x18] sm:$0xf]
      %v368 = vld [vmem:[%s354 + $0x1c] sm:$0xf]
      %v369 = vld [vmem:[%s354 + $0x20] sm:$0xf]
      %v370 = vld [vmem:[%s354 + $0x24] sm:$0xf]
      %v371 = vld [vmem:[%s354 + $0x28] sm:$0xf]
      %v372 = vld [vmem:[%s354 + $0x2c] sm:$0xf]
      %v373 = vld [vmem:[%s354 + $0x30] sm:$0xf]
      %v374 = vld [vmem:[%s354 + $0x34] sm:$0xf]
      %v375 = vld [vmem:[%s354 + $0x38] sm:$0xf]
      %v376 = vld [vmem:[%s354 + $0x3c] sm:$0xf]
      %v377 = vld [vmem:[%s354 + $0x40] sm:$0xf]
      %v378 = vld [vmem:[%s354 + $0x44] sm:$0xf]
      %v379 = vld [vmem:[%s354 + $0x48] sm:$0xf]
      %v380 = vld [vmem:[%s354 + $0x4c] sm:$0xf]
      %v381 = vld [vmem:[%s354 + $0x50] sm:$0xf]
      %v382 = vld [vmem:[%s354 + $0x54] sm:$0xf]
      %v383 = vld [vmem:[%s354 + $0x58] sm:$0xf]
      %v384 = vld [vmem:[%s354 + $0x5c] sm:$0xf]
      %v385 = vld [vmem:[%s354 + $0x60] sm:$0xf]
      %v386 = vld [vmem:[%s354 + $0x64] sm:$0xf]
      %v387 = vld [vmem:[%s354 + $0x68] sm:$0xf]
      %v388 = vld [vmem:[%s354 + $0x6c] sm:$0xf]
      %v389 = vld [vmem:[%s354 + $0x70] sm:$0xf]
      %v390 = vld [vmem:[%s354 + $0x74] sm:$0xf]
      %v391 = vld [vmem:[%s354 + $0x78] sm:$0xf]
      %v392 = vld [vmem:[%s354 + $0x7c] sm:$0xf]
      %vm393 = vcmask 27648
      %394 = vst.msk [vmem:[#allocation2] sm:$0xf] %vm393, 0
      %395 = vst.msk [vmem:[#allocation2 + $0x4] sm:$0xf] %vm393, 0
      %vm396 = vcmask 24576
      %397 = vst.msk [vmem:[#allocation2 + $0x8] sm:$0x1] %vm396, 0
      %s398 = scalar_lea.vmem [#allocation2], 204
      %399 = vst.msk [vmem:[%s398] sm:$0xf] %vm393, 0
      %400 = vst.msk [vmem:[%s398 + $0x4] sm:$0xf] %vm393, 0
      %401 = vst.msk [vmem:[%s398 + $0x8] sm:$0x1] %vm396, 0
      %vm402 = vcmask 24576
      %vm403 = vsmask.f32 256
      %vm404 = vmand %vm402, %vm403
      %v405 = vld [vmem:[#allocation2] sm:$0x1]
      %v406 = vsel %vm404, 0, %v405
      %407 = vst [vmem:[#allocation2] sm:$0x1] %v406
      %v408 = vld [vmem:[#allocation2 + $0xc] sm:$0x1]
      %v409 = vsel %vm404, 0, %v408
      %410 = vst [vmem:[#allocation2 + $0xc] sm:$0x1] %v409
      %v411 = vld [vmem:[#allocation2 + $0x18] sm:$0x1]
      %v412 = vsel %vm404, 0, %v411
      %413 = vst [vmem:[#allocation2 + $0x18] sm:$0x1] %v412
      %v414 = vld [vmem:[#allocation2 + $0x24] sm:$0x1]
      %v415 = vsel %vm404, 0, %v414
      %416 = vst [vmem:[#allocation2 + $0x24] sm:$0x1] %v415
      %v417 = vld [vmem:[#allocation2 + $0x30] sm:$0x1]
      %v418 = vsel %vm404, 0, %v417
      %419 = vst [vmem:[#allocation2 + $0x30] sm:$0x1] %v418
      %v420 = vld [vmem:[#allocation2 + $0x3c] sm:$0x1]
      %v421 = vsel %vm404, 0, %v420
      %422 = vst [vmem:[#allocation2 + $0x3c] sm:$0x1] %v421
      %v423 = vld [vmem:[#allocation2 + $0x48] sm:$0x1]
      %v424 = vsel %vm404, 0, %v423
      %425 = vst [vmem:[#allocation2 + $0x48] sm:$0x1] %v424
      %v426 = vld [vmem:[#allocation2 + $0x54] sm:$0x1]
      %v427 = vsel %vm404, 0, %v426
      %428 = vst [vmem:[#allocation2 + $0x54] sm:$0x1] %v427
      %v429 = vld [vmem:[#allocation2 + $0x60] sm:$0x1]
      %v430 = vsel %vm404, 0, %v429
      %431 = vst [vmem:[#allocation2 + $0x60] sm:$0x1] %v430
      %v432 = vld [vmem:[#allocation2 + $0x6c] sm:$0x1]
      %v433 = vsel %vm404, 0, %v432
      %434 = vst [vmem:[#allocation2 + $0x6c] sm:$0x1] %v433
      %v435 = vld [vmem:[#allocation2 + $0x78] sm:$0x1]
      %v436 = vsel %vm404, 0, %v435
      %437 = vst [vmem:[#allocation2 + $0x78] sm:$0x1] %v436
      %v438 = vld [vmem:[#allocation2 + $0x84] sm:$0x1]
      %v439 = vsel %vm404, 0, %v438
      %440 = vst [vmem:[#allocation2 + $0x84] sm:$0x1] %v439
      %v441 = vld [vmem:[#allocation2 + $0x90] sm:$0x1]
      %v442 = vsel %vm404, 0, %v441
      %443 = vst [vmem:[#allocation2 + $0x90] sm:$0x1] %v442
      %v444 = vld [vmem:[#allocation2 + $0x9c] sm:$0x1]
      %v445 = vsel %vm404, 0, %v444
      %446 = vst [vmem:[#allocation2 + $0x9c] sm:$0x1] %v445
      %v447 = vld [vmem:[#allocation2 + $0xa8] sm:$0x1]
      %v448 = vsel %vm404, 0, %v447
      %449 = vst [vmem:[#allocation2 + $0xa8] sm:$0x1] %v448
      %v450 = vld [vmem:[#allocation2 + $0xb4] sm:$0x1]
      %v451 = vsel %vm404, 0, %v450
      %452 = vst [vmem:[#allocation2 + $0xb4] sm:$0x1] %v451
      %v453 = vld [vmem:[#allocation2 + $0xc0] sm:$0x1]
      %v454 = vsel %vm404, 0, %v453
      %455 = vst [vmem:[#allocation2 + $0xc0] sm:$0x1] %v454
      %v456 = vld [vmem:[#allocation2 + $0xcc] sm:$0x1]
      %v457 = vsel %vm404, 0, %v456
      %458 = vst [vmem:[#allocation2 + $0xcc] sm:$0x1] %v457
      %vm459 = vsmask.f32 7938
      %vm460 = vmand %vm402, %vm459
      %v461 = vld [vmem:[#allocation2 + $0x8] sm:$0x1]
      %v462 = vsel %vm460, 0, %v461
      %463 = vst [vmem:[#allocation2 + $0x8] sm:$0x1] %v462
      %v464 = vld [vmem:[#allocation2 + $0x14] sm:$0x1]
      %v465 = vsel %vm460, 0, %v464
      %466 = vst [vmem:[#allocation2 + $0x14] sm:$0x1] %v465
      %v467 = vld [vmem:[#allocation2 + $0x20] sm:$0x1]
      %v468 = vsel %vm460, 0, %v467
      %469 = vst [vmem:[#allocation2 + $0x20] sm:$0x1] %v468
      %v470 = vld [vmem:[#allocation2 + $0x2c] sm:$0x1]
      %v471 = vsel %vm460, 0, %v470
      %472 = vst [vmem:[#allocation2 + $0x2c] sm:$0x1] %v471
      %v473 = vld [vmem:[#allocation2 + $0x38] sm:$0x1]
      %v474 = vsel %vm460, 0, %v473
      %475 = vst [vmem:[#allocation2 + $0x38] sm:$0x1] %v474
      %v476 = vld [vmem:[#allocation2 + $0x44] sm:$0x1]
      %v477 = vsel %vm460, 0, %v476
      %478 = vst [vmem:[#allocation2 + $0x44] sm:$0x1] %v477
      %v479 = vld [vmem:[#allocation2 + $0x50] sm:$0x1]
      %v480 = vsel %vm460, 0, %v479
      %481 = vst [vmem:[#allocation2 + $0x50] sm:$0x1] %v480
      %v482 = vld [vmem:[#allocation2 + $0x5c] sm:$0x1]
      %v483 = vsel %vm460, 0, %v482
      %484 = vst [vmem:[#allocation2 + $0x5c] sm:$0x1] %v483
      %v485 = vld [vmem:[#allocation2 + $0x68] sm:$0x1]
      %v486 = vsel %vm460, 0, %v485
      %487 = vst [vmem:[#allocation2 + $0x68] sm:$0x1] %v486
      %v488 = vld [vmem:[#allocation2 + $0x74] sm:$0x1]
      %v489 = vsel %vm460, 0, %v488
      %490 = vst [vmem:[#allocation2 + $0x74] sm:$0x1] %v489
      %v491 = vld [vmem:[#allocation2 + $0x80] sm:$0x1]
      %v492 = vsel %vm460, 0, %v491
      %493 = vst [vmem:[#allocation2 + $0x80] sm:$0x1] %v492
      %v494 = vld [vmem:[#allocation2 + $0x8c] sm:$0x1]
      %v495 = vsel %vm460, 0, %v494
      %496 = vst [vmem:[#allocation2 + $0x8c] sm:$0x1] %v495
      %v497 = vld [vmem:[#allocation2 + $0x98] sm:$0x1]
      %v498 = vsel %vm460, 0, %v497
      %499 = vst [vmem:[#allocation2 + $0x98] sm:$0x1] %v498
      %v500 = vld [vmem:[#allocation2 + $0xa4] sm:$0x1]
      %v501 = vsel %vm460, 0, %v500
      %502 = vst [vmem:[#allocation2 + $0xa4] sm:$0x1] %v501
      %v503 = vld [vmem:[#allocation2 + $0xb0] sm:$0x1]
      %v504 = vsel %vm460, 0, %v503
      %505 = vst [vmem:[#allocation2 + $0xb0] sm:$0x1] %v504
      %v506 = vld [vmem:[#allocation2 + $0xbc] sm:$0x1]
      %v507 = vsel %vm460, 0, %v506
      %508 = vst [vmem:[#allocation2 + $0xbc] sm:$0x1] %v507
      %v509 = vld [vmem:[#allocation2 + $0xc8] sm:$0x1]
      %v510 = vsel %vm460, 0, %v509
      %511 = vst [vmem:[#allocation2 + $0xc8] sm:$0x1] %v510
      %v512 = vld [vmem:[#allocation2 + $0xd4] sm:$0x1]
      %v513 = vsel %vm460, 0, %v512
      %514 = vst [vmem:[#allocation2 + $0xd4] sm:$0x1] %v513
      %vm515 = vsmask.f32 4368
      %vm516 = vmor %vm403, %vm515
      %v518 = vshrl.u32 %v361, 16
      %v520 = vrot.slane %v518, 7
      %v521 = vshll.u32 %v361, 16
      %v523 = vor.u32 %v520, %v521
      %v524 = vrot.slane %v520, 4
      %v526 = vshrl.u32 %v362, 16
      %v528 = vrot.slane %v526, 7
      %v529 = vshll.u32 %v362, 16
      %v531 = vor.u32 %v528, %v529
      %v532 = vsel %vm516, %v524, %v531
      %v533 = vrot.slane %v528, 4
      %v535 = vshrl.u32 %v363, 16
      %v537 = vrot.slane %v535, 7
      %v538 = vshll.u32 %v363, 16
      %v540 = vor.u32 %v537, %v538
      %v541 = vrot.slane %v537, 4
      %v543 = vshrl.u32 %v364, 16
      %v545 = vrot.slane %v543, 7
      %v546 = vshll.u32 %v364, 16
      %v548 = vor.u32 %v545, %v546
      %v549 = vsel %vm516, %v541, %v548
      %v550 = vrot.slane %v545, 4
      %v552 = vshrl.u32 %v365, 16
      %v554 = vrot.slane %v552, 7
      %v555 = vshll.u32 %v365, 16
      %v557 = vor.u32 %v554, %v555
      %v558 = vrot.slane %v554, 4
      %v560 = vshrl.u32 %v366, 16
      %v562 = vrot.slane %v560, 7
      %v563 = vshll.u32 %v366, 16
      %v565 = vor.u32 %v562, %v563
      %v566 = vsel %vm516, %v558, %v565
      %v567 = vrot.slane %v562, 4
      %v569 = vshrl.u32 %v367, 16
      %v571 = vrot.slane %v569, 7
      %v572 = vshll.u32 %v367, 16
      %v574 = vor.u32 %v571, %v572
      %v575 = vrot.slane %v571, 4
      %v577 = vshrl.u32 %v368, 16
      %v579 = vrot.slane %v577, 7
      %v580 = vshll.u32 %v368, 16
      %v582 = vor.u32 %v579, %v580
      %v583 = vsel %vm516, %v575, %v582
      %v584 = vrot.slane %v579, 4
      %v586 = vshrl.u32 %v369, 16
      %v588 = vrot.slane %v586, 7
      %v589 = vshll.u32 %v369, 16
      %v591 = vor.u32 %v588, %v589
      %v592 = vrot.slane %v588, 4
      %v594 = vshrl.u32 %v370, 16
      %v596 = vrot.slane %v594, 7
      %v597 = vshll.u32 %v370, 16
      %v599 = vor.u32 %v596, %v597
      %v600 = vsel %vm516, %v592, %v599
      %v601 = vrot.slane %v596, 4
      %v603 = vshrl.u32 %v371, 16
      %v605 = vrot.slane %v603, 7
      %v606 = vshll.u32 %v371, 16
      %v608 = vor.u32 %v605, %v606
      %v609 = vrot.slane %v605, 4
      %v611 = vshrl.u32 %v372, 16
      %v613 = vrot.slane %v611, 7
      %v614 = vshll.u32 %v372, 16
      %v616 = vor.u32 %v613, %v614
      %v617 = vsel %vm516, %v609, %v616
      %v618 = vrot.slane %v613, 4
      %v620 = vshrl.u32 %v373, 16
      %v622 = vrot.slane %v620, 7
      %v623 = vshll.u32 %v373, 16
      %v625 = vor.u32 %v622, %v623
      %v626 = vrot.slane %v622, 4
      %v628 = vshrl.u32 %v374, 16
      %v630 = vrot.slane %v628, 7
      %v631 = vshll.u32 %v374, 16
      %v633 = vor.u32 %v630, %v631
      %v634 = vsel %vm516, %v626, %v633
      %v635 = vrot.slane %v630, 4
      %v637 = vshrl.u32 %v375, 16
      %v639 = vrot.slane %v637, 7
      %v640 = vshll.u32 %v375, 16
      %v642 = vor.u32 %v639, %v640
      %v643 = vrot.slane %v639, 4
      %v645 = vshrl.u32 %v376, 16
      %v647 = vrot.slane %v645, 7
      %v648 = vshll.u32 %v376, 16
      %v650 = vor.u32 %v647, %v648
      %v651 = vsel %vm516, %v643, %v650
      %v652 = vrot.slane %v647, 4
      %v654 = vshrl.u32 %v377, 16
      %v656 = vrot.slane %v654, 7
      %v657 = vshll.u32 %v377, 16
      %v659 = vor.u32 %v656, %v657
      %v660 = vrot.slane %v656, 4
      %v662 = vshrl.u32 %v378, 16
      %v664 = vrot.slane %v662, 7
      %v665 = vshll.u32 %v378, 16
      %v667 = vor.u32 %v664, %v665
      %v668 = vsel %vm516, %v660, %v667
      %v669 = vrot.slane %v664, 4
      %v671 = vshrl.u32 %v379, 16
      %v673 = vrot.slane %v671, 7
      %v674 = vshll.u32 %v379, 16
      %v676 = vor.u32 %v673, %v674
      %v677 = vrot.slane %v673, 4
      %v679 = vshrl.u32 %v380, 16
      %v681 = vrot.slane %v679, 7
      %v682 = vshll.u32 %v380, 16
      %v684 = vor.u32 %v681, %v682
      %v685 = vsel %vm516, %v677, %v684
      %v686 = vrot.slane %v681, 4
      %v688 = vshrl.u32 %v381, 16
      %v690 = vrot.slane %v688, 7
      %v691 = vshll.u32 %v381, 16
      %v693 = vor.u32 %v690, %v691
      %v694 = vrot.slane %v690, 4
      %v696 = vshrl.u32 %v382, 16
      %v698 = vrot.slane %v696, 7
      %v699 = vshll.u32 %v382, 16
      %v701 = vor.u32 %v698, %v699
      %v702 = vsel %vm516, %v694, %v701
      %v703 = vrot.slane %v698, 4
      %v705 = vshrl.u32 %v383, 16
      %v707 = vrot.slane %v705, 7
      %v708 = vshll.u32 %v383, 16
      %v710 = vor.u32 %v707, %v708
      %v711 = vrot.slane %v707, 4
      %v713 = vshrl.u32 %v384, 16
      %v715 = vrot.slane %v713, 7
      %v716 = vshll.u32 %v384, 16
      %v718 = vor.u32 %v715, %v716
      %v719 = vsel %vm516, %v711, %v718
      %v720 = vrot.slane %v715, 4
      %v722 = vshrl.u32 %v385, 16
      %v724 = vrot.slane %v722, 7
      %v725 = vshll.u32 %v385, 16
      %v727 = vor.u32 %v724, %v725
      %v728 = vrot.slane %v724, 4
      %v730 = vshrl.u32 %v386, 16
      %v732 = vrot.slane %v730, 7
      %v733 = vshll.u32 %v386, 16
      %v735 = vor.u32 %v732, %v733
      %v736 = vsel %vm516, %v728, %v735
      %v737 = vrot.slane %v732, 4
      %v739 = vshrl.u32 %v387, 16
      %v741 = vrot.slane %v739, 7
      %v742 = vshll.u32 %v387, 16
      %v744 = vor.u32 %v741, %v742
      %v745 = vrot.slane %v741, 4
      %v747 = vshrl.u32 %v388, 16
      %v749 = vrot.slane %v747, 7
      %v750 = vshll.u32 %v388, 16
      %v752 = vor.u32 %v749, %v750
      %v753 = vsel %vm516, %v745, %v752
      %v754 = vrot.slane %v749, 4
      %v756 = vshrl.u32 %v389, 16
      %v758 = vrot.slane %v756, 7
      %v759 = vshll.u32 %v389, 16
      %v761 = vor.u32 %v758, %v759
      %v762 = vrot.slane %v758, 4
      %v764 = vshrl.u32 %v390, 16
      %v766 = vrot.slane %v764, 7
      %v767 = vshll.u32 %v390, 16
      %v769 = vor.u32 %v766, %v767
      %v770 = vsel %vm516, %v762, %v769
      %v771 = vrot.slane %v766, 4
      %v773 = vshrl.u32 %v391, 16
      %v775 = vrot.slane %v773, 7
      %v776 = vshll.u32 %v391, 16
      %v778 = vor.u32 %v775, %v776
      %v779 = vrot.slane %v775, 4
      %v781 = vshrl.u32 %v392, 16
      %v783 = vrot.slane %v781, 7
      %v784 = vshll.u32 %v392, 16
      %v786 = vor.u32 %v783, %v784
      %v787 = vsel %vm516, %v779, %v786
      %v788 = vrot.slane %v783, 4
      %s837 = scalar_lea.vmem [#allocation2], 12
      %vm838 = vcmask 27648
      %vm839 = vmand %vm838, %vm459
      %v840 = vld [vmem:[%s837] sm:$0xf]
      %v841 = vsel %vm839, %v523, %v840
      %842 = vst [vmem:[%s837] sm:$0xf] %v841
      %843 = vst.msk [vmem:[%s837 + $0x4] sm:$0xf] %vm393, %v532
      %v844 = vld [vmem:[%s837 + $0x8] sm:$0x1]
      %v845 = vsel %vm404, %v533, %v844
      %846 = vst [vmem:[%s837 + $0x8] sm:$0x1] %v845
      %v847 = vld [vmem:[%s837 + $0xc] sm:$0xf]
      %v848 = vsel %vm839, %v540, %v847
      %849 = vst [vmem:[%s837 + $0xc] sm:$0xf] %v848
      %850 = vst.msk [vmem:[%s837 + $0x10] sm:$0xf] %vm393, %v549
      %v851 = vld [vmem:[%s837 + $0x14] sm:$0x1]
      %v852 = vsel %vm404, %v550, %v851
      %853 = vst [vmem:[%s837 + $0x14] sm:$0x1] %v852
      %v854 = vld [vmem:[%s837 + $0x18] sm:$0xf]
      %v855 = vsel %vm839, %v557, %v854
      %856 = vst [vmem:[%s837 + $0x18] sm:$0xf] %v855
      %857 = vst.msk [vmem:[%s837 + $0x1c] sm:$0xf] %vm393, %v566
      %v858 = vld [vmem:[%s837 + $0x20] sm:$0x1]
      %v859 = vsel %vm404, %v567, %v858
      %860 = vst [vmem:[%s837 + $0x20] sm:$0x1] %v859
      %v861 = vld [vmem:[%s837 + $0x24] sm:$0xf]
      %v862 = vsel %vm839, %v574, %v861
      %863 = vst [vmem:[%s837 + $0x24] sm:$0xf] %v862
      %864 = vst.msk [vmem:[%s837 + $0x28] sm:$0xf] %vm393, %v583
      %v865 = vld [vmem:[%s837 + $0x2c] sm:$0x1]
      %v866 = vsel %vm404, %v584, %v865
      %867 = vst [vmem:[%s837 + $0x2c] sm:$0x1] %v866
      %v868 = vld [vmem:[%s837 + $0x30] sm:$0xf]
      %v869 = vsel %vm839, %v591, %v868
      %870 = vst [vmem:[%s837 + $0x30] sm:$0xf] %v869
      %871 = vst.msk [vmem:[%s837 + $0x34] sm:$0xf] %vm393, %v600
      %v872 = vld [vmem:[%s837 + $0x38] sm:$0x1]
      %v873 = vsel %vm404, %v601, %v872
      %874 = vst [vmem:[%s837 + $0x38] sm:$0x1] %v873
      %v875 = vld [vmem:[%s837 + $0x3c] sm:$0xf]
      %v876 = vsel %vm839, %v608, %v875
      %877 = vst [vmem:[%s837 + $0x3c] sm:$0xf] %v876
      %878 = vst.msk [vmem:[%s837 + $0x40] sm:$0xf] %vm393, %v617
      %v879 = vld [vmem:[%s837 + $0x44] sm:$0x1]
      %v880 = vsel %vm404, %v618, %v879
      %881 = vst [vmem:[%s837 + $0x44] sm:$0x1] %v880
      %v882 = vld [vmem:[%s837 + $0x48] sm:$0xf]
      %v883 = vsel %vm839, %v625, %v882
      %884 = vst [vmem:[%s837 + $0x48] sm:$0xf] %v883
      %885 = vst.msk [vmem:[%s837 + $0x4c] sm:$0xf] %vm393, %v634
      %v886 = vld [vmem:[%s837 + $0x50] sm:$0x1]
      %v887 = vsel %vm404, %v635, %v886
      %888 = vst [vmem:[%s837 + $0x50] sm:$0x1] %v887
      %v889 = vld [vmem:[%s837 + $0x54] sm:$0xf]
      %v890 = vsel %vm839, %v642, %v889
      %891 = vst [vmem:[%s837 + $0x54] sm:$0xf] %v890
      %892 = vst.msk [vmem:[%s837 + $0x58] sm:$0xf] %vm393, %v651
      %v893 = vld [vmem:[%s837 + $0x5c] sm:$0x1]
      %v894 = vsel %vm404, %v652, %v893
      %895 = vst [vmem:[%s837 + $0x5c] sm:$0x1] %v894
      %v896 = vld [vmem:[%s837 + $0x60] sm:$0xf]
      %v897 = vsel %vm839, %v659, %v896
      %898 = vst [vmem:[%s837 + $0x60] sm:$0xf] %v897
      %899 = vst.msk [vmem:[%s837 + $0x64] sm:$0xf] %vm393, %v668
      %v900 = vld [vmem:[%s837 + $0x68] sm:$0x1]
      %v901 = vsel %vm404, %v669, %v900
      %902 = vst [vmem:[%s837 + $0x68] sm:$0x1] %v901
      %v903 = vld [vmem:[%s837 + $0x6c] sm:$0xf]
      %v904 = vsel %vm839, %v676, %v903
      %905 = vst [vmem:[%s837 + $0x6c] sm:$0xf] %v904
      %906 = vst.msk [vmem:[%s837 + $0x70] sm:$0xf] %vm393, %v685
      %v907 = vld [vmem:[%s837 + $0x74] sm:$0x1]
      %v908 = vsel %vm404, %v686, %v907
      %909 = vst [vmem:[%s837 + $0x74] sm:$0x1] %v908
      %v910 = vld [vmem:[%s837 + $0x78] sm:$0xf]
      %v911 = vsel %vm839, %v693, %v910
      %912 = vst [vmem:[%s837 + $0x78] sm:$0xf] %v911
      %913 = vst.msk [vmem:[%s837 + $0x7c] sm:$0xf] %vm393, %v702
      %v914 = vld [vmem:[%s837 + $0x80] sm:$0x1]
      %v915 = vsel %vm404, %v703, %v914
      %916 = vst [vmem:[%s837 + $0x80] sm:$0x1] %v915
      %v917 = vld [vmem:[%s837 + $0x84] sm:$0xf]
      %v918 = vsel %vm839, %v710, %v917
      %919 = vst [vmem:[%s837 + $0x84] sm:$0xf] %v918
      %920 = vst.msk [vmem:[%s837 + $0x88] sm:$0xf] %vm393, %v719
      %v921 = vld [vmem:[%s837 + $0x8c] sm:$0x1]
      %v922 = vsel %vm404, %v720, %v921
      %923 = vst [vmem:[%s837 + $0x8c] sm:$0x1] %v922
      %v924 = vld [vmem:[%s837 + $0x90] sm:$0xf]
      %v925 = vsel %vm839, %v727, %v924
      %926 = vst [vmem:[%s837 + $0x90] sm:$0xf] %v925
      %927 = vst.msk [vmem:[%s837 + $0x94] sm:$0xf] %vm393, %v736
      %v928 = vld [vmem:[%s837 + $0x98] sm:$0x1]
      %v929 = vsel %vm404, %v737, %v928
      %930 = vst [vmem:[%s837 + $0x98] sm:$0x1] %v929
      %v931 = vld [vmem:[%s837 + $0x9c] sm:$0xf]
      %v932 = vsel %vm839, %v744, %v931
      %933 = vst [vmem:[%s837 + $0x9c] sm:$0xf] %v932
      %934 = vst.msk [vmem:[%s837 + $0xa0] sm:$0xf] %vm393, %v753
      %v935 = vld [vmem:[%s837 + $0xa4] sm:$0x1]
      %v936 = vsel %vm404, %v754, %v935
      %937 = vst [vmem:[%s837 + $0xa4] sm:$0x1] %v936
      %v938 = vld [vmem:[%s837 + $0xa8] sm:$0xf]
      %v939 = vsel %vm839, %v761, %v938
      %940 = vst [vmem:[%s837 + $0xa8] sm:$0xf] %v939
      %941 = vst.msk [vmem:[%s837 + $0xac] sm:$0xf] %vm393, %v770
      %v942 = vld [vmem:[%s837 + $0xb0] sm:$0x1]
      %v943 = vsel %vm404, %v771, %v942
      %944 = vst [vmem:[%s837 + $0xb0] sm:$0x1] %v943
      %v945 = vld [vmem:[%s837 + $0xb4] sm:$0xf]
      %v946 = vsel %vm839, %v778, %v945
      %947 = vst [vmem:[%s837 + $0xb4] sm:$0xf] %v946
      %948 = vst.msk [vmem:[%s837 + $0xb8] sm:$0xf] %vm393, %v787
      %v949 = vld [vmem:[%s837 + $0xbc] sm:$0x1]
      %v950 = vsel %vm404, %v788, %v949
      %951 = vst [vmem:[%s837 + $0xbc] sm:$0x1] %v950
      %v952 = vld [vmem:[#allocation2] sm:$0xf]
      %v953 = vld [vmem:[#allocation2 + $0x4] sm:$0xf]
      %v954 = vld [vmem:[#allocation2 + $0xc] sm:$0xf]
      %v955 = vld [vmem:[#allocation2 + $0x10] sm:$0xf]
      %v956 = vld [vmem:[#allocation2 + $0x18] sm:$0xf]
      %v957 = vld [vmem:[#allocation2 + $0x1c] sm:$0xf]
      %v958 = vld [vmem:[#allocation2 + $0x24] sm:$0xf]
      %v959 = vld [vmem:[#allocation2 + $0x28] sm:$0xf]
      %v960 = vld [vmem:[#allocation2 + $0x30] sm:$0xf]
      %v961 = vld [vmem:[#allocation2 + $0x34] sm:$0xf]
      %v962 = vld [vmem:[#allocation2 + $0x3c] sm:$0xf]
      %v963 = vld [vmem:[#allocation2 + $0x40] sm:$0xf]
      %v964 = vld [vmem:[#allocation2 + $0x48] sm:$0xf]
      %v965 = vld [vmem:[#allocation2 + $0x4c] sm:$0xf]
      %v966 = vld [vmem:[#allocation2 + $0x54] sm:$0xf]
      %v967 = vld [vmem:[#allocation2 + $0x58] sm:$0xf]
      %v968 = vld [vmem:[#allocation2 + $0x60] sm:$0xf]
      %v969 = vld [vmem:[#allocation2 + $0x64] sm:$0xf]
      %v970 = vld [vmem:[#allocation2 + $0x6c] sm:$0xf]
      %v971 = vld [vmem:[#allocation2 + $0x70] sm:$0xf]
      %v972 = vld [vmem:[#allocation2 + $0x78] sm:$0xf]
      %v973 = vld [vmem:[#allocation2 + $0x7c] sm:$0xf]
      %v974 = vld [vmem:[#allocation2 + $0x84] sm:$0xf]
      %v975 = vld [vmem:[#allocation2 + $0x88] sm:$0xf]
      %v976 = vld [vmem:[#allocation2 + $0x90] sm:$0xf]
      %v977 = vld [vmem:[#allocation2 + $0x94] sm:$0xf]
      %v978 = vld [vmem:[#allocation2 + $0x9c] sm:$0xf]
      %v979 = vld [vmem:[#allocation2 + $0xa0] sm:$0xf]
      %v980 = vld [vmem:[#allocation2 + $0xa8] sm:$0xf]
      %v981 = vld [vmem:[#allocation2 + $0xac] sm:$0xf]
      %v982 = vld [vmem:[#allocation2 + $0xb4] sm:$0xf]
      %v983 = vld [vmem:[#allocation2 + $0xb8] sm:$0xf]
      %984 = vst.msk [vmem:[#allocation4] sm:$0xf] %vm393, %v952
      %985 = vst.msk [vmem:[#allocation4 + $0x4] sm:$0xf] %vm393, %v953
      %986 = vst.msk [vmem:[#allocation4 + $0x8] sm:$0xf] %vm393, %v954
      %987 = vst.msk [vmem:[#allocation4 + $0xc] sm:$0xf] %vm393, %v955
      %988 = vst.msk [vmem:[#allocation4 + $0x10] sm:$0xf] %vm393, %v956
      %989 = vst.msk [vmem:[#allocation4 + $0x14] sm:$0xf] %vm393, %v957
      %990 = vst.msk [vmem:[#allocation4 + $0x18] sm:$0xf] %vm393, %v958
      %991 = vst.msk [vmem:[#allocation4 + $0x1c] sm:$0xf] %vm393, %v959
      %992 = vst.msk [vmem:[#allocation4 + $0x20] sm:$0xf] %vm393, %v960
      %993 = vst.msk [vmem:[#allocation4 + $0x24] sm:$0xf] %vm393, %v961
      %994 = vst.msk [vmem:[#allocation4 + $0x28] sm:$0xf] %vm393, %v962
      %995 = vst.msk [vmem:[#allocation4 + $0x2c] sm:$0xf] %vm393, %v963
      %996 = vst.msk [vmem:[#allocation4 + $0x30] sm:$0xf] %vm393, %v964
      %997 = vst.msk [vmem:[#allocation4 + $0x34] sm:$0xf] %vm393, %v965
      %998 = vst.msk [vmem:[#allocation4 + $0x38] sm:$0xf] %vm393, %v966
      %999 = vst.msk [vmem:[#allocation4 + $0x3c] sm:$0xf] %vm393, %v967
      %1000 = vst.msk [vmem:[#allocation4 + $0x40] sm:$0xf] %vm393, %v968
      %1001 = vst.msk [vmem:[#allocation4 + $0x44] sm:$0xf] %vm393, %v969
      %1002 = vst.msk [vmem:[#allocation4 + $0x48] sm:$0xf] %vm393, %v970
      %1003 = vst.msk [vmem:[#allocation4 + $0x4c] sm:$0xf] %vm393, %v971
      %1004 = vst.msk [vmem:[#allocation4 + $0x50] sm:$0xf] %vm393, %v972
      %1005 = vst.msk [vmem:[#allocation4 + $0x54] sm:$0xf] %vm393, %v973
      %1006 = vst.msk [vmem:[#allocation4 + $0x58] sm:$0xf] %vm393, %v974
      %1007 = vst.msk [vmem:[#allocation4 + $0x5c] sm:$0xf] %vm393, %v975
      %1008 = vst.msk [vmem:[#allocation4 + $0x60] sm:$0xf] %vm393, %v976
      %1009 = vst.msk [vmem:[#allocation4 + $0x64] sm:$0xf] %vm393, %v977
      %1010 = vst.msk [vmem:[#allocation4 + $0x68] sm:$0xf] %vm393, %v978
      %1011 = vst.msk [vmem:[#allocation4 + $0x6c] sm:$0xf] %vm393, %v979
      %1012 = vst.msk [vmem:[#allocation4 + $0x70] sm:$0xf] %vm393, %v980
      %1013 = vst.msk [vmem:[#allocation4 + $0x74] sm:$0xf] %vm393, %v981
      %1014 = vst.msk [vmem:[#allocation4 + $0x78] sm:$0xf] %vm393, %v982
      %1015 = vst.msk [vmem:[#allocation4 + $0x7c] sm:$0xf] %vm393, %v983
      %v1016 = vld [vmem:[#allocation2] sm:$0xf]
      %v1017 = vld [vmem:[#allocation2 + $0x4] sm:$0xf]
      %v1018 = vld [vmem:[#allocation2 + $0x8] sm:$0x1]
      %v1019 = vld [vmem:[#allocation2 + $0xc] sm:$0xf]
      %v1020 = vld [vmem:[#allocation2 + $0x10] sm:$0xf]
      %v1021 = vld [vmem:[#allocation2 + $0x14] sm:$0x1]
      %v1022 = vld [vmem:[#allocation2 + $0x18] sm:$0xf]
      %v1023 = vld [vmem:[#allocation2 + $0x1c] sm:$0xf]
      %v1024 = vld [vmem:[#allocation2 + $0x20] sm:$0x1]
      %v1025 = vld [vmem:[#allocation2 + $0x24] sm:$0xf]
      %v1026 = vld [vmem:[#allocation2 + $0x28] sm:$0xf]
      %v1027 = vld [vmem:[#allocation2 + $0x2c] sm:$0x1]
      %v1028 = vld [vmem:[#allocation2 + $0x30] sm:$0xf]
      %v1029 = vld [vmem:[#allocation2 + $0x34] sm:$0xf]
      %v1030 = vld [vmem:[#allocation2 + $0x38] sm:$0x1]
      %v1031 = vld [vmem:[#allocation2 + $0x3c] sm:$0xf]
      %v1032 = vld [vmem:[#allocation2 + $0x40] sm:$0xf]
      %v1033 = vld [vmem:[#allocation2 + $0x44] sm:$0x1]
      %v1034 = vld [vmem:[#allocation2 + $0x48] sm:$0xf]
      %v1035 = vld [vmem:[#allocation2 + $0x4c] sm:$0xf]
      %v1036 = vld [vmem:[#allocation2 + $0x50] sm:$0x1]
      %v1037 = vld [vmem:[#allocation2 + $0x54] sm:$0xf]
      %v1038 = vld [vmem:[#allocation2 + $0x58] sm:$0xf]
      %v1039 = vld [vmem:[#allocation2 + $0x5c] sm:$0x1]
      %v1040 = vld [vmem:[#allocation2 + $0x60] sm:$0xf]
      %v1041 = vld [vmem:[#allocation2 + $0x64] sm:$0xf]
      %v1042 = vld [vmem:[#allocation2 + $0x68] sm:$0x1]
      %v1043 = vld [vmem:[#allocation2 + $0x6c] sm:$0xf]
      %v1044 = vld [vmem:[#allocation2 + $0x70] sm:$0xf]
      %v1045 = vld [vmem:[#allocation2 + $0x74] sm:$0x1]
      %v1046 = vld [vmem:[#allocation2 + $0x78] sm:$0xf]
      %v1047 = vld [vmem:[#allocation2 + $0x7c] sm:$0xf]
      %v1048 = vld [vmem:[#allocation2 + $0x80] sm:$0x1]
      %v1049 = vld [vmem:[#allocation2 + $0x84] sm:$0xf]
      %v1050 = vld [vmem:[#allocation2 + $0x88] sm:$0xf]
      %v1051 = vld [vmem:[#allocation2 + $0x8c] sm:$0x1]
      %v1052 = vld [vmem:[#allocation2 + $0x90] sm:$0xf]
      %v1053 = vld [vmem:[#allocation2 + $0x94] sm:$0xf]
      %v1054 = vld [vmem:[#allocation2 + $0x98] sm:$0x1]
      %v1055 = vld [vmem:[#allocation2 + $0x9c] sm:$0xf]
      %v1056 = vld [vmem:[#allocation2 + $0xa0] sm:$0xf]
      %v1057 = vld [vmem:[#allocation2 + $0xa4] sm:$0x1]
      %v1058 = vld [vmem:[#allocation2 + $0xa8] sm:$0xf]
      %v1059 = vld [vmem:[#allocation2 + $0xac] sm:$0xf]
      %v1060 = vld [vmem:[#allocation2 + $0xb0] sm:$0x1]
      %v1061 = vld [vmem:[#allocation2 + $0xb4] sm:$0xf]
      %v1062 = vld [vmem:[#allocation2 + $0xb8] sm:$0xf]
      %v1063 = vld [vmem:[#allocation2 + $0xbc] sm:$0x1]
      %vm1064 = vsmask.f32 3328
      %vm1065 = vsmask.f32 7440
      %vm1066 = vmor %vm1064, %vm1065
      %v1068 = vshrl.u32 %v1016, 16
      %v1070 = vrot.slane %v1068, 4
      %v1071 = vshll.u32 %v1016, 16
      %v1073 = vrot.slane %v1071, 5
      %v1074 = vor.u32 %v1070, %v1073
      %v1075 = vrot.slane %v1074, 4
      %v1077 = vshll.u32 %v1017, 16
      %v1079 = vrot.slane %v1077, 5
      %v1080 = vsel %vm1066, %v1075, %v1079
      %v1081 = vshrl.u32 %v1017, 16
      %v1083 = vrot.slane %v1081, 4
      %v1084 = vor.u32 %v1083, %v1079
      %v1085 = vrot.slane %v1084, 4
      %v1087 = vshll.u32 %v1018, 16
      %v1089 = vrot.slane %v1087, 5
      %v1090 = vsel %vm1066, %v1085, %v1089
      %v1092 = vshrl.u32 %v1019, 16
      %v1094 = vrot.slane %v1092, 4
      %v1095 = vshll.u32 %v1019, 16
      %v1097 = vrot.slane %v1095, 5
      %v1098 = vor.u32 %v1094, %v1097
      %v1099 = vrot.slane %v1098, 4
      %v1101 = vshll.u32 %v1020, 16
      %v1103 = vrot.slane %v1101, 5
      %v1104 = vsel %vm1066, %v1099, %v1103
      %v1105 = vshrl.u32 %v1020, 16
      %v1107 = vrot.slane %v1105, 4
      %v1108 = vor.u32 %v1107, %v1103
      %v1109 = vrot.slane %v1108, 4
      %v1111 = vshll.u32 %v1021, 16
      %v1113 = vrot.slane %v1111, 5
      %v1114 = vsel %vm1066, %v1109, %v1113
      %v1116 = vshrl.u32 %v1022, 16
      %v1118 = vrot.slane %v1116, 4
      %v1119 = vshll.u32 %v1022, 16
      %v1121 = vrot.slane %v1119, 5
      %v1122 = vor.u32 %v1118, %v1121
      %v1123 = vrot.slane %v1122, 4
      %v1125 = vshll.u32 %v1023, 16
      %v1127 = vrot.slane %v1125, 5
      %v1128 = vsel %vm1066, %v1123, %v1127
      %v1129 = vshrl.u32 %v1023, 16
      %v1131 = vrot.slane %v1129, 4
      %v1132 = vor.u32 %v1131, %v1127
      %v1133 = vrot.slane %v1132, 4
      %v1135 = vshll.u32 %v1024, 16
      %v1137 = vrot.slane %v1135, 5
      %v1138 = vsel %vm1066, %v1133, %v1137
      %v1140 = vshrl.u32 %v1025, 16
      %v1142 = vrot.slane %v1140, 4
      %v1143 = vshll.u32 %v1025, 16
      %v1145 = vrot.slane %v1143, 5
      %v1146 = vor.u32 %v1142, %v1145
      %v1147 = vrot.slane %v1146, 4
      %v1149 = vshll.u32 %v1026, 16
      %v1151 = vrot.slane %v1149, 5
      %v1152 = vsel %vm1066, %v1147, %v1151
      %v1153 = vshrl.u32 %v1026, 16
      %v1155 = vrot.slane %v1153, 4
      %v1156 = vor.u32 %v1155, %v1151
      %v1157 = vrot.slane %v1156, 4
      %v1159 = vshll.u32 %v1027, 16
      %v1161 = vrot.slane %v1159, 5
      %v1162 = vsel %vm1066, %v1157, %v1161
      %v1164 = vshrl.u32 %v1028, 16
      %v1166 = vrot.slane %v1164, 4
      %v1167 = vshll.u32 %v1028, 16
      %v1169 = vrot.slane %v1167, 5
      %v1170 = vor.u32 %v1166, %v1169
      %v1171 = vrot.slane %v1170, 4
      %v1173 = vshll.u32 %v1029, 16
      %v1175 = vrot.slane %v1173, 5
      %v1176 = vsel %vm1066, %v1171, %v1175
      %v1177 = vshrl.u32 %v1029, 16
      %v1179 = vrot.slane %v1177, 4
      %v1180 = vor.u32 %v1179, %v1175
      %v1181 = vrot.slane %v1180, 4
      %v1183 = vshll.u32 %v1030, 16
      %v1185 = vrot.slane %v1183, 5
      %v1186 = vsel %vm1066, %v1181, %v1185
      %v1188 = vshrl.u32 %v1031, 16
      %v1190 = vrot.slane %v1188, 4
      %v1191 = vshll.u32 %v1031, 16
      %v1193 = vrot.slane %v1191, 5
      %v1194 = vor.u32 %v1190, %v1193
      %v1195 = vrot.slane %v1194, 4
      %v1197 = vshll.u32 %v1032, 16
      %v1199 = vrot.slane %v1197, 5
      %v1200 = vsel %vm1066, %v1195, %v1199
      %v1201 = vshrl.u32 %v1032, 16
      %v1203 = vrot.slane %v1201, 4
      %v1204 = vor.u32 %v1203, %v1199
      %v1205 = vrot.slane %v1204, 4
      %v1207 = vshll.u32 %v1033, 16
      %v1209 = vrot.slane %v1207, 5
      %v1210 = vsel %vm1066, %v1205, %v1209
      %v1212 = vshrl.u32 %v1034, 16
      %v1214 = vrot.slane %v1212, 4
      %v1215 = vshll.u32 %v1034, 16
      %v1217 = vrot.slane %v1215, 5
      %v1218 = vor.u32 %v1214, %v1217
      %v1219 = vrot.slane %v1218, 4
      %v1221 = vshll.u32 %v1035, 16
      %v1223 = vrot.slane %v1221, 5
      %v1224 = vsel %vm1066, %v1219, %v1223
      %v1225 = vshrl.u32 %v1035, 16
      %v1227 = vrot.slane %v1225, 4
      %v1228 = vor.u32 %v1227, %v1223
      %v1229 = vrot.slane %v1228, 4
      %v1231 = vshll.u32 %v1036, 16
      %v1233 = vrot.slane %v1231, 5
      %v1234 = vsel %vm1066, %v1229, %v1233
      %v1236 = vshrl.u32 %v1037, 16
      %v1238 = vrot.slane %v1236, 4
      %v1239 = vshll.u32 %v1037, 16
      %v1241 = vrot.slane %v1239, 5
      %v1242 = vor.u32 %v1238, %v1241
      %v1243 = vrot.slane %v1242, 4
      %v1245 = vshll.u32 %v1038, 16
      %v1247 = vrot.slane %v1245, 5
      %v1248 = vsel %vm1066, %v1243, %v1247
      %v1249 = vshrl.u32 %v1038, 16
      %v1251 = vrot.slane %v1249, 4
      %v1252 = vor.u32 %v1251, %v1247
      %v1253 = vrot.slane %v1252, 4
      %v1255 = vshll.u32 %v1039, 16
      %v1257 = vrot.slane %v1255, 5
      %v1258 = vsel %vm1066, %v1253, %v1257
      %v1260 = vshrl.u32 %v1040, 16
      %v1262 = vrot.slane %v1260, 4
      %v1263 = vshll.u32 %v1040, 16
      %v1265 = vrot.slane %v1263, 5
      %v1266 = vor.u32 %v1262, %v1265
      %v1267 = vrot.slane %v1266, 4
      %v1269 = vshll.u32 %v1041, 16
      %v1271 = vrot.slane %v1269, 5
      %v1272 = vsel %vm1066, %v1267, %v1271
      %v1273 = vshrl.u32 %v1041, 16
      %v1275 = vrot.slane %v1273, 4
      %v1276 = vor.u32 %v1275, %v1271
      %v1277 = vrot.slane %v1276, 4
      %v1279 = vshll.u32 %v1042, 16
      %v1281 = vrot.slane %v1279, 5
      %v1282 = vsel %vm1066, %v1277, %v1281
      %v1284 = vshrl.u32 %v1043, 16
      %v1286 = vrot.slane %v1284, 4
      %v1287 = vshll.u32 %v1043, 16
      %v1289 = vrot.slane %v1287, 5
      %v1290 = vor.u32 %v1286, %v1289
      %v1291 = vrot.slane %v1290, 4
      %v1293 = vshll.u32 %v1044, 16
      %v1295 = vrot.slane %v1293, 5
      %v1296 = vsel %vm1066, %v1291, %v1295
      %v1297 = vshrl.u32 %v1044, 16
      %v1299 = vrot.slane %v1297, 4
      %v1300 = vor.u32 %v1299, %v1295
      %v1301 = vrot.slane %v1300, 4
      %v1303 = vshll.u32 %v1045, 16
      %v1305 = vrot.slane %v1303, 5
      %v1306 = vsel %vm1066, %v1301, %v1305
      %v1308 = vshrl.u32 %v1046, 16
      %v1310 = vrot.slane %v1308, 4
      %v1311 = vshll.u32 %v1046, 16
      %v1313 = vrot.slane %v1311, 5
      %v1314 = vor.u32 %v1310, %v1313
      %v1315 = vrot.slane %v1314, 4
      %v1317 = vshll.u32 %v1047, 16
      %v1319 = vrot.slane %v1317, 5
      %v1320 = vsel %vm1066, %v1315, %v1319
      %v1321 = vshrl.u32 %v1047, 16
      %v1323 = vrot.slane %v1321, 4
      %v1324 = vor.u32 %v1323, %v1319
      %v1325 = vrot.slane %v1324, 4
      %v1327 = vshll.u32 %v1048, 16
      %v1329 = vrot.slane %v1327, 5
      %v1330 = vsel %vm1066, %v1325, %v1329
      %v1332 = vshrl.u32 %v1049, 16
      %v1334 = vrot.slane %v1332, 4
      %v1335 = vshll.u32 %v1049, 16
      %v1337 = vrot.slane %v1335, 5
      %v1338 = vor.u32 %v1334, %v1337
      %v1339 = vrot.slane %v1338, 4
      %v1341 = vshll.u32 %v1050, 16
      %v1343 = vrot.slane %v1341, 5
      %v1344 = vsel %vm1066, %v1339, %v1343
      %v1345 = vshrl.u32 %v1050, 16
      %v1347 = vrot.slane %v1345, 4
      %v1348 = vor.u32 %v1347, %v1343
      %v1349 = vrot.slane %v1348, 4
      %v1351 = vshll.u32 %v1051, 16
      %v1353 = vrot.slane %v1351, 5
      %v1354 = vsel %vm1066, %v1349, %v1353
      %v1356 = vshrl.u32 %v1052, 16
      %v1358 = vrot.slane %v1356, 4
      %v1359 = vshll.u32 %v1052, 16
      %v1361 = vrot.slane %v1359, 5
      %v1362 = vor.u32 %v1358, %v1361
      %v1363 = vrot.slane %v1362, 4
      %v1365 = vshll.u32 %v1053, 16
      %v1367 = vrot.slane %v1365, 5
      %v1368 = vsel %vm1066, %v1363, %v1367
      %v1369 = vshrl.u32 %v1053, 16
      %v1371 = vrot.slane %v1369, 4
      %v1372 = vor.u32 %v1371, %v1367
      %v1373 = vrot.slane %v1372, 4
      %v1375 = vshll.u32 %v1054, 16
      %v1377 = vrot.slane %v1375, 5
      %v1378 = vsel %vm1066, %v1373, %v1377
      %v1380 = vshrl.u32 %v1055, 16
      %v1382 = vrot.slane %v1380, 4
      %v1383 = vshll.u32 %v1055, 16
      %v1385 = vrot.slane %v1383, 5
      %v1386 = vor.u32 %v1382, %v1385
      %v1387 = vrot.slane %v1386, 4
      %v1389 = vshll.u32 %v1056, 16
      %v1391 = vrot.slane %v1389, 5
      %v1392 = vsel %vm1066, %v1387, %v1391
      %v1393 = vshrl.u32 %v1056, 16
      %v1395 = vrot.slane %v1393, 4
      %v1396 = vor.u32 %v1395, %v1391
      %v1397 = vrot.slane %v1396, 4
      %v1399 = vshll.u32 %v1057, 16
      %v1401 = vrot.slane %v1399, 5
      %v1402 = vsel %vm1066, %v1397, %v1401
      %v1404 = vshrl.u32 %v1058, 16
      %v1406 = vrot.slane %v1404, 4
      %v1407 = vshll.u32 %v1058, 16
      %v1409 = vrot.slane %v1407, 5
      %v1410 = vor.u32 %v1406, %v1409
      %v1411 = vrot.slane %v1410, 4
      %v1413 = vshll.u32 %v1059, 16
      %v1415 = vrot.slane %v1413, 5
      %v1416 = vsel %vm1066, %v1411, %v1415
      %v1417 = vshrl.u32 %v1059, 16
      %v1419 = vrot.slane %v1417, 4
      %v1420 = vor.u32 %v1419, %v1415
      %v1421 = vrot.slane %v1420, 4
      %v1423 = vshll.u32 %v1060, 16
      %v1425 = vrot.slane %v1423, 5
      %v1426 = vsel %vm1066, %v1421, %v1425
      %v1428 = vshrl.u32 %v1061, 16
      %v1430 = vrot.slane %v1428, 4
      %v1431 = vshll.u32 %v1061, 16
      %v1433 = vrot.slane %v1431, 5
      %v1434 = vor.u32 %v1430, %v1433
      %v1435 = vrot.slane %v1434, 4
      %v1437 = vshll.u32 %v1062, 16
      %v1439 = vrot.slane %v1437, 5
      %v1440 = vsel %vm1066, %v1435, %v1439
      %v1441 = vshrl.u32 %v1062, 16
      %v1443 = vrot.slane %v1441, 4
      %v1444 = vor.u32 %v1443, %v1439
      %v1445 = vrot.slane %v1444, 4
      %v1447 = vshll.u32 %v1063, 16
      %v1449 = vrot.slane %v1447, 5
      %v1450 = vsel %vm1066, %v1445, %v1449
      %1451 = vrot.lane.b32.xlu0 %v1080, 4
      %v1452 = vpop.permute.xlu0 %1451
      %1453 = vrot.lane.b32.xlu0 %v1090, 4
      %v1454 = vpop.permute.xlu0 %1453
      %1455 = vrot.lane.b32.xlu0 %v1104, 4
      %v1456 = vpop.permute.xlu0 %1455
      %1457 = vrot.lane.b32.xlu0 %v1114, 4
      %v1458 = vpop.permute.xlu0 %1457
      %1459 = vrot.lane.b32.xlu0 %v1128, 4
      %v1460 = vpop.permute.xlu0 %1459
      %1461 = vrot.lane.b32.xlu0 %v1138, 4
      %v1462 = vpop.permute.xlu0 %1461
      %1463 = vrot.lane.b32.xlu0 %v1152, 4
      %v1464 = vpop.permute.xlu0 %1463
      %1465 = vrot.lane.b32.xlu0 %v1162, 4
      %v1466 = vpop.permute.xlu0 %1465
      %1467 = vrot.lane.b32.xlu0 %v1176, 4
      %v1468 = vpop.permute.xlu0 %1467
      %1469 = vrot.lane.b32.xlu0 %v1186, 4
      %v1470 = vpop.permute.xlu0 %1469
      %1471 = vrot.lane.b32.xlu0 %v1200, 4
      %v1472 = vpop.permute.xlu0 %1471
      %1473 = vrot.lane.b32.xlu0 %v1210, 4
      %v1474 = vpop.permute.xlu0 %1473
      %1475 = vrot.lane.b32.xlu0 %v1224, 4
      %v1476 = vpop.permute.xlu0 %1475
      %1477 = vrot.lane.b32.xlu0 %v1234, 4
      %v1478 = vpop.permute.xlu0 %1477
      %1479 = vrot.lane.b32.xlu0 %v1248, 4
      %v1480 = vpop.permute.xlu0 %1479
      %1481 = vrot.lane.b32.xlu0 %v1258, 4
      %v1482 = vpop.permute.xlu0 %1481
      %1483 = vrot.lane.b32.xlu0 %v1272, 4
      %v1484 = vpop.permute.xlu0 %1483
      %1485 = vrot.lane.b32.xlu0 %v1282, 4
      %v1486 = vpop.permute.xlu0 %1485
      %1487 = vrot.lane.b32.xlu0 %v1296, 4
      %v1488 = vpop.permute.xlu0 %1487
      %1489 = vrot.lane.b32.xlu0 %v1306, 4
      %v1490 = vpop.permute.xlu0 %1489
      %1491 = vrot.lane.b32.xlu0 %v1320, 4
      %v1492 = vpop.permute.xlu0 %1491
      %1493 = vrot.lane.b32.xlu0 %v1330, 4
      %v1494 = vpop.permute.xlu0 %1493
      %1495 = vrot.lane.b32.xlu0 %v1344, 4
      %v1496 = vpop.permute.xlu0 %1495
      %1497 = vrot.lane.b32.xlu0 %v1354, 4
      %v1498 = vpop.permute.xlu0 %1497
      %1499 = vrot.lane.b32.xlu0 %v1368, 4
      %v1500 = vpop.permute.xlu0 %1499
      %1501 = vrot.lane.b32.xlu0 %v1378, 4
      %v1502 = vpop.permute.xlu0 %1501
      %1503 = vrot.lane.b32.xlu0 %v1392, 4
      %v1504 = vpop.permute.xlu0 %1503
      %1505 = vrot.lane.b32.xlu0 %v1402, 4
      %v1506 = vpop.permute.xlu0 %1505
      %1507 = vrot.lane.b32.xlu0 %v1416, 4
      %v1508 = vpop.permute.xlu0 %1507
      %1509 = vrot.lane.b32.xlu0 %v1426, 4
      %v1510 = vpop.permute.xlu0 %1509
      %1511 = vrot.lane.b32.xlu0 %v1440, 4
      %v1512 = vpop.permute.xlu0 %1511
      %1513 = vrot.lane.b32.xlu0 %v1450, 4
      %v1514 = vpop.permute.xlu0 %1513
      %vm1547 = vcmask 60448
      %1548 = vst.msk [vmem:[#allocation4] sm:$0xf] %vm1547, %v1452
      %1549 = vst.msk [vmem:[#allocation4 + $0x4] sm:$0xf] %vm1547, %v1454
      %1550 = vst.msk [vmem:[#allocation4 + $0x8] sm:$0xf] %vm1547, %v1456
      %1551 = vst.msk [vmem:[#allocation4 + $0xc] sm:$0xf] %vm1547, %v1458
      %1552 = vst.msk [vmem:[#allocation4 + $0x10] sm:$0xf] %vm1547, %v1460
      %1553 = vst.msk [vmem:[#allocation4 + $0x14] sm:$0xf] %vm1547, %v1462
      %1554 = vst.msk [vmem:[#allocation4 + $0x18] sm:$0xf] %vm1547, %v1464
      %1555 = vst.msk [vmem:[#allocation4 + $0x1c] sm:$0xf] %vm1547, %v1466
      %1556 = vst.msk [vmem:[#allocation4 + $0x20] sm:$0xf] %vm1547, %v1468
      %1557 = vst.msk [vmem:[#allocation4 + $0x24] sm:$0xf] %vm1547, %v1470
      %1558 = vst.msk [vmem:[#allocation4 + $0x28] sm:$0xf] %vm1547, %v1472
      %1559 = vst.msk [vmem:[#allocation4 + $0x2c] sm:$0xf] %vm1547, %v1474
      %1560 = vst.msk [vmem:[#allocation4 + $0x30] sm:$0xf] %vm1547, %v1476
      %1561 = vst.msk [vmem:[#allocation4 + $0x34] sm:$0xf] %vm1547, %v1478
      %1562 = vst.msk [vmem:[#allocation4 + $0x38] sm:$0xf] %vm1547, %v1480
      %1563 = vst.msk [vmem:[#allocation4 + $0x3c] sm:$0xf] %vm1547, %v1482
      %1564 = vst.msk [vmem:[#allocation4 + $0x40] sm:$0xf] %vm1547, %v1484
      %1565 = vst.msk [vmem:[#allocation4 + $0x44] sm:$0xf] %vm1547, %v1486
      %1566 = vst.msk [vmem:[#allocation4 + $0x48] sm:$0xf] %vm1547, %v1488
      %1567 = vst.msk [vmem:[#allocation4 + $0x4c] sm:$0xf] %vm1547, %v1490
      %1568 = vst.msk [vmem:[#allocation4 + $0x50] sm:$0xf] %vm1547, %v1492
      %1569 = vst.msk [vmem:[#allocation4 + $0x54] sm:$0xf] %vm1547, %v1494
      %1570 = vst.msk [vmem:[#allocation4 + $0x58] sm:$0xf] %vm1547, %v1496
      %1571 = vst.msk [vmem:[#allocation4 + $0x5c] sm:$0xf] %vm1547, %v1498
      %1572 = vst.msk [vmem:[#allocation4 + $0x60] sm:$0xf] %vm1547, %v1500
      %1573 = vst.msk [vmem:[#allocation4 + $0x64] sm:$0xf] %vm1547, %v1502
      %1574 = vst.msk [vmem:[#allocation4 + $0x68] sm:$0xf] %vm1547, %v1504
      %1575 = vst.msk [vmem:[#allocation4 + $0x6c] sm:$0xf] %vm1547, %v1506
      %1576 = vst.msk [vmem:[#allocation4 + $0x70] sm:$0xf] %vm1547, %v1508
      %1577 = vst.msk [vmem:[#allocation4 + $0x74] sm:$0xf] %vm1547, %v1510
      %1578 = vst.msk [vmem:[#allocation4 + $0x78] sm:$0xf] %vm1547, %v1512
      %1579 = vst.msk [vmem:[#allocation4 + $0x7c] sm:$0xf] %vm1547, %v1514
      %v1580 = vld [vmem:[#allocation2] sm:$0xe]
      %v1581 = vld [vmem:[#allocation2 + $0x4] sm:$0xf]
      %v1582 = vld [vmem:[#allocation2 + $0x8] sm:$0x1]
      %v1583 = vld [vmem:[#allocation2 + $0xc] sm:$0xe]
      %v1584 = vld [vmem:[#allocation2 + $0x10] sm:$0xf]
      %v1585 = vld [vmem:[#allocation2 + $0x14] sm:$0x1]
      %v1586 = vld [vmem:[#allocation2 + $0x18] sm:$0xe]
      %v1587 = vld [vmem:[#allocation2 + $0x1c] sm:$0xf]
      %v1588 = vld [vmem:[#allocation2 + $0x20] sm:$0x1]
      %v1589 = vld [vmem:[#allocation2 + $0x24] sm:$0xe]
      %v1590 = vld [vmem:[#allocation2 + $0x28] sm:$0xf]
      %v1591 = vld [vmem:[#allocation2 + $0x2c] sm:$0x1]
      %v1592 = vld [vmem:[#allocation2 + $0x30] sm:$0xe]
      %v1593 = vld [vmem:[#allocation2 + $0x34] sm:$0xf]
      %v1594 = vld [vmem:[#allocation2 + $0x38] sm:$0x1]
      %v1595 = vld [vmem:[#allocation2 + $0x3c] sm:$0xe]
      %v1596 = vld [vmem:[#allocation2 + $0x40] sm:$0xf]
      %v1597 = vld [vmem:[#allocation2 + $0x44] sm:$0x1]
      %v1598 = vld [vmem:[#allocation2 + $0x48] sm:$0xe]
      %v1599 = vld [vmem:[#allocation2 + $0x4c] sm:$0xf]
      %v1600 = vld [vmem:[#allocation2 + $0x50] sm:$0x1]
      %v1601 = vld [vmem:[#allocation2 + $0x54] sm:$0xe]
      %v1602 = vld [vmem:[#allocation2 + $0x58] sm:$0xf]
      %v1603 = vld [vmem:[#allocation2 + $0x5c] sm:$0x1]
      %v1604 = vld [vmem:[#allocation2 + $0x60] sm:$0xe]
      %v1605 = vld [vmem:[#allocation2 + $0x64] sm:$0xf]
      %v1606 = vld [vmem:[#allocation2 + $0x68] sm:$0x1]
      %v1607 = vld [vmem:[#allocation2 + $0x6c] sm:$0xe]
      %v1608 = vld [vmem:[#allocation2 + $0x70] sm:$0xf]
      %v1609 = vld [vmem:[#allocation2 + $0x74] sm:$0x1]
      %v1610 = vld [vmem:[#allocation2 + $0x78] sm:$0xe]
      %v1611 = vld [vmem:[#allocation2 + $0x7c] sm:$0xf]
      %v1612 = vld [vmem:[#allocation2 + $0x80] sm:$0x1]
      %v1613 = vld [vmem:[#allocation2 + $0x84] sm:$0xe]
      %v1614 = vld [vmem:[#allocation2 + $0x88] sm:$0xf]
      %v1615 = vld [vmem:[#allocation2 + $0x8c] sm:$0x1]
      %v1616 = vld [vmem:[#allocation2 + $0x90] sm:$0xe]
      %v1617 = vld [vmem:[#allocation2 + $0x94] sm:$0xf]
      %v1618 = vld [vmem:[#allocation2 + $0x98] sm:$0x1]
      %v1619 = vld [vmem:[#allocation2 + $0x9c] sm:$0xe]
      %v1620 = vld [vmem:[#allocation2 + $0xa0] sm:$0xf]
      %v1621 = vld [vmem:[#allocation2 + $0xa4] sm:$0x1]
      %v1622 = vld [vmem:[#allocation2 + $0xa8] sm:$0xe]
      %v1623 = vld [vmem:[#allocation2 + $0xac] sm:$0xf]
      %v1624 = vld [vmem:[#allocation2 + $0xb0] sm:$0x1]
      %v1625 = vld [vmem:[#allocation2 + $0xb4] sm:$0xe]
      %v1626 = vld [vmem:[#allocation2 + $0xb8] sm:$0xf]
      %v1627 = vld [vmem:[#allocation2 + $0xbc] sm:$0x1]
      %vm1676 = vcmask 1042432
      %vm1677 = vcmask 1046532
      %vm1678 = vmor %vm1676, %vm1677
      %v1679 = vrot.slane %v1580, 5
      %v1680 = vrot.slane %v1679, 4
      %v1681 = vrot.slane %v1581, 5
      %v1682 = vsel %vm1678, %v1680, %v1681
      %v1683 = vrot.slane %v1681, 4
      %v1684 = vrot.slane %v1582, 5
      %v1685 = vsel %vm1678, %v1683, %v1684
      %v1686 = vrot.slane %v1583, 5
      %v1687 = vrot.slane %v1686, 4
      %v1688 = vrot.slane %v1584, 5
      %v1689 = vsel %vm1678, %v1687, %v1688
      %v1690 = vrot.slane %v1688, 4
      %v1691 = vrot.slane %v1585, 5
      %v1692 = vsel %vm1678, %v1690, %v1691
      %v1693 = vrot.slane %v1586, 5
      %v1694 = vrot.slane %v1693, 4
      %v1695 = vrot.slane %v1587, 5
      %v1696 = vsel %vm1678, %v1694, %v1695
      %v1697 = vrot.slane %v1695, 4
      %v1698 = vrot.slane %v1588, 5
      %v1699 = vsel %vm1678, %v1697, %v1698
      %v1700 = vrot.slane %v1589, 5
      %v1701 = vrot.slane %v1700, 4
      %v1702 = vrot.slane %v1590, 5
      %v1703 = vsel %vm1678, %v1701, %v1702
      %v1704 = vrot.slane %v1702, 4
      %v1705 = vrot.slane %v1591, 5
      %v1706 = vsel %vm1678, %v1704, %v1705
      %v1707 = vrot.slane %v1592, 5
      %v1708 = vrot.slane %v1707, 4
      %v1709 = vrot.slane %v1593, 5
      %v1710 = vsel %vm1678, %v1708, %v1709
      %v1711 = vrot.slane %v1709, 4
      %v1712 = vrot.slane %v1594, 5
      %v1713 = vsel %vm1678, %v1711, %v1712
      %v1714 = vrot.slane %v1595, 5
      %v1715 = vrot.slane %v1714, 4
      %v1716 = vrot.slane %v1596, 5
      %v1717 = vsel %vm1678, %v1715, %v1716
      %v1718 = vrot.slane %v1716, 4
      %v1719 = vrot.slane %v1597, 5
      %v1720 = vsel %vm1678, %v1718, %v1719
      %v1721 = vrot.slane %v1598, 5
      %v1722 = vrot.slane %v1721, 4
      %v1723 = vrot.slane %v1599, 5
      %v1724 = vsel %vm1678, %v1722, %v1723
      %v1725 = vrot.slane %v1723, 4
      %v1726 = vrot.slane %v1600, 5
      %v1727 = vsel %vm1678, %v1725, %v1726
      %v1728 = vrot.slane %v1601, 5
      %v1729 = vrot.slane %v1728, 4
      %v1730 = vrot.slane %v1602, 5
      %v1731 = vsel %vm1678, %v1729, %v1730
      %v1732 = vrot.slane %v1730, 4
      %v1733 = vrot.slane %v1603, 5
      %v1734 = vsel %vm1678, %v1732, %v1733
      %v1735 = vrot.slane %v1604, 5
      %v1736 = vrot.slane %v1735, 4
      %v1737 = vrot.slane %v1605, 5
      %v1738 = vsel %vm1678, %v1736, %v1737
      %v1739 = vrot.slane %v1737, 4
      %v1740 = vrot.slane %v1606, 5
      %v1741 = vsel %vm1678, %v1739, %v1740
      %v1742 = vrot.slane %v1607, 5
      %v1743 = vrot.slane %v1742, 4
      %v1744 = vrot.slane %v1608, 5
      %v1745 = vsel %vm1678, %v1743, %v1744
      %v1746 = vrot.slane %v1744, 4
      %v1747 = vrot.slane %v1609, 5
      %v1748 = vsel %vm1678, %v1746, %v1747
      %v1749 = vrot.slane %v1610, 5
      %v1750 = vrot.slane %v1749, 4
      %v1751 = vrot.slane %v1611, 5
      %v1752 = vsel %vm1678, %v1750, %v1751
      %v1753 = vrot.slane %v1751, 4
      %v1754 = vrot.slane %v1612, 5
      %v1755 = vsel %vm1678, %v1753, %v1754
      %v1756 = vrot.slane %v1613, 5
      %v1757 = vrot.slane %v1756, 4
      %v1758 = vrot.slane %v1614, 5
      %v1759 = vsel %vm1678, %v1757, %v1758
      %v1760 = vrot.slane %v1758, 4
      %v1761 = vrot.slane %v1615, 5
      %v1762 = vsel %vm1678, %v1760, %v1761
      %v1763 = vrot.slane %v1616, 5
      %v1764 = vrot.slane %v1763, 4
      %v1765 = vrot.slane %v1617, 5
      %v1766 = vsel %vm1678, %v1764, %v1765
      %v1767 = vrot.slane %v1765, 4
      %v1768 = vrot.slane %v1618, 5
      %v1769 = vsel %vm1678, %v1767, %v1768
      %v1770 = vrot.slane %v1619, 5
      %v1771 = vrot.slane %v1770, 4
      %v1772 = vrot.slane %v1620, 5
      %v1773 = vsel %vm1678, %v1771, %v1772
      %v1774 = vrot.slane %v1772, 4
      %v1775 = vrot.slane %v1621, 5
      %v1776 = vsel %vm1678, %v1774, %v1775
      %v1777 = vrot.slane %v1622, 5
      %v1778 = vrot.slane %v1777, 4
      %v1779 = vrot.slane %v1623, 5
      %v1780 = vsel %vm1678, %v1778, %v1779
      %v1781 = vrot.slane %v1779, 4
      %v1782 = vrot.slane %v1624, 5
      %v1783 = vsel %vm1678, %v1781, %v1782
      %v1784 = vrot.slane %v1625, 5
      %v1785 = vrot.slane %v1784, 4
      %v1786 = vrot.slane %v1626, 5
      %v1787 = vsel %vm1678, %v1785, %v1786
      %v1788 = vrot.slane %v1786, 4
      %v1789 = vrot.slane %v1627, 5
      %v1790 = vsel %vm1678, %v1788, %v1789
      %1791 = vrot.lane.b32.xlu0 %v1682, 8
      %v1792 = vpop.permute.xlu0 %1791
      %1793 = vrot.lane.b32.xlu0 %v1685, 8
      %v1794 = vpop.permute.xlu0 %1793
      %1795 = vrot.lane.b32.xlu0 %v1689, 8
      %v1796 = vpop.permute.xlu0 %1795
      %1797 = vrot.lane.b32.xlu0 %v1692, 8
      %v1798 = vpop.permute.xlu0 %1797
      %1799 = vrot.lane.b32.xlu0 %v1696, 8
      %v1800 = vpop.permute.xlu0 %1799
      %1801 = vrot.lane.b32.xlu0 %v1699, 8
      %v1802 = vpop.permute.xlu0 %1801
      %1803 = vrot.lane.b32.xlu0 %v1703, 8
      %v1804 = vpop.permute.xlu0 %1803
      %1805 = vrot.lane.b32.xlu0 %v1706, 8
      %v1806 = vpop.permute.xlu0 %1805
      %1807 = vrot.lane.b32.xlu0 %v1710, 8
      %v1808 = vpop.permute.xlu0 %1807
      %1809 = vrot.lane.b32.xlu0 %v1713, 8
      %v1810 = vpop.permute.xlu0 %1809
      %1811 = vrot.lane.b32.xlu0 %v1717, 8
      %v1812 = vpop.permute.xlu0 %1811
      %1813 = vrot.lane.b32.xlu0 %v1720, 8
      %v1814 = vpop.permute.xlu0 %1813
      %1815 = vrot.lane.b32.xlu0 %v1724, 8
      %v1816 = vpop.permute.xlu0 %1815
      %1817 = vrot.lane.b32.xlu0 %v1727, 8
      %v1818 = vpop.permute.xlu0 %1817
      %1819 = vrot.lane.b32.xlu0 %v1731, 8
      %v1820 = vpop.permute.xlu0 %1819
      %1821 = vrot.lane.b32.xlu0 %v1734, 8
      %v1822 = vpop.permute.xlu0 %1821
      %1823 = vrot.lane.b32.xlu0 %v1738, 8
      %v1824 = vpop.permute.xlu0 %1823
      %1825 = vrot.lane.b32.xlu0 %v1741, 8
      %v1826 = vpop.permute.xlu0 %1825
      %1827 = vrot.lane.b32.xlu0 %v1745, 8
      %v1828 = vpop.permute.xlu0 %1827
      %1829 = vrot.lane.b32.xlu0 %v1748, 8
      %v1830 = vpop.permute.xlu0 %1829
      %1831 = vrot.lane.b32.xlu0 %v1752, 8
      %v1832 = vpop.permute.xlu0 %1831
      %1833 = vrot.lane.b32.xlu0 %v1755, 8
      %v1834 = vpop.permute.xlu0 %1833
      %1835 = vrot.lane.b32.xlu0 %v1759, 8
      %v1836 = vpop.permute.xlu0 %1835
      %1837 = vrot.lane.b32.xlu0 %v1762, 8
      %v1838 = vpop.permute.xlu0 %1837
      %1839 = vrot.lane.b32.xlu0 %v1766, 8
      %v1840 = vpop.permute.xlu0 %1839
      %1841 = vrot.lane.b32.xlu0 %v1769, 8
      %v1842 = vpop.permute.xlu0 %1841
      %1843 = vrot.lane.b32.xlu0 %v1773, 8
      %v1844 = vpop.permute.xlu0 %1843
      %1845 = vrot.lane.b32.xlu0 %v1776, 8
      %v1846 = vpop.permute.xlu0 %1845
      %1847 = vrot.lane.b32.xlu0 %v1780, 8
      %v1848 = vpop.permute.xlu0 %1847
      %1849 = vrot.lane.b32.xlu0 %v1783, 8
      %v1850 = vpop.permute.xlu0 %1849
      %1851 = vrot.lane.b32.xlu0 %v1787, 8
      %v1852 = vpop.permute.xlu0 %1851
      %1853 = vrot.lane.b32.xlu0 %v1790, 8
      %v1854 = vpop.permute.xlu0 %1853
      %vm1887 = vcmask 93248
      %1888 = vst.msk [vmem:[#allocation4] sm:$0xf] %vm1887, %v1792
      %1889 = vst.msk [vmem:[#allocation4 + $0x4] sm:$0xf] %vm1887, %v1794
      %1890 = vst.msk [vmem:[#allocation4 + $0x8] sm:$0xf] %vm1887, %v1796
      %1891 = vst.msk [vmem:[#allocation4 + $0xc] sm:$0xf] %vm1887, %v1798
      %1892 = vst.msk [vmem:[#allocation4 + $0x10] sm:$0xf] %vm1887, %v1800
      %1893 = vst.msk [vmem:[#allocation4 + $0x14] sm:$0xf] %vm1887, %v1802
      %1894 = vst.msk [vmem:[#allocation4 + $0x18] sm:$0xf] %vm1887, %v1804
      %1895 = vst.msk [vmem:[#allocation4 + $0x1c] sm:$0xf] %vm1887, %v1806
      %1896 = vst.msk [vmem:[#allocation4 + $0x20] sm:$0xf] %vm1887, %v1808
      %1897 = vst.msk [vmem:[#allocation4 + $0x24] sm:$0xf] %vm1887, %v1810
      %1898 = vst.msk [vmem:[#allocation4 + $0x28] sm:$0xf] %vm1887, %v1812
      %1899 = vst.msk [vmem:[#allocation4 + $0x2c] sm:$0xf] %vm1887, %v1814
      %1900 = vst.msk [vmem:[#allocation4 + $0x30] sm:$0xf] %vm1887, %v1816
      %1901 = vst.msk [vmem:[#allocation4 + $0x34] sm:$0xf] %vm1887, %v1818
      %1902 = vst.msk [vmem:[#allocation4 + $0x38] sm:$0xf] %vm1887, %v1820
      %1903 = vst.msk [vmem:[#allocation4 + $0x3c] sm:$0xf] %vm1887, %v1822
      %1904 = vst.msk [vmem:[#allocation4 + $0x40] sm:$0xf] %vm1887, %v1824
      %1905 = vst.msk [vmem:[#allocation4 + $0x44] sm:$0xf] %vm1887, %v1826
      %1906 = vst.msk [vmem:[#allocation4 + $0x48] sm:$0xf] %vm1887, %v1828
      %1907 = vst.msk [vmem:[#allocation4 + $0x4c] sm:$0xf] %vm1887, %v1830
      %1908 = vst.msk [vmem:[#allocation4 + $0x50] sm:$0xf] %vm1887, %v1832
      %1909 = vst.msk [vmem:[#allocation4 + $0x54] sm:$0xf] %vm1887, %v1834
      %1910 = vst.msk [vmem:[#allocation4 + $0x58] sm:$0xf] %vm1887, %v1836
      %1911 = vst.msk [vmem:[#allocation4 + $0x5c] sm:$0xf] %vm1887, %v1838
      %1912 = vst.msk [vmem:[#allocation4 + $0x60] sm:$0xf] %vm1887, %v1840
      %1913 = vst.msk [vmem:[#allocation4 + $0x64] sm:$0xf] %vm1887, %v1842
      %1914 = vst.msk [vmem:[#allocation4 + $0x68] sm:$0xf] %vm1887, %v1844
      %1915 = vst.msk [vmem:[#allocation4 + $0x6c] sm:$0xf] %vm1887, %v1846
      %1916 = vst.msk [vmem:[#allocation4 + $0x70] sm:$0xf] %vm1887, %v1848
      %1917 = vst.msk [vmem:[#allocation4 + $0x74] sm:$0xf] %vm1887, %v1850
      %1918 = vst.msk [vmem:[#allocation4 + $0x78] sm:$0xf] %vm1887, %v1852
      %1919 = vst.msk [vmem:[#allocation4 + $0x7c] sm:$0xf] %vm1887, %v1854
      %v1920 = vld [vmem:[%s837] sm:$0xf]
      %v1921 = vld [vmem:[%s837 + $0x4] sm:$0xf]
      %v1922 = vld [vmem:[%s837 + $0xc] sm:$0xf]
      %v1923 = vld [vmem:[%s837 + $0x10] sm:$0xf]
      %v1924 = vld [vmem:[%s837 + $0x18] sm:$0xf]
      %v1925 = vld [vmem:[%s837 + $0x1c] sm:$0xf]
      %v1926 = vld [vmem:[%s837 + $0x24] sm:$0xf]
      %v1927 = vld [vmem:[%s837 + $0x28] sm:$0xf]
      %v1928 = vld [vmem:[%s837 + $0x30] sm:$0xf]
      %v1929 = vld [vmem:[%s837 + $0x34] sm:$0xf]
      %v1930 = vld [vmem:[%s837 + $0x3c] sm:$0xf]
      %v1931 = vld [vmem:[%s837 + $0x40] sm:$0xf]
      %v1932 = vld [vmem:[%s837 + $0x48] sm:$0xf]
      %v1933 = vld [vmem:[%s837 + $0x4c] sm:$0xf]
      %v1934 = vld [vmem:[%s837 + $0x54] sm:$0xf]
      %v1935 = vld [vmem:[%s837 + $0x58] sm:$0xf]
      %v1936 = vld [vmem:[%s837 + $0x60] sm:$0xf]
      %v1937 = vld [vmem:[%s837 + $0x64] sm:$0xf]
      %v1938 = vld [vmem:[%s837 + $0x6c] sm:$0xf]
      %v1939 = vld [vmem:[%s837 + $0x70] sm:$0xf]
      %v1940 = vld [vmem:[%s837 + $0x78] sm:$0xf]
      %v1941 = vld [vmem:[%s837 + $0x7c] sm:$0xf]
      %v1942 = vld [vmem:[%s837 + $0x84] sm:$0xf]
      %v1943 = vld [vmem:[%s837 + $0x88] sm:$0xf]
      %v1944 = vld [vmem:[%s837 + $0x90] sm:$0xf]
      %v1945 = vld [vmem:[%s837 + $0x94] sm:$0xf]
      %v1946 = vld [vmem:[%s837 + $0x9c] sm:$0xf]
      %v1947 = vld [vmem:[%s837 + $0xa0] sm:$0xf]
      %v1948 = vld [vmem:[%s837 + $0xa8] sm:$0xf]
      %v1949 = vld [vmem:[%s837 + $0xac] sm:$0xf]
      %v1950 = vld [vmem:[%s837 + $0xb4] sm:$0xf]
      %v1951 = vld [vmem:[%s837 + $0xb8] sm:$0xf]
      %1984 = vrot.lane.b32.xlu0 %v1920, 12
      %v1985 = vpop.permute.xlu0 %1984
      %1986 = vrot.lane.b32.xlu0 %v1921, 12
      %v1987 = vpop.permute.xlu0 %1986
      %1988 = vrot.lane.b32.xlu0 %v1922, 12
      %v1989 = vpop.permute.xlu0 %1988
      %1990 = vrot.lane.b32.xlu0 %v1923, 12
      %v1991 = vpop.permute.xlu0 %1990
      %1992 = vrot.lane.b32.xlu0 %v1924, 12
      %v1993 = vpop.permute.xlu0 %1992
      %1994 = vrot.lane.b32.xlu0 %v1925, 12
      %v1995 = vpop.permute.xlu0 %1994
      %1996 = vrot.lane.b32.xlu0 %v1926, 12
      %v1997 = vpop.permute.xlu0 %1996
      %1998 = vrot.lane.b32.xlu0 %v1927, 12
      %v1999 = vpop.permute.xlu0 %1998
      %2000 = vrot.lane.b32.xlu0 %v1928, 12
      %v2001 = vpop.permute.xlu0 %2000
      %2002 = vrot.lane.b32.xlu0 %v1929, 12
      %v2003 = vpop.permute.xlu0 %2002
      %2004 = vrot.lane.b32.xlu0 %v1930, 12
      %v2005 = vpop.permute.xlu0 %2004
      %2006 = vrot.lane.b32.xlu0 %v1931, 12
      %v2007 = vpop.permute.xlu0 %2006
      %2008 = vrot.lane.b32.xlu0 %v1932, 12
      %v2009 = vpop.permute.xlu0 %2008
      %2010 = vrot.lane.b32.xlu0 %v1933, 12
      %v2011 = vpop.permute.xlu0 %2010
      %2012 = vrot.lane.b32.xlu0 %v1934, 12
      %v2013 = vpop.permute.xlu0 %2012
      %2014 = vrot.lane.b32.xlu0 %v1935, 12
      %v2015 = vpop.permute.xlu0 %2014
      %2016 = vrot.lane.b32.xlu0 %v1936, 12
      %v2017 = vpop.permute.xlu0 %2016
      %2018 = vrot.lane.b32.xlu0 %v1937, 12
      %v2019 = vpop.permute.xlu0 %2018
      %2020 = vrot.lane.b32.xlu0 %v1938, 12
      %v2021 = vpop.permute.xlu0 %2020
      %2022 = vrot.lane.b32.xlu0 %v1939, 12
      %v2023 = vpop.permute.xlu0 %2022
      %2024 = vrot.lane.b32.xlu0 %v1940, 12
      %v2025 = vpop.permute.xlu0 %2024
      %2026 = vrot.lane.b32.xlu0 %v1941, 12
      %v2027 = vpop.permute.xlu0 %2026
      %2028 = vrot.lane.b32.xlu0 %v1942, 12
      %v2029 = vpop.permute.xlu0 %2028
      %2030 = vrot.lane.b32.xlu0 %v1943, 12
      %v2031 = vpop.permute.xlu0 %2030
      %2032 = vrot.lane.b32.xlu0 %v1944, 12
      %v2033 = vpop.permute.xlu0 %2032
      %2034 = vrot.lane.b32.xlu0 %v1945, 12
      %v2035 = vpop.permute.xlu0 %2034
      %2036 = vrot.lane.b32.xlu0 %v1946, 12
      %v2037 = vpop.permute.xlu0 %2036
      %2038 = vrot.lane.b32.xlu0 %v1947, 12
      %v2039 = vpop.permute.xlu0 %2038
      %2040 = vrot.lane.b32.xlu0 %v1948, 12
      %v2041 = vpop.permute.xlu0 %2040
      %2042 = vrot.lane.b32.xlu0 %v1949, 12
      %v2043 = vpop.permute.xlu0 %2042
      %2044 = vrot.lane.b32.xlu0 %v1950, 12
      %v2045 = vpop.permute.xlu0 %2044
      %2046 = vrot.lane.b32.xlu0 %v1951, 12
      %v2047 = vpop.permute.xlu0 %2046
      %vm2080 = vcmask 126048
      %2081 = vst.msk [vmem:[#allocation4] sm:$0xf] %vm2080, %v1985
      %2082 = vst.msk [vmem:[#allocation4 + $0x4] sm:$0xf] %vm2080, %v1987
      %2083 = vst.msk [vmem:[#allocation4 + $0x8] sm:$0xf] %vm2080, %v1989
      %2084 = vst.msk [vmem:[#allocation4 + $0xc] sm:$0xf] %vm2080, %v1991
      %2085 = vst.msk [vmem:[#allocation4 + $0x10] sm:$0xf] %vm2080, %v1993
      %2086 = vst.msk [vmem:[#allocation4 + $0x14] sm:$0xf] %vm2080, %v1995
      %2087 = vst.msk [vmem:[#allocation4 + $0x18] sm:$0xf] %vm2080, %v1997
      %2088 = vst.msk [vmem:[#allocation4 + $0x1c] sm:$0xf] %vm2080, %v1999
      %2089 = vst.msk [vmem:[#allocation4 + $0x20] sm:$0xf] %vm2080, %v2001
      %2090 = vst.msk [vmem:[#allocation4 + $0x24] sm:$0xf] %vm2080, %v2003
      %2091 = vst.msk [vmem:[#allocation4 + $0x28] sm:$0xf] %vm2080, %v2005
      %2092 = vst.msk [vmem:[#allocation4 + $0x2c] sm:$0xf] %vm2080, %v2007
      %2093 = vst.msk [vmem:[#allocation4 + $0x30] sm:$0xf] %vm2080, %v2009
      %2094 = vst.msk [vmem:[#allocation4 + $0x34] sm:$0xf] %vm2080, %v2011
      %2095 = vst.msk [vmem:[#allocation4 + $0x38] sm:$0xf] %vm2080, %v2013
      %2096 = vst.msk [vmem:[#allocation4 + $0x3c] sm:$0xf] %vm2080, %v2015
      %2097 = vst.msk [vmem:[#allocation4 + $0x40] sm:$0xf] %vm2080, %v2017
      %2098 = vst.msk [vmem:[#allocation4 + $0x44] sm:$0xf] %vm2080, %v2019
      %2099 = vst.msk [vmem:[#allocation4 + $0x48] sm:$0xf] %vm2080, %v2021
      %2100 = vst.msk [vmem:[#allocation4 + $0x4c] sm:$0xf] %vm2080, %v2023
      %2101 = vst.msk [vmem:[#allocation4 + $0x50] sm:$0xf] %vm2080, %v2025
      %2102 = vst.msk [vmem:[#allocation4 + $0x54] sm:$0xf] %vm2080, %v2027
      %2103 = vst.msk [vmem:[#allocation4 + $0x58] sm:$0xf] %vm2080, %v2029
      %2104 = vst.msk [vmem:[#allocation4 + $0x5c] sm:$0xf] %vm2080, %v2031
      %2105 = vst.msk [vmem:[#allocation4 + $0x60] sm:$0xf] %vm2080, %v2033
      %2106 = vst.msk [vmem:[#allocation4 + $0x64] sm:$0xf] %vm2080, %v2035
      %2107 = vst.msk [vmem:[#allocation4 + $0x68] sm:$0xf] %vm2080, %v2037
      %2108 = vst.msk [vmem:[#allocation4 + $0x6c] sm:$0xf] %vm2080, %v2039
      %2109 = vst.msk [vmem:[#allocation4 + $0x70] sm:$0xf] %vm2080, %v2041
      %2110 = vst.msk [vmem:[#allocation4 + $0x74] sm:$0xf] %vm2080, %v2043
      %2111 = vst.msk [vmem:[#allocation4 + $0x78] sm:$0xf] %vm2080, %v2045
      %2112 = vst.msk [vmem:[#allocation4 + $0x7c] sm:$0xf] %vm2080, %v2047
      %v2113 = vld [vmem:[%s837] sm:$0xf]
      %v2114 = vld [vmem:[%s837 + $0x4] sm:$0xf]
      %v2115 = vld [vmem:[%s837 + $0x8] sm:$0x1]
      %v2116 = vld [vmem:[%s837 + $0xc] sm:$0xf]
      %v2117 = vld [vmem:[%s837 + $0x10] sm:$0xf]
      %v2118 = vld [vmem:[%s837 + $0x14] sm:$0x1]
      %v2119 = vld [vmem:[%s837 + $0x18] sm:$0xf]
      %v2120 = vld [vmem:[%s837 + $0x1c] sm:$0xf]
      %v2121 = vld [vmem:[%s837 + $0x20] sm:$0x1]
      %v2122 = vld [vmem:[%s837 + $0x24] sm:$0xf]
      %v2123 = vld [vmem:[%s837 + $0x28] sm:$0xf]
      %v2124 = vld [vmem:[%s837 + $0x2c] sm:$0x1]
      %v2125 = vld [vmem:[%s837 + $0x30] sm:$0xf]
      %v2126 = vld [vmem:[%s837 + $0x34] sm:$0xf]
      %v2127 = vld [vmem:[%s837 + $0x38] sm:$0x1]
      %v2128 = vld [vmem:[%s837 + $0x3c] sm:$0xf]
      %v2129 = vld [vmem:[%s837 + $0x40] sm:$0xf]
      %v2130 = vld [vmem:[%s837 + $0x44] sm:$0x1]
      %v2131 = vld [vmem:[%s837 + $0x48] sm:$0xf]
      %v2132 = vld [vmem:[%s837 + $0x4c] sm:$0xf]
      %v2133 = vld [vmem:[%s837 + $0x50] sm:$0x1]
      %v2134 = vld [vmem:[%s837 + $0x54] sm:$0xf]
      %v2135 = vld [vmem:[%s837 + $0x58] sm:$0xf]
      %v2136 = vld [vmem:[%s837 + $0x5c] sm:$0x1]
      %v2137 = vld [vmem:[%s837 + $0x60] sm:$0xf]
      %v2138 = vld [vmem:[%s837 + $0x64] sm:$0xf]
      %v2139 = vld [vmem:[%s837 + $0x68] sm:$0x1]
      %v2140 = vld [vmem:[%s837 + $0x6c] sm:$0xf]
      %v2141 = vld [vmem:[%s837 + $0x70] sm:$0xf]
      %v2142 = vld [vmem:[%s837 + $0x74] sm:$0x1]
      %v2143 = vld [vmem:[%s837 + $0x78] sm:$0xf]
      %v2144 = vld [vmem:[%s837 + $0x7c] sm:$0xf]
      %v2145 = vld [vmem:[%s837 + $0x80] sm:$0x1]
      %v2146 = vld [vmem:[%s837 + $0x84] sm:$0xf]
      %v2147 = vld [vmem:[%s837 + $0x88] sm:$0xf]
      %v2148 = vld [vmem:[%s837 + $0x8c] sm:$0x1]
      %v2149 = vld [vmem:[%s837 + $0x90] sm:$0xf]
      %v2150 = vld [vmem:[%s837 + $0x94] sm:$0xf]
      %v2151 = vld [vmem:[%s837 + $0x98] sm:$0x1]
      %v2152 = vld [vmem:[%s837 + $0x9c] sm:$0xf]
      %v2153 = vld [vmem:[%s837 + $0xa0] sm:$0xf]
      %v2154 = vld [vmem:[%s837 + $0xa4] sm:$0x1]
      %v2155 = vld [vmem:[%s837 + $0xa8] sm:$0xf]
      %v2156 = vld [vmem:[%s837 + $0xac] sm:$0xf]
      %v2157 = vld [vmem:[%s837 + $0xb0] sm:$0x1]
      %v2158 = vld [vmem:[%s837 + $0xb4] sm:$0xf]
      %v2159 = vld [vmem:[%s837 + $0xb8] sm:$0xf]
      %v2160 = vld [vmem:[%s837 + $0xbc] sm:$0x1]
      %v2162 = vshrl.u32 %v2113, 16
      %v2164 = vrot.slane %v2162, 4
      %v2165 = vshll.u32 %v2113, 16
      %v2167 = vrot.slane %v2165, 5
      %v2168 = vor.u32 %v2164, %v2167
      %v2169 = vrot.slane %v2168, 4
      %v2171 = vshll.u32 %v2114, 16
      %v2173 = vrot.slane %v2171, 5
      %v2174 = vsel %vm1066, %v2169, %v2173
      %v2175 = vshrl.u32 %v2114, 16
      %v2177 = vrot.slane %v2175, 4
      %v2178 = vor.u32 %v2177, %v2173
      %v2179 = vrot.slane %v2178, 4
      %v2181 = vshll.u32 %v2115, 16
      %v2183 = vrot.slane %v2181, 5
      %v2184 = vsel %vm1066, %v2179, %v2183
      %v2186 = vshrl.u32 %v2116, 16
      %v2188 = vrot.slane %v2186, 4
      %v2189 = vshll.u32 %v2116, 16
      %v2191 = vrot.slane %v2189, 5
      %v2192 = vor.u32 %v2188, %v2191
      %v2193 = vrot.slane %v2192, 4
      %v2195 = vshll.u32 %v2117, 16
      %v2197 = vrot.slane %v2195, 5
      %v2198 = vsel %vm1066, %v2193, %v2197
      %v2199 = vshrl.u32 %v2117, 16
      %v2201 = vrot.slane %v2199, 4
      %v2202 = vor.u32 %v2201, %v2197
      %v2203 = vrot.slane %v2202, 4
      %v2205 = vshll.u32 %v2118, 16
      %v2207 = vrot.slane %v2205, 5
      %v2208 = vsel %vm1066, %v2203, %v2207
      %v2210 = vshrl.u32 %v2119, 16
      %v2212 = vrot.slane %v2210, 4
      %v2213 = vshll.u32 %v2119, 16
      %v2215 = vrot.slane %v2213, 5
      %v2216 = vor.u32 %v2212, %v2215
      %v2217 = vrot.slane %v2216, 4
      %v2219 = vshll.u32 %v2120, 16
      %v2221 = vrot.slane %v2219, 5
      %v2222 = vsel %vm1066, %v2217, %v2221
      %v2223 = vshrl.u32 %v2120, 16
      %v2225 = vrot.slane %v2223, 4
      %v2226 = vor.u32 %v2225, %v2221
      %v2227 = vrot.slane %v2226, 4
      %v2229 = vshll.u32 %v2121, 16
      %v2231 = vrot.slane %v2229, 5
      %v2232 = vsel %vm1066, %v2227, %v2231
      %v2234 = vshrl.u32 %v2122, 16
      %v2236 = vrot.slane %v2234, 4
      %v2237 = vshll.u32 %v2122, 16
      %v2239 = vrot.slane %v2237, 5
      %v2240 = vor.u32 %v2236, %v2239
      %v2241 = vrot.slane %v2240, 4
      %v2243 = vshll.u32 %v2123, 16
      %v2245 = vrot.slane %v2243, 5
      %v2246 = vsel %vm1066, %v2241, %v2245
      %v2247 = vshrl.u32 %v2123, 16
      %v2249 = vrot.slane %v2247, 4
      %v2250 = vor.u32 %v2249, %v2245
      %v2251 = vrot.slane %v2250, 4
      %v2253 = vshll.u32 %v2124, 16
      %v2255 = vrot.slane %v2253, 5
      %v2256 = vsel %vm1066, %v2251, %v2255
      %v2258 = vshrl.u32 %v2125, 16
      %v2260 = vrot.slane %v2258, 4
      %v2261 = vshll.u32 %v2125, 16
      %v2263 = vrot.slane %v2261, 5
      %v2264 = vor.u32 %v2260, %v2263
      %v2265 = vrot.slane %v2264, 4
      %v2267 = vshll.u32 %v2126, 16
      %v2269 = vrot.slane %v2267, 5
      %v2270 = vsel %vm1066, %v2265, %v2269
      %v2271 = vshrl.u32 %v2126, 16
      %v2273 = vrot.slane %v2271, 4
      %v2274 = vor.u32 %v2273, %v2269
      %v2275 = vrot.slane %v2274, 4
      %v2277 = vshll.u32 %v2127, 16
      %v2279 = vrot.slane %v2277, 5
      %v2280 = vsel %vm1066, %v2275, %v2279
      %v2282 = vshrl.u32 %v2128, 16
      %v2284 = vrot.slane %v2282, 4
      %v2285 = vshll.u32 %v2128, 16
      %v2287 = vrot.slane %v2285, 5
      %v2288 = vor.u32 %v2284, %v2287
      %v2289 = vrot.slane %v2288, 4
      %v2291 = vshll.u32 %v2129, 16
      %v2293 = vrot.slane %v2291, 5
      %v2294 = vsel %vm1066, %v2289, %v2293
      %v2295 = vshrl.u32 %v2129, 16
      %v2297 = vrot.slane %v2295, 4
      %v2298 = vor.u32 %v2297, %v2293
      %v2299 = vrot.slane %v2298, 4
      %v2301 = vshll.u32 %v2130, 16
      %v2303 = vrot.slane %v2301, 5
      %v2304 = vsel %vm1066, %v2299, %v2303
      %v2306 = vshrl.u32 %v2131, 16
      %v2308 = vrot.slane %v2306, 4
      %v2309 = vshll.u32 %v2131, 16
      %v2311 = vrot.slane %v2309, 5
      %v2312 = vor.u32 %v2308, %v2311
      %v2313 = vrot.slane %v2312, 4
      %v2315 = vshll.u32 %v2132, 16
      %v2317 = vrot.slane %v2315, 5
      %v2318 = vsel %vm1066, %v2313, %v2317
      %v2319 = vshrl.u32 %v2132, 16
      %v2321 = vrot.slane %v2319, 4
      %v2322 = vor.u32 %v2321, %v2317
      %v2323 = vrot.slane %v2322, 4
      %v2325 = vshll.u32 %v2133, 16
      %v2327 = vrot.slane %v2325, 5
      %v2328 = vsel %vm1066, %v2323, %v2327
      %v2330 = vshrl.u32 %v2134, 16
      %v2332 = vrot.slane %v2330, 4
      %v2333 = vshll.u32 %v2134, 16
      %v2335 = vrot.slane %v2333, 5
      %v2336 = vor.u32 %v2332, %v2335
      %v2337 = vrot.slane %v2336, 4
      %v2339 = vshll.u32 %v2135, 16
      %v2341 = vrot.slane %v2339, 5
      %v2342 = vsel %vm1066, %v2337, %v2341
      %v2343 = vshrl.u32 %v2135, 16
      %v2345 = vrot.slane %v2343, 4
      %v2346 = vor.u32 %v2345, %v2341
      %v2347 = vrot.slane %v2346, 4
      %v2349 = vshll.u32 %v2136, 16
      %v2351 = vrot.slane %v2349, 5
      %v2352 = vsel %vm1066, %v2347, %v2351
      %v2354 = vshrl.u32 %v2137, 16
      %v2356 = vrot.slane %v2354, 4
      %v2357 = vshll.u32 %v2137, 16
      %v2359 = vrot.slane %v2357, 5
      %v2360 = vor.u32 %v2356, %v2359
      %v2361 = vrot.slane %v2360, 4
      %v2363 = vshll.u32 %v2138, 16
      %v2365 = vrot.slane %v2363, 5
      %v2366 = vsel %vm1066, %v2361, %v2365
      %v2367 = vshrl.u32 %v2138, 16
      %v2369 = vrot.slane %v2367, 4
      %v2370 = vor.u32 %v2369, %v2365
      %v2371 = vrot.slane %v2370, 4
      %v2373 = vshll.u32 %v2139, 16
      %v2375 = vrot.slane %v2373, 5
      %v2376 = vsel %vm1066, %v2371, %v2375
      %v2378 = vshrl.u32 %v2140, 16
      %v2380 = vrot.slane %v2378, 4
      %v2381 = vshll.u32 %v2140, 16
      %v2383 = vrot.slane %v2381, 5
      %v2384 = vor.u32 %v2380, %v2383
      %v2385 = vrot.slane %v2384, 4
      %v2387 = vshll.u32 %v2141, 16
      %v2389 = vrot.slane %v2387, 5
      %v2390 = vsel %vm1066, %v2385, %v2389
      %v2391 = vshrl.u32 %v2141, 16
      %v2393 = vrot.slane %v2391, 4
      %v2394 = vor.u32 %v2393, %v2389
      %v2395 = vrot.slane %v2394, 4
      %v2397 = vshll.u32 %v2142, 16
      %v2399 = vrot.slane %v2397, 5
      %v2400 = vsel %vm1066, %v2395, %v2399
      %v2402 = vshrl.u32 %v2143, 16
      %v2404 = vrot.slane %v2402, 4
      %v2405 = vshll.u32 %v2143, 16
      %v2407 = vrot.slane %v2405, 5
      %v2408 = vor.u32 %v2404, %v2407
      %v2409 = vrot.slane %v2408, 4
      %v2411 = vshll.u32 %v2144, 16
      %v2413 = vrot.slane %v2411, 5
      %v2414 = vsel %vm1066, %v2409, %v2413
      %v2415 = vshrl.u32 %v2144, 16
      %v2417 = vrot.slane %v2415, 4
      %v2418 = vor.u32 %v2417, %v2413
      %v2419 = vrot.slane %v2418, 4
      %v2421 = vshll.u32 %v2145, 16
      %v2423 = vrot.slane %v2421, 5
      %v2424 = vsel %vm1066, %v2419, %v2423
      %v2426 = vshrl.u32 %v2146, 16
      %v2428 = vrot.slane %v2426, 4
      %v2429 = vshll.u32 %v2146, 16
      %v2431 = vrot.slane %v2429, 5
      %v2432 = vor.u32 %v2428, %v2431
      %v2433 = vrot.slane %v2432, 4
      %v2435 = vshll.u32 %v2147, 16
      %v2437 = vrot.slane %v2435, 5
      %v2438 = vsel %vm1066, %v2433, %v2437
      %v2439 = vshrl.u32 %v2147, 16
      %v2441 = vrot.slane %v2439, 4
      %v2442 = vor.u32 %v2441, %v2437
      %v2443 = vrot.slane %v2442, 4
      %v2445 = vshll.u32 %v2148, 16
      %v2447 = vrot.slane %v2445, 5
      %v2448 = vsel %vm1066, %v2443, %v2447
      %v2450 = vshrl.u32 %v2149, 16
      %v2452 = vrot.slane %v2450, 4
      %v2453 = vshll.u32 %v2149, 16
      %v2455 = vrot.slane %v2453, 5
      %v2456 = vor.u32 %v2452, %v2455
      %v2457 = vrot.slane %v2456, 4
      %v2459 = vshll.u32 %v2150, 16
      %v2461 = vrot.slane %v2459, 5
      %v2462 = vsel %vm1066, %v2457, %v2461
      %v2463 = vshrl.u32 %v2150, 16
      %v2465 = vrot.slane %v2463, 4
      %v2466 = vor.u32 %v2465, %v2461
      %v2467 = vrot.slane %v2466, 4
      %v2469 = vshll.u32 %v2151, 16
      %v2471 = vrot.slane %v2469, 5
      %v2472 = vsel %vm1066, %v2467, %v2471
      %v2474 = vshrl.u32 %v2152, 16
      %v2476 = vrot.slane %v2474, 4
      %v2477 = vshll.u32 %v2152, 16
      %v2479 = vrot.slane %v2477, 5
      %v2480 = vor.u32 %v2476, %v2479
      %v2481 = vrot.slane %v2480, 4
      %v2483 = vshll.u32 %v2153, 16
      %v2485 = vrot.slane %v2483, 5
      %v2486 = vsel %vm1066, %v2481, %v2485
      %v2487 = vshrl.u32 %v2153, 16
      %v2489 = vrot.slane %v2487, 4
      %v2490 = vor.u32 %v2489, %v2485
      %v2491 = vrot.slane %v2490, 4
      %v2493 = vshll.u32 %v2154, 16
      %v2495 = vrot.slane %v2493, 5
      %v2496 = vsel %vm1066, %v2491, %v2495
      %v2498 = vshrl.u32 %v2155, 16
      %v2500 = vrot.slane %v2498, 4
      %v2501 = vshll.u32 %v2155, 16
      %v2503 = vrot.slane %v2501, 5
      %v2504 = vor.u32 %v2500, %v2503
      %v2505 = vrot.slane %v2504, 4
      %v2507 = vshll.u32 %v2156, 16
      %v2509 = vrot.slane %v2507, 5
      %v2510 = vsel %vm1066, %v2505, %v2509
      %v2511 = vshrl.u32 %v2156, 16
      %v2513 = vrot.slane %v2511, 4
      %v2514 = vor.u32 %v2513, %v2509
      %v2515 = vrot.slane %v2514, 4
      %v2517 = vshll.u32 %v2157, 16
      %v2519 = vrot.slane %v2517, 5
      %v2520 = vsel %vm1066, %v2515, %v2519
      %v2522 = vshrl.u32 %v2158, 16
      %v2524 = vrot.slane %v2522, 4
      %v2525 = vshll.u32 %v2158, 16
      %v2527 = vrot.slane %v2525, 5
      %v2528 = vor.u32 %v2524, %v2527
      %v2529 = vrot.slane %v2528, 4
      %v2531 = vshll.u32 %v2159, 16
      %v2533 = vrot.slane %v2531, 5
      %v2534 = vsel %vm1066, %v2529, %v2533
      %v2535 = vshrl.u32 %v2159, 16
      %v2537 = vrot.slane %v2535, 4
      %v2538 = vor.u32 %v2537, %v2533
      %v2539 = vrot.slane %v2538, 4
      %v2541 = vshll.u32 %v2160, 16
      %v2543 = vrot.slane %v2541, 5
      %v2544 = vsel %vm1066, %v2539, %v2543
      %2545 = vrot.lane.b32.xlu0 %v2174, 16
      %v2546 = vpop.permute.xlu0 %2545
      %2547 = vrot.lane.b32.xlu0 %v2184, 16
      %v2548 = vpop.permute.xlu0 %2547
      %2549 = vrot.lane.b32.xlu0 %v2198, 16
      %v2550 = vpop.permute.xlu0 %2549
      %2551 = vrot.lane.b32.xlu0 %v2208, 16
      %v2552 = vpop.permute.xlu0 %2551
      %2553 = vrot.lane.b32.xlu0 %v2222, 16
      %v2554 = vpop.permute.xlu0 %2553
      %2555 = vrot.lane.b32.xlu0 %v2232, 16
      %v2556 = vpop.permute.xlu0 %2555
      %2557 = vrot.lane.b32.xlu0 %v2246, 16
      %v2558 = vpop.permute.xlu0 %2557
      %2559 = vrot.lane.b32.xlu0 %v2256, 16
      %v2560 = vpop.permute.xlu0 %2559
      %2561 = vrot.lane.b32.xlu0 %v2270, 16
      %v2562 = vpop.permute.xlu0 %2561
      %2563 = vrot.lane.b32.xlu0 %v2280, 16
      %v2564 = vpop.permute.xlu0 %2563
      %2565 = vrot.lane.b32.xlu0 %v2294, 16
      %v2566 = vpop.permute.xlu0 %2565
      %2567 = vrot.lane.b32.xlu0 %v2304, 16
      %v2568 = vpop.permute.xlu0 %2567
      %2569 = vrot.lane.b32.xlu0 %v2318, 16
      %v2570 = vpop.permute.xlu0 %2569
      %2571 = vrot.lane.b32.xlu0 %v2328, 16
      %v2572 = vpop.permute.xlu0 %2571
      %2573 = vrot.lane.b32.xlu0 %v2342, 16
      %v2574 = vpop.permute.xlu0 %2573
      %2575 = vrot.lane.b32.xlu0 %v2352, 16
      %v2576 = vpop.permute.xlu0 %2575
      %2577 = vrot.lane.b32.xlu0 %v2366, 16
      %v2578 = vpop.permute.xlu0 %2577
      %2579 = vrot.lane.b32.xlu0 %v2376, 16
      %v2580 = vpop.permute.xlu0 %2579
      %2581 = vrot.lane.b32.xlu0 %v2390, 16
      %v2582 = vpop.permute.xlu0 %2581
      %2583 = vrot.lane.b32.xlu0 %v2400, 16
      %v2584 = vpop.permute.xlu0 %2583
      %2585 = vrot.lane.b32.xlu0 %v2414, 16
      %v2586 = vpop.permute.xlu0 %2585
      %2587 = vrot.lane.b32.xlu0 %v2424, 16
      %v2588 = vpop.permute.xlu0 %2587
      %2589 = vrot.lane.b32.xlu0 %v2438, 16
      %v2590 = vpop.permute.xlu0 %2589
      %2591 = vrot.lane.b32.xlu0 %v2448, 16
      %v2592 = vpop.permute.xlu0 %2591
      %2593 = vrot.lane.b32.xlu0 %v2462, 16
      %v2594 = vpop.permute.xlu0 %2593
      %2595 = vrot.lane.b32.xlu0 %v2472, 16
      %v2596 = vpop.permute.xlu0 %2595
      %2597 = vrot.lane.b32.xlu0 %v2486, 16
      %v2598 = vpop.permute.xlu0 %2597
      %2599 = vrot.lane.b32.xlu0 %v2496, 16
      %v2600 = vpop.permute.xlu0 %2599
      %2601 = vrot.lane.b32.xlu0 %v2510, 16
      %v2602 = vpop.permute.xlu0 %2601
      %2603 = vrot.lane.b32.xlu0 %v2520, 16
      %v2604 = vpop.permute.xlu0 %2603
      %2605 = vrot.lane.b32.xlu0 %v2534, 16
      %v2606 = vpop.permute.xlu0 %2605
      %2607 = vrot.lane.b32.xlu0 %v2544, 16
      %v2608 = vpop.permute.xlu0 %2607
      %vm2641 = vcmask 158848
      %2642 = vst.msk [vmem:[#allocation4] sm:$0xf] %vm2641, %v2546
      %2643 = vst.msk [vmem:[#allocation4 + $0x4] sm:$0xf] %vm2641, %v2548
      %2644 = vst.msk [vmem:[#allocation4 + $0x8] sm:$0xf] %vm2641, %v2550
      %2645 = vst.msk [vmem:[#allocation4 + $0xc] sm:$0xf] %vm2641, %v2552
      %2646 = vst.msk [vmem:[#allocation4 + $0x10] sm:$0xf] %vm2641, %v2554
      %2647 = vst.msk [vmem:[#allocation4 + $0x14] sm:$0xf] %vm2641, %v2556
      %2648 = vst.msk [vmem:[#allocation4 + $0x18] sm:$0xf] %vm2641, %v2558
      %2649 = vst.msk [vmem:[#allocation4 + $0x1c] sm:$0xf] %vm2641, %v2560
      %2650 = vst.msk [vmem:[#allocation4 + $0x20] sm:$0xf] %vm2641, %v2562
      %2651 = vst.msk [vmem:[#allocation4 + $0x24] sm:$0xf] %vm2641, %v2564
      %2652 = vst.msk [vmem:[#allocation4 + $0x28] sm:$0xf] %vm2641, %v2566
      %2653 = vst.msk [vmem:[#allocation4 + $0x2c] sm:$0xf] %vm2641, %v2568
      %2654 = vst.msk [vmem:[#allocation4 + $0x30] sm:$0xf] %vm2641, %v2570
      %2655 = vst.msk [vmem:[#allocation4 + $0x34] sm:$0xf] %vm2641, %v2572
      %2656 = vst.msk [vmem:[#allocation4 + $0x38] sm:$0xf] %vm2641, %v2574
      %2657 = vst.msk [vmem:[#allocation4 + $0x3c] sm:$0xf] %vm2641, %v2576
      %2658 = vst.msk [vmem:[#allocation4 + $0x40] sm:$0xf] %vm2641, %v2578
      %2659 = vst.msk [vmem:[#allocation4 + $0x44] sm:$0xf] %vm2641, %v2580
      %2660 = vst.msk [vmem:[#allocation4 + $0x48] sm:$0xf] %vm2641, %v2582
      %2661 = vst.msk [vmem:[#allocation4 + $0x4c] sm:$0xf] %vm2641, %v2584
      %2662 = vst.msk [vmem:[#allocation4 + $0x50] sm:$0xf] %vm2641, %v2586
      %2663 = vst.msk [vmem:[#allocation4 + $0x54] sm:$0xf] %vm2641, %v2588
      %2664 = vst.msk [vmem:[#allocation4 + $0x58] sm:$0xf] %vm2641, %v2590
      %2665 = vst.msk [vmem:[#allocation4 + $0x5c] sm:$0xf] %vm2641, %v2592
      %2666 = vst.msk [vmem:[#allocation4 + $0x60] sm:$0xf] %vm2641, %v2594
      %2667 = vst.msk [vmem:[#allocation4 + $0x64] sm:$0xf] %vm2641, %v2596
      %2668 = vst.msk [vmem:[#allocation4 + $0x68] sm:$0xf] %vm2641, %v2598
      %2669 = vst.msk [vmem:[#allocation4 + $0x6c] sm:$0xf] %vm2641, %v2600
      %2670 = vst.msk [vmem:[#allocation4 + $0x70] sm:$0xf] %vm2641, %v2602
      %2671 = vst.msk [vmem:[#allocation4 + $0x74] sm:$0xf] %vm2641, %v2604
      %2672 = vst.msk [vmem:[#allocation4 + $0x78] sm:$0xf] %vm2641, %v2606
      %2673 = vst.msk [vmem:[#allocation4 + $0x7c] sm:$0xf] %vm2641, %v2608
      %v2674 = vld [vmem:[%s837] sm:$0xe]
      %v2675 = vld [vmem:[%s837 + $0x4] sm:$0xf]
      %v2676 = vld [vmem:[%s837 + $0x8] sm:$0x1]
      %v2677 = vld [vmem:[%s837 + $0xc] sm:$0xe]
      %v2678 = vld [vmem:[%s837 + $0x10] sm:$0xf]
      %v2679 = vld [vmem:[%s837 + $0x14] sm:$0x1]
      %v2680 = vld [vmem:[%s837 + $0x18] sm:$0xe]
      %v2681 = vld [vmem:[%s837 + $0x1c] sm:$0xf]
      %v2682 = vld [vmem:[%s837 + $0x20] sm:$0x1]
      %v2683 = vld [vmem:[%s837 + $0x24] sm:$0xe]
      %v2684 = vld [vmem:[%s837 + $0x28] sm:$0xf]
      %v2685 = vld [vmem:[%s837 + $0x2c] sm:$0x1]
      %v2686 = vld [vmem:[%s837 + $0x30] sm:$0xe]
      %v2687 = vld [vmem:[%s837 + $0x34] sm:$0xf]
      %v2688 = vld [vmem:[%s837 + $0x38] sm:$0x1]
      %v2689 = vld [vmem:[%s837 + $0x3c] sm:$0xe]
      %v2690 = vld [vmem:[%s837 + $0x40] sm:$0xf]
      %v2691 = vld [vmem:[%s837 + $0x44] sm:$0x1]
      %v2692 = vld [vmem:[%s837 + $0x48] sm:$0xe]
      %v2693 = vld [vmem:[%s837 + $0x4c] sm:$0xf]
      %v2694 = vld [vmem:[%s837 + $0x50] sm:$0x1]
      %v2695 = vld [vmem:[%s837 + $0x54] sm:$0xe]
      %v2696 = vld [vmem:[%s837 + $0x58] sm:$0xf]
      %v2697 = vld [vmem:[%s837 + $0x5c] sm:$0x1]
      %v2698 = vld [vmem:[%s837 + $0x60] sm:$0xe]
      %v2699 = vld [vmem:[%s837 + $0x64] sm:$0xf]
      %v2700 = vld [vmem:[%s837 + $0x68] sm:$0x1]
      %v2701 = vld [vmem:[%s837 + $0x6c] sm:$0xe]
      %v2702 = vld [vmem:[%s837 + $0x70] sm:$0xf]
      %v2703 = vld [vmem:[%s837 + $0x74] sm:$0x1]
      %v2704 = vld [vmem:[%s837 + $0x78] sm:$0xe]
      %v2705 = vld [vmem:[%s837 + $0x7c] sm:$0xf]
      %v2706 = vld [vmem:[%s837 + $0x80] sm:$0x1]
      %v2707 = vld [vmem:[%s837 + $0x84] sm:$0xe]
      %v2708 = vld [vmem:[%s837 + $0x88] sm:$0xf]
      %v2709 = vld [vmem:[%s837 + $0x8c] sm:$0x1]
      %v2710 = vld [vmem:[%s837 + $0x90] sm:$0xe]
      %v2711 = vld [vmem:[%s837 + $0x94] sm:$0xf]
      %v2712 = vld [vmem:[%s837 + $0x98] sm:$0x1]
      %v2713 = vld [vmem:[%s837 + $0x9c] sm:$0xe]
      %v2714 = vld [vmem:[%s837 + $0xa0] sm:$0xf]
      %v2715 = vld [vmem:[%s837 + $0xa4] sm:$0x1]
      %v2716 = vld [vmem:[%s837 + $0xa8] sm:$0xe]
      %v2717 = vld [vmem:[%s837 + $0xac] sm:$0xf]
      %v2718 = vld [vmem:[%s837 + $0xb0] sm:$0x1]
      %v2719 = vld [vmem:[%s837 + $0xb4] sm:$0xe]
      %v2720 = vld [vmem:[%s837 + $0xb8] sm:$0xf]
      %v2721 = vld [vmem:[%s837 + $0xbc] sm:$0x1]
      %v2770 = vrot.slane %v2674, 5
      %v2771 = vrot.slane %v2770, 4
      %v2772 = vrot.slane %v2675, 5
      %v2773 = vsel %vm1678, %v2771, %v2772
      %v2774 = vrot.slane %v2772, 4
      %v2775 = vrot.slane %v2676, 5
      %v2776 = vsel %vm1678, %v2774, %v2775
      %v2777 = vrot.slane %v2677, 5
      %v2778 = vrot.slane %v2777, 4
      %v2779 = vrot.slane %v2678, 5
      %v2780 = vsel %vm1678, %v2778, %v2779
      %v2781 = vrot.slane %v2779, 4
      %v2782 = vrot.slane %v2679, 5
      %v2783 = vsel %vm1678, %v2781, %v2782
      %v2784 = vrot.slane %v2680, 5
      %v2785 = vrot.slane %v2784, 4
      %v2786 = vrot.slane %v2681, 5
      %v2787 = vsel %vm1678, %v2785, %v2786
      %v2788 = vrot.slane %v2786, 4
      %v2789 = vrot.slane %v2682, 5
      %v2790 = vsel %vm1678, %v2788, %v2789
      %v2791 = vrot.slane %v2683, 5
      %v2792 = vrot.slane %v2791, 4
      %v2793 = vrot.slane %v2684, 5
      %v2794 = vsel %vm1678, %v2792, %v2793
      %v2795 = vrot.slane %v2793, 4
      %v2796 = vrot.slane %v2685, 5
      %v2797 = vsel %vm1678, %v2795, %v2796
      %v2798 = vrot.slane %v2686, 5
      %v2799 = vrot.slane %v2798, 4
      %v2800 = vrot.slane %v2687, 5
      %v2801 = vsel %vm1678, %v2799, %v2800
      %v2802 = vrot.slane %v2800, 4
      %v2803 = vrot.slane %v2688, 5
      %v2804 = vsel %vm1678, %v2802, %v2803
      %v2805 = vrot.slane %v2689, 5
      %v2806 = vrot.slane %v2805, 4
      %v2807 = vrot.slane %v2690, 5
      %v2808 = vsel %vm1678, %v2806, %v2807
      %v2809 = vrot.slane %v2807, 4
      %v2810 = vrot.slane %v2691, 5
      %v2811 = vsel %vm1678, %v2809, %v2810
      %v2812 = vrot.slane %v2692, 5
      %v2813 = vrot.slane %v2812, 4
      %v2814 = vrot.slane %v2693, 5
      %v2815 = vsel %vm1678, %v2813, %v2814
      %v2816 = vrot.slane %v2814, 4
      %v2817 = vrot.slane %v2694, 5
      %v2818 = vsel %vm1678, %v2816, %v2817
      %v2819 = vrot.slane %v2695, 5
      %v2820 = vrot.slane %v2819, 4
      %v2821 = vrot.slane %v2696, 5
      %v2822 = vsel %vm1678, %v2820, %v2821
      %v2823 = vrot.slane %v2821, 4
      %v2824 = vrot.slane %v2697, 5
      %v2825 = vsel %vm1678, %v2823, %v2824
      %v2826 = vrot.slane %v2698, 5
      %v2827 = vrot.slane %v2826, 4
      %v2828 = vrot.slane %v2699, 5
      %v2829 = vsel %vm1678, %v2827, %v2828
      %v2830 = vrot.slane %v2828, 4
      %v2831 = vrot.slane %v2700, 5
      %v2832 = vsel %vm1678, %v2830, %v2831
      %v2833 = vrot.slane %v2701, 5
      %v2834 = vrot.slane %v2833, 4
      %v2835 = vrot.slane %v2702, 5
      %v2836 = vsel %vm1678, %v2834, %v2835
      %v2837 = vrot.slane %v2835, 4
      %v2838 = vrot.slane %v2703, 5
      %v2839 = vsel %vm1678, %v2837, %v2838
      %v2840 = vrot.slane %v2704, 5
      %v2841 = vrot.slane %v2840, 4
      %v2842 = vrot.slane %v2705, 5
      %v2843 = vsel %vm1678, %v2841, %v2842
      %v2844 = vrot.slane %v2842, 4
      %v2845 = vrot.slane %v2706, 5
      %v2846 = vsel %vm1678, %v2844, %v2845
      %v2847 = vrot.slane %v2707, 5
      %v2848 = vrot.slane %v2847, 4
      %v2849 = vrot.slane %v2708, 5
      %v2850 = vsel %vm1678, %v2848, %v2849
      %v2851 = vrot.slane %v2849, 4
      %v2852 = vrot.slane %v2709, 5
      %v2853 = vsel %vm1678, %v2851, %v2852
      %v2854 = vrot.slane %v2710, 5
      %v2855 = vrot.slane %v2854, 4
      %v2856 = vrot.slane %v2711, 5
      %v2857 = vsel %vm1678, %v2855, %v2856
      %v2858 = vrot.slane %v2856, 4
      %v2859 = vrot.slane %v2712, 5
      %v2860 = vsel %vm1678, %v2858, %v2859
      %v2861 = vrot.slane %v2713, 5
      %v2862 = vrot.slane %v2861, 4
      %v2863 = vrot.slane %v2714, 5
      %v2864 = vsel %vm1678, %v2862, %v2863
      %v2865 = vrot.slane %v2863, 4
      %v2866 = vrot.slane %v2715, 5
      %v2867 = vsel %vm1678, %v2865, %v2866
      %v2868 = vrot.slane %v2716, 5
      %v2869 = vrot.slane %v2868, 4
      %v2870 = vrot.slane %v2717, 5
      %v2871 = vsel %vm1678, %v2869, %v2870
      %v2872 = vrot.slane %v2870, 4
      %v2873 = vrot.slane %v2718, 5
      %v2874 = vsel %vm1678, %v2872, %v2873
      %v2875 = vrot.slane %v2719, 5
      %v2876 = vrot.slane %v2875, 4
      %v2877 = vrot.slane %v2720, 5
      %v2878 = vsel %vm1678, %v2876, %v2877
      %v2879 = vrot.slane %v2877, 4
      %v2880 = vrot.slane %v2721, 5
      %v2881 = vsel %vm1678, %v2879, %v2880
      %2882 = vrot.lane.b32.xlu0 %v2773, 20
      %v2883 = vpop.permute.xlu0 %2882
      %2884 = vrot.lane.b32.xlu0 %v2776, 20
      %v2885 = vpop.permute.xlu0 %2884
      %2886 = vrot.lane.b32.xlu0 %v2780, 20
      %v2887 = vpop.permute.xlu0 %2886
      %2888 = vrot.lane.b32.xlu0 %v2783, 20
      %v2889 = vpop.permute.xlu0 %2888
      %2890 = vrot.lane.b32.xlu0 %v2787, 20
      %v2891 = vpop.permute.xlu0 %2890
      %2892 = vrot.lane.b32.xlu0 %v2790, 20
      %v2893 = vpop.permute.xlu0 %2892
      %2894 = vrot.lane.b32.xlu0 %v2794, 20
      %v2895 = vpop.permute.xlu0 %2894
      %2896 = vrot.lane.b32.xlu0 %v2797, 20
      %v2897 = vpop.permute.xlu0 %2896
      %2898 = vrot.lane.b32.xlu0 %v2801, 20
      %v2899 = vpop.permute.xlu0 %2898
      %2900 = vrot.lane.b32.xlu0 %v2804, 20
      %v2901 = vpop.permute.xlu0 %2900
      %2902 = vrot.lane.b32.xlu0 %v2808, 20
      %v2903 = vpop.permute.xlu0 %2902
      %2904 = vrot.lane.b32.xlu0 %v2811, 20
      %v2905 = vpop.permute.xlu0 %2904
      %2906 = vrot.lane.b32.xlu0 %v2815, 20
      %v2907 = vpop.permute.xlu0 %2906
      %2908 = vrot.lane.b32.xlu0 %v2818, 20
      %v2909 = vpop.permute.xlu0 %2908
      %2910 = vrot.lane.b32.xlu0 %v2822, 20
      %v2911 = vpop.permute.xlu0 %2910
      %2912 = vrot.lane.b32.xlu0 %v2825, 20
      %v2913 = vpop.permute.xlu0 %2912
      %2914 = vrot.lane.b32.xlu0 %v2829, 20
      %v2915 = vpop.permute.xlu0 %2914
      %2916 = vrot.lane.b32.xlu0 %v2832, 20
      %v2917 = vpop.permute.xlu0 %2916
      %2918 = vrot.lane.b32.xlu0 %v2836, 20
      %v2919 = vpop.permute.xlu0 %2918
      %2920 = vrot.lane.b32.xlu0 %v2839, 20
      %v2921 = vpop.permute.xlu0 %2920
      %2922 = vrot.lane.b32.xlu0 %v2843, 20
      %v2923 = vpop.permute.xlu0 %2922
      %2924 = vrot.lane.b32.xlu0 %v2846, 20
      %v2925 = vpop.permute.xlu0 %2924
      %2926 = vrot.lane.b32.xlu0 %v2850, 20
      %v2927 = vpop.permute.xlu0 %2926
      %2928 = vrot.lane.b32.xlu0 %v2853, 20
      %v2929 = vpop.permute.xlu0 %2928
      %2930 = vrot.lane.b32.xlu0 %v2857, 20
      %v2931 = vpop.permute.xlu0 %2930
      %2932 = vrot.lane.b32.xlu0 %v2860, 20
      %v2933 = vpop.permute.xlu0 %2932
      %2934 = vrot.lane.b32.xlu0 %v2864, 20
      %v2935 = vpop.permute.xlu0 %2934
      %2936 = vrot.lane.b32.xlu0 %v2867, 20
      %v2937 = vpop.permute.xlu0 %2936
      %2938 = vrot.lane.b32.xlu0 %v2871, 20
      %v2939 = vpop.permute.xlu0 %2938
      %2940 = vrot.lane.b32.xlu0 %v2874, 20
      %v2941 = vpop.permute.xlu0 %2940
      %2942 = vrot.lane.b32.xlu0 %v2878, 20
      %v2943 = vpop.permute.xlu0 %2942
      %2944 = vrot.lane.b32.xlu0 %v2881, 20
      %v2945 = vpop.permute.xlu0 %2944
      %vm2978 = vcmask 191648
      %2979 = vst.msk [vmem:[#allocation4] sm:$0xf] %vm2978, %v2883
      %2980 = vst.msk [vmem:[#allocation4 + $0x4] sm:$0xf] %vm2978, %v2885
      %2981 = vst.msk [vmem:[#allocation4 + $0x8] sm:$0xf] %vm2978, %v2887
      %2982 = vst.msk [vmem:[#allocation4 + $0xc] sm:$0xf] %vm2978, %v2889
      %2983 = vst.msk [vmem:[#allocation4 + $0x10] sm:$0xf] %vm2978, %v2891
      %2984 = vst.msk [vmem:[#allocation4 + $0x14] sm:$0xf] %vm2978, %v2893
      %2985 = vst.msk [vmem:[#allocation4 + $0x18] sm:$0xf] %vm2978, %v2895
      %2986 = vst.msk [vmem:[#allocation4 + $0x1c] sm:$0xf] %vm2978, %v2897
      %2987 = vst.msk [vmem:[#allocation4 + $0x20] sm:$0xf] %vm2978, %v2899
      %2988 = vst.msk [vmem:[#allocation4 + $0x24] sm:$0xf] %vm2978, %v2901
      %2989 = vst.msk [vmem:[#allocation4 + $0x28] sm:$0xf] %vm2978, %v2903
      %2990 = vst.msk [vmem:[#allocation4 + $0x2c] sm:$0xf] %vm2978, %v2905
      %2991 = vst.msk [vmem:[#allocation4 + $0x30] sm:$0xf] %vm2978, %v2907
      %2992 = vst.msk [vmem:[#allocation4 + $0x34] sm:$0xf] %vm2978, %v2909
      %2993 = vst.msk [vmem:[#allocation4 + $0x38] sm:$0xf] %vm2978, %v2911
      %2994 = vst.msk [vmem:[#allocation4 + $0x3c] sm:$0xf] %vm2978, %v2913
      %2995 = vst.msk [vmem:[#allocation4 + $0x40] sm:$0xf] %vm2978, %v2915
      %2996 = vst.msk [vmem:[#allocation4 + $0x44] sm:$0xf] %vm2978, %v2917
      %2997 = vst.msk [vmem:[#allocation4 + $0x48] sm:$0xf] %vm2978, %v2919
      %2998 = vst.msk [vmem:[#allocation4 + $0x4c] sm:$0xf] %vm2978, %v2921
      %2999 = vst.msk [vmem:[#allocation4 + $0x50] sm:$0xf] %vm2978, %v2923
      %3000 = vst.msk [vmem:[#allocation4 + $0x54] sm:$0xf] %vm2978, %v2925
      %3001 = vst.msk [vmem:[#allocation4 + $0x58] sm:$0xf] %vm2978, %v2927
      %3002 = vst.msk [vmem:[#allocation4 + $0x5c] sm:$0xf] %vm2978, %v2929
      %3003 = vst.msk [vmem:[#allocation4 + $0x60] sm:$0xf] %vm2978, %v2931
      %3004 = vst.msk [vmem:[#allocation4 + $0x64] sm:$0xf] %vm2978, %v2933
      %3005 = vst.msk [vmem:[#allocation4 + $0x68] sm:$0xf] %vm2978, %v2935
      %3006 = vst.msk [vmem:[#allocation4 + $0x6c] sm:$0xf] %vm2978, %v2937
      %3007 = vst.msk [vmem:[#allocation4 + $0x70] sm:$0xf] %vm2978, %v2939
      %3008 = vst.msk [vmem:[#allocation4 + $0x74] sm:$0xf] %vm2978, %v2941
      %3009 = vst.msk [vmem:[#allocation4 + $0x78] sm:$0xf] %vm2978, %v2943
      %3010 = vst.msk [vmem:[#allocation4 + $0x7c] sm:$0xf] %vm2978, %v2945
      %s3011 = scalar_lea.vmem [#allocation2], 24
      %v3012 = vld [vmem:[%s3011] sm:$0xf]
      %v3013 = vld [vmem:[%s3011 + $0x4] sm:$0xf]
      %v3014 = vld [vmem:[%s3011 + $0xc] sm:$0xf]
      %v3015 = vld [vmem:[%s3011 + $0x10] sm:$0xf]
      %v3016 = vld [vmem:[%s3011 + $0x18] sm:$0xf]
      %v3017 = vld [vmem:[%s3011 + $0x1c] sm:$0xf]
      %v3018 = vld [vmem:[%s3011 + $0x24] sm:$0xf]
      %v3019 = vld [vmem:[%s3011 + $0x28] sm:$0xf]
      %v3020 = vld [vmem:[%s3011 + $0x30] sm:$0xf]
      %v3021 = vld [vmem:[%s3011 + $0x34] sm:$0xf]
      %v3022 = vld [vmem:[%s3011 + $0x3c] sm:$0xf]
      %v3023 = vld [vmem:[%s3011 + $0x40] sm:$0xf]
      %v3024 = vld [vmem:[%s3011 + $0x48] sm:$0xf]
      %v3025 = vld [vmem:[%s3011 + $0x4c] sm:$0xf]
      %v3026 = vld [vmem:[%s3011 + $0x54] sm:$0xf]
      %v3027 = vld [vmem:[%s3011 + $0x58] sm:$0xf]
      %v3028 = vld [vmem:[%s3011 + $0x60] sm:$0xf]
      %v3029 = vld [vmem:[%s3011 + $0x64] sm:$0xf]
      %v3030 = vld [vmem:[%s3011 + $0x6c] sm:$0xf]
      %v3031 = vld [vmem:[%s3011 + $0x70] sm:$0xf]
      %v3032 = vld [vmem:[%s3011 + $0x78] sm:$0xf]
      %v3033 = vld [vmem:[%s3011 + $0x7c] sm:$0xf]
      %v3034 = vld [vmem:[%s3011 + $0x84] sm:$0xf]
      %v3035 = vld [vmem:[%s3011 + $0x88] sm:$0xf]
      %v3036 = vld [vmem:[%s3011 + $0x90] sm:$0xf]
      %v3037 = vld [vmem:[%s3011 + $0x94] sm:$0xf]
      %v3038 = vld [vmem:[%s3011 + $0x9c] sm:$0xf]
      %v3039 = vld [vmem:[%s3011 + $0xa0] sm:$0xf]
      %v3040 = vld [vmem:[%s3011 + $0xa8] sm:$0xf]
      %v3041 = vld [vmem:[%s3011 + $0xac] sm:$0xf]
      %v3042 = vld [vmem:[%s3011 + $0xb4] sm:$0xf]
      %v3043 = vld [vmem:[%s3011 + $0xb8] sm:$0xf]
      %3076 = vrot.lane.b32.xlu0 %v3012, 24
      %v3077 = vpop.permute.xlu0 %3076
      %3078 = vrot.lane.b32.xlu0 %v3013, 24
      %v3079 = vpop.permute.xlu0 %3078
      %3080 = vrot.lane.b32.xlu0 %v3014, 24
      %v3081 = vpop.permute.xlu0 %3080
      %3082 = vrot.lane.b32.xlu0 %v3015, 24
      %v3083 = vpop.permute.xlu0 %3082
      %3084 = vrot.lane.b32.xlu0 %v3016, 24
      %v3085 = vpop.permute.xlu0 %3084
      %3086 = vrot.lane.b32.xlu0 %v3017, 24
      %v3087 = vpop.permute.xlu0 %3086
      %3088 = vrot.lane.b32.xlu0 %v3018, 24
      %v3089 = vpop.permute.xlu0 %3088
      %3090 = vrot.lane.b32.xlu0 %v3019, 24
      %v3091 = vpop.permute.xlu0 %3090
      %3092 = vrot.lane.b32.xlu0 %v3020, 24
      %v3093 = vpop.permute.xlu0 %3092
      %3094 = vrot.lane.b32.xlu0 %v3021, 24
      %v3095 = vpop.permute.xlu0 %3094
      %3096 = vrot.lane.b32.xlu0 %v3022, 24
      %v3097 = vpop.permute.xlu0 %3096
      %3098 = vrot.lane.b32.xlu0 %v3023, 24
      %v3099 = vpop.permute.xlu0 %3098
      %3100 = vrot.lane.b32.xlu0 %v3024, 24
      %v3101 = vpop.permute.xlu0 %3100
      %3102 = vrot.lane.b32.xlu0 %v3025, 24
      %v3103 = vpop.permute.xlu0 %3102
      %3104 = vrot.lane.b32.xlu0 %v3026, 24
      %v3105 = vpop.permute.xlu0 %3104
      %3106 = vrot.lane.b32.xlu0 %v3027, 24
      %v3107 = vpop.permute.xlu0 %3106
      %3108 = vrot.lane.b32.xlu0 %v3028, 24
      %v3109 = vpop.permute.xlu0 %3108
      %3110 = vrot.lane.b32.xlu0 %v3029, 24
      %v3111 = vpop.permute.xlu0 %3110
      %3112 = vrot.lane.b32.xlu0 %v3030, 24
      %v3113 = vpop.permute.xlu0 %3112
      %3114 = vrot.lane.b32.xlu0 %v3031, 24
      %v3115 = vpop.permute.xlu0 %3114
      %3116 = vrot.lane.b32.xlu0 %v3032, 24
      %v3117 = vpop.permute.xlu0 %3116
      %3118 = vrot.lane.b32.xlu0 %v3033, 24
      %v3119 = vpop.permute.xlu0 %3118
      %3120 = vrot.lane.b32.xlu0 %v3034, 24
      %v3121 = vpop.permute.xlu0 %3120
      %3122 = vrot.lane.b32.xlu0 %v3035, 24
      %v3123 = vpop.permute.xlu0 %3122
      %3124 = vrot.lane.b32.xlu0 %v3036, 24
      %v3125 = vpop.permute.xlu0 %3124
      %3126 = vrot.lane.b32.xlu0 %v3037, 24
      %v3127 = vpop.permute.xlu0 %3126
      %3128 = vrot.lane.b32.xlu0 %v3038, 24
      %v3129 = vpop.permute.xlu0 %3128
      %3130 = vrot.lane.b32.xlu0 %v3039, 24
      %v3131 = vpop.permute.xlu0 %3130
      %3132 = vrot.lane.b32.xlu0 %v3040, 24
      %v3133 = vpop.permute.xlu0 %3132
      %3134 = vrot.lane.b32.xlu0 %v3041, 24
      %v3135 = vpop.permute.xlu0 %3134
      %3136 = vrot.lane.b32.xlu0 %v3042, 24
      %v3137 = vpop.permute.xlu0 %3136
      %3138 = vrot.lane.b32.xlu0 %v3043, 24
      %v3139 = vpop.permute.xlu0 %3138
      %vm3172 = vcmask 224448
      %3173 = vst.msk [vmem:[#allocation4] sm:$0xf] %vm3172, %v3077
      %3174 = vst.msk [vmem:[#allocation4 + $0x4] sm:$0xf] %vm3172, %v3079
      %3175 = vst.msk [vmem:[#allocation4 + $0x8] sm:$0xf] %vm3172, %v3081
      %3176 = vst.msk [vmem:[#allocation4 + $0xc] sm:$0xf] %vm3172, %v3083
      %3177 = vst.msk [vmem:[#allocation4 + $0x10] sm:$0xf] %vm3172, %v3085
      %3178 = vst.msk [vmem:[#allocation4 + $0x14] sm:$0xf] %vm3172, %v3087
      %3179 = vst.msk [vmem:[#allocation4 + $0x18] sm:$0xf] %vm3172, %v3089
      %3180 = vst.msk [vmem:[#allocation4 + $0x1c] sm:$0xf] %vm3172, %v3091
      %3181 = vst.msk [vmem:[#allocation4 + $0x20] sm:$0xf] %vm3172, %v3093
      %3182 = vst.msk [vmem:[#allocation4 + $0x24] sm:$0xf] %vm3172, %v3095
      %3183 = vst.msk [vmem:[#allocation4 + $0x28] sm:$0xf] %vm3172, %v3097
      %3184 = vst.msk [vmem:[#allocation4 + $0x2c] sm:$0xf] %vm3172, %v3099
      %3185 = vst.msk [vmem:[#allocation4 + $0x30] sm:$0xf] %vm3172, %v3101
      %3186 = vst.msk [vmem:[#allocation4 + $0x34] sm:$0xf] %vm3172, %v3103
      %3187 = vst.msk [vmem:[#allocation4 + $0x38] sm:$0xf] %vm3172, %v3105
      %3188 = vst.msk [vmem:[#allocation4 + $0x3c] sm:$0xf] %vm3172, %v3107
      %3189 = vst.msk [vmem:[#allocation4 + $0x40] sm:$0xf] %vm3172, %v3109
      %3190 = vst.msk [vmem:[#allocation4 + $0x44] sm:$0xf] %vm3172, %v3111
      %3191 = vst.msk [vmem:[#allocation4 + $0x48] sm:$0xf] %vm3172, %v3113
      %3192 = vst.msk [vmem:[#allocation4 + $0x4c] sm:$0xf] %vm3172, %v3115
      %3193 = vst.msk [vmem:[#allocation4 + $0x50] sm:$0xf] %vm3172, %v3117
      %3194 = vst.msk [vmem:[#allocation4 + $0x54] sm:$0xf] %vm3172, %v3119
      %3195 = vst.msk [vmem:[#allocation4 + $0x58] sm:$0xf] %vm3172, %v3121
      %3196 = vst.msk [vmem:[#allocation4 + $0x5c] sm:$0xf] %vm3172, %v3123
      %3197 = vst.msk [vmem:[#allocation4 + $0x60] sm:$0xf] %vm3172, %v3125
      %3198 = vst.msk [vmem:[#allocation4 + $0x64] sm:$0xf] %vm3172, %v3127
      %3199 = vst.msk [vmem:[#allocation4 + $0x68] sm:$0xf] %vm3172, %v3129
      %3200 = vst.msk [vmem:[#allocation4 + $0x6c] sm:$0xf] %vm3172, %v3131
      %3201 = vst.msk [vmem:[#allocation4 + $0x70] sm:$0xf] %vm3172, %v3133
      %3202 = vst.msk [vmem:[#allocation4 + $0x74] sm:$0xf] %vm3172, %v3135
      %3203 = vst.msk [vmem:[#allocation4 + $0x78] sm:$0xf] %vm3172, %v3137
      %3204 = vst.msk [vmem:[#allocation4 + $0x7c] sm:$0xf] %vm3172, %v3139
      %v3205 = vld [vmem:[%s3011] sm:$0xf]
      %v3206 = vld [vmem:[%s3011 + $0x4] sm:$0xf]
      %v3207 = vld [vmem:[%s3011 + $0x8] sm:$0x1]
      %v3208 = vld [vmem:[%s3011 + $0xc] sm:$0xf]
      %v3209 = vld [vmem:[%s3011 + $0x10] sm:$0xf]
      %v3210 = vld [vmem:[%s3011 + $0x14] sm:$0x1]
      %v3211 = vld [vmem:[%s3011 + $0x18] sm:$0xf]
      %v3212 = vld [vmem:[%s3011 + $0x1c] sm:$0xf]
      %v3213 = vld [vmem:[%s3011 + $0x20] sm:$0x1]
      %v3214 = vld [vmem:[%s3011 + $0x24] sm:$0xf]
      %v3215 = vld [vmem:[%s3011 + $0x28] sm:$0xf]
      %v3216 = vld [vmem:[%s3011 + $0x2c] sm:$0x1]
      %v3217 = vld [vmem:[%s3011 + $0x30] sm:$0xf]
      %v3218 = vld [vmem:[%s3011 + $0x34] sm:$0xf]
      %v3219 = vld [vmem:[%s3011 + $0x38] sm:$0x1]
      %v3220 = vld [vmem:[%s3011 + $0x3c] sm:$0xf]
      %v3221 = vld [vmem:[%s3011 + $0x40] sm:$0xf]
      %v3222 = vld [vmem:[%s3011 + $0x44] sm:$0x1]
      %v3223 = vld [vmem:[%s3011 + $0x48] sm:$0xf]
      %v3224 = vld [vmem:[%s3011 + $0x4c] sm:$0xf]
      %v3225 = vld [vmem:[%s3011 + $0x50] sm:$0x1]
      %v3226 = vld [vmem:[%s3011 + $0x54] sm:$0xf]
      %v3227 = vld [vmem:[%s3011 + $0x58] sm:$0xf]
      %v3228 = vld [vmem:[%s3011 + $0x5c] sm:$0x1]
      %v3229 = vld [vmem:[%s3011 + $0x60] sm:$0xf]
      %v3230 = vld [vmem:[%s3011 + $0x64] sm:$0xf]
      %v3231 = vld [vmem:[%s3011 + $0x68] sm:$0x1]
      %v3232 = vld [vmem:[%s3011 + $0x6c] sm:$0xf]
      %v3233 = vld [vmem:[%s3011 + $0x70] sm:$0xf]
      %v3234 = vld [vmem:[%s3011 + $0x74] sm:$0x1]
      %v3235 = vld [vmem:[%s3011 + $0x78] sm:$0xf]
      %v3236 = vld [vmem:[%s3011 + $0x7c] sm:$0xf]
      %v3237 = vld [vmem:[%s3011 + $0x80] sm:$0x1]
      %v3238 = vld [vmem:[%s3011 + $0x84] sm:$0xf]
      %v3239 = vld [vmem:[%s3011 + $0x88] sm:$0xf]
      %v3240 = vld [vmem:[%s3011 + $0x8c] sm:$0x1]
      %v3241 = vld [vmem:[%s3011 + $0x90] sm:$0xf]
      %v3242 = vld [vmem:[%s3011 + $0x94] sm:$0xf]
      %v3243 = vld [vmem:[%s3011 + $0x98] sm:$0x1]
      %v3244 = vld [vmem:[%s3011 + $0x9c] sm:$0xf]
      %v3245 = vld [vmem:[%s3011 + $0xa0] sm:$0xf]
      %v3246 = vld [vmem:[%s3011 + $0xa4] sm:$0x1]
      %v3247 = vld [vmem:[%s3011 + $0xa8] sm:$0xf]
      %v3248 = vld [vmem:[%s3011 + $0xac] sm:$0xf]
      %v3249 = vld [vmem:[%s3011 + $0xb0] sm:$0x1]
      %v3250 = vld [vmem:[%s3011 + $0xb4] sm:$0xf]
      %v3251 = vld [vmem:[%s3011 + $0xb8] sm:$0xf]
      %v3252 = vld [vmem:[%s3011 + $0xbc] sm:$0x1]
      %v3254 = vshrl.u32 %v3205, 16
      %v3256 = vrot.slane %v3254, 4
      %v3257 = vshll.u32 %v3205, 16
      %v3259 = vrot.slane %v3257, 5
      %v3260 = vor.u32 %v3256, %v3259
      %v3261 = vrot.slane %v3260, 4
      %v3263 = vshll.u32 %v3206, 16
      %v3265 = vrot.slane %v3263, 5
      %v3266 = vsel %vm1066, %v3261, %v3265
      %v3267 = vshrl.u32 %v3206, 16
      %v3269 = vrot.slane %v3267, 4
      %v3270 = vor.u32 %v3269, %v3265
      %v3271 = vrot.slane %v3270, 4
      %v3273 = vshll.u32 %v3207, 16
      %v3275 = vrot.slane %v3273, 5
      %v3276 = vsel %vm1066, %v3271, %v3275
      %v3278 = vshrl.u32 %v3208, 16
      %v3280 = vrot.slane %v3278, 4
      %v3281 = vshll.u32 %v3208, 16
      %v3283 = vrot.slane %v3281, 5
      %v3284 = vor.u32 %v3280, %v3283
      %v3285 = vrot.slane %v3284, 4
      %v3287 = vshll.u32 %v3209, 16
      %v3289 = vrot.slane %v3287, 5
      %v3290 = vsel %vm1066, %v3285, %v3289
      %v3291 = vshrl.u32 %v3209, 16
      %v3293 = vrot.slane %v3291, 4
      %v3294 = vor.u32 %v3293, %v3289
      %v3295 = vrot.slane %v3294, 4
      %v3297 = vshll.u32 %v3210, 16
      %v3299 = vrot.slane %v3297, 5
      %v3300 = vsel %vm1066, %v3295, %v3299
      %v3302 = vshrl.u32 %v3211, 16
      %v3304 = vrot.slane %v3302, 4
      %v3305 = vshll.u32 %v3211, 16
      %v3307 = vrot.slane %v3305, 5
      %v3308 = vor.u32 %v3304, %v3307
      %v3309 = vrot.slane %v3308, 4
      %v3311 = vshll.u32 %v3212, 16
      %v3313 = vrot.slane %v3311, 5
      %v3314 = vsel %vm1066, %v3309, %v3313
      %v3315 = vshrl.u32 %v3212, 16
      %v3317 = vrot.slane %v3315, 4
      %v3318 = vor.u32 %v3317, %v3313
      %v3319 = vrot.slane %v3318, 4
      %v3321 = vshll.u32 %v3213, 16
      %v3323 = vrot.slane %v3321, 5
      %v3324 = vsel %vm1066, %v3319, %v3323
      %v3326 = vshrl.u32 %v3214, 16
      %v3328 = vrot.slane %v3326, 4
      %v3329 = vshll.u32 %v3214, 16
      %v3331 = vrot.slane %v3329, 5
      %v3332 = vor.u32 %v3328, %v3331
      %v3333 = vrot.slane %v3332, 4
      %v3335 = vshll.u32 %v3215, 16
      %v3337 = vrot.slane %v3335, 5
      %v3338 = vsel %vm1066, %v3333, %v3337
      %v3339 = vshrl.u32 %v3215, 16
      %v3341 = vrot.slane %v3339, 4
      %v3342 = vor.u32 %v3341, %v3337
      %v3343 = vrot.slane %v3342, 4
      %v3345 = vshll.u32 %v3216, 16
      %v3347 = vrot.slane %v3345, 5
      %v3348 = vsel %vm1066, %v3343, %v3347
      %v3350 = vshrl.u32 %v3217, 16
      %v3352 = vrot.slane %v3350, 4
      %v3353 = vshll.u32 %v3217, 16
      %v3355 = vrot.slane %v3353, 5
      %v3356 = vor.u32 %v3352, %v3355
      %v3357 = vrot.slane %v3356, 4
      %v3359 = vshll.u32 %v3218, 16
      %v3361 = vrot.slane %v3359, 5
      %v3362 = vsel %vm1066, %v3357, %v3361
      %v3363 = vshrl.u32 %v3218, 16
      %v3365 = vrot.slane %v3363, 4
      %v3366 = vor.u32 %v3365, %v3361
      %v3367 = vrot.slane %v3366, 4
      %v3369 = vshll.u32 %v3219, 16
      %v3371 = vrot.slane %v3369, 5
      %v3372 = vsel %vm1066, %v3367, %v3371
      %v3374 = vshrl.u32 %v3220, 16
      %v3376 = vrot.slane %v3374, 4
      %v3377 = vshll.u32 %v3220, 16
      %v3379 = vrot.slane %v3377, 5
      %v3380 = vor.u32 %v3376, %v3379
      %v3381 = vrot.slane %v3380, 4
      %v3383 = vshll.u32 %v3221, 16
      %v3385 = vrot.slane %v3383, 5
      %v3386 = vsel %vm1066, %v3381, %v3385
      %v3387 = vshrl.u32 %v3221, 16
      %v3389 = vrot.slane %v3387, 4
      %v3390 = vor.u32 %v3389, %v3385
      %v3391 = vrot.slane %v3390, 4
      %v3393 = vshll.u32 %v3222, 16
      %v3395 = vrot.slane %v3393, 5
      %v3396 = vsel %vm1066, %v3391, %v3395
      %v3398 = vshrl.u32 %v3223, 16
      %v3400 = vrot.slane %v3398, 4
      %v3401 = vshll.u32 %v3223, 16
      %v3403 = vrot.slane %v3401, 5
      %v3404 = vor.u32 %v3400, %v3403
      %v3405 = vrot.slane %v3404, 4
      %v3407 = vshll.u32 %v3224, 16
      %v3409 = vrot.slane %v3407, 5
      %v3410 = vsel %vm1066, %v3405, %v3409
      %v3411 = vshrl.u32 %v3224, 16
      %v3413 = vrot.slane %v3411, 4
      %v3414 = vor.u32 %v3413, %v3409
      %v3415 = vrot.slane %v3414, 4
      %v3417 = vshll.u32 %v3225, 16
      %v3419 = vrot.slane %v3417, 5
      %v3420 = vsel %vm1066, %v3415, %v3419
      %v3422 = vshrl.u32 %v3226, 16
      %v3424 = vrot.slane %v3422, 4
      %v3425 = vshll.u32 %v3226, 16
      %v3427 = vrot.slane %v3425, 5
      %v3428 = vor.u32 %v3424, %v3427
      %v3429 = vrot.slane %v3428, 4
      %v3431 = vshll.u32 %v3227, 16
      %v3433 = vrot.slane %v3431, 5
      %v3434 = vsel %vm1066, %v3429, %v3433
      %v3435 = vshrl.u32 %v3227, 16
      %v3437 = vrot.slane %v3435, 4
      %v3438 = vor.u32 %v3437, %v3433
      %v3439 = vrot.slane %v3438, 4
      %v3441 = vshll.u32 %v3228, 16
      %v3443 = vrot.slane %v3441, 5
      %v3444 = vsel %vm1066, %v3439, %v3443
      %v3446 = vshrl.u32 %v3229, 16
      %v3448 = vrot.slane %v3446, 4
      %v3449 = vshll.u32 %v3229, 16
      %v3451 = vrot.slane %v3449, 5
      %v3452 = vor.u32 %v3448, %v3451
      %v3453 = vrot.slane %v3452, 4
      %v3455 = vshll.u32 %v3230, 16
      %v3457 = vrot.slane %v3455, 5
      %v3458 = vsel %vm1066, %v3453, %v3457
      %v3459 = vshrl.u32 %v3230, 16
      %v3461 = vrot.slane %v3459, 4
      %v3462 = vor.u32 %v3461, %v3457
      %v3463 = vrot.slane %v3462, 4
      %v3465 = vshll.u32 %v3231, 16
      %v3467 = vrot.slane %v3465, 5
      %v3468 = vsel %vm1066, %v3463, %v3467
      %v3470 = vshrl.u32 %v3232, 16
      %v3472 = vrot.slane %v3470, 4
      %v3473 = vshll.u32 %v3232, 16
      %v3475 = vrot.slane %v3473, 5
      %v3476 = vor.u32 %v3472, %v3475
      %v3477 = vrot.slane %v3476, 4
      %v3479 = vshll.u32 %v3233, 16
      %v3481 = vrot.slane %v3479, 5
      %v3482 = vsel %vm1066, %v3477, %v3481
      %v3483 = vshrl.u32 %v3233, 16
      %v3485 = vrot.slane %v3483, 4
      %v3486 = vor.u32 %v3485, %v3481
      %v3487 = vrot.slane %v3486, 4
      %v3489 = vshll.u32 %v3234, 16
      %v3491 = vrot.slane %v3489, 5
      %v3492 = vsel %vm1066, %v3487, %v3491
      %v3494 = vshrl.u32 %v3235, 16
      %v3496 = vrot.slane %v3494, 4
      %v3497 = vshll.u32 %v3235, 16
      %v3499 = vrot.slane %v3497, 5
      %v3500 = vor.u32 %v3496, %v3499
      %v3501 = vrot.slane %v3500, 4
      %v3503 = vshll.u32 %v3236, 16
      %v3505 = vrot.slane %v3503, 5
      %v3506 = vsel %vm1066, %v3501, %v3505
      %v3507 = vshrl.u32 %v3236, 16
      %v3509 = vrot.slane %v3507, 4
      %v3510 = vor.u32 %v3509, %v3505
      %v3511 = vrot.slane %v3510, 4
      %v3513 = vshll.u32 %v3237, 16
      %v3515 = vrot.slane %v3513, 5
      %v3516 = vsel %vm1066, %v3511, %v3515
      %v3518 = vshrl.u32 %v3238, 16
      %v3520 = vrot.slane %v3518, 4
      %v3521 = vshll.u32 %v3238, 16
      %v3523 = vrot.slane %v3521, 5
      %v3524 = vor.u32 %v3520, %v3523
      %v3525 = vrot.slane %v3524, 4
      %v3527 = vshll.u32 %v3239, 16
      %v3529 = vrot.slane %v3527, 5
      %v3530 = vsel %vm1066, %v3525, %v3529
      %v3531 = vshrl.u32 %v3239, 16
      %v3533 = vrot.slane %v3531, 4
      %v3534 = vor.u32 %v3533, %v3529
      %v3535 = vrot.slane %v3534, 4
      %v3537 = vshll.u32 %v3240, 16
      %v3539 = vrot.slane %v3537, 5
      %v3540 = vsel %vm1066, %v3535, %v3539
      %v3542 = vshrl.u32 %v3241, 16
      %v3544 = vrot.slane %v3542, 4
      %v3545 = vshll.u32 %v3241, 16
      %v3547 = vrot.slane %v3545, 5
      %v3548 = vor.u32 %v3544, %v3547
      %v3549 = vrot.slane %v3548, 4
      %v3551 = vshll.u32 %v3242, 16
      %v3553 = vrot.slane %v3551, 5
      %v3554 = vsel %vm1066, %v3549, %v3553
      %v3555 = vshrl.u32 %v3242, 16
      %v3557 = vrot.slane %v3555, 4
      %v3558 = vor.u32 %v3557, %v3553
      %v3559 = vrot.slane %v3558, 4
      %v3561 = vshll.u32 %v3243, 16
      %v3563 = vrot.slane %v3561, 5
      %v3564 = vsel %vm1066, %v3559, %v3563
      %v3566 = vshrl.u32 %v3244, 16
      %v3568 = vrot.slane %v3566, 4
      %v3569 = vshll.u32 %v3244, 16
      %v3571 = vrot.slane %v3569, 5
      %v3572 = vor.u32 %v3568, %v3571
      %v3573 = vrot.slane %v3572, 4
      %v3575 = vshll.u32 %v3245, 16
      %v3577 = vrot.slane %v3575, 5
      %v3578 = vsel %vm1066, %v3573, %v3577
      %v3579 = vshrl.u32 %v3245, 16
      %v3581 = vrot.slane %v3579, 4
      %v3582 = vor.u32 %v3581, %v3577
      %v3583 = vrot.slane %v3582, 4
      %v3585 = vshll.u32 %v3246, 16
      %v3587 = vrot.slane %v3585, 5
      %v3588 = vsel %vm1066, %v3583, %v3587
      %v3590 = vshrl.u32 %v3247, 16
      %v3592 = vrot.slane %v3590, 4
      %v3593 = vshll.u32 %v3247, 16
      %v3595 = vrot.slane %v3593, 5
      %v3596 = vor.u32 %v3592, %v3595
      %v3597 = vrot.slane %v3596, 4
      %v3599 = vshll.u32 %v3248, 16
      %v3601 = vrot.slane %v3599, 5
      %v3602 = vsel %vm1066, %v3597, %v3601
      %v3603 = vshrl.u32 %v3248, 16
      %v3605 = vrot.slane %v3603, 4
      %v3606 = vor.u32 %v3605, %v3601
      %v3607 = vrot.slane %v3606, 4
      %v3609 = vshll.u32 %v3249, 16
      %v3611 = vrot.slane %v3609, 5
      %v3612 = vsel %vm1066, %v3607, %v3611
      %v3614 = vshrl.u32 %v3250, 16
      %v3616 = vrot.slane %v3614, 4
      %v3617 = vshll.u32 %v3250, 16
      %v3619 = vrot.slane %v3617, 5
      %v3620 = vor.u32 %v3616, %v3619
      %v3621 = vrot.slane %v3620, 4
      %v3623 = vshll.u32 %v3251, 16
      %v3625 = vrot.slane %v3623, 5
      %v3626 = vsel %vm1066, %v3621, %v3625
      %v3627 = vshrl.u32 %v3251, 16
      %v3629 = vrot.slane %v3627, 4
      %v3630 = vor.u32 %v3629, %v3625
      %v3631 = vrot.slane %v3630, 4
      %v3633 = vshll.u32 %v3252, 16
      %v3635 = vrot.slane %v3633, 5
      %v3636 = vsel %vm1066, %v3631, %v3635
      %3637 = vrot.lane.b32.xlu0 %v3266, 28
      %v3638 = vpop.permute.xlu0 %3637
      %3639 = vrot.lane.b32.xlu0 %v3276, 28
      %v3640 = vpop.permute.xlu0 %3639
      %3641 = vrot.lane.b32.xlu0 %v3290, 28
      %v3642 = vpop.permute.xlu0 %3641
      %3643 = vrot.lane.b32.xlu0 %v3300, 28
      %v3644 = vpop.permute.xlu0 %3643
      %3645 = vrot.lane.b32.xlu0 %v3314, 28
      %v3646 = vpop.permute.xlu0 %3645
      %3647 = vrot.lane.b32.xlu0 %v3324, 28
      %v3648 = vpop.permute.xlu0 %3647
      %3649 = vrot.lane.b32.xlu0 %v3338, 28
      %v3650 = vpop.permute.xlu0 %3649
      %3651 = vrot.lane.b32.xlu0 %v3348, 28
      %v3652 = vpop.permute.xlu0 %3651
      %3653 = vrot.lane.b32.xlu0 %v3362, 28
      %v3654 = vpop.permute.xlu0 %3653
      %3655 = vrot.lane.b32.xlu0 %v3372, 28
      %v3656 = vpop.permute.xlu0 %3655
      %3657 = vrot.lane.b32.xlu0 %v3386, 28
      %v3658 = vpop.permute.xlu0 %3657
      %3659 = vrot.lane.b32.xlu0 %v3396, 28
      %v3660 = vpop.permute.xlu0 %3659
      %3661 = vrot.lane.b32.xlu0 %v3410, 28
      %v3662 = vpop.permute.xlu0 %3661
      %3663 = vrot.lane.b32.xlu0 %v3420, 28
      %v3664 = vpop.permute.xlu0 %3663
      %3665 = vrot.lane.b32.xlu0 %v3434, 28
      %v3666 = vpop.permute.xlu0 %3665
      %3667 = vrot.lane.b32.xlu0 %v3444, 28
      %v3668 = vpop.permute.xlu0 %3667
      %3669 = vrot.lane.b32.xlu0 %v3458, 28
      %v3670 = vpop.permute.xlu0 %3669
      %3671 = vrot.lane.b32.xlu0 %v3468, 28
      %v3672 = vpop.permute.xlu0 %3671
      %3673 = vrot.lane.b32.xlu0 %v3482, 28
      %v3674 = vpop.permute.xlu0 %3673
      %3675 = vrot.lane.b32.xlu0 %v3492, 28
      %v3676 = vpop.permute.xlu0 %3675
      %3677 = vrot.lane.b32.xlu0 %v3506, 28
      %v3678 = vpop.permute.xlu0 %3677
      %3679 = vrot.lane.b32.xlu0 %v3516, 28
      %v3680 = vpop.permute.xlu0 %3679
      %3681 = vrot.lane.b32.xlu0 %v3530, 28
      %v3682 = vpop.permute.xlu0 %3681
      %3683 = vrot.lane.b32.xlu0 %v3540, 28
      %v3684 = vpop.permute.xlu0 %3683
      %3685 = vrot.lane.b32.xlu0 %v3554, 28
      %v3686 = vpop.permute.xlu0 %3685
      %3687 = vrot.lane.b32.xlu0 %v3564, 28
      %v3688 = vpop.permute.xlu0 %3687
      %3689 = vrot.lane.b32.xlu0 %v3578, 28
      %v3690 = vpop.permute.xlu0 %3689
      %3691 = vrot.lane.b32.xlu0 %v3588, 28
      %v3692 = vpop.permute.xlu0 %3691
      %3693 = vrot.lane.b32.xlu0 %v3602, 28
      %v3694 = vpop.permute.xlu0 %3693
      %3695 = vrot.lane.b32.xlu0 %v3612, 28
      %v3696 = vpop.permute.xlu0 %3695
      %3697 = vrot.lane.b32.xlu0 %v3626, 28
      %v3698 = vpop.permute.xlu0 %3697
      %3699 = vrot.lane.b32.xlu0 %v3636, 28
      %v3700 = vpop.permute.xlu0 %3699
      %vm3733 = vcmask 257248
      %3734 = vst.msk [vmem:[#allocation4] sm:$0xf] %vm3733, %v3638
      %3735 = vst.msk [vmem:[#allocation4 + $0x4] sm:$0xf] %vm3733, %v3640
      %3736 = vst.msk [vmem:[#allocation4 + $0x8] sm:$0xf] %vm3733, %v3642
      %3737 = vst.msk [vmem:[#allocation4 + $0xc] sm:$0xf] %vm3733, %v3644
      %3738 = vst.msk [vmem:[#allocation4 + $0x10] sm:$0xf] %vm3733, %v3646
      %3739 = vst.msk [vmem:[#allocation4 + $0x14] sm:$0xf] %vm3733, %v3648
      %3740 = vst.msk [vmem:[#allocation4 + $0x18] sm:$0xf] %vm3733, %v3650
      %3741 = vst.msk [vmem:[#allocation4 + $0x1c] sm:$0xf] %vm3733, %v3652
      %3742 = vst.msk [vmem:[#allocation4 + $0x20] sm:$0xf] %vm3733, %v3654
      %3743 = vst.msk [vmem:[#allocation4 + $0x24] sm:$0xf] %vm3733, %v3656
      %3744 = vst.msk [vmem:[#allocation4 + $0x28] sm:$0xf] %vm3733, %v3658
      %3745 = vst.msk [vmem:[#allocation4 + $0x2c] sm:$0xf] %vm3733, %v3660
      %3746 = vst.msk [vmem:[#allocation4 + $0x30] sm:$0xf] %vm3733, %v3662
      %3747 = vst.msk [vmem:[#allocation4 + $0x34] sm:$0xf] %vm3733, %v3664
      %3748 = vst.msk [vmem:[#allocation4 + $0x38] sm:$0xf] %vm3733, %v3666
      %3749 = vst.msk [vmem:[#allocation4 + $0x3c] sm:$0xf] %vm3733, %v3668
      %3750 = vst.msk [vmem:[#allocation4 + $0x40] sm:$0xf] %vm3733, %v3670
      %3751 = vst.msk [vmem:[#allocation4 + $0x44] sm:$0xf] %vm3733, %v3672
      %3752 = vst.msk [vmem:[#allocation4 + $0x48] sm:$0xf] %vm3733, %v3674
      %3753 = vst.msk [vmem:[#allocation4 + $0x4c] sm:$0xf] %vm3733, %v3676
      %3754 = vst.msk [vmem:[#allocation4 + $0x50] sm:$0xf] %vm3733, %v3678
      %3755 = vst.msk [vmem:[#allocation4 + $0x54] sm:$0xf] %vm3733, %v3680
      %3756 = vst.msk [vmem:[#allocation4 + $0x58] sm:$0xf] %vm3733, %v3682
      %3757 = vst.msk [vmem:[#allocation4 + $0x5c] sm:$0xf] %vm3733, %v3684
      %3758 = vst.msk [vmem:[#allocation4 + $0x60] sm:$0xf] %vm3733, %v3686
      %3759 = vst.msk [vmem:[#allocation4 + $0x64] sm:$0xf] %vm3733, %v3688
      %3760 = vst.msk [vmem:[#allocation4 + $0x68] sm:$0xf] %vm3733, %v3690
      %3761 = vst.msk [vmem:[#allocation4 + $0x6c] sm:$0xf] %vm3733, %v3692
      %3762 = vst.msk [vmem:[#allocation4 + $0x70] sm:$0xf] %vm3733, %v3694
      %3763 = vst.msk [vmem:[#allocation4 + $0x74] sm:$0xf] %vm3733, %v3696
      %3764 = vst.msk [vmem:[#allocation4 + $0x78] sm:$0xf] %vm3733, %v3698
      %3765 = vst.msk [vmem:[#allocation4 + $0x7c] sm:$0xf] %vm3733, %v3700
      %v3766 = vld [vmem:[%s3011] sm:$0xe]
      %v3767 = vld [vmem:[%s3011 + $0x4] sm:$0xf]
      %v3768 = vld [vmem:[%s3011 + $0x8] sm:$0x1]
      %v3769 = vld [vmem:[%s3011 + $0xc] sm:$0xe]
      %v3770 = vld [vmem:[%s3011 + $0x10] sm:$0xf]
      %v3771 = vld [vmem:[%s3011 + $0x14] sm:$0x1]
      %v3772 = vld [vmem:[%s3011 + $0x18] sm:$0xe]
      %v3773 = vld [vmem:[%s3011 + $0x1c] sm:$0xf]
      %v3774 = vld [vmem:[%s3011 + $0x20] sm:$0x1]
      %v3775 = vld [vmem:[%s3011 + $0x24] sm:$0xe]
      %v3776 = vld [vmem:[%s3011 + $0x28] sm:$0xf]
      %v3777 = vld [vmem:[%s3011 + $0x2c] sm:$0x1]
      %v3778 = vld [vmem:[%s3011 + $0x30] sm:$0xe]
      %v3779 = vld [vmem:[%s3011 + $0x34] sm:$0xf]
      %v3780 = vld [vmem:[%s3011 + $0x38] sm:$0x1]
      %v3781 = vld [vmem:[%s3011 + $0x3c] sm:$0xe]
      %v3782 = vld [vmem:[%s3011 + $0x40] sm:$0xf]
      %v3783 = vld [vmem:[%s3011 + $0x44] sm:$0x1]
      %v3784 = vld [vmem:[%s3011 + $0x48] sm:$0xe]
      %v3785 = vld [vmem:[%s3011 + $0x4c] sm:$0xf]
      %v3786 = vld [vmem:[%s3011 + $0x50] sm:$0x1]
      %v3787 = vld [vmem:[%s3011 + $0x54] sm:$0xe]
      %v3788 = vld [vmem:[%s3011 + $0x58] sm:$0xf]
      %v3789 = vld [vmem:[%s3011 + $0x5c] sm:$0x1]
      %v3790 = vld [vmem:[%s3011 + $0x60] sm:$0xe]
      %v3791 = vld [vmem:[%s3011 + $0x64] sm:$0xf]
      %v3792 = vld [vmem:[%s3011 + $0x68] sm:$0x1]
      %v3793 = vld [vmem:[%s3011 + $0x6c] sm:$0xe]
      %v3794 = vld [vmem:[%s3011 + $0x70] sm:$0xf]
      %v3795 = vld [vmem:[%s3011 + $0x74] sm:$0x1]
      %v3796 = vld [vmem:[%s3011 + $0x78] sm:$0xe]
      %v3797 = vld [vmem:[%s3011 + $0x7c] sm:$0xf]
      %v3798 = vld [vmem:[%s3011 + $0x80] sm:$0x1]
      %v3799 = vld [vmem:[%s3011 + $0x84] sm:$0xe]
      %v3800 = vld [vmem:[%s3011 + $0x88] sm:$0xf]
      %v3801 = vld [vmem:[%s3011 + $0x8c] sm:$0x1]
      %v3802 = vld [vmem:[%s3011 + $0x90] sm:$0xe]
      %v3803 = vld [vmem:[%s3011 + $0x94] sm:$0xf]
      %v3804 = vld [vmem:[%s3011 + $0x98] sm:$0x1]
      %v3805 = vld [vmem:[%s3011 + $0x9c] sm:$0xe]
      %v3806 = vld [vmem:[%s3011 + $0xa0] sm:$0xf]
      %v3807 = vld [vmem:[%s3011 + $0xa4] sm:$0x1]
      %v3808 = vld [vmem:[%s3011 + $0xa8] sm:$0xe]
      %v3809 = vld [vmem:[%s3011 + $0xac] sm:$0xf]
      %v3810 = vld [vmem:[%s3011 + $0xb0] sm:$0x1]
      %v3811 = vld [vmem:[%s3011 + $0xb4] sm:$0xe]
      %v3812 = vld [vmem:[%s3011 + $0xb8] sm:$0xf]
      %v3813 = vld [vmem:[%s3011 + $0xbc] sm:$0x1]
      %v3862 = vrot.slane %v3766, 5
      %v3863 = vrot.slane %v3862, 4
      %v3864 = vrot.slane %v3767, 5
      %v3865 = vsel %vm1678, %v3863, %v3864
      %v3866 = vrot.slane %v3864, 4
      %v3867 = vrot.slane %v3768, 5
      %v3868 = vsel %vm1678, %v3866, %v3867
      %v3869 = vrot.slane %v3769, 5
      %v3870 = vrot.slane %v3869, 4
      %v3871 = vrot.slane %v3770, 5
      %v3872 = vsel %vm1678, %v3870, %v3871
      %v3873 = vrot.slane %v3871, 4
      %v3874 = vrot.slane %v3771, 5
      %v3875 = vsel %vm1678, %v3873, %v3874
      %v3876 = vrot.slane %v3772, 5
      %v3877 = vrot.slane %v3876, 4
      %v3878 = vrot.slane %v3773, 5
      %v3879 = vsel %vm1678, %v3877, %v3878
      %v3880 = vrot.slane %v3878, 4
      %v3881 = vrot.slane %v3774, 5
      %v3882 = vsel %vm1678, %v3880, %v3881
      %v3883 = vrot.slane %v3775, 5
      %v3884 = vrot.slane %v3883, 4
      %v3885 = vrot.slane %v3776, 5
      %v3886 = vsel %vm1678, %v3884, %v3885
      %v3887 = vrot.slane %v3885, 4
      %v3888 = vrot.slane %v3777, 5
      %v3889 = vsel %vm1678, %v3887, %v3888
      %v3890 = vrot.slane %v3778, 5
      %v3891 = vrot.slane %v3890, 4
      %v3892 = vrot.slane %v3779, 5
      %v3893 = vsel %vm1678, %v3891, %v3892
      %v3894 = vrot.slane %v3892, 4
      %v3895 = vrot.slane %v3780, 5
      %v3896 = vsel %vm1678, %v3894, %v3895
      %v3897 = vrot.slane %v3781, 5
      %v3898 = vrot.slane %v3897, 4
      %v3899 = vrot.slane %v3782, 5
      %v3900 = vsel %vm1678, %v3898, %v3899
      %v3901 = vrot.slane %v3899, 4
      %v3902 = vrot.slane %v3783, 5
      %v3903 = vsel %vm1678, %v3901, %v3902
      %v3904 = vrot.slane %v3784, 5
      %v3905 = vrot.slane %v3904, 4
      %v3906 = vrot.slane %v3785, 5
      %v3907 = vsel %vm1678, %v3905, %v3906
      %v3908 = vrot.slane %v3906, 4
      %v3909 = vrot.slane %v3786, 5
      %v3910 = vsel %vm1678, %v3908, %v3909
      %v3911 = vrot.slane %v3787, 5
      %v3912 = vrot.slane %v3911, 4
      %v3913 = vrot.slane %v3788, 5
      %v3914 = vsel %vm1678, %v3912, %v3913
      %v3915 = vrot.slane %v3913, 4
      %v3916 = vrot.slane %v3789, 5
      %v3917 = vsel %vm1678, %v3915, %v3916
      %v3918 = vrot.slane %v3790, 5
      %v3919 = vrot.slane %v3918, 4
      %v3920 = vrot.slane %v3791, 5
      %v3921 = vsel %vm1678, %v3919, %v3920
      %v3922 = vrot.slane %v3920, 4
      %v3923 = vrot.slane %v3792, 5
      %v3924 = vsel %vm1678, %v3922, %v3923
      %v3925 = vrot.slane %v3793, 5
      %v3926 = vrot.slane %v3925, 4
      %v3927 = vrot.slane %v3794, 5
      %v3928 = vsel %vm1678, %v3926, %v3927
      %v3929 = vrot.slane %v3927, 4
      %v3930 = vrot.slane %v3795, 5
      %v3931 = vsel %vm1678, %v3929, %v3930
      %v3932 = vrot.slane %v3796, 5
      %v3933 = vrot.slane %v3932, 4
      %v3934 = vrot.slane %v3797, 5
      %v3935 = vsel %vm1678, %v3933, %v3934
      %v3936 = vrot.slane %v3934, 4
      %v3937 = vrot.slane %v3798, 5
      %v3938 = vsel %vm1678, %v3936, %v3937
      %v3939 = vrot.slane %v3799, 5
      %v3940 = vrot.slane %v3939, 4
      %v3941 = vrot.slane %v3800, 5
      %v3942 = vsel %vm1678, %v3940, %v3941
      %v3943 = vrot.slane %v3941, 4
      %v3944 = vrot.slane %v3801, 5
      %v3945 = vsel %vm1678, %v3943, %v3944
      %v3946 = vrot.slane %v3802, 5
      %v3947 = vrot.slane %v3946, 4
      %v3948 = vrot.slane %v3803, 5
      %v3949 = vsel %vm1678, %v3947, %v3948
      %v3950 = vrot.slane %v3948, 4
      %v3951 = vrot.slane %v3804, 5
      %v3952 = vsel %vm1678, %v3950, %v3951
      %v3953 = vrot.slane %v3805, 5
      %v3954 = vrot.slane %v3953, 4
      %v3955 = vrot.slane %v3806, 5
      %v3956 = vsel %vm1678, %v3954, %v3955
      %v3957 = vrot.slane %v3955, 4
      %v3958 = vrot.slane %v3807, 5
      %v3959 = vsel %vm1678, %v3957, %v3958
      %v3960 = vrot.slane %v3808, 5
      %v3961 = vrot.slane %v3960, 4
      %v3962 = vrot.slane %v3809, 5
      %v3963 = vsel %vm1678, %v3961, %v3962
      %v3964 = vrot.slane %v3962, 4
      %v3965 = vrot.slane %v3810, 5
      %v3966 = vsel %vm1678, %v3964, %v3965
      %v3967 = vrot.slane %v3811, 5
      %v3968 = vrot.slane %v3967, 4
      %v3969 = vrot.slane %v3812, 5
      %v3970 = vsel %vm1678, %v3968, %v3969
      %v3971 = vrot.slane %v3969, 4
      %v3972 = vrot.slane %v3813, 5
      %v3973 = vsel %vm1678, %v3971, %v3972
      %3974 = vrot.lane.b32.xlu0 %v3865, 32
      %v3975 = vpop.permute.xlu0 %3974
      %3976 = vrot.lane.b32.xlu0 %v3868, 32
      %v3977 = vpop.permute.xlu0 %3976
      %3978 = vrot.lane.b32.xlu0 %v3872, 32
      %v3979 = vpop.permute.xlu0 %3978
      %3980 = vrot.lane.b32.xlu0 %v3875, 32
      %v3981 = vpop.permute.xlu0 %3980
      %3982 = vrot.lane.b32.xlu0 %v3879, 32
      %v3983 = vpop.permute.xlu0 %3982
      %3984 = vrot.lane.b32.xlu0 %v3882, 32
      %v3985 = vpop.permute.xlu0 %3984
      %3986 = vrot.lane.b32.xlu0 %v3886, 32
      %v3987 = vpop.permute.xlu0 %3986
      %3988 = vrot.lane.b32.xlu0 %v3889, 32
      %v3989 = vpop.permute.xlu0 %3988
      %3990 = vrot.lane.b32.xlu0 %v3893, 32
      %v3991 = vpop.permute.xlu0 %3990
      %3992 = vrot.lane.b32.xlu0 %v3896, 32
      %v3993 = vpop.permute.xlu0 %3992
      %3994 = vrot.lane.b32.xlu0 %v3900, 32
      %v3995 = vpop.permute.xlu0 %3994
      %3996 = vrot.lane.b32.xlu0 %v3903, 32
      %v3997 = vpop.permute.xlu0 %3996
      %3998 = vrot.lane.b32.xlu0 %v3907, 32
      %v3999 = vpop.permute.xlu0 %3998
      %4000 = vrot.lane.b32.xlu0 %v3910, 32
      %v4001 = vpop.permute.xlu0 %4000
      %4002 = vrot.lane.b32.xlu0 %v3914, 32
      %v4003 = vpop.permute.xlu0 %4002
      %4004 = vrot.lane.b32.xlu0 %v3917, 32
      %v4005 = vpop.permute.xlu0 %4004
      %4006 = vrot.lane.b32.xlu0 %v3921, 32
      %v4007 = vpop.permute.xlu0 %4006
      %4008 = vrot.lane.b32.xlu0 %v3924, 32
      %v4009 = vpop.permute.xlu0 %4008
      %4010 = vrot.lane.b32.xlu0 %v3928, 32
      %v4011 = vpop.permute.xlu0 %4010
      %4012 = vrot.lane.b32.xlu0 %v3931, 32
      %v4013 = vpop.permute.xlu0 %4012
      %4014 = vrot.lane.b32.xlu0 %v3935, 32
      %v4015 = vpop.permute.xlu0 %4014
      %4016 = vrot.lane.b32.xlu0 %v3938, 32
      %v4017 = vpop.permute.xlu0 %4016
      %4018 = vrot.lane.b32.xlu0 %v3942, 32
      %v4019 = vpop.permute.xlu0 %4018
      %4020 = vrot.lane.b32.xlu0 %v3945, 32
      %v4021 = vpop.permute.xlu0 %4020
      %4022 = vrot.lane.b32.xlu0 %v3949, 32
      %v4023 = vpop.permute.xlu0 %4022
      %4024 = vrot.lane.b32.xlu0 %v3952, 32
      %v4025 = vpop.permute.xlu0 %4024
      %4026 = vrot.lane.b32.xlu0 %v3956, 32
      %v4027 = vpop.permute.xlu0 %4026
      %4028 = vrot.lane.b32.xlu0 %v3959, 32
      %v4029 = vpop.permute.xlu0 %4028
      %4030 = vrot.lane.b32.xlu0 %v3963, 32
      %v4031 = vpop.permute.xlu0 %4030
      %4032 = vrot.lane.b32.xlu0 %v3966, 32
      %v4033 = vpop.permute.xlu0 %4032
      %4034 = vrot.lane.b32.xlu0 %v3970, 32
      %v4035 = vpop.permute.xlu0 %4034
      %4036 = vrot.lane.b32.xlu0 %v3973, 32
      %v4037 = vpop.permute.xlu0 %4036
      %vm4070 = vcmask 290048
      %4071 = vst.msk [vmem:[#allocation4] sm:$0xf] %vm4070, %v3975
      %4072 = vst.msk [vmem:[#allocation4 + $0x4] sm:$0xf] %vm4070, %v3977
      %4073 = vst.msk [vmem:[#allocation4 + $0x8] sm:$0xf] %vm4070, %v3979
      %4074 = vst.msk [vmem:[#allocation4 + $0xc] sm:$0xf] %vm4070, %v3981
      %4075 = vst.msk [vmem:[#allocation4 + $0x10] sm:$0xf] %vm4070, %v3983
      %4076 = vst.msk [vmem:[#allocation4 + $0x14] sm:$0xf] %vm4070, %v3985
      %4077 = vst.msk [vmem:[#allocation4 + $0x18] sm:$0xf] %vm4070, %v3987
      %4078 = vst.msk [vmem:[#allocation4 + $0x1c] sm:$0xf] %vm4070, %v3989
      %4079 = vst.msk [vmem:[#allocation4 + $0x20] sm:$0xf] %vm4070, %v3991
      %4080 = vst.msk [vmem:[#allocation4 + $0x24] sm:$0xf] %vm4070, %v3993
      %4081 = vst.msk [vmem:[#allocation4 + $0x28] sm:$0xf] %vm4070, %v3995
      %4082 = vst.msk [vmem:[#allocation4 + $0x2c] sm:$0xf] %vm4070, %v3997
      %4083 = vst.msk [vmem:[#allocation4 + $0x30] sm:$0xf] %vm4070, %v3999
      %4084 = vst.msk [vmem:[#allocation4 + $0x34] sm:$0xf] %vm4070, %v4001
      %4085 = vst.msk [vmem:[#allocation4 + $0x38] sm:$0xf] %vm4070, %v4003
      %4086 = vst.msk [vmem:[#allocation4 + $0x3c] sm:$0xf] %vm4070, %v4005
      %4087 = vst.msk [vmem:[#allocation4 + $0x40] sm:$0xf] %vm4070, %v4007
      %4088 = vst.msk [vmem:[#allocation4 + $0x44] sm:$0xf] %vm4070, %v4009
      %4089 = vst.msk [vmem:[#allocation4 + $0x48] sm:$0xf] %vm4070, %v4011
      %4090 = vst.msk [vmem:[#allocation4 + $0x4c] sm:$0xf] %vm4070, %v4013
      %4091 = vst.msk [vmem:[#allocation4 + $0x50] sm:$0xf] %vm4070, %v4015
      %4092 = vst.msk [vmem:[#allocation4 + $0x54] sm:$0xf] %vm4070, %v4017
      %4093 = vst.msk [vmem:[#allocation4 + $0x58] sm:$0xf] %vm4070, %v4019
      %4094 = vst.msk [vmem:[#allocation4 + $0x5c] sm:$0xf] %vm4070, %v4021
      %4095 = vst.msk [vmem:[#allocation4 + $0x60] sm:$0xf] %vm4070, %v4023
      %4096 = vst.msk [vmem:[#allocation4 + $0x64] sm:$0xf] %vm4070, %v4025
      %4097 = vst.msk [vmem:[#allocation4 + $0x68] sm:$0xf] %vm4070, %v4027
      %4098 = vst.msk [vmem:[#allocation4 + $0x6c] sm:$0xf] %vm4070, %v4029
      %4099 = vst.msk [vmem:[#allocation4 + $0x70] sm:$0xf] %vm4070, %v4031
      %4100 = vst.msk [vmem:[#allocation4 + $0x74] sm:$0xf] %vm4070, %v4033
      %4101 = vst.msk [vmem:[#allocation4 + $0x78] sm:$0xf] %vm4070, %v4035
      %4102 = vst.msk [vmem:[#allocation4 + $0x7c] sm:$0xf] %vm4070, %v4037
      %v4103 = vld [vmem:[#allocation4] sm:$0xf]
      %v4104 = vld [vmem:[#allocation4 + $0x4] sm:$0xf]
      %v4105 = vld [vmem:[#allocation4 + $0x8] sm:$0xf]
      %v4106 = vld [vmem:[#allocation4 + $0xc] sm:$0xf]
      %v4107 = vld [vmem:[#allocation4 + $0x10] sm:$0xf]
      %v4108 = vld [vmem:[#allocation4 + $0x14] sm:$0xf]
      %v4109 = vld [vmem:[#allocation4 + $0x18] sm:$0xf]
      %v4110 = vld [vmem:[#allocation4 + $0x1c] sm:$0xf]
      %v4111 = vld [vmem:[#allocation4 + $0x20] sm:$0xf]
      %v4112 = vld [vmem:[#allocation4 + $0x24] sm:$0xf]
      %v4113 = vld [vmem:[#allocation4 + $0x28] sm:$0xf]
      %v4114 = vld [vmem:[#allocation4 + $0x2c] sm:$0xf]
      %v4115 = vld [vmem:[#allocation4 + $0x30] sm:$0xf]
      %v4116 = vld [vmem:[#allocation4 + $0x34] sm:$0xf]
      %v4117 = vld [vmem:[#allocation4 + $0x38] sm:$0xf]
      %v4118 = vld [vmem:[#allocation4 + $0x3c] sm:$0xf]
      %v4119 = vld [vmem:[#allocation4 + $0x40] sm:$0xf]
      %v4120 = vld [vmem:[#allocation4 + $0x44] sm:$0xf]
      %v4121 = vld [vmem:[#allocation4 + $0x48] sm:$0xf]
      %v4122 = vld [vmem:[#allocation4 + $0x4c] sm:$0xf]
      %v4123 = vld [vmem:[#allocation4 + $0x50] sm:$0xf]
      %v4124 = vld [vmem:[#allocation4 + $0x54] sm:$0xf]
      %v4125 = vld [vmem:[#allocation4 + $0x58] sm:$0xf]
      %v4126 = vld [vmem:[#allocation4 + $0x5c] sm:$0xf]
      %v4127 = vld [vmem:[#allocation4 + $0x60] sm:$0xf]
      %v4128 = vld [vmem:[#allocation4 + $0x64] sm:$0xf]
      %v4129 = vld [vmem:[#allocation4 + $0x68] sm:$0xf]
      %v4130 = vld [vmem:[#allocation4 + $0x6c] sm:$0xf]
      %v4131 = vld [vmem:[#allocation4 + $0x70] sm:$0xf]
      %v4132 = vld [vmem:[#allocation4 + $0x74] sm:$0xf]
      %v4133 = vld [vmem:[#allocation4 + $0x78] sm:$0xf]
      %v4134 = vld [vmem:[#allocation4 + $0x7c] sm:$0xf]
      %v4135 = vld [vmem:[%s1] sm:$0xf]
      %v4136 = vld [vmem:[%s1 + $0x4] sm:$0xf]
      %v4137 = vld [vmem:[%s1 + $0x8] sm:$0xf]
      %v4138 = vld [vmem:[%s1 + $0xc] sm:$0xf]
      %v4139 = vld [vmem:[%s1 + $0x10] sm:$0x3]
      %v4172 = vunpack.c.l.b16 %v4103
      %v4173 = vunpack.c.l.b16 %v4104
      %v4174 = vunpack.c.l.b16 %v4105
      %v4175 = vunpack.c.l.b16 %v4106
      %v4176 = vunpack.c.l.b16 %v4107
      %v4177 = vunpack.c.l.b16 %v4108
      %v4178 = vunpack.c.l.b16 %v4109
      %v4179 = vunpack.c.l.b16 %v4110
      %v4180 = vunpack.c.l.b16 %v4111
      %v4181 = vunpack.c.l.b16 %v4112
      %v4182 = vunpack.c.l.b16 %v4113
      %v4183 = vunpack.c.l.b16 %v4114
      %v4184 = vunpack.c.l.b16 %v4115
      %v4185 = vunpack.c.l.b16 %v4116
      %v4186 = vunpack.c.l.b16 %v4117
      %v4187 = vunpack.c.l.b16 %v4118
      %v4188 = vunpack.c.l.b16 %v4119
      %v4189 = vunpack.c.l.b16 %v4120
      %v4190 = vunpack.c.l.b16 %v4121
      %v4191 = vunpack.c.l.b16 %v4122
      %v4192 = vunpack.c.l.b16 %v4123
      %v4193 = vunpack.c.l.b16 %v4124
      %v4194 = vunpack.c.l.b16 %v4125
      %v4195 = vunpack.c.l.b16 %v4126
      %v4196 = vunpack.c.l.b16 %v4127
      %v4197 = vunpack.c.l.b16 %v4128
      %v4198 = vunpack.c.l.b16 %v4129
      %v4199 = vunpack.c.l.b16 %v4130
      %v4200 = vunpack.c.l.b16 %v4131
      %v4201 = vunpack.c.l.b16 %v4132
      %v4202 = vunpack.c.l.b16 %v4133
      %v4203 = vunpack.c.l.b16 %v4134
      %v4204 = vpack.c.b16 %v4173, %v4172
      %v4205 = vpack.c.b16 %v4175, %v4174
      %v4206 = vpack.c.b16 %v4177, %v4176
      %v4207 = vpack.c.b16 %v4179, %v4178
      %v4208 = vpack.c.b16 %v4181, %v4180
      %v4209 = vpack.c.b16 %v4183, %v4182
      %v4210 = vpack.c.b16 %v4185, %v4184
      %v4211 = vpack.c.b16 %v4187, %v4186
      %v4212 = vpack.c.b16 %v4189, %v4188
      %v4213 = vpack.c.b16 %v4191, %v4190
      %v4214 = vpack.c.b16 %v4193, %v4192
      %v4215 = vpack.c.b16 %v4195, %v4194
      %v4216 = vpack.c.b16 %v4197, %v4196
      %v4217 = vpack.c.b16 %v4199, %v4198
      %v4218 = vpack.c.b16 %v4201, %v4200
      %v4219 = vpack.c.b16 %v4203, %v4202
      %v4225 = vunpack.c.l.b16 %v4135
      %v4226 = vunpack.c.l.b16 %v4136
      %v4227 = vunpack.c.l.b16 %v4137
      %v4228 = vunpack.c.l.b16 %v4138
      %v4229 = vunpack.c.l.b16 %v4139
      %v4230 = vpack.c.b16 %v4226, %v4225
      %v4231 = vpack.c.b16 %v4228, %v4227
      %v4232 = vpack.c.b16 %v4229, %v4229
      %vm4235 = vcmask 293888
      %v4237 = vsel %vm4235, %v4204, 0
      %v4240 = vsel %vm4235, %v4205, 0
      %v4243 = vsel %vm4235, %v4206, 0
      %v4246 = vsel %vm4235, %v4207, 0
      %v4249 = vsel %vm4235, %v4208, 0
      %v4252 = vsel %vm4235, %v4209, 0
      %v4255 = vsel %vm4235, %v4210, 0
      %v4258 = vsel %vm4235, %v4211, 0
      %v4261 = vsel %vm4235, %v4212, 0
      %v4264 = vsel %vm4235, %v4213, 0
      %v4267 = vsel %vm4235, %v4214, 0
      %v4270 = vsel %vm4235, %v4215, 0
      %v4273 = vsel %vm4235, %v4216, 0
      %v4276 = vsel %vm4235, %v4217, 0
      %v4279 = vsel %vm4235, %v4218, 0
      %v4282 = vsel %vm4235, %v4219, 0
      %vm4284 = vcmask 1041408
      %v4286 = vsel %vm4284, %v4232, 0
      %4288 = vmatprep.subr.bf16.mxu0 0
      %4289 = vmatpush1.bf16.msra.mxu0 0
      %4290 = vmatprep.subr.bf16.mxu0 0
      %4291 = vmatpush1.bf16.msra.mxu0 0
      %4292 = vmatprep.subr.bf16.mxu0 0
      %4293 = vmatpush1.bf16.msra.mxu0 0
      %4294 = vmatprep.subr.bf16.mxu0 0
      %4295 = vmatpush1.bf16.msra.mxu0 0
      %4296 = vmatprep.subr.bf16.mxu0 0
      %4297 = vmatpush1.bf16.msra.mxu0 0
      %4298 = vmatprep.subr.bf16.mxu0 0
      %4299 = vmatpush1.bf16.msra.mxu0 %v4286
      %4300 = vmatprep.subr.bf16.mxu0 0
      %4301 = vmatpush1.bf16.msra.mxu0 %v4231
      %4302 = vmatprep.subr.bf16.mxu0 0
      %4303 = vmatpush1.bf16.msra.mxu0 %v4230
      %4304 = vmatprep.subr.bf16.mxu0 0
      %4305 = vmatpush2.bf16.msra.mxu0 0
      %4306 = vmatprep.subr.bf16.mxu0 0
      %4307 = vmatpush2.bf16.msra.mxu0 0
      %4308 = vmatprep.subr.bf16.mxu0 0
      %4309 = vmatpush2.bf16.msra.mxu0 0
      %4310 = vmatprep.subr.bf16.mxu0 0
      %4311 = vmatpush2.bf16.msra.mxu0 0
      %4312 = vmatprep.subr.bf16.mxu0 0
      %4313 = vmatpush2.bf16.msra.mxu0 0
      %4314 = vmatprep.subr.bf16.mxu0 0
      %4315 = vmatpush2.bf16.msra.mxu0 0
      %4316 = vmatprep.subr.bf16.mxu0 0
      %4317 = vmatpush2.bf16.msra.mxu0 0
      %4318 = vmatprep.subr.bf16.mxu0 0
      %4319 = vmatpush2.bf16.msra.mxu0 0
      %4320 = vmatprep.mubr.bf16.mxu0 0
      %4321 = vmatmul.mubr.bf16.gmra.mxu0 %v4237
      %v4322 = vpop.f32.mrf.mxu0
      %v4323 = vadd.f32 0.0, %v4322
      %v4324 = vpop.f32.mrf.mxu0
      %v4325 = vpop.f32.mrf.mxu0
      %v4326 = vadd.f32 0.0, %v4325
      %v4327 = vpop.f32.mrf.mxu0
      %4328 = vmatprep.mubr.bf16.mxu0 0
      %4329 = vmatmul.mubr.bf16.gmra.mxu0 %v4240
      %v4330 = vpop.f32.mrf.mxu0
      %v4331 = vadd.f32 0.0, %v4330
      %v4332 = vpop.f32.mrf.mxu0
      %v4333 = vpop.f32.mrf.mxu0
      %v4334 = vadd.f32 0.0, %v4333
      %v4335 = vpop.f32.mrf.mxu0
      %4336 = vmatprep.mubr.bf16.mxu0 0
      %4337 = vmatmul.mubr.bf16.gmra.mxu0 %v4243
      %v4338 = vpop.f32.mrf.mxu0
      %v4339 = vadd.f32 0.0, %v4338
      %v4340 = vpop.f32.mrf.mxu0
      %v4341 = vpop.f32.mrf.mxu0
      %v4342 = vadd.f32 0.0, %v4341
      %v4343 = vpop.f32.mrf.mxu0
      %4344 = vmatprep.mubr.bf16.mxu0 0
      %4345 = vmatmul.mubr.bf16.gmra.mxu0 %v4246
      %v4346 = vpop.f32.mrf.mxu0
      %v4347 = vadd.f32 0.0, %v4346
      %v4348 = vpop.f32.mrf.mxu0
      %v4349 = vpop.f32.mrf.mxu0
      %v4350 = vadd.f32 0.0, %v4349
      %v4351 = vpop.f32.mrf.mxu0
      %4352 = vmatprep.mubr.bf16.mxu0 0
      %4353 = vmatmul.mubr.bf16.gmra.mxu0 %v4249
      %v4354 = vpop.f32.mrf.mxu0
      %v4355 = vadd.f32 0.0, %v4354
      %v4356 = vpop.f32.mrf.mxu0
      %v4357 = vpop.f32.mrf.mxu0
      %v4358 = vadd.f32 0.0, %v4357
      %v4359 = vpop.f32.mrf.mxu0
      %4360 = vmatprep.mubr.bf16.mxu0 0
      %4361 = vmatmul.mubr.bf16.gmra.mxu0 %v4252
      %v4362 = vpop.f32.mrf.mxu0
      %v4363 = vadd.f32 0.0, %v4362
      %v4364 = vpop.f32.mrf.mxu0
      %v4365 = vpop.f32.mrf.mxu0
      %v4366 = vadd.f32 0.0, %v4365
      %v4367 = vpop.f32.mrf.mxu0
      %4368 = vmatprep.mubr.bf16.mxu0 0
      %4369 = vmatmul.mubr.bf16.gmra.mxu0 %v4255
      %v4370 = vpop.f32.mrf.mxu0
      %v4371 = vadd.f32 0.0, %v4370
      %v4372 = vpop.f32.mrf.mxu0
      %v4373 = vpop.f32.mrf.mxu0
      %v4374 = vadd.f32 0.0, %v4373
      %v4375 = vpop.f32.mrf.mxu0
      %4376 = vmatprep.mubr.bf16.mxu0 0
      %4377 = vmatmul.mubr.bf16.gmra.mxu0 %v4258
      %v4378 = vpop.f32.mrf.mxu0
      %v4379 = vadd.f32 0.0, %v4378
      %v4380 = vpop.f32.mrf.mxu0
      %v4381 = vpop.f32.mrf.mxu0
      %v4382 = vadd.f32 0.0, %v4381
      %v4383 = vpop.f32.mrf.mxu0
      %4384 = vmatprep.mubr.bf16.mxu0 0
      %4385 = vmatmul.mubr.bf16.gmra.mxu0 %v4261
      %v4386 = vpop.f32.mrf.mxu0
      %v4387 = vadd.f32 0.0, %v4386
      %v4388 = vpop.f32.mrf.mxu0
      %v4389 = vpop.f32.mrf.mxu0
      %v4390 = vadd.f32 0.0, %v4389
      %v4391 = vpop.f32.mrf.mxu0
      %4392 = vmatprep.mubr.bf16.mxu0 0
      %4393 = vmatmul.mubr.bf16.gmra.mxu0 %v4264
      %v4394 = vpop.f32.mrf.mxu0
      %v4395 = vadd.f32 0.0, %v4394
      %v4396 = vpop.f32.mrf.mxu0
      %v4397 = vpop.f32.mrf.mxu0
      %v4398 = vadd.f32 0.0, %v4397
      %v4399 = vpop.f32.mrf.mxu0
      %4400 = vmatprep.mubr.bf16.mxu0 0
      %4401 = vmatmul.mubr.bf16.gmra.mxu0 %v4267
      %v4402 = vpop.f32.mrf.mxu0
      %v4403 = vadd.f32 0.0, %v4402
      %v4404 = vpop.f32.mrf.mxu0
      %v4405 = vpop.f32.mrf.mxu0
      %v4406 = vadd.f32 0.0, %v4405
      %v4407 = vpop.f32.mrf.mxu0
      %4408 = vmatprep.mubr.bf16.mxu0 0
      %4409 = vmatmul.mubr.bf16.gmra.mxu0 %v4270
      %v4410 = vpop.f32.mrf.mxu0
      %v4411 = vadd.f32 0.0, %v4410
      %v4412 = vpop.f32.mrf.mxu0
      %v4413 = vpop.f32.mrf.mxu0
      %v4414 = vadd.f32 0.0, %v4413
      %v4415 = vpop.f32.mrf.mxu0
      %4416 = vmatprep.mubr.bf16.mxu0 0
      %4417 = vmatmul.mubr.bf16.gmra.mxu0 %v4273
      %v4418 = vpop.f32.mrf.mxu0
      %v4419 = vadd.f32 0.0, %v4418
      %v4420 = vpop.f32.mrf.mxu0
      %v4421 = vpop.f32.mrf.mxu0
      %v4422 = vadd.f32 0.0, %v4421
      %v4423 = vpop.f32.mrf.mxu0
      %4424 = vmatprep.mubr.bf16.mxu0 0
      %4425 = vmatmul.mubr.bf16.gmra.mxu0 %v4276
      %v4426 = vpop.f32.mrf.mxu0
      %v4427 = vadd.f32 0.0, %v4426
      %v4428 = vpop.f32.mrf.mxu0
      %v4429 = vpop.f32.mrf.mxu0
      %v4430 = vadd.f32 0.0, %v4429
      %v4431 = vpop.f32.mrf.mxu0
      %4432 = vmatprep.mubr.bf16.mxu0 0
      %4433 = vmatmul.mubr.bf16.gmra.mxu0 %v4279
      %v4434 = vpop.f32.mrf.mxu0
      %v4435 = vadd.f32 0.0, %v4434
      %v4436 = vpop.f32.mrf.mxu0
      %v4437 = vpop.f32.mrf.mxu0
      %v4438 = vadd.f32 0.0, %v4437
      %v4439 = vpop.f32.mrf.mxu0
      %4440 = vmatprep.mubr.bf16.mxu0 0
      %4441 = vmatmul.mubr.bf16.gmra.mxu0 %v4282
      %v4442 = vpop.f32.mrf.mxu0
      %v4443 = vadd.f32 0.0, %v4442
      %v4444 = vpop.f32.mrf.mxu0
      %v4445 = vpop.f32.mrf.mxu0
      %v4446 = vadd.f32 0.0, %v4445
      %v4447 = vpop.f32.mrf.mxu0
      %4448 = vdwg.mxu0
      %v4449 = vld [vmem:[%s2] sm:$0x1]
      %v4451 = vlaneseq
      %v4452 = vshrl.u32 %v4451, 7
      %v4453 = vsub.s32 0, %v4452
      %v4454 = vrot.slane %v4449, %v4453
      %v4456 = vmul.f32 %v4323, %v4454
      %v4457 = vmul.f32 %v4326, %v4454
      %v4458 = vmul.f32 %v4331, %v4454
      %v4459 = vmul.f32 %v4334, %v4454
      %v4460 = vmul.f32 %v4339, %v4454
      %v4461 = vmul.f32 %v4342, %v4454
      %v4462 = vmul.f32 %v4347, %v4454
      %v4463 = vmul.f32 %v4350, %v4454
      %v4464 = vmul.f32 %v4355, %v4454
      %v4465 = vmul.f32 %v4358, %v4454
      %v4466 = vmul.f32 %v4363, %v4454
      %v4467 = vmul.f32 %v4366, %v4454
      %v4468 = vmul.f32 %v4371, %v4454
      %v4469 = vmul.f32 %v4374, %v4454
      %v4470 = vmul.f32 %v4379, %v4454
      %v4471 = vmul.f32 %v4382, %v4454
      %v4472 = vmul.f32 %v4387, %v4454
      %v4473 = vmul.f32 %v4390, %v4454
      %v4474 = vmul.f32 %v4395, %v4454
      %v4475 = vmul.f32 %v4398, %v4454
      %v4476 = vmul.f32 %v4403, %v4454
      %v4477 = vmul.f32 %v4406, %v4454
      %v4478 = vmul.f32 %v4411, %v4454
      %v4479 = vmul.f32 %v4414, %v4454
      %v4480 = vmul.f32 %v4419, %v4454
      %v4481 = vmul.f32 %v4422, %v4454
      %v4482 = vmul.f32 %v4427, %v4454
      %v4483 = vmul.f32 %v4430, %v4454
      %v4484 = vmul.f32 %v4435, %v4454
      %v4485 = vmul.f32 %v4438, %v4454
      %v4486 = vmul.f32 %v4443, %v4454
      %v4487 = vmul.f32 %v4446, %v4454
      %v4488 = vld [vmem:[%s3] sm:$0x1]
      %v4490 = vlaneseq
      %v4491 = vshrl.u32 %v4490, 7
      %v4492 = vsub.s32 0, %v4491
      %v4493 = vrot.slane %v4488, %v4492
      %v4495 = vadd.f32 %v4456, %v4493
      %v4496 = vadd.f32 %v4457, %v4493
      %v4497 = vadd.f32 %v4458, %v4493
      %v4498 = vadd.f32 %v4459, %v4493
      %v4499 = vadd.f32 %v4460, %v4493
      %v4500 = vadd.f32 %v4461, %v4493
      %v4501 = vadd.f32 %v4462, %v4493
      %v4502 = vadd.f32 %v4463, %v4493
      %v4503 = vadd.f32 %v4464, %v4493
      %v4504 = vadd.f32 %v4465, %v4493
      %v4505 = vadd.f32 %v4466, %v4493
      %v4506 = vadd.f32 %v4467, %v4493
      %v4507 = vadd.f32 %v4468, %v4493
      %v4508 = vadd.f32 %v4469, %v4493
      %v4509 = vadd.f32 %v4470, %v4493
      %v4510 = vadd.f32 %v4471, %v4493
      %v4511 = vadd.f32 %v4472, %v4493
      %v4512 = vadd.f32 %v4473, %v4493
      %v4513 = vadd.f32 %v4474, %v4493
      %v4514 = vadd.f32 %v4475, %v4493
      %v4515 = vadd.f32 %v4476, %v4493
      %v4516 = vadd.f32 %v4477, %v4493
      %v4517 = vadd.f32 %v4478, %v4493
      %v4518 = vadd.f32 %v4479, %v4493
      %v4519 = vadd.f32 %v4480, %v4493
      %v4520 = vadd.f32 %v4481, %v4493
      %v4521 = vadd.f32 %v4482, %v4493
      %v4522 = vadd.f32 %v4483, %v4493
      %v4523 = vadd.f32 %v4484, %v4493
      %v4524 = vadd.f32 %v4485, %v4493
      %v4525 = vadd.f32 %v4486, %v4493
      %v4526 = vadd.f32 %v4487, %v4493
      %v4527 = vmax.f32 %v4495, 0.0
      %v4528 = vmax.f32 %v4496, 0.0
      %v4529 = vmax.f32 %v4497, 0.0
      %v4530 = vmax.f32 %v4498, 0.0
      %v4531 = vmax.f32 %v4499, 0.0
      %v4532 = vmax.f32 %v4500, 0.0
      %v4533 = vmax.f32 %v4501, 0.0
      %v4534 = vmax.f32 %v4502, 0.0
      %v4535 = vmax.f32 %v4503, 0.0
      %v4536 = vmax.f32 %v4504, 0.0
      %v4537 = vmax.f32 %v4505, 0.0
      %v4538 = vmax.f32 %v4506, 0.0
      %v4539 = vmax.f32 %v4507, 0.0
      %v4540 = vmax.f32 %v4508, 0.0
      %v4541 = vmax.f32 %v4509, 0.0
      %v4542 = vmax.f32 %v4510, 0.0
      %v4543 = vmax.f32 %v4511, 0.0
      %v4544 = vmax.f32 %v4512, 0.0
      %v4545 = vmax.f32 %v4513, 0.0
      %v4546 = vmax.f32 %v4514, 0.0
      %v4547 = vmax.f32 %v4515, 0.0
      %v4548 = vmax.f32 %v4516, 0.0
      %v4549 = vmax.f32 %v4517, 0.0
      %v4550 = vmax.f32 %v4518, 0.0
      %v4551 = vmax.f32 %v4519, 0.0
      %v4552 = vmax.f32 %v4520, 0.0
      %v4553 = vmax.f32 %v4521, 0.0
      %v4554 = vmax.f32 %v4522, 0.0
      %v4555 = vmax.f32 %v4523, 0.0
      %v4556 = vmax.f32 %v4524, 0.0
      %v4557 = vmax.f32 %v4525, 0.0
      %v4558 = vmax.f32 %v4526, 0.0
      %vm4559 = vcmask 60416
      %4560 = vst.msk [vmem:[#allocation3] sm:$0xf] %vm4559, 0
      %4561 = vst.msk [vmem:[#allocation3 + $0x4] sm:$0xf] %vm4559, 0
      %vm4562 = vcmask 57344
      %4563 = vst.msk [vmem:[#allocation3 + $0x8] sm:$0x1] %vm4562, 0
      %s4564 = scalar_lea.vmem [#allocation3], 204
      %4565 = vst.msk [vmem:[%s4564] sm:$0xf] %vm4559, 0
      %4566 = vst.msk [vmem:[%s4564 + $0x4] sm:$0xf] %vm4559, 0
      %4567 = vst.msk [vmem:[%s4564 + $0x8] sm:$0x1] %vm4562, 0
      %vm4568 = vcmask 57344
      %vm4569 = vmand %vm4568, %vm403
      %v4570 = vld [vmem:[#allocation3] sm:$0x1]
      %v4571 = vsel %vm4569, 0, %v4570
      %4572 = vst [vmem:[#allocation3] sm:$0x1] %v4571
      %v4573 = vld [vmem:[#allocation3 + $0xc] sm:$0x1]
      %v4574 = vsel %vm4569, 0, %v4573
      %4575 = vst [vmem:[#allocation3 + $0xc] sm:$0x1] %v4574
      %v4576 = vld [vmem:[#allocation3 + $0x18] sm:$0x1]
      %v4577 = vsel %vm4569, 0, %v4576
      %4578 = vst [vmem:[#allocation3 + $0x18] sm:$0x1] %v4577
      %v4579 = vld [vmem:[#allocation3 + $0x24] sm:$0x1]
      %v4580 = vsel %vm4569, 0, %v4579
      %4581 = vst [vmem:[#allocation3 + $0x24] sm:$0x1] %v4580
      %v4582 = vld [vmem:[#allocation3 + $0x30] sm:$0x1]
      %v4583 = vsel %vm4569, 0, %v4582
      %4584 = vst [vmem:[#allocation3 + $0x30] sm:$0x1] %v4583
      %v4585 = vld [vmem:[#allocation3 + $0x3c] sm:$0x1]
      %v4586 = vsel %vm4569, 0, %v4585
      %4587 = vst [vmem:[#allocation3 + $0x3c] sm:$0x1] %v4586
      %v4588 = vld [vmem:[#allocation3 + $0x48] sm:$0x1]
      %v4589 = vsel %vm4569, 0, %v4588
      %4590 = vst [vmem:[#allocation3 + $0x48] sm:$0x1] %v4589
      %v4591 = vld [vmem:[#allocation3 + $0x54] sm:$0x1]
      %v4592 = vsel %vm4569, 0, %v4591
      %4593 = vst [vmem:[#allocation3 + $0x54] sm:$0x1] %v4592
      %v4594 = vld [vmem:[#allocation3 + $0x60] sm:$0x1]
      %v4595 = vsel %vm4569, 0, %v4594
      %4596 = vst [vmem:[#allocation3 + $0x60] sm:$0x1] %v4595
      %v4597 = vld [vmem:[#allocation3 + $0x6c] sm:$0x1]
      %v4598 = vsel %vm4569, 0, %v4597
      %4599 = vst [vmem:[#allocation3 + $0x6c] sm:$0x1] %v4598
      %v4600 = vld [vmem:[#allocation3 + $0x78] sm:$0x1]
      %v4601 = vsel %vm4569, 0, %v4600
      %4602 = vst [vmem:[#allocation3 + $0x78] sm:$0x1] %v4601
      %v4603 = vld [vmem:[#allocation3 + $0x84] sm:$0x1]
      %v4604 = vsel %vm4569, 0, %v4603
      %4605 = vst [vmem:[#allocation3 + $0x84] sm:$0x1] %v4604
      %v4606 = vld [vmem:[#allocation3 + $0x90] sm:$0x1]
      %v4607 = vsel %vm4569, 0, %v4606
      %4608 = vst [vmem:[#allocation3 + $0x90] sm:$0x1] %v4607
      %v4609 = vld [vmem:[#allocation3 + $0x9c] sm:$0x1]
      %v4610 = vsel %vm4569, 0, %v4609
      %4611 = vst [vmem:[#allocation3 + $0x9c] sm:$0x1] %v4610
      %v4612 = vld [vmem:[#allocation3 + $0xa8] sm:$0x1]
      %v4613 = vsel %vm4569, 0, %v4612
      %4614 = vst [vmem:[#allocation3 + $0xa8] sm:$0x1] %v4613
      %v4615 = vld [vmem:[#allocation3 + $0xb4] sm:$0x1]
      %v4616 = vsel %vm4569, 0, %v4615
      %4617 = vst [vmem:[#allocation3 + $0xb4] sm:$0x1] %v4616
      %v4618 = vld [vmem:[#allocation3 + $0xc0] sm:$0x1]
      %v4619 = vsel %vm4569, 0, %v4618
      %4620 = vst [vmem:[#allocation3 + $0xc0] sm:$0x1] %v4619
      %v4621 = vld [vmem:[#allocation3 + $0xcc] sm:$0x1]
      %v4622 = vsel %vm4569, 0, %v4621
      %4623 = vst [vmem:[#allocation3 + $0xcc] sm:$0x1] %v4622
      %vm4624 = vmand %vm4568, %vm459
      %v4625 = vld [vmem:[#allocation3 + $0x8] sm:$0x1]
      %v4626 = vsel %vm4624, 0, %v4625
      %4627 = vst [vmem:[#allocation3 + $0x8] sm:$0x1] %v4626
      %v4628 = vld [vmem:[#allocation3 + $0x14] sm:$0x1]
      %v4629 = vsel %vm4624, 0, %v4628
      %4630 = vst [vmem:[#allocation3 + $0x14] sm:$0x1] %v4629
      %v4631 = vld [vmem:[#allocation3 + $0x20] sm:$0x1]
      %v4632 = vsel %vm4624, 0, %v4631
      %4633 = vst [vmem:[#allocation3 + $0x20] sm:$0x1] %v4632
      %v4634 = vld [vmem:[#allocation3 + $0x2c] sm:$0x1]
      %v4635 = vsel %vm4624, 0, %v4634
      %4636 = vst [vmem:[#allocation3 + $0x2c] sm:$0x1] %v4635
      %v4637 = vld [vmem:[#allocation3 + $0x38] sm:$0x1]
      %v4638 = vsel %vm4624, 0, %v4637
      %4639 = vst [vmem:[#allocation3 + $0x38] sm:$0x1] %v4638
      %v4640 = vld [vmem:[#allocation3 + $0x44] sm:$0x1]
      %v4641 = vsel %vm4624, 0, %v4640
      %4642 = vst [vmem:[#allocation3 + $0x44] sm:$0x1] %v4641
      %v4643 = vld [vmem:[#allocation3 + $0x50] sm:$0x1]
      %v4644 = vsel %vm4624, 0, %v4643
      %4645 = vst [vmem:[#allocation3 + $0x50] sm:$0x1] %v4644
      %v4646 = vld [vmem:[#allocation3 + $0x5c] sm:$0x1]
      %v4647 = vsel %vm4624, 0, %v4646
      %4648 = vst [vmem:[#allocation3 + $0x5c] sm:$0x1] %v4647
      %v4649 = vld [vmem:[#allocation3 + $0x68] sm:$0x1]
      %v4650 = vsel %vm4624, 0, %v4649
      %4651 = vst [vmem:[#allocation3 + $0x68] sm:$0x1] %v4650
      %v4652 = vld [vmem:[#allocation3 + $0x74] sm:$0x1]
      %v4653 = vsel %vm4624, 0, %v4652
      %4654 = vst [vmem:[#allocation3 + $0x74] sm:$0x1] %v4653
      %v4655 = vld [vmem:[#allocation3 + $0x80] sm:$0x1]
      %v4656 = vsel %vm4624, 0, %v4655
      %4657 = vst [vmem:[#allocation3 + $0x80] sm:$0x1] %v4656
      %v4658 = vld [vmem:[#allocation3 + $0x8c] sm:$0x1]
      %v4659 = vsel %vm4624, 0, %v4658
      %4660 = vst [vmem:[#allocation3 + $0x8c] sm:$0x1] %v4659
      %v4661 = vld [vmem:[#allocation3 + $0x98] sm:$0x1]
      %v4662 = vsel %vm4624, 0, %v4661
      %4663 = vst [vmem:[#allocation3 + $0x98] sm:$0x1] %v4662
      %v4664 = vld [vmem:[#allocation3 + $0xa4] sm:$0x1]
      %v4665 = vsel %vm4624, 0, %v4664
      %4666 = vst [vmem:[#allocation3 + $0xa4] sm:$0x1] %v4665
      %v4667 = vld [vmem:[#allocation3 + $0xb0] sm:$0x1]
      %v4668 = vsel %vm4624, 0, %v4667
      %4669 = vst [vmem:[#allocation3 + $0xb0] sm:$0x1] %v4668
      %v4670 = vld [vmem:[#allocation3 + $0xbc] sm:$0x1]
      %v4671 = vsel %vm4624, 0, %v4670
      %4672 = vst [vmem:[#allocation3 + $0xbc] sm:$0x1] %v4671
      %v4673 = vld [vmem:[#allocation3 + $0xc8] sm:$0x1]
      %v4674 = vsel %vm4624, 0, %v4673
      %4675 = vst [vmem:[#allocation3 + $0xc8] sm:$0x1] %v4674
      %v4676 = vld [vmem:[#allocation3 + $0xd4] sm:$0x1]
      %v4677 = vsel %vm4624, 0, %v4676
      %4678 = vst [vmem:[#allocation3 + $0xd4] sm:$0x1] %v4677
      %v4679 = vpack.c.bf16 %v4528, %v4527
      %v4680 = vpack.c.bf16 %v4530, %v4529
      %v4681 = vpack.c.bf16 %v4532, %v4531
      %v4682 = vpack.c.bf16 %v4534, %v4533
      %v4683 = vpack.c.bf16 %v4536, %v4535
      %v4684 = vpack.c.bf16 %v4538, %v4537
      %v4685 = vpack.c.bf16 %v4540, %v4539
      %v4686 = vpack.c.bf16 %v4542, %v4541
      %v4687 = vpack.c.bf16 %v4544, %v4543
      %v4688 = vpack.c.bf16 %v4546, %v4545
      %v4689 = vpack.c.bf16 %v4548, %v4547
      %v4690 = vpack.c.bf16 %v4550, %v4549
      %v4691 = vpack.c.bf16 %v4552, %v4551
      %v4692 = vpack.c.bf16 %v4554, %v4553
      %v4693 = vpack.c.bf16 %v4556, %v4555
      %v4694 = vpack.c.bf16 %v4558, %v4557
      %v4711 = vunpack.c.l.b16 %v4679
      %v4712 = vunpack.c.h.b16 %v4679
      %v4713 = vunpack.c.l.b16 %v4680
      %v4714 = vunpack.c.h.b16 %v4680
      %v4715 = vunpack.c.l.b16 %v4681
      %v4716 = vunpack.c.h.b16 %v4681
      %v4717 = vunpack.c.l.b16 %v4682
      %v4718 = vunpack.c.h.b16 %v4682
      %v4719 = vunpack.c.l.b16 %v4683
      %v4720 = vunpack.c.h.b16 %v4683
      %v4721 = vunpack.c.l.b16 %v4684
      %v4722 = vunpack.c.h.b16 %v4684
      %v4723 = vunpack.c.l.b16 %v4685
      %v4724 = vunpack.c.h.b16 %v4685
      %v4725 = vunpack.c.l.b16 %v4686
      %v4726 = vunpack.c.h.b16 %v4686
      %v4727 = vunpack.c.l.b16 %v4687
      %v4728 = vunpack.c.h.b16 %v4687
      %v4729 = vunpack.c.l.b16 %v4688
      %v4730 = vunpack.c.h.b16 %v4688
      %v4731 = vunpack.c.l.b16 %v4689
      %v4732 = vunpack.c.h.b16 %v4689
      %v4733 = vunpack.c.l.b16 %v4690
      %v4734 = vunpack.c.h.b16 %v4690
      %v4735 = vunpack.c.l.b16 %v4691
      %v4736 = vunpack.c.h.b16 %v4691
      %v4737 = vunpack.c.l.b16 %v4692
      %v4738 = vunpack.c.h.b16 %v4692
      %v4739 = vunpack.c.l.b16 %v4693
      %v4740 = vunpack.c.h.b16 %v4693
      %v4741 = vunpack.c.l.b16 %v4694
      %v4742 = vunpack.c.h.b16 %v4694
      %v4743 = vpack.c.b16 %v4711, %v4711
      %v4744 = vpack.c.b16 %v4712, %v4712
      %v4745 = vpack.c.b16 %v4713, %v4713
      %v4746 = vpack.c.b16 %v4714, %v4714
      %v4747 = vpack.c.b16 %v4715, %v4715
      %v4748 = vpack.c.b16 %v4716, %v4716
      %v4749 = vpack.c.b16 %v4717, %v4717
      %v4750 = vpack.c.b16 %v4718, %v4718
      %v4751 = vpack.c.b16 %v4719, %v4719
      %v4752 = vpack.c.b16 %v4720, %v4720
      %v4753 = vpack.c.b16 %v4721, %v4721
      %v4754 = vpack.c.b16 %v4722, %v4722
      %v4755 = vpack.c.b16 %v4723, %v4723
      %v4756 = vpack.c.b16 %v4724, %v4724
      %v4757 = vpack.c.b16 %v4725, %v4725
      %v4758 = vpack.c.b16 %v4726, %v4726
      %v4759 = vpack.c.b16 %v4727, %v4727
      %v4760 = vpack.c.b16 %v4728, %v4728
      %v4761 = vpack.c.b16 %v4729, %v4729
      %v4762 = vpack.c.b16 %v4730, %v4730
      %v4763 = vpack.c.b16 %v4731, %v4731
      %v4764 = vpack.c.b16 %v4732, %v4732
      %v4765 = vpack.c.b16 %v4733, %v4733
      %v4766 = vpack.c.b16 %v4734, %v4734
      %v4767 = vpack.c.b16 %v4735, %v4735
      %v4768 = vpack.c.b16 %v4736, %v4736
      %v4769 = vpack.c.b16 %v4737, %v4737
      %v4770 = vpack.c.b16 %v4738, %v4738
      %v4771 = vpack.c.b16 %v4739, %v4739
      %v4772 = vpack.c.b16 %v4740, %v4740
      %v4773 = vpack.c.b16 %v4741, %v4741
      %v4774 = vpack.c.b16 %v4742, %v4742
      %v4776 = vshrl.u32 %v4743, 16
      %v4778 = vrot.slane %v4776, 7
      %v4779 = vshll.u32 %v4743, 16
      %v4781 = vor.u32 %v4778, %v4779
      %v4782 = vrot.slane %v4778, 4
      %v4784 = vshrl.u32 %v4744, 16
      %v4786 = vrot.slane %v4784, 7
      %v4787 = vshll.u32 %v4744, 16
      %v4789 = vor.u32 %v4786, %v4787
      %v4790 = vsel %vm516, %v4782, %v4789
      %v4791 = vrot.slane %v4786, 4
      %v4793 = vshrl.u32 %v4745, 16
      %v4795 = vrot.slane %v4793, 7
      %v4796 = vshll.u32 %v4745, 16
      %v4798 = vor.u32 %v4795, %v4796
      %v4799 = vrot.slane %v4795, 4
      %v4801 = vshrl.u32 %v4746, 16
      %v4803 = vrot.slane %v4801, 7
      %v4804 = vshll.u32 %v4746, 16
      %v4806 = vor.u32 %v4803, %v4804
      %v4807 = vsel %vm516, %v4799, %v4806
      %v4808 = vrot.slane %v4803, 4
      %v4810 = vshrl.u32 %v4747, 16
      %v4812 = vrot.slane %v4810, 7
      %v4813 = vshll.u32 %v4747, 16
      %v4815 = vor.u32 %v4812, %v4813
      %v4816 = vrot.slane %v4812, 4
      %v4818 = vshrl.u32 %v4748, 16
      %v4820 = vrot.slane %v4818, 7
      %v4821 = vshll.u32 %v4748, 16
      %v4823 = vor.u32 %v4820, %v4821
      %v4824 = vsel %vm516, %v4816, %v4823
      %v4825 = vrot.slane %v4820, 4
      %v4827 = vshrl.u32 %v4749, 16
      %v4829 = vrot.slane %v4827, 7
      %v4830 = vshll.u32 %v4749, 16
      %v4832 = vor.u32 %v4829, %v4830
      %v4833 = vrot.slane %v4829, 4
      %v4835 = vshrl.u32 %v4750, 16
      %v4837 = vrot.slane %v4835, 7
      %v4838 = vshll.u32 %v4750, 16
      %v4840 = vor.u32 %v4837, %v4838
      %v4841 = vsel %vm516, %v4833, %v4840
      %v4842 = vrot.slane %v4837, 4
      %v4844 = vshrl.u32 %v4751, 16
      %v4846 = vrot.slane %v4844, 7
      %v4847 = vshll.u32 %v4751, 16
      %v4849 = vor.u32 %v4846, %v4847
      %v4850 = vrot.slane %v4846, 4
      %v4852 = vshrl.u32 %v4752, 16
      %v4854 = vrot.slane %v4852, 7
      %v4855 = vshll.u32 %v4752, 16
      %v4857 = vor.u32 %v4854, %v4855
      %v4858 = vsel %vm516, %v4850, %v4857
      %v4859 = vrot.slane %v4854, 4
      %v4861 = vshrl.u32 %v4753, 16
      %v4863 = vrot.slane %v4861, 7
      %v4864 = vshll.u32 %v4753, 16
      %v4866 = vor.u32 %v4863, %v4864
      %v4867 = vrot.slane %v4863, 4
      %v4869 = vshrl.u32 %v4754, 16
      %v4871 = vrot.slane %v4869, 7
      %v4872 = vshll.u32 %v4754, 16
      %v4874 = vor.u32 %v4871, %v4872
      %v4875 = vsel %vm516, %v4867, %v4874
      %v4876 = vrot.slane %v4871, 4
      %v4878 = vshrl.u32 %v4755, 16
      %v4880 = vrot.slane %v4878, 7
      %v4881 = vshll.u32 %v4755, 16
      %v4883 = vor.u32 %v4880, %v4881
      %v4884 = vrot.slane %v4880, 4
      %v4886 = vshrl.u32 %v4756, 16
      %v4888 = vrot.slane %v4886, 7
      %v4889 = vshll.u32 %v4756, 16
      %v4891 = vor.u32 %v4888, %v4889
      %v4892 = vsel %vm516, %v4884, %v4891
      %v4893 = vrot.slane %v4888, 4
      %v4895 = vshrl.u32 %v4757, 16
      %v4897 = vrot.slane %v4895, 7
      %v4898 = vshll.u32 %v4757, 16
      %v4900 = vor.u32 %v4897, %v4898
      %v4901 = vrot.slane %v4897, 4
      %v4903 = vshrl.u32 %v4758, 16
      %v4905 = vrot.slane %v4903, 7
      %v4906 = vshll.u32 %v4758, 16
      %v4908 = vor.u32 %v4905, %v4906
      %v4909 = vsel %vm516, %v4901, %v4908
      %v4910 = vrot.slane %v4905, 4
      %v4912 = vshrl.u32 %v4759, 16
      %v4914 = vrot.slane %v4912, 7
      %v4915 = vshll.u32 %v4759, 16
      %v4917 = vor.u32 %v4914, %v4915
      %v4918 = vrot.slane %v4914, 4
      %v4920 = vshrl.u32 %v4760, 16
      %v4922 = vrot.slane %v4920, 7
      %v4923 = vshll.u32 %v4760, 16
      %v4925 = vor.u32 %v4922, %v4923
      %v4926 = vsel %vm516, %v4918, %v4925
      %v4927 = vrot.slane %v4922, 4
      %v4929 = vshrl.u32 %v4761, 16
      %v4931 = vrot.slane %v4929, 7
      %v4932 = vshll.u32 %v4761, 16
      %v4934 = vor.u32 %v4931, %v4932
      %v4935 = vrot.slane %v4931, 4
      %v4937 = vshrl.u32 %v4762, 16
      %v4939 = vrot.slane %v4937, 7
      %v4940 = vshll.u32 %v4762, 16
      %v4942 = vor.u32 %v4939, %v4940
      %v4943 = vsel %vm516, %v4935, %v4942
      %v4944 = vrot.slane %v4939, 4
      %v4946 = vshrl.u32 %v4763, 16
      %v4948 = vrot.slane %v4946, 7
      %v4949 = vshll.u32 %v4763, 16
      %v4951 = vor.u32 %v4948, %v4949
      %v4952 = vrot.slane %v4948, 4
      %v4954 = vshrl.u32 %v4764, 16
      %v4956 = vrot.slane %v4954, 7
      %v4957 = vshll.u32 %v4764, 16
      %v4959 = vor.u32 %v4956, %v4957
      %v4960 = vsel %vm516, %v4952, %v4959
      %v4961 = vrot.slane %v4956, 4
      %v4963 = vshrl.u32 %v4765, 16
      %v4965 = vrot.slane %v4963, 7
      %v4966 = vshll.u32 %v4765, 16
      %v4968 = vor.u32 %v4965, %v4966
      %v4969 = vrot.slane %v4965, 4
      %v4971 = vshrl.u32 %v4766, 16
      %v4973 = vrot.slane %v4971, 7
      %v4974 = vshll.u32 %v4766, 16
      %v4976 = vor.u32 %v4973, %v4974
      %v4977 = vsel %vm516, %v4969, %v4976
      %v4978 = vrot.slane %v4973, 4
      %v4980 = vshrl.u32 %v4767, 16
      %v4982 = vrot.slane %v4980, 7
      %v4983 = vshll.u32 %v4767, 16
      %v4985 = vor.u32 %v4982, %v4983
      %v4986 = vrot.slane %v4982, 4
      %v4988 = vshrl.u32 %v4768, 16
      %v4990 = vrot.slane %v4988, 7
      %v4991 = vshll.u32 %v4768, 16
      %v4993 = vor.u32 %v4990, %v4991
      %v4994 = vsel %vm516, %v4986, %v4993
      %v4995 = vrot.slane %v4990, 4
      %v4997 = vshrl.u32 %v4769, 16
      %v4999 = vrot.slane %v4997, 7
      %v5000 = vshll.u32 %v4769, 16
      %v5002 = vor.u32 %v4999, %v5000
      %v5003 = vrot.slane %v4999, 4
      %v5005 = vshrl.u32 %v4770, 16
      %v5007 = vrot.slane %v5005, 7
      %v5008 = vshll.u32 %v4770, 16
      %v5010 = vor.u32 %v5007, %v5008
      %v5011 = vsel %vm516, %v5003, %v5010
      %v5012 = vrot.slane %v5007, 4
      %v5014 = vshrl.u32 %v4771, 16
      %v5016 = vrot.slane %v5014, 7
      %v5017 = vshll.u32 %v4771, 16
      %v5019 = vor.u32 %v5016, %v5017
      %v5020 = vrot.slane %v5016, 4
      %v5022 = vshrl.u32 %v4772, 16
      %v5024 = vrot.slane %v5022, 7
      %v5025 = vshll.u32 %v4772, 16
      %v5027 = vor.u32 %v5024, %v5025
      %v5028 = vsel %vm516, %v5020, %v5027
      %v5029 = vrot.slane %v5024, 4
      %v5031 = vshrl.u32 %v4773, 16
      %v5033 = vrot.slane %v5031, 7
      %v5034 = vshll.u32 %v4773, 16
      %v5036 = vor.u32 %v5033, %v5034
      %v5037 = vrot.slane %v5033, 4
      %v5039 = vshrl.u32 %v4774, 16
      %v5041 = vrot.slane %v5039, 7
      %v5042 = vshll.u32 %v4774, 16
      %v5044 = vor.u32 %v5041, %v5042
      %v5045 = vsel %vm516, %v5037, %v5044
      %v5046 = vrot.slane %v5041, 4
      %s5095 = scalar_lea.vmem [#allocation3], 12
      %vm5096 = vcmask 60416
      %vm5097 = vmand %vm5096, %vm459
      %v5098 = vld [vmem:[%s5095] sm:$0xf]
      %v5099 = vsel %vm5097, %v4781, %v5098
      %5100 = vst [vmem:[%s5095] sm:$0xf] %v5099
      %5101 = vst.msk [vmem:[%s5095 + $0x4] sm:$0xf] %vm4559, %v4790
      %v5102 = vld [vmem:[%s5095 + $0x8] sm:$0x1]
      %v5103 = vsel %vm4569, %v4791, %v5102
      %5104 = vst [vmem:[%s5095 + $0x8] sm:$0x1] %v5103
      %v5105 = vld [vmem:[%s5095 + $0xc] sm:$0xf]
      %v5106 = vsel %vm5097, %v4798, %v5105
      %5107 = vst [vmem:[%s5095 + $0xc] sm:$0xf] %v5106
      %5108 = vst.msk [vmem:[%s5095 + $0x10] sm:$0xf] %vm4559, %v4807
      %v5109 = vld [vmem:[%s5095 + $0x14] sm:$0x1]
      %v5110 = vsel %vm4569, %v4808, %v5109
      %5111 = vst [vmem:[%s5095 + $0x14] sm:$0x1] %v5110
      %v5112 = vld [vmem:[%s5095 + $0x18] sm:$0xf]
      %v5113 = vsel %vm5097, %v4815, %v5112
      %5114 = vst [vmem:[%s5095 + $0x18] sm:$0xf] %v5113
      %5115 = vst.msk [vmem:[%s5095 + $0x1c] sm:$0xf] %vm4559, %v4824
      %v5116 = vld [vmem:[%s5095 + $0x20] sm:$0x1]
      %v5117 = vsel %vm4569, %v4825, %v5116
      %5118 = vst [vmem:[%s5095 + $0x20] sm:$0x1] %v5117
      %v5119 = vld [vmem:[%s5095 + $0x24] sm:$0xf]
      %v5120 = vsel %vm5097, %v4832, %v5119
      %5121 = vst [vmem:[%s5095 + $0x24] sm:$0xf] %v5120
      %5122 = vst.msk [vmem:[%s5095 + $0x28] sm:$0xf] %vm4559, %v4841
      %v5123 = vld [vmem:[%s5095 + $0x2c] sm:$0x1]
      %v5124 = vsel %vm4569, %v4842, %v5123
      %5125 = vst [vmem:[%s5095 + $0x2c] sm:$0x1] %v5124
      %v5126 = vld [vmem:[%s5095 + $0x30] sm:$0xf]
      %v5127 = vsel %vm5097, %v4849, %v5126
      %5128 = vst [vmem:[%s5095 + $0x30] sm:$0xf] %v5127
      %5129 = vst.msk [vmem:[%s5095 + $0x34] sm:$0xf] %vm4559, %v4858
      %v5130 = vld [vmem:[%s5095 + $0x38] sm:$0x1]
      %v5131 = vsel %vm4569, %v4859, %v5130
      %5132 = vst [vmem:[%s5095 + $0x38] sm:$0x1] %v5131
      %v5133 = vld [vmem:[%s5095 + $0x3c] sm:$0xf]
      %v5134 = vsel %vm5097, %v4866, %v5133
      %5135 = vst [vmem:[%s5095 + $0x3c] sm:$0xf] %v5134
      %5136 = vst.msk [vmem:[%s5095 + $0x40] sm:$0xf] %vm4559, %v4875
      %v5137 = vld [vmem:[%s5095 + $0x44] sm:$0x1]
      %v5138 = vsel %vm4569, %v4876, %v5137
      %5139 = vst [vmem:[%s5095 + $0x44] sm:$0x1] %v5138
      %v5140 = vld [vmem:[%s5095 + $0x48] sm:$0xf]
      %v5141 = vsel %vm5097, %v4883, %v5140
      %5142 = vst [vmem:[%s5095 + $0x48] sm:$0xf] %v5141
      %5143 = vst.msk [vmem:[%s5095 + $0x4c] sm:$0xf] %vm4559, %v4892
      %v5144 = vld [vmem:[%s5095 + $0x50] sm:$0x1]
      %v5145 = vsel %vm4569, %v4893, %v5144
      %5146 = vst [vmem:[%s5095 + $0x50] sm:$0x1] %v5145
      %v5147 = vld [vmem:[%s5095 + $0x54] sm:$0xf]
      %v5148 = vsel %vm5097, %v4900, %v5147
      %5149 = vst [vmem:[%s5095 + $0x54] sm:$0xf] %v5148
      %5150 = vst.msk [vmem:[%s5095 + $0x58] sm:$0xf] %vm4559, %v4909
      %v5151 = vld [vmem:[%s5095 + $0x5c] sm:$0x1]
      %v5152 = vsel %vm4569, %v4910, %v5151
      %5153 = vst [vmem:[%s5095 + $0x5c] sm:$0x1] %v5152
      %v5154 = vld [vmem:[%s5095 + $0x60] sm:$0xf]
      %v5155 = vsel %vm5097, %v4917, %v5154
      %5156 = vst [vmem:[%s5095 + $0x60] sm:$0xf] %v5155
      %5157 = vst.msk [vmem:[%s5095 + $0x64] sm:$0xf] %vm4559, %v4926
      %v5158 = vld [vmem:[%s5095 + $0x68] sm:$0x1]
      %v5159 = vsel %vm4569, %v4927, %v5158
      %5160 = vst [vmem:[%s5095 + $0x68] sm:$0x1] %v5159
      %v5161 = vld [vmem:[%s5095 + $0x6c] sm:$0xf]
      %v5162 = vsel %vm5097, %v4934, %v5161
      %5163 = vst [vmem:[%s5095 + $0x6c] sm:$0xf] %v5162
      %5164 = vst.msk [vmem:[%s5095 + $0x70] sm:$0xf] %vm4559, %v4943
      %v5165 = vld [vmem:[%s5095 + $0x74] sm:$0x1]
      %v5166 = vsel %vm4569, %v4944, %v5165
      %5167 = vst [vmem:[%s5095 + $0x74] sm:$0x1] %v5166
      %v5168 = vld [vmem:[%s5095 + $0x78] sm:$0xf]
      %v5169 = vsel %vm5097, %v4951, %v5168
      %5170 = vst [vmem:[%s5095 + $0x78] sm:$0xf] %v5169
      %5171 = vst.msk [vmem:[%s5095 + $0x7c] sm:$0xf] %vm4559, %v4960
      %v5172 = vld [vmem:[%s5095 + $0x80] sm:$0x1]
      %v5173 = vsel %vm4569, %v4961, %v5172
      %5174 = vst [vmem:[%s5095 + $0x80] sm:$0x1] %v5173
      %v5175 = vld [vmem:[%s5095 + $0x84] sm:$0xf]
      %v5176 = vsel %vm5097, %v4968, %v5175
      %5177 = vst [vmem:[%s5095 + $0x84] sm:$0xf] %v5176
      %5178 = vst.msk [vmem:[%s5095 + $0x88] sm:$0xf] %vm4559, %v4977
      %v5179 = vld [vmem:[%s5095 + $0x8c] sm:$0x1]
      %v5180 = vsel %vm4569, %v4978, %v5179
      %5181 = vst [vmem:[%s5095 + $0x8c] sm:$0x1] %v5180
      %v5182 = vld [vmem:[%s5095 + $0x90] sm:$0xf]
      %v5183 = vsel %vm5097, %v4985, %v5182
      %5184 = vst [vmem:[%s5095 + $0x90] sm:$0xf] %v5183
      %5185 = vst.msk [vmem:[%s5095 + $0x94] sm:$0xf] %vm4559, %v4994
      %v5186 = vld [vmem:[%s5095 + $0x98] sm:$0x1]
      %v5187 = vsel %vm4569, %v4995, %v5186
      %5188 = vst [vmem:[%s5095 + $0x98] sm:$0x1] %v5187
      %v5189 = vld [vmem:[%s5095 + $0x9c] sm:$0xf]
      %v5190 = vsel %vm5097, %v5002, %v5189
      %5191 = vst [vmem:[%s5095 + $0x9c] sm:$0xf] %v5190
      %5192 = vst.msk [vmem:[%s5095 + $0xa0] sm:$0xf] %vm4559, %v5011
      %v5193 = vld [vmem:[%s5095 + $0xa4] sm:$0x1]
      %v5194 = vsel %vm4569, %v5012, %v5193
      %5195 = vst [vmem:[%s5095 + $0xa4] sm:$0x1] %v5194
      %v5196 = vld [vmem:[%s5095 + $0xa8] sm:$0xf]
      %v5197 = vsel %vm5097, %v5019, %v5196
      %5198 = vst [vmem:[%s5095 + $0xa8] sm:$0xf] %v5197
      %5199 = vst.msk [vmem:[%s5095 + $0xac] sm:$0xf] %vm4559, %v5028
      %v5200 = vld [vmem:[%s5095 + $0xb0] sm:$0x1]
      %v5201 = vsel %vm4569, %v5029, %v5200
      %5202 = vst [vmem:[%s5095 + $0xb0] sm:$0x1] %v5201
      %v5203 = vld [vmem:[%s5095 + $0xb4] sm:$0xf]
      %v5204 = vsel %vm5097, %v5036, %v5203
      %5205 = vst [vmem:[%s5095 + $0xb4] sm:$0xf] %v5204
      %5206 = vst.msk [vmem:[%s5095 + $0xb8] sm:$0xf] %vm4559, %v5045
      %v5207 = vld [vmem:[%s5095 + $0xbc] sm:$0x1]
      %v5208 = vsel %vm4569, %v5046, %v5207
      %5209 = vst [vmem:[%s5095 + $0xbc] sm:$0x1] %v5208
      %v5210 = vld [vmem:[#allocation3] sm:$0xf]
      %v5211 = vld [vmem:[#allocation3 + $0x4] sm:$0xf]
      %v5212 = vld [vmem:[#allocation3 + $0xc] sm:$0xf]
      %v5213 = vld [vmem:[#allocation3 + $0x10] sm:$0xf]
      %v5214 = vld [vmem:[#allocation3 + $0x18] sm:$0xf]
      %v5215 = vld [vmem:[#allocation3 + $0x1c] sm:$0xf]
      %v5216 = vld [vmem:[#allocation3 + $0x24] sm:$0xf]
      %v5217 = vld [vmem:[#allocation3 + $0x28] sm:$0xf]
      %v5218 = vld [vmem:[#allocation3 + $0x30] sm:$0xf]
      %v5219 = vld [vmem:[#allocation3 + $0x34] sm:$0xf]
      %v5220 = vld [vmem:[#allocation3 + $0x3c] sm:$0xf]
      %v5221 = vld [vmem:[#allocation3 + $0x40] sm:$0xf]
      %v5222 = vld [vmem:[#allocation3 + $0x48] sm:$0xf]
      %v5223 = vld [vmem:[#allocation3 + $0x4c] sm:$0xf]
      %v5224 = vld [vmem:[#allocation3 + $0x54] sm:$0xf]
      %v5225 = vld [vmem:[#allocation3 + $0x58] sm:$0xf]
      %v5226 = vld [vmem:[#allocation3 + $0x60] sm:$0xf]
      %v5227 = vld [vmem:[#allocation3 + $0x64] sm:$0xf]
      %v5228 = vld [vmem:[#allocation3 + $0x6c] sm:$0xf]
      %v5229 = vld [vmem:[#allocation3 + $0x70] sm:$0xf]
      %v5230 = vld [vmem:[#allocation3 + $0x78] sm:$0xf]
      %v5231 = vld [vmem:[#allocation3 + $0x7c] sm:$0xf]
      %v5232 = vld [vmem:[#allocation3 + $0x84] sm:$0xf]
      %v5233 = vld [vmem:[#allocation3 + $0x88] sm:$0xf]
      %v5234 = vld [vmem:[#allocation3 + $0x90] sm:$0xf]
      %v5235 = vld [vmem:[#allocation3 + $0x94] sm:$0xf]
      %v5236 = vld [vmem:[#allocation3 + $0x9c] sm:$0xf]
      %v5237 = vld [vmem:[#allocation3 + $0xa0] sm:$0xf]
      %v5238 = vld [vmem:[#allocation3 + $0xa8] sm:$0xf]
      %v5239 = vld [vmem:[#allocation3 + $0xac] sm:$0xf]
      %v5240 = vld [vmem:[#allocation3 + $0xb4] sm:$0xf]
      %v5241 = vld [vmem:[#allocation3 + $0xb8] sm:$0xf]
      %5242 = vst.msk [vmem:[#allocation5] sm:$0xf] %vm4559, %v5210
      %5243 = vst.msk [vmem:[#allocation5 + $0x4] sm:$0xf] %vm4559, %v5211
      %5244 = vst.msk [vmem:[#allocation5 + $0x8] sm:$0xf] %vm4559, %v5212
      %5245 = vst.msk [vmem:[#allocation5 + $0xc] sm:$0xf] %vm4559, %v5213
      %5246 = vst.msk [vmem:[#allocation5 + $0x10] sm:$0xf] %vm4559, %v5214
      %5247 = vst.msk [vmem:[#allocation5 + $0x14] sm:$0xf] %vm4559, %v5215
      %5248 = vst.msk [vmem:[#allocation5 + $0x18] sm:$0xf] %vm4559, %v5216
      %5249 = vst.msk [vmem:[#allocation5 + $0x1c] sm:$0xf] %vm4559, %v5217
      %5250 = vst.msk [vmem:[#allocation5 + $0x20] sm:$0xf] %vm4559, %v5218
      %5251 = vst.msk [vmem:[#allocation5 + $0x24] sm:$0xf] %vm4559, %v5219
      %5252 = vst.msk [vmem:[#allocation5 + $0x28] sm:$0xf] %vm4559, %v5220
      %5253 = vst.msk [vmem:[#allocation5 + $0x2c] sm:$0xf] %vm4559, %v5221
      %5254 = vst.msk [vmem:[#allocation5 + $0x30] sm:$0xf] %vm4559, %v5222
      %5255 = vst.msk [vmem:[#allocation5 + $0x34] sm:$0xf] %vm4559, %v5223
      %5256 = vst.msk [vmem:[#allocation5 + $0x38] sm:$0xf] %vm4559, %v5224
      %5257 = vst.msk [vmem:[#allocation5 + $0x3c] sm:$0xf] %vm4559, %v5225
      %5258 = vst.msk [vmem:[#allocation5 + $0x40] sm:$0xf] %vm4559, %v5226
      %5259 = vst.msk [vmem:[#allocation5 + $0x44] sm:$0xf] %vm4559, %v5227
      %5260 = vst.msk [vmem:[#allocation5 + $0x48] sm:$0xf] %vm4559, %v5228
      %5261 = vst.msk [vmem:[#allocation5 + $0x4c] sm:$0xf] %vm4559, %v5229
      %5262 = vst.msk [vmem:[#allocation5 + $0x50] sm:$0xf] %vm4559, %v5230
      %5263 = vst.msk [vmem:[#allocation5 + $0x54] sm:$0xf] %vm4559, %v5231
      %5264 = vst.msk [vmem:[#allocation5 + $0x58] sm:$0xf] %vm4559, %v5232
      %5265 = vst.msk [vmem:[#allocation5 + $0x5c] sm:$0xf] %vm4559, %v5233
      %5266 = vst.msk [vmem:[#allocation5 + $0x60] sm:$0xf] %vm4559, %v5234
      %5267 = vst.msk [vmem:[#allocation5 + $0x64] sm:$0xf] %vm4559, %v5235
      %5268 = vst.msk [vmem:[#allocation5 + $0x68] sm:$0xf] %vm4559, %v5236
      %5269 = vst.msk [vmem:[#allocation5 + $0x6c] sm:$0xf] %vm4559, %v5237
      %5270 = vst.msk [vmem:[#allocation5 + $0x70] sm:$0xf] %vm4559, %v5238
      %5271 = vst.msk [vmem:[#allocation5 + $0x74] sm:$0xf] %vm4559, %v5239
      %5272 = vst.msk [vmem:[#allocation5 + $0x78] sm:$0xf] %vm4559, %v5240
      %5273 = vst.msk [vmem:[#allocation5 + $0x7c] sm:$0xf] %vm4559, %v5241
      %v5274 = vld [vmem:[#allocation3] sm:$0xf]
      %v5275 = vld [vmem:[#allocation3 + $0x4] sm:$0xf]
      %v5276 = vld [vmem:[#allocation3 + $0x8] sm:$0x1]
      %v5277 = vld [vmem:[#allocation3 + $0xc] sm:$0xf]
      %v5278 = vld [vmem:[#allocation3 + $0x10] sm:$0xf]
      %v5279 = vld [vmem:[#allocation3 + $0x14] sm:$0x1]
      %v5280 = vld [vmem:[#allocation3 + $0x18] sm:$0xf]
      %v5281 = vld [vmem:[#allocation3 + $0x1c] sm:$0xf]
      %v5282 = vld [vmem:[#allocation3 + $0x20] sm:$0x1]
      %v5283 = vld [vmem:[#allocation3 + $0x24] sm:$0xf]
      %v5284 = vld [vmem:[#allocation3 + $0x28] sm:$0xf]
      %v5285 = vld [vmem:[#allocation3 + $0x2c] sm:$0x1]
      %v5286 = vld [vmem:[#allocation3 + $0x30] sm:$0xf]
      %v5287 = vld [vmem:[#allocation3 + $0x34] sm:$0xf]
      %v5288 = vld [vmem:[#allocation3 + $0x38] sm:$0x1]
      %v5289 = vld [vmem:[#allocation3 + $0x3c] sm:$0xf]
      %v5290 = vld [vmem:[#allocation3 + $0x40] sm:$0xf]
      %v5291 = vld [vmem:[#allocation3 + $0x44] sm:$0x1]
      %v5292 = vld [vmem:[#allocation3 + $0x48] sm:$0xf]
      %v5293 = vld [vmem:[#allocation3 + $0x4c] sm:$0xf]
      %v5294 = vld [vmem:[#allocation3 + $0x50] sm:$0x1]
      %v5295 = vld [vmem:[#allocation3 + $0x54] sm:$0xf]
      %v5296 = vld [vmem:[#allocation3 + $0x58] sm:$0xf]
      %v5297 = vld [vmem:[#allocation3 + $0x5c] sm:$0x1]
      %v5298 = vld [vmem:[#allocation3 + $0x60] sm:$0xf]
      %v5299 = vld [vmem:[#allocation3 + $0x64] sm:$0xf]
      %v5300 = vld [vmem:[#allocation3 + $0x68] sm:$0x1]
      %v5301 = vld [vmem:[#allocation3 + $0x6c] sm:$0xf]
      %v5302 = vld [vmem:[#allocation3 + $0x70] sm:$0xf]
      %v5303 = vld [vmem:[#allocation3 + $0x74] sm:$0x1]
      %v5304 = vld [vmem:[#allocation3 + $0x78] sm:$0xf]
      %v5305 = vld [vmem:[#allocation3 + $0x7c] sm:$0xf]
      %v5306 = vld [vmem:[#allocation3 + $0x80] sm:$0x1]
      %v5307 = vld [vmem:[#allocation3 + $0x84] sm:$0xf]
      %v5308 = vld [vmem:[#allocation3 + $0x88] sm:$0xf]
      %v5309 = vld [vmem:[#allocation3 + $0x8c] sm:$0x1]
      %v5310 = vld [vmem:[#allocation3 + $0x90] sm:$0xf]
      %v5311 = vld [vmem:[#allocation3 + $0x94] sm:$0xf]
      %v5312 = vld [vmem:[#allocation3 + $0x98] sm:$0x1]
      %v5313 = vld [vmem:[#allocation3 + $0x9c] sm:$0xf]
      %v5314 = vld [vmem:[#allocation3 + $0xa0] sm:$0xf]
      %v5315 = vld [vmem:[#allocation3 + $0xa4] sm:$0x1]
      %v5316 = vld [vmem:[#allocation3 + $0xa8] sm:$0xf]
      %v5317 = vld [vmem:[#allocation3 + $0xac] sm:$0xf]
      %v5318 = vld [vmem:[#allocation3 + $0xb0] sm:$0x1]
      %v5319 = vld [vmem:[#allocation3 + $0xb4] sm:$0xf]
      %v5320 = vld [vmem:[#allocation3 + $0xb8] sm:$0xf]
      %v5321 = vld [vmem:[#allocation3 + $0xbc] sm:$0x1]
      %v5323 = vshrl.u32 %v5274, 16
      %v5325 = vrot.slane %v5323, 4
      %v5326 = vshll.u32 %v5274, 16
      %v5328 = vrot.slane %v5326, 5
      %v5329 = vor.u32 %v5325, %v5328
      %v5330 = vrot.slane %v5329, 4
      %v5332 = vshll.u32 %v5275, 16
      %v5334 = vrot.slane %v5332, 5
      %v5335 = vsel %vm1066, %v5330, %v5334
      %v5336 = vshrl.u32 %v5275, 16
      %v5338 = vrot.slane %v5336, 4
      %v5339 = vor.u32 %v5338, %v5334
      %v5340 = vrot.slane %v5339, 4
      %v5342 = vshll.u32 %v5276, 16
      %v5344 = vrot.slane %v5342, 5
      %v5345 = vsel %vm1066, %v5340, %v5344
      %v5347 = vshrl.u32 %v5277, 16
      %v5349 = vrot.slane %v5347, 4
      %v5350 = vshll.u32 %v5277, 16
      %v5352 = vrot.slane %v5350, 5
      %v5353 = vor.u32 %v5349, %v5352
      %v5354 = vrot.slane %v5353, 4
      %v5356 = vshll.u32 %v5278, 16
      %v5358 = vrot.slane %v5356, 5
      %v5359 = vsel %vm1066, %v5354, %v5358
      %v5360 = vshrl.u32 %v5278, 16
      %v5362 = vrot.slane %v5360, 4
      %v5363 = vor.u32 %v5362, %v5358
      %v5364 = vrot.slane %v5363, 4
      %v5366 = vshll.u32 %v5279, 16
      %v5368 = vrot.slane %v5366, 5
      %v5369 = vsel %vm1066, %v5364, %v5368
      %v5371 = vshrl.u32 %v5280, 16
      %v5373 = vrot.slane %v5371, 4
      %v5374 = vshll.u32 %v5280, 16
      %v5376 = vrot.slane %v5374, 5
      %v5377 = vor.u32 %v5373, %v5376
      %v5378 = vrot.slane %v5377, 4
      %v5380 = vshll.u32 %v5281, 16
      %v5382 = vrot.slane %v5380, 5
      %v5383 = vsel %vm1066, %v5378, %v5382
      %v5384 = vshrl.u32 %v5281, 16
      %v5386 = vrot.slane %v5384, 4
      %v5387 = vor.u32 %v5386, %v5382
      %v5388 = vrot.slane %v5387, 4
      %v5390 = vshll.u32 %v5282, 16
      %v5392 = vrot.slane %v5390, 5
      %v5393 = vsel %vm1066, %v5388, %v5392
      %v5395 = vshrl.u32 %v5283, 16
      %v5397 = vrot.slane %v5395, 4
      %v5398 = vshll.u32 %v5283, 16
      %v5400 = vrot.slane %v5398, 5
      %v5401 = vor.u32 %v5397, %v5400
      %v5402 = vrot.slane %v5401, 4
      %v5404 = vshll.u32 %v5284, 16
      %v5406 = vrot.slane %v5404, 5
      %v5407 = vsel %vm1066, %v5402, %v5406
      %v5408 = vshrl.u32 %v5284, 16
      %v5410 = vrot.slane %v5408, 4
      %v5411 = vor.u32 %v5410, %v5406
      %v5412 = vrot.slane %v5411, 4
      %v5414 = vshll.u32 %v5285, 16
      %v5416 = vrot.slane %v5414, 5
      %v5417 = vsel %vm1066, %v5412, %v5416
      %v5419 = vshrl.u32 %v5286, 16
      %v5421 = vrot.slane %v5419, 4
      %v5422 = vshll.u32 %v5286, 16
      %v5424 = vrot.slane %v5422, 5
      %v5425 = vor.u32 %v5421, %v5424
      %v5426 = vrot.slane %v5425, 4
      %v5428 = vshll.u32 %v5287, 16
      %v5430 = vrot.slane %v5428, 5
      %v5431 = vsel %vm1066, %v5426, %v5430
      %v5432 = vshrl.u32 %v5287, 16
      %v5434 = vrot.slane %v5432, 4
      %v5435 = vor.u32 %v5434, %v5430
      %v5436 = vrot.slane %v5435, 4
      %v5438 = vshll.u32 %v5288, 16
      %v5440 = vrot.slane %v5438, 5
      %v5441 = vsel %vm1066, %v5436, %v5440
      %v5443 = vshrl.u32 %v5289, 16
      %v5445 = vrot.slane %v5443, 4
      %v5446 = vshll.u32 %v5289, 16
      %v5448 = vrot.slane %v5446, 5
      %v5449 = vor.u32 %v5445, %v5448
      %v5450 = vrot.slane %v5449, 4
      %v5452 = vshll.u32 %v5290, 16
      %v5454 = vrot.slane %v5452, 5
      %v5455 = vsel %vm1066, %v5450, %v5454
      %v5456 = vshrl.u32 %v5290, 16
      %v5458 = vrot.slane %v5456, 4
      %v5459 = vor.u32 %v5458, %v5454
      %v5460 = vrot.slane %v5459, 4
      %v5462 = vshll.u32 %v5291, 16
      %v5464 = vrot.slane %v5462, 5
      %v5465 = vsel %vm1066, %v5460, %v5464
      %v5467 = vshrl.u32 %v5292, 16
      %v5469 = vrot.slane %v5467, 4
      %v5470 = vshll.u32 %v5292, 16
      %v5472 = vrot.slane %v5470, 5
      %v5473 = vor.u32 %v5469, %v5472
      %v5474 = vrot.slane %v5473, 4
      %v5476 = vshll.u32 %v5293, 16
      %v5478 = vrot.slane %v5476, 5
      %v5479 = vsel %vm1066, %v5474, %v5478
      %v5480 = vshrl.u32 %v5293, 16
      %v5482 = vrot.slane %v5480, 4
      %v5483 = vor.u32 %v5482, %v5478
      %v5484 = vrot.slane %v5483, 4
      %v5486 = vshll.u32 %v5294, 16
      %v5488 = vrot.slane %v5486, 5
      %v5489 = vsel %vm1066, %v5484, %v5488
      %v5491 = vshrl.u32 %v5295, 16
      %v5493 = vrot.slane %v5491, 4
      %v5494 = vshll.u32 %v5295, 16
      %v5496 = vrot.slane %v5494, 5
      %v5497 = vor.u32 %v5493, %v5496
      %v5498 = vrot.slane %v5497, 4
      %v5500 = vshll.u32 %v5296, 16
      %v5502 = vrot.slane %v5500, 5
      %v5503 = vsel %vm1066, %v5498, %v5502
      %v5504 = vshrl.u32 %v5296, 16
      %v5506 = vrot.slane %v5504, 4
      %v5507 = vor.u32 %v5506, %v5502
      %v5508 = vrot.slane %v5507, 4
      %v5510 = vshll.u32 %v5297, 16
      %v5512 = vrot.slane %v5510, 5
      %v5513 = vsel %vm1066, %v5508, %v5512
      %v5515 = vshrl.u32 %v5298, 16
      %v5517 = vrot.slane %v5515, 4
      %v5518 = vshll.u32 %v5298, 16
      %v5520 = vrot.slane %v5518, 5
      %v5521 = vor.u32 %v5517, %v5520
      %v5522 = vrot.slane %v5521, 4
      %v5524 = vshll.u32 %v5299, 16
      %v5526 = vrot.slane %v5524, 5
      %v5527 = vsel %vm1066, %v5522, %v5526
      %v5528 = vshrl.u32 %v5299, 16
      %v5530 = vrot.slane %v5528, 4
      %v5531 = vor.u32 %v5530, %v5526
      %v5532 = vrot.slane %v5531, 4
      %v5534 = vshll.u32 %v5300, 16
      %v5536 = vrot.slane %v5534, 5
      %v5537 = vsel %vm1066, %v5532, %v5536
      %v5539 = vshrl.u32 %v5301, 16
      %v5541 = vrot.slane %v5539, 4
      %v5542 = vshll.u32 %v5301, 16
      %v5544 = vrot.slane %v5542, 5
      %v5545 = vor.u32 %v5541, %v5544
      %v5546 = vrot.slane %v5545, 4
      %v5548 = vshll.u32 %v5302, 16
      %v5550 = vrot.slane %v5548, 5
      %v5551 = vsel %vm1066, %v5546, %v5550
      %v5552 = vshrl.u32 %v5302, 16
      %v5554 = vrot.slane %v5552, 4
      %v5555 = vor.u32 %v5554, %v5550
      %v5556 = vrot.slane %v5555, 4
      %v5558 = vshll.u32 %v5303, 16
      %v5560 = vrot.slane %v5558, 5
      %v5561 = vsel %vm1066, %v5556, %v5560
      %v5563 = vshrl.u32 %v5304, 16
      %v5565 = vrot.slane %v5563, 4
      %v5566 = vshll.u32 %v5304, 16
      %v5568 = vrot.slane %v5566, 5
      %v5569 = vor.u32 %v5565, %v5568
      %v5570 = vrot.slane %v5569, 4
      %v5572 = vshll.u32 %v5305, 16
      %v5574 = vrot.slane %v5572, 5
      %v5575 = vsel %vm1066, %v5570, %v5574
      %v5576 = vshrl.u32 %v5305, 16
      %v5578 = vrot.slane %v5576, 4
      %v5579 = vor.u32 %v5578, %v5574
      %v5580 = vrot.slane %v5579, 4
      %v5582 = vshll.u32 %v5306, 16
      %v5584 = vrot.slane %v5582, 5
      %v5585 = vsel %vm1066, %v5580, %v5584
      %v5587 = vshrl.u32 %v5307, 16
      %v5589 = vrot.slane %v5587, 4
      %v5590 = vshll.u32 %v5307, 16
      %v5592 = vrot.slane %v5590, 5
      %v5593 = vor.u32 %v5589, %v5592
      %v5594 = vrot.slane %v5593, 4
      %v5596 = vshll.u32 %v5308, 16
      %v5598 = vrot.slane %v5596, 5
      %v5599 = vsel %vm1066, %v5594, %v5598
      %v5600 = vshrl.u32 %v5308, 16
      %v5602 = vrot.slane %v5600, 4
      %v5603 = vor.u32 %v5602, %v5598
      %v5604 = vrot.slane %v5603, 4
      %v5606 = vshll.u32 %v5309, 16
      %v5608 = vrot.slane %v5606, 5
      %v5609 = vsel %vm1066, %v5604, %v5608
      %v5611 = vshrl.u32 %v5310, 16
      %v5613 = vrot.slane %v5611, 4
      %v5614 = vshll.u32 %v5310, 16
      %v5616 = vrot.slane %v5614, 5
      %v5617 = vor.u32 %v5613, %v5616
      %v5618 = vrot.slane %v5617, 4
      %v5620 = vshll.u32 %v5311, 16
      %v5622 = vrot.slane %v5620, 5
      %v5623 = vsel %vm1066, %v5618, %v5622
      %v5624 = vshrl.u32 %v5311, 16
      %v5626 = vrot.slane %v5624, 4
      %v5627 = vor.u32 %v5626, %v5622
      %v5628 = vrot.slane %v5627, 4
      %v5630 = vshll.u32 %v5312, 16
      %v5632 = vrot.slane %v5630, 5
      %v5633 = vsel %vm1066, %v5628, %v5632
      %v5635 = vshrl.u32 %v5313, 16
      %v5637 = vrot.slane %v5635, 4
      %v5638 = vshll.u32 %v5313, 16
      %v5640 = vrot.slane %v5638, 5
      %v5641 = vor.u32 %v5637, %v5640
      %v5642 = vrot.slane %v5641, 4
      %v5644 = vshll.u32 %v5314, 16
      %v5646 = vrot.slane %v5644, 5
      %v5647 = vsel %vm1066, %v5642, %v5646
      %v5648 = vshrl.u32 %v5314, 16
      %v5650 = vrot.slane %v5648, 4
      %v5651 = vor.u32 %v5650, %v5646
      %v5652 = vrot.slane %v5651, 4
      %v5654 = vshll.u32 %v5315, 16
      %v5656 = vrot.slane %v5654, 5
      %v5657 = vsel %vm1066, %v5652, %v5656
      %v5659 = vshrl.u32 %v5316, 16
      %v5661 = vrot.slane %v5659, 4
      %v5662 = vshll.u32 %v5316, 16
      %v5664 = vrot.slane %v5662, 5
      %v5665 = vor.u32 %v5661, %v5664
      %v5666 = vrot.slane %v5665, 4
      %v5668 = vshll.u32 %v5317, 16
      %v5670 = vrot.slane %v5668, 5
      %v5671 = vsel %vm1066, %v5666, %v5670
      %v5672 = vshrl.u32 %v5317, 16
      %v5674 = vrot.slane %v5672, 4
      %v5675 = vor.u32 %v5674, %v5670
      %v5676 = vrot.slane %v5675, 4
      %v5678 = vshll.u32 %v5318, 16
      %v5680 = vrot.slane %v5678, 5
      %v5681 = vsel %vm1066, %v5676, %v5680
      %v5683 = vshrl.u32 %v5319, 16
      %v5685 = vrot.slane %v5683, 4
      %v5686 = vshll.u32 %v5319, 16
      %v5688 = vrot.slane %v5686, 5
      %v5689 = vor.u32 %v5685, %v5688
      %v5690 = vrot.slane %v5689, 4
      %v5692 = vshll.u32 %v5320, 16
      %v5694 = vrot.slane %v5692, 5
      %v5695 = vsel %vm1066, %v5690, %v5694
      %v5696 = vshrl.u32 %v5320, 16
      %v5698 = vrot.slane %v5696, 4
      %v5699 = vor.u32 %v5698, %v5694
      %v5700 = vrot.slane %v5699, 4
      %v5702 = vshll.u32 %v5321, 16
      %v5704 = vrot.slane %v5702, 5
      %v5705 = vsel %vm1066, %v5700, %v5704
      %5706 = vrot.lane.b32.xlu0 %v5335, 8
      %v5707 = vpop.permute.xlu0 %5706
      %5708 = vrot.lane.b32.xlu0 %v5345, 8
      %v5709 = vpop.permute.xlu0 %5708
      %5710 = vrot.lane.b32.xlu0 %v5359, 8
      %v5711 = vpop.permute.xlu0 %5710
      %5712 = vrot.lane.b32.xlu0 %v5369, 8
      %v5713 = vpop.permute.xlu0 %5712
      %5714 = vrot.lane.b32.xlu0 %v5383, 8
      %v5715 = vpop.permute.xlu0 %5714
      %5716 = vrot.lane.b32.xlu0 %v5393, 8
      %v5717 = vpop.permute.xlu0 %5716
      %5718 = vrot.lane.b32.xlu0 %v5407, 8
      %v5719 = vpop.permute.xlu0 %5718
      %5720 = vrot.lane.b32.xlu0 %v5417, 8
      %v5721 = vpop.permute.xlu0 %5720
      %5722 = vrot.lane.b32.xlu0 %v5431, 8
      %v5723 = vpop.permute.xlu0 %5722
      %5724 = vrot.lane.b32.xlu0 %v5441, 8
      %v5725 = vpop.permute.xlu0 %5724
      %5726 = vrot.lane.b32.xlu0 %v5455, 8
      %v5727 = vpop.permute.xlu0 %5726
      %5728 = vrot.lane.b32.xlu0 %v5465, 8
      %v5729 = vpop.permute.xlu0 %5728
      %5730 = vrot.lane.b32.xlu0 %v5479, 8
      %v5731 = vpop.permute.xlu0 %5730
      %5732 = vrot.lane.b32.xlu0 %v5489, 8
      %v5733 = vpop.permute.xlu0 %5732
      %5734 = vrot.lane.b32.xlu0 %v5503, 8
      %v5735 = vpop.permute.xlu0 %5734
      %5736 = vrot.lane.b32.xlu0 %v5513, 8
      %v5737 = vpop.permute.xlu0 %5736
      %5738 = vrot.lane.b32.xlu0 %v5527, 8
      %v5739 = vpop.permute.xlu0 %5738
      %5740 = vrot.lane.b32.xlu0 %v5537, 8
      %v5741 = vpop.permute.xlu0 %5740
      %5742 = vrot.lane.b32.xlu0 %v5551, 8
      %v5743 = vpop.permute.xlu0 %5742
      %5744 = vrot.lane.b32.xlu0 %v5561, 8
      %v5745 = vpop.permute.xlu0 %5744
      %5746 = vrot.lane.b32.xlu0 %v5575, 8
      %v5747 = vpop.permute.xlu0 %5746
      %5748 = vrot.lane.b32.xlu0 %v5585, 8
      %v5749 = vpop.permute.xlu0 %5748
      %5750 = vrot.lane.b32.xlu0 %v5599, 8
      %v5751 = vpop.permute.xlu0 %5750
      %5752 = vrot.lane.b32.xlu0 %v5609, 8
      %v5753 = vpop.permute.xlu0 %5752
      %5754 = vrot.lane.b32.xlu0 %v5623, 8
      %v5755 = vpop.permute.xlu0 %5754
      %5756 = vrot.lane.b32.xlu0 %v5633, 8
      %v5757 = vpop.permute.xlu0 %5756
      %5758 = vrot.lane.b32.xlu0 %v5647, 8
      %v5759 = vpop.permute.xlu0 %5758
      %5760 = vrot.lane.b32.xlu0 %v5657, 8
      %v5761 = vpop.permute.xlu0 %5760
      %5762 = vrot.lane.b32.xlu0 %v5671, 8
      %v5763 = vpop.permute.xlu0 %5762
      %5764 = vrot.lane.b32.xlu0 %v5681, 8
      %v5765 = vpop.permute.xlu0 %5764
      %5766 = vrot.lane.b32.xlu0 %v5695, 8
      %v5767 = vpop.permute.xlu0 %5766
      %5768 = vrot.lane.b32.xlu0 %v5705, 8
      %v5769 = vpop.permute.xlu0 %5768
      %vm5802 = vcmask 126016
      %5803 = vst.msk [vmem:[#allocation5] sm:$0xf] %vm5802, %v5707
      %5804 = vst.msk [vmem:[#allocation5 + $0x4] sm:$0xf] %vm5802, %v5709
      %5805 = vst.msk [vmem:[#allocation5 + $0x8] sm:$0xf] %vm5802, %v5711
      %5806 = vst.msk [vmem:[#allocation5 + $0xc] sm:$0xf] %vm5802, %v5713
      %5807 = vst.msk [vmem:[#allocation5 + $0x10] sm:$0xf] %vm5802, %v5715
      %5808 = vst.msk [vmem:[#allocation5 + $0x14] sm:$0xf] %vm5802, %v5717
      %5809 = vst.msk [vmem:[#allocation5 + $0x18] sm:$0xf] %vm5802, %v5719
      %5810 = vst.msk [vmem:[#allocation5 + $0x1c] sm:$0xf] %vm5802, %v5721
      %5811 = vst.msk [vmem:[#allocation5 + $0x20] sm:$0xf] %vm5802, %v5723
      %5812 = vst.msk [vmem:[#allocation5 + $0x24] sm:$0xf] %vm5802, %v5725
      %5813 = vst.msk [vmem:[#allocation5 + $0x28] sm:$0xf] %vm5802, %v5727
      %5814 = vst.msk [vmem:[#allocation5 + $0x2c] sm:$0xf] %vm5802, %v5729
      %5815 = vst.msk [vmem:[#allocation5 + $0x30] sm:$0xf] %vm5802, %v5731
      %5816 = vst.msk [vmem:[#allocation5 + $0x34] sm:$0xf] %vm5802, %v5733
      %5817 = vst.msk [vmem:[#allocation5 + $0x38] sm:$0xf] %vm5802, %v5735
      %5818 = vst.msk [vmem:[#allocation5 + $0x3c] sm:$0xf] %vm5802, %v5737
      %5819 = vst.msk [vmem:[#allocation5 + $0x40] sm:$0xf] %vm5802, %v5739
      %5820 = vst.msk [vmem:[#allocation5 + $0x44] sm:$0xf] %vm5802, %v5741
      %5821 = vst.msk [vmem:[#allocation5 + $0x48] sm:$0xf] %vm5802, %v5743
      %5822 = vst.msk [vmem:[#allocation5 + $0x4c] sm:$0xf] %vm5802, %v5745
      %5823 = vst.msk [vmem:[#allocation5 + $0x50] sm:$0xf] %vm5802, %v5747
      %5824 = vst.msk [vmem:[#allocation5 + $0x54] sm:$0xf] %vm5802, %v5749
      %5825 = vst.msk [vmem:[#allocation5 + $0x58] sm:$0xf] %vm5802, %v5751
      %5826 = vst.msk [vmem:[#allocation5 + $0x5c] sm:$0xf] %vm5802, %v5753
      %5827 = vst.msk [vmem:[#allocation5 + $0x60] sm:$0xf] %vm5802, %v5755
      %5828 = vst.msk [vmem:[#allocation5 + $0x64] sm:$0xf] %vm5802, %v5757
      %5829 = vst.msk [vmem:[#allocation5 + $0x68] sm:$0xf] %vm5802, %v5759
      %5830 = vst.msk [vmem:[#allocation5 + $0x6c] sm:$0xf] %vm5802, %v5761
      %5831 = vst.msk [vmem:[#allocation5 + $0x70] sm:$0xf] %vm5802, %v5763
      %5832 = vst.msk [vmem:[#allocation5 + $0x74] sm:$0xf] %vm5802, %v5765
      %5833 = vst.msk [vmem:[#allocation5 + $0x78] sm:$0xf] %vm5802, %v5767
      %5834 = vst.msk [vmem:[#allocation5 + $0x7c] sm:$0xf] %vm5802, %v5769
      %v5835 = vld [vmem:[#allocation3] sm:$0xe]
      %v5836 = vld [vmem:[#allocation3 + $0x4] sm:$0xf]
      %v5837 = vld [vmem:[#allocation3 + $0x8] sm:$0x1]
      %v5838 = vld [vmem:[#allocation3 + $0xc] sm:$0xe]
      %v5839 = vld [vmem:[#allocation3 + $0x10] sm:$0xf]
      %v5840 = vld [vmem:[#allocation3 + $0x14] sm:$0x1]
      %v5841 = vld [vmem:[#allocation3 + $0x18] sm:$0xe]
      %v5842 = vld [vmem:[#allocation3 + $0x1c] sm:$0xf]
      %v5843 = vld [vmem:[#allocation3 + $0x20] sm:$0x1]
      %v5844 = vld [vmem:[#allocation3 + $0x24] sm:$0xe]
      %v5845 = vld [vmem:[#allocation3 + $0x28] sm:$0xf]
      %v5846 = vld [vmem:[#allocation3 + $0x2c] sm:$0x1]
      %v5847 = vld [vmem:[#allocation3 + $0x30] sm:$0xe]
      %v5848 = vld [vmem:[#allocation3 + $0x34] sm:$0xf]
      %v5849 = vld [vmem:[#allocation3 + $0x38] sm:$0x1]
      %v5850 = vld [vmem:[#allocation3 + $0x3c] sm:$0xe]
      %v5851 = vld [vmem:[#allocation3 + $0x40] sm:$0xf]
      %v5852 = vld [vmem:[#allocation3 + $0x44] sm:$0x1]
      %v5853 = vld [vmem:[#allocation3 + $0x48] sm:$0xe]
      %v5854 = vld [vmem:[#allocation3 + $0x4c] sm:$0xf]
      %v5855 = vld [vmem:[#allocation3 + $0x50] sm:$0x1]
      %v5856 = vld [vmem:[#allocation3 + $0x54] sm:$0xe]
      %v5857 = vld [vmem:[#allocation3 + $0x58] sm:$0xf]
      %v5858 = vld [vmem:[#allocation3 + $0x5c] sm:$0x1]
      %v5859 = vld [vmem:[#allocation3 + $0x60] sm:$0xe]
      %v5860 = vld [vmem:[#allocation3 + $0x64] sm:$0xf]
      %v5861 = vld [vmem:[#allocation3 + $0x68] sm:$0x1]
      %v5862 = vld [vmem:[#allocation3 + $0x6c] sm:$0xe]
      %v5863 = vld [vmem:[#allocation3 + $0x70] sm:$0xf]
      %v5864 = vld [vmem:[#allocation3 + $0x74] sm:$0x1]
      %v5865 = vld [vmem:[#allocation3 + $0x78] sm:$0xe]
      %v5866 = vld [vmem:[#allocation3 + $0x7c] sm:$0xf]
      %v5867 = vld [vmem:[#allocation3 + $0x80] sm:$0x1]
      %v5868 = vld [vmem:[#allocation3 + $0x84] sm:$0xe]
      %v5869 = vld [vmem:[#allocation3 + $0x88] sm:$0xf]
      %v5870 = vld [vmem:[#allocation3 + $0x8c] sm:$0x1]
      %v5871 = vld [vmem:[#allocation3 + $0x90] sm:$0xe]
      %v5872 = vld [vmem:[#allocation3 + $0x94] sm:$0xf]
      %v5873 = vld [vmem:[#allocation3 + $0x98] sm:$0x1]
      %v5874 = vld [vmem:[#allocation3 + $0x9c] sm:$0xe]
      %v5875 = vld [vmem:[#allocation3 + $0xa0] sm:$0xf]
      %v5876 = vld [vmem:[#allocation3 + $0xa4] sm:$0x1]
      %v5877 = vld [vmem:[#allocation3 + $0xa8] sm:$0xe]
      %v5878 = vld [vmem:[#allocation3 + $0xac] sm:$0xf]
      %v5879 = vld [vmem:[#allocation3 + $0xb0] sm:$0x1]
      %v5880 = vld [vmem:[#allocation3 + $0xb4] sm:$0xe]
      %v5881 = vld [vmem:[#allocation3 + $0xb8] sm:$0xf]
      %v5882 = vld [vmem:[#allocation3 + $0xbc] sm:$0x1]
      %v5931 = vrot.slane %v5835, 5
      %v5932 = vrot.slane %v5931, 4
      %v5933 = vrot.slane %v5836, 5
      %v5934 = vsel %vm1678, %v5932, %v5933
      %v5935 = vrot.slane %v5933, 4
      %v5936 = vrot.slane %v5837, 5
      %v5937 = vsel %vm1678, %v5935, %v5936
      %v5938 = vrot.slane %v5838, 5
      %v5939 = vrot.slane %v5938, 4
      %v5940 = vrot.slane %v5839, 5
      %v5941 = vsel %vm1678, %v5939, %v5940
      %v5942 = vrot.slane %v5940, 4
      %v5943 = vrot.slane %v5840, 5
      %v5944 = vsel %vm1678, %v5942, %v5943
      %v5945 = vrot.slane %v5841, 5
      %v5946 = vrot.slane %v5945, 4
      %v5947 = vrot.slane %v5842, 5
      %v5948 = vsel %vm1678, %v5946, %v5947
      %v5949 = vrot.slane %v5947, 4
      %v5950 = vrot.slane %v5843, 5
      %v5951 = vsel %vm1678, %v5949, %v5950
      %v5952 = vrot.slane %v5844, 5
      %v5953 = vrot.slane %v5952, 4
      %v5954 = vrot.slane %v5845, 5
      %v5955 = vsel %vm1678, %v5953, %v5954
      %v5956 = vrot.slane %v5954, 4
      %v5957 = vrot.slane %v5846, 5
      %v5958 = vsel %vm1678, %v5956, %v5957
      %v5959 = vrot.slane %v5847, 5
      %v5960 = vrot.slane %v5959, 4
      %v5961 = vrot.slane %v5848, 5
      %v5962 = vsel %vm1678, %v5960, %v5961
      %v5963 = vrot.slane %v5961, 4
      %v5964 = vrot.slane %v5849, 5
      %v5965 = vsel %vm1678, %v5963, %v5964
      %v5966 = vrot.slane %v5850, 5
      %v5967 = vrot.slane %v5966, 4
      %v5968 = vrot.slane %v5851, 5
      %v5969 = vsel %vm1678, %v5967, %v5968
      %v5970 = vrot.slane %v5968, 4
      %v5971 = vrot.slane %v5852, 5
      %v5972 = vsel %vm1678, %v5970, %v5971
      %v5973 = vrot.slane %v5853, 5
      %v5974 = vrot.slane %v5973, 4
      %v5975 = vrot.slane %v5854, 5
      %v5976 = vsel %vm1678, %v5974, %v5975
      %v5977 = vrot.slane %v5975, 4
      %v5978 = vrot.slane %v5855, 5
      %v5979 = vsel %vm1678, %v5977, %v5978
      %v5980 = vrot.slane %v5856, 5
      %v5981 = vrot.slane %v5980, 4
      %v5982 = vrot.slane %v5857, 5
      %v5983 = vsel %vm1678, %v5981, %v5982
      %v5984 = vrot.slane %v5982, 4
      %v5985 = vrot.slane %v5858, 5
      %v5986 = vsel %vm1678, %v5984, %v5985
      %v5987 = vrot.slane %v5859, 5
      %v5988 = vrot.slane %v5987, 4
      %v5989 = vrot.slane %v5860, 5
      %v5990 = vsel %vm1678, %v5988, %v5989
      %v5991 = vrot.slane %v5989, 4
      %v5992 = vrot.slane %v5861, 5
      %v5993 = vsel %vm1678, %v5991, %v5992
      %v5994 = vrot.slane %v5862, 5
      %v5995 = vrot.slane %v5994, 4
      %v5996 = vrot.slane %v5863, 5
      %v5997 = vsel %vm1678, %v5995, %v5996
      %v5998 = vrot.slane %v5996, 4
      %v5999 = vrot.slane %v5864, 5
      %v6000 = vsel %vm1678, %v5998, %v5999
      %v6001 = vrot.slane %v5865, 5
      %v6002 = vrot.slane %v6001, 4
      %v6003 = vrot.slane %v5866, 5
      %v6004 = vsel %vm1678, %v6002, %v6003
      %v6005 = vrot.slane %v6003, 4
      %v6006 = vrot.slane %v5867, 5
      %v6007 = vsel %vm1678, %v6005, %v6006
      %v6008 = vrot.slane %v5868, 5
      %v6009 = vrot.slane %v6008, 4
      %v6010 = vrot.slane %v5869, 5
      %v6011 = vsel %vm1678, %v6009, %v6010
      %v6012 = vrot.slane %v6010, 4
      %v6013 = vrot.slane %v5870, 5
      %v6014 = vsel %vm1678, %v6012, %v6013
      %v6015 = vrot.slane %v5871, 5
      %v6016 = vrot.slane %v6015, 4
      %v6017 = vrot.slane %v5872, 5
      %v6018 = vsel %vm1678, %v6016, %v6017
      %v6019 = vrot.slane %v6017, 4
      %v6020 = vrot.slane %v5873, 5
      %v6021 = vsel %vm1678, %v6019, %v6020
      %v6022 = vrot.slane %v5874, 5
      %v6023 = vrot.slane %v6022, 4
      %v6024 = vrot.slane %v5875, 5
      %v6025 = vsel %vm1678, %v6023, %v6024
      %v6026 = vrot.slane %v6024, 4
      %v6027 = vrot.slane %v5876, 5
      %v6028 = vsel %vm1678, %v6026, %v6027
      %v6029 = vrot.slane %v5877, 5
      %v6030 = vrot.slane %v6029, 4
      %v6031 = vrot.slane %v5878, 5
      %v6032 = vsel %vm1678, %v6030, %v6031
      %v6033 = vrot.slane %v6031, 4
      %v6034 = vrot.slane %v5879, 5
      %v6035 = vsel %vm1678, %v6033, %v6034
      %v6036 = vrot.slane %v5880, 5
      %v6037 = vrot.slane %v6036, 4
      %v6038 = vrot.slane %v5881, 5
      %v6039 = vsel %vm1678, %v6037, %v6038
      %v6040 = vrot.slane %v6038, 4
      %v6041 = vrot.slane %v5882, 5
      %v6042 = vsel %vm1678, %v6040, %v6041
      %6043 = vrot.lane.b32.xlu0 %v5934, 16
      %v6044 = vpop.permute.xlu0 %6043
      %6045 = vrot.lane.b32.xlu0 %v5937, 16
      %v6046 = vpop.permute.xlu0 %6045
      %6047 = vrot.lane.b32.xlu0 %v5941, 16
      %v6048 = vpop.permute.xlu0 %6047
      %6049 = vrot.lane.b32.xlu0 %v5944, 16
      %v6050 = vpop.permute.xlu0 %6049
      %6051 = vrot.lane.b32.xlu0 %v5948, 16
      %v6052 = vpop.permute.xlu0 %6051
      %6053 = vrot.lane.b32.xlu0 %v5951, 16
      %v6054 = vpop.permute.xlu0 %6053
      %6055 = vrot.lane.b32.xlu0 %v5955, 16
      %v6056 = vpop.permute.xlu0 %6055
      %6057 = vrot.lane.b32.xlu0 %v5958, 16
      %v6058 = vpop.permute.xlu0 %6057
      %6059 = vrot.lane.b32.xlu0 %v5962, 16
      %v6060 = vpop.permute.xlu0 %6059
      %6061 = vrot.lane.b32.xlu0 %v5965, 16
      %v6062 = vpop.permute.xlu0 %6061
      %6063 = vrot.lane.b32.xlu0 %v5969, 16
      %v6064 = vpop.permute.xlu0 %6063
      %6065 = vrot.lane.b32.xlu0 %v5972, 16
      %v6066 = vpop.permute.xlu0 %6065
      %6067 = vrot.lane.b32.xlu0 %v5976, 16
      %v6068 = vpop.permute.xlu0 %6067
      %6069 = vrot.lane.b32.xlu0 %v5979, 16
      %v6070 = vpop.permute.xlu0 %6069
      %6071 = vrot.lane.b32.xlu0 %v5983, 16
      %v6072 = vpop.permute.xlu0 %6071
      %6073 = vrot.lane.b32.xlu0 %v5986, 16
      %v6074 = vpop.permute.xlu0 %6073
      %6075 = vrot.lane.b32.xlu0 %v5990, 16
      %v6076 = vpop.permute.xlu0 %6075
      %6077 = vrot.lane.b32.xlu0 %v5993, 16
      %v6078 = vpop.permute.xlu0 %6077
      %6079 = vrot.lane.b32.xlu0 %v5997, 16
      %v6080 = vpop.permute.xlu0 %6079
      %6081 = vrot.lane.b32.xlu0 %v6000, 16
      %v6082 = vpop.permute.xlu0 %6081
      %6083 = vrot.lane.b32.xlu0 %v6004, 16
      %v6084 = vpop.permute.xlu0 %6083
      %6085 = vrot.lane.b32.xlu0 %v6007, 16
      %v6086 = vpop.permute.xlu0 %6085
      %6087 = vrot.lane.b32.xlu0 %v6011, 16
      %v6088 = vpop.permute.xlu0 %6087
      %6089 = vrot.lane.b32.xlu0 %v6014, 16
      %v6090 = vpop.permute.xlu0 %6089
      %6091 = vrot.lane.b32.xlu0 %v6018, 16
      %v6092 = vpop.permute.xlu0 %6091
      %6093 = vrot.lane.b32.xlu0 %v6021, 16
      %v6094 = vpop.permute.xlu0 %6093
      %6095 = vrot.lane.b32.xlu0 %v6025, 16
      %v6096 = vpop.permute.xlu0 %6095
      %6097 = vrot.lane.b32.xlu0 %v6028, 16
      %v6098 = vpop.permute.xlu0 %6097
      %6099 = vrot.lane.b32.xlu0 %v6032, 16
      %v6100 = vpop.permute.xlu0 %6099
      %6101 = vrot.lane.b32.xlu0 %v6035, 16
      %v6102 = vpop.permute.xlu0 %6101
      %6103 = vrot.lane.b32.xlu0 %v6039, 16
      %v6104 = vpop.permute.xlu0 %6103
      %6105 = vrot.lane.b32.xlu0 %v6042, 16
      %v6106 = vpop.permute.xlu0 %6105
      %vm6139 = vcmask 191616
      %6140 = vst.msk [vmem:[#allocation5] sm:$0xf] %vm6139, %v6044
      %6141 = vst.msk [vmem:[#allocation5 + $0x4] sm:$0xf] %vm6139, %v6046
      %6142 = vst.msk [vmem:[#allocation5 + $0x8] sm:$0xf] %vm6139, %v6048
      %6143 = vst.msk [vmem:[#allocation5 + $0xc] sm:$0xf] %vm6139, %v6050
      %6144 = vst.msk [vmem:[#allocation5 + $0x10] sm:$0xf] %vm6139, %v6052
      %6145 = vst.msk [vmem:[#allocation5 + $0x14] sm:$0xf] %vm6139, %v6054
      %6146 = vst.msk [vmem:[#allocation5 + $0x18] sm:$0xf] %vm6139, %v6056
      %6147 = vst.msk [vmem:[#allocation5 + $0x1c] sm:$0xf] %vm6139, %v6058
      %6148 = vst.msk [vmem:[#allocation5 + $0x20] sm:$0xf] %vm6139, %v6060
      %6149 = vst.msk [vmem:[#allocation5 + $0x24] sm:$0xf] %vm6139, %v6062
      %6150 = vst.msk [vmem:[#allocation5 + $0x28] sm:$0xf] %vm6139, %v6064
      %6151 = vst.msk [vmem:[#allocation5 + $0x2c] sm:$0xf] %vm6139, %v6066
      %6152 = vst.msk [vmem:[#allocation5 + $0x30] sm:$0xf] %vm6139, %v6068
      %6153 = vst.msk [vmem:[#allocation5 + $0x34] sm:$0xf] %vm6139, %v6070
      %6154 = vst.msk [vmem:[#allocation5 + $0x38] sm:$0xf] %vm6139, %v6072
      %6155 = vst.msk [vmem:[#allocation5 + $0x3c] sm:$0xf] %vm6139, %v6074
      %6156 = vst.msk [vmem:[#allocation5 + $0x40] sm:$0xf] %vm6139, %v6076
      %6157 = vst.msk [vmem:[#allocation5 + $0x44] sm:$0xf] %vm6139, %v6078
      %6158 = vst.msk [vmem:[#allocation5 + $0x48] sm:$0xf] %vm6139, %v6080
      %6159 = vst.msk [vmem:[#allocation5 + $0x4c] sm:$0xf] %vm6139, %v6082
      %6160 = vst.msk [vmem:[#allocation5 + $0x50] sm:$0xf] %vm6139, %v6084
      %6161 = vst.msk [vmem:[#allocation5 + $0x54] sm:$0xf] %vm6139, %v6086
      %6162 = vst.msk [vmem:[#allocation5 + $0x58] sm:$0xf] %vm6139, %v6088
      %6163 = vst.msk [vmem:[#allocation5 + $0x5c] sm:$0xf] %vm6139, %v6090
      %6164 = vst.msk [vmem:[#allocation5 + $0x60] sm:$0xf] %vm6139, %v6092
      %6165 = vst.msk [vmem:[#allocation5 + $0x64] sm:$0xf] %vm6139, %v6094
      %6166 = vst.msk [vmem:[#allocation5 + $0x68] sm:$0xf] %vm6139, %v6096
      %6167 = vst.msk [vmem:[#allocation5 + $0x6c] sm:$0xf] %vm6139, %v6098
      %6168 = vst.msk [vmem:[#allocation5 + $0x70] sm:$0xf] %vm6139, %v6100
      %6169 = vst.msk [vmem:[#allocation5 + $0x74] sm:$0xf] %vm6139, %v6102
      %6170 = vst.msk [vmem:[#allocation5 + $0x78] sm:$0xf] %vm6139, %v6104
      %6171 = vst.msk [vmem:[#allocation5 + $0x7c] sm:$0xf] %vm6139, %v6106
      %v6172 = vld [vmem:[%s5095] sm:$0xf]
      %v6173 = vld [vmem:[%s5095 + $0x4] sm:$0xf]
      %v6174 = vld [vmem:[%s5095 + $0xc] sm:$0xf]
      %v6175 = vld [vmem:[%s5095 + $0x10] sm:$0xf]
      %v6176 = vld [vmem:[%s5095 + $0x18] sm:$0xf]
      %v6177 = vld [vmem:[%s5095 + $0x1c] sm:$0xf]
      %v6178 = vld [vmem:[%s5095 + $0x24] sm:$0xf]
      %v6179 = vld [vmem:[%s5095 + $0x28] sm:$0xf]
      %v6180 = vld [vmem:[%s5095 + $0x30] sm:$0xf]
      %v6181 = vld [vmem:[%s5095 + $0x34] sm:$0xf]
      %v6182 = vld [vmem:[%s5095 + $0x3c] sm:$0xf]
      %v6183 = vld [vmem:[%s5095 + $0x40] sm:$0xf]
      %v6184 = vld [vmem:[%s5095 + $0x48] sm:$0xf]
      %v6185 = vld [vmem:[%s5095 + $0x4c] sm:$0xf]
      %v6186 = vld [vmem:[%s5095 + $0x54] sm:$0xf]
      %v6187 = vld [vmem:[%s5095 + $0x58] sm:$0xf]
      %v6188 = vld [vmem:[%s5095 + $0x60] sm:$0xf]
      %v6189 = vld [vmem:[%s5095 + $0x64] sm:$0xf]
      %v6190 = vld [vmem:[%s5095 + $0x6c] sm:$0xf]
      %v6191 = vld [vmem:[%s5095 + $0x70] sm:$0xf]
      %v6192 = vld [vmem:[%s5095 + $0x78] sm:$0xf]
      %v6193 = vld [vmem:[%s5095 + $0x7c] sm:$0xf]
      %v6194 = vld [vmem:[%s5095 + $0x84] sm:$0xf]
      %v6195 = vld [vmem:[%s5095 + $0x88] sm:$0xf]
      %v6196 = vld [vmem:[%s5095 + $0x90] sm:$0xf]
      %v6197 = vld [vmem:[%s5095 + $0x94] sm:$0xf]
      %v6198 = vld [vmem:[%s5095 + $0x9c] sm:$0xf]
      %v6199 = vld [vmem:[%s5095 + $0xa0] sm:$0xf]
      %v6200 = vld [vmem:[%s5095 + $0xa8] sm:$0xf]
      %v6201 = vld [vmem:[%s5095 + $0xac] sm:$0xf]
      %v6202 = vld [vmem:[%s5095 + $0xb4] sm:$0xf]
      %v6203 = vld [vmem:[%s5095 + $0xb8] sm:$0xf]
      %6236 = vrot.lane.b32.xlu0 %v6172, 24
      %v6237 = vpop.permute.xlu0 %6236
      %6238 = vrot.lane.b32.xlu0 %v6173, 24
      %v6239 = vpop.permute.xlu0 %6238
      %6240 = vrot.lane.b32.xlu0 %v6174, 24
      %v6241 = vpop.permute.xlu0 %6240
      %6242 = vrot.lane.b32.xlu0 %v6175, 24
      %v6243 = vpop.permute.xlu0 %6242
      %6244 = vrot.lane.b32.xlu0 %v6176, 24
      %v6245 = vpop.permute.xlu0 %6244
      %6246 = vrot.lane.b32.xlu0 %v6177, 24
      %v6247 = vpop.permute.xlu0 %6246
      %6248 = vrot.lane.b32.xlu0 %v6178, 24
      %v6249 = vpop.permute.xlu0 %6248
      %6250 = vrot.lane.b32.xlu0 %v6179, 24
      %v6251 = vpop.permute.xlu0 %6250
      %6252 = vrot.lane.b32.xlu0 %v6180, 24
      %v6253 = vpop.permute.xlu0 %6252
      %6254 = vrot.lane.b32.xlu0 %v6181, 24
      %v6255 = vpop.permute.xlu0 %6254
      %6256 = vrot.lane.b32.xlu0 %v6182, 24
      %v6257 = vpop.permute.xlu0 %6256
      %6258 = vrot.lane.b32.xlu0 %v6183, 24
      %v6259 = vpop.permute.xlu0 %6258
      %6260 = vrot.lane.b32.xlu0 %v6184, 24
      %v6261 = vpop.permute.xlu0 %6260
      %6262 = vrot.lane.b32.xlu0 %v6185, 24
      %v6263 = vpop.permute.xlu0 %6262
      %6264 = vrot.lane.b32.xlu0 %v6186, 24
      %v6265 = vpop.permute.xlu0 %6264
      %6266 = vrot.lane.b32.xlu0 %v6187, 24
      %v6267 = vpop.permute.xlu0 %6266
      %6268 = vrot.lane.b32.xlu0 %v6188, 24
      %v6269 = vpop.permute.xlu0 %6268
      %6270 = vrot.lane.b32.xlu0 %v6189, 24
      %v6271 = vpop.permute.xlu0 %6270
      %6272 = vrot.lane.b32.xlu0 %v6190, 24
      %v6273 = vpop.permute.xlu0 %6272
      %6274 = vrot.lane.b32.xlu0 %v6191, 24
      %v6275 = vpop.permute.xlu0 %6274
      %6276 = vrot.lane.b32.xlu0 %v6192, 24
      %v6277 = vpop.permute.xlu0 %6276
      %6278 = vrot.lane.b32.xlu0 %v6193, 24
      %v6279 = vpop.permute.xlu0 %6278
      %6280 = vrot.lane.b32.xlu0 %v6194, 24
      %v6281 = vpop.permute.xlu0 %6280
      %6282 = vrot.lane.b32.xlu0 %v6195, 24
      %v6283 = vpop.permute.xlu0 %6282
      %6284 = vrot.lane.b32.xlu0 %v6196, 24
      %v6285 = vpop.permute.xlu0 %6284
      %6286 = vrot.lane.b32.xlu0 %v6197, 24
      %v6287 = vpop.permute.xlu0 %6286
      %6288 = vrot.lane.b32.xlu0 %v6198, 24
      %v6289 = vpop.permute.xlu0 %6288
      %6290 = vrot.lane.b32.xlu0 %v6199, 24
      %v6291 = vpop.permute.xlu0 %6290
      %6292 = vrot.lane.b32.xlu0 %v6200, 24
      %v6293 = vpop.permute.xlu0 %6292
      %6294 = vrot.lane.b32.xlu0 %v6201, 24
      %v6295 = vpop.permute.xlu0 %6294
      %6296 = vrot.lane.b32.xlu0 %v6202, 24
      %v6297 = vpop.permute.xlu0 %6296
      %6298 = vrot.lane.b32.xlu0 %v6203, 24
      %v6299 = vpop.permute.xlu0 %6298
      %vm6332 = vcmask 257216
      %6333 = vst.msk [vmem:[#allocation5] sm:$0xf] %vm6332, %v6237
      %6334 = vst.msk [vmem:[#allocation5 + $0x4] sm:$0xf] %vm6332, %v6239
      %6335 = vst.msk [vmem:[#allocation5 + $0x8] sm:$0xf] %vm6332, %v6241
      %6336 = vst.msk [vmem:[#allocation5 + $0xc] sm:$0xf] %vm6332, %v6243
      %6337 = vst.msk [vmem:[#allocation5 + $0x10] sm:$0xf] %vm6332, %v6245
      %6338 = vst.msk [vmem:[#allocation5 + $0x14] sm:$0xf] %vm6332, %v6247
      %6339 = vst.msk [vmem:[#allocation5 + $0x18] sm:$0xf] %vm6332, %v6249
      %6340 = vst.msk [vmem:[#allocation5 + $0x1c] sm:$0xf] %vm6332, %v6251
      %6341 = vst.msk [vmem:[#allocation5 + $0x20] sm:$0xf] %vm6332, %v6253
      %6342 = vst.msk [vmem:[#allocation5 + $0x24] sm:$0xf] %vm6332, %v6255
      %6343 = vst.msk [vmem:[#allocation5 + $0x28] sm:$0xf] %vm6332, %v6257
      %6344 = vst.msk [vmem:[#allocation5 + $0x2c] sm:$0xf] %vm6332, %v6259
      %6345 = vst.msk [vmem:[#allocation5 + $0x30] sm:$0xf] %vm6332, %v6261
      %6346 = vst.msk [vmem:[#allocation5 + $0x34] sm:$0xf] %vm6332, %v6263
      %6347 = vst.msk [vmem:[#allocation5 + $0x38] sm:$0xf] %vm6332, %v6265
      %6348 = vst.msk [vmem:[#allocation5 + $0x3c] sm:$0xf] %vm6332, %v6267
      %6349 = vst.msk [vmem:[#allocation5 + $0x40] sm:$0xf] %vm6332, %v6269
      %6350 = vst.msk [vmem:[#allocation5 + $0x44] sm:$0xf] %vm6332, %v6271
      %6351 = vst.msk [vmem:[#allocation5 + $0x48] sm:$0xf] %vm6332, %v6273
      %6352 = vst.msk [vmem:[#allocation5 + $0x4c] sm:$0xf] %vm6332, %v6275
      %6353 = vst.msk [vmem:[#allocation5 + $0x50] sm:$0xf] %vm6332, %v6277
      %6354 = vst.msk [vmem:[#allocation5 + $0x54] sm:$0xf] %vm6332, %v6279
      %6355 = vst.msk [vmem:[#allocation5 + $0x58] sm:$0xf] %vm6332, %v6281
      %6356 = vst.msk [vmem:[#allocation5 + $0x5c] sm:$0xf] %vm6332, %v6283
      %6357 = vst.msk [vmem:[#allocation5 + $0x60] sm:$0xf] %vm6332, %v6285
      %6358 = vst.msk [vmem:[#allocation5 + $0x64] sm:$0xf] %vm6332, %v6287
      %6359 = vst.msk [vmem:[#allocation5 + $0x68] sm:$0xf] %vm6332, %v6289
      %6360 = vst.msk [vmem:[#allocation5 + $0x6c] sm:$0xf] %vm6332, %v6291
      %6361 = vst.msk [vmem:[#allocation5 + $0x70] sm:$0xf] %vm6332, %v6293
      %6362 = vst.msk [vmem:[#allocation5 + $0x74] sm:$0xf] %vm6332, %v6295
      %6363 = vst.msk [vmem:[#allocation5 + $0x78] sm:$0xf] %vm6332, %v6297
      %6364 = vst.msk [vmem:[#allocation5 + $0x7c] sm:$0xf] %vm6332, %v6299
      %v6365 = vld [vmem:[%s5095] sm:$0xf]
      %v6366 = vld [vmem:[%s5095 + $0x4] sm:$0xf]
      %v6367 = vld [vmem:[%s5095 + $0x8] sm:$0x1]
      %v6368 = vld [vmem:[%s5095 + $0xc] sm:$0xf]
      %v6369 = vld [vmem:[%s5095 + $0x10] sm:$0xf]
      %v6370 = vld [vmem:[%s5095 + $0x14] sm:$0x1]
      %v6371 = vld [vmem:[%s5095 + $0x18] sm:$0xf]
      %v6372 = vld [vmem:[%s5095 + $0x1c] sm:$0xf]
      %v6373 = vld [vmem:[%s5095 + $0x20] sm:$0x1]
      %v6374 = vld [vmem:[%s5095 + $0x24] sm:$0xf]
      %v6375 = vld [vmem:[%s5095 + $0x28] sm:$0xf]
      %v6376 = vld [vmem:[%s5095 + $0x2c] sm:$0x1]
      %v6377 = vld [vmem:[%s5095 + $0x30] sm:$0xf]
      %v6378 = vld [vmem:[%s5095 + $0x34] sm:$0xf]
      %v6379 = vld [vmem:[%s5095 + $0x38] sm:$0x1]
      %v6380 = vld [vmem:[%s5095 + $0x3c] sm:$0xf]
      %v6381 = vld [vmem:[%s5095 + $0x40] sm:$0xf]
      %v6382 = vld [vmem:[%s5095 + $0x44] sm:$0x1]
      %v6383 = vld [vmem:[%s5095 + $0x48] sm:$0xf]
      %v6384 = vld [vmem:[%s5095 + $0x4c] sm:$0xf]
      %v6385 = vld [vmem:[%s5095 + $0x50] sm:$0x1]
      %v6386 = vld [vmem:[%s5095 + $0x54] sm:$0xf]
      %v6387 = vld [vmem:[%s5095 + $0x58] sm:$0xf]
      %v6388 = vld [vmem:[%s5095 + $0x5c] sm:$0x1]
      %v6389 = vld [vmem:[%s5095 + $0x60] sm:$0xf]
      %v6390 = vld [vmem:[%s5095 + $0x64] sm:$0xf]
      %v6391 = vld [vmem:[%s5095 + $0x68] sm:$0x1]
      %v6392 = vld [vmem:[%s5095 + $0x6c] sm:$0xf]
      %v6393 = vld [vmem:[%s5095 + $0x70] sm:$0xf]
      %v6394 = vld [vmem:[%s5095 + $0x74] sm:$0x1]
      %v6395 = vld [vmem:[%s5095 + $0x78] sm:$0xf]
      %v6396 = vld [vmem:[%s5095 + $0x7c] sm:$0xf]
      %v6397 = vld [vmem:[%s5095 + $0x80] sm:$0x1]
      %v6398 = vld [vmem:[%s5095 + $0x84] sm:$0xf]
      %v6399 = vld [vmem:[%s5095 + $0x88] sm:$0xf]
      %v6400 = vld [vmem:[%s5095 + $0x8c] sm:$0x1]
      %v6401 = vld [vmem:[%s5095 + $0x90] sm:$0xf]
      %v6402 = vld [vmem:[%s5095 + $0x94] sm:$0xf]
      %v6403 = vld [vmem:[%s5095 + $0x98] sm:$0x1]
      %v6404 = vld [vmem:[%s5095 + $0x9c] sm:$0xf]
      %v6405 = vld [vmem:[%s5095 + $0xa0] sm:$0xf]
      %v6406 = vld [vmem:[%s5095 + $0xa4] sm:$0x1]
      %v6407 = vld [vmem:[%s5095 + $0xa8] sm:$0xf]
      %v6408 = vld [vmem:[%s5095 + $0xac] sm:$0xf]
      %v6409 = vld [vmem:[%s5095 + $0xb0] sm:$0x1]
      %v6410 = vld [vmem:[%s5095 + $0xb4] sm:$0xf]
      %v6411 = vld [vmem:[%s5095 + $0xb8] sm:$0xf]
      %v6412 = vld [vmem:[%s5095 + $0xbc] sm:$0x1]
      %v6414 = vshrl.u32 %v6365, 16
      %v6416 = vrot.slane %v6414, 4
      %v6417 = vshll.u32 %v6365, 16
      %v6419 = vrot.slane %v6417, 5
      %v6420 = vor.u32 %v6416, %v6419
      %v6421 = vrot.slane %v6420, 4
      %v6423 = vshll.u32 %v6366, 16
      %v6425 = vrot.slane %v6423, 5
      %v6426 = vsel %vm1066, %v6421, %v6425
      %v6427 = vshrl.u32 %v6366, 16
      %v6429 = vrot.slane %v6427, 4
      %v6430 = vor.u32 %v6429, %v6425
      %v6431 = vrot.slane %v6430, 4
      %v6433 = vshll.u32 %v6367, 16
      %v6435 = vrot.slane %v6433, 5
      %v6436 = vsel %vm1066, %v6431, %v6435
      %v6438 = vshrl.u32 %v6368, 16
      %v6440 = vrot.slane %v6438, 4
      %v6441 = vshll.u32 %v6368, 16
      %v6443 = vrot.slane %v6441, 5
      %v6444 = vor.u32 %v6440, %v6443
      %v6445 = vrot.slane %v6444, 4
      %v6447 = vshll.u32 %v6369, 16
      %v6449 = vrot.slane %v6447, 5
      %v6450 = vsel %vm1066, %v6445, %v6449
      %v6451 = vshrl.u32 %v6369, 16
      %v6453 = vrot.slane %v6451, 4
      %v6454 = vor.u32 %v6453, %v6449
      %v6455 = vrot.slane %v6454, 4
      %v6457 = vshll.u32 %v6370, 16
      %v6459 = vrot.slane %v6457, 5
      %v6460 = vsel %vm1066, %v6455, %v6459
      %v6462 = vshrl.u32 %v6371, 16
      %v6464 = vrot.slane %v6462, 4
      %v6465 = vshll.u32 %v6371, 16
      %v6467 = vrot.slane %v6465, 5
      %v6468 = vor.u32 %v6464, %v6467
      %v6469 = vrot.slane %v6468, 4
      %v6471 = vshll.u32 %v6372, 16
      %v6473 = vrot.slane %v6471, 5
      %v6474 = vsel %vm1066, %v6469, %v6473
      %v6475 = vshrl.u32 %v6372, 16
      %v6477 = vrot.slane %v6475, 4
      %v6478 = vor.u32 %v6477, %v6473
      %v6479 = vrot.slane %v6478, 4
      %v6481 = vshll.u32 %v6373, 16
      %v6483 = vrot.slane %v6481, 5
      %v6484 = vsel %vm1066, %v6479, %v6483
      %v6486 = vshrl.u32 %v6374, 16
      %v6488 = vrot.slane %v6486, 4
      %v6489 = vshll.u32 %v6374, 16
      %v6491 = vrot.slane %v6489, 5
      %v6492 = vor.u32 %v6488, %v6491
      %v6493 = vrot.slane %v6492, 4
      %v6495 = vshll.u32 %v6375, 16
      %v6497 = vrot.slane %v6495, 5
      %v6498 = vsel %vm1066, %v6493, %v6497
      %v6499 = vshrl.u32 %v6375, 16
      %v6501 = vrot.slane %v6499, 4
      %v6502 = vor.u32 %v6501, %v6497
      %v6503 = vrot.slane %v6502, 4
      %v6505 = vshll.u32 %v6376, 16
      %v6507 = vrot.slane %v6505, 5
      %v6508 = vsel %vm1066, %v6503, %v6507
      %v6510 = vshrl.u32 %v6377, 16
      %v6512 = vrot.slane %v6510, 4
      %v6513 = vshll.u32 %v6377, 16
      %v6515 = vrot.slane %v6513, 5
      %v6516 = vor.u32 %v6512, %v6515
      %v6517 = vrot.slane %v6516, 4
      %v6519 = vshll.u32 %v6378, 16
      %v6521 = vrot.slane %v6519, 5
      %v6522 = vsel %vm1066, %v6517, %v6521
      %v6523 = vshrl.u32 %v6378, 16
      %v6525 = vrot.slane %v6523, 4
      %v6526 = vor.u32 %v6525, %v6521
      %v6527 = vrot.slane %v6526, 4
      %v6529 = vshll.u32 %v6379, 16
      %v6531 = vrot.slane %v6529, 5
      %v6532 = vsel %vm1066, %v6527, %v6531
      %v6534 = vshrl.u32 %v6380, 16
      %v6536 = vrot.slane %v6534, 4
      %v6537 = vshll.u32 %v6380, 16
      %v6539 = vrot.slane %v6537, 5
      %v6540 = vor.u32 %v6536, %v6539
      %v6541 = vrot.slane %v6540, 4
      %v6543 = vshll.u32 %v6381, 16
      %v6545 = vrot.slane %v6543, 5
      %v6546 = vsel %vm1066, %v6541, %v6545
      %v6547 = vshrl.u32 %v6381, 16
      %v6549 = vrot.slane %v6547, 4
      %v6550 = vor.u32 %v6549, %v6545
      %v6551 = vrot.slane %v6550, 4
      %v6553 = vshll.u32 %v6382, 16
      %v6555 = vrot.slane %v6553, 5
      %v6556 = vsel %vm1066, %v6551, %v6555
      %v6558 = vshrl.u32 %v6383, 16
      %v6560 = vrot.slane %v6558, 4
      %v6561 = vshll.u32 %v6383, 16
      %v6563 = vrot.slane %v6561, 5
      %v6564 = vor.u32 %v6560, %v6563
      %v6565 = vrot.slane %v6564, 4
      %v6567 = vshll.u32 %v6384, 16
      %v6569 = vrot.slane %v6567, 5
      %v6570 = vsel %vm1066, %v6565, %v6569
      %v6571 = vshrl.u32 %v6384, 16
      %v6573 = vrot.slane %v6571, 4
      %v6574 = vor.u32 %v6573, %v6569
      %v6575 = vrot.slane %v6574, 4
      %v6577 = vshll.u32 %v6385, 16
      %v6579 = vrot.slane %v6577, 5
      %v6580 = vsel %vm1066, %v6575, %v6579
      %v6582 = vshrl.u32 %v6386, 16
      %v6584 = vrot.slane %v6582, 4
      %v6585 = vshll.u32 %v6386, 16
      %v6587 = vrot.slane %v6585, 5
      %v6588 = vor.u32 %v6584, %v6587
      %v6589 = vrot.slane %v6588, 4
      %v6591 = vshll.u32 %v6387, 16
      %v6593 = vrot.slane %v6591, 5
      %v6594 = vsel %vm1066, %v6589, %v6593
      %v6595 = vshrl.u32 %v6387, 16
      %v6597 = vrot.slane %v6595, 4
      %v6598 = vor.u32 %v6597, %v6593
      %v6599 = vrot.slane %v6598, 4
      %v6601 = vshll.u32 %v6388, 16
      %v6603 = vrot.slane %v6601, 5
      %v6604 = vsel %vm1066, %v6599, %v6603
      %v6606 = vshrl.u32 %v6389, 16
      %v6608 = vrot.slane %v6606, 4
      %v6609 = vshll.u32 %v6389, 16
      %v6611 = vrot.slane %v6609, 5
      %v6612 = vor.u32 %v6608, %v6611
      %v6613 = vrot.slane %v6612, 4
      %v6615 = vshll.u32 %v6390, 16
      %v6617 = vrot.slane %v6615, 5
      %v6618 = vsel %vm1066, %v6613, %v6617
      %v6619 = vshrl.u32 %v6390, 16
      %v6621 = vrot.slane %v6619, 4
      %v6622 = vor.u32 %v6621, %v6617
      %v6623 = vrot.slane %v6622, 4
      %v6625 = vshll.u32 %v6391, 16
      %v6627 = vrot.slane %v6625, 5
      %v6628 = vsel %vm1066, %v6623, %v6627
      %v6630 = vshrl.u32 %v6392, 16
      %v6632 = vrot.slane %v6630, 4
      %v6633 = vshll.u32 %v6392, 16
      %v6635 = vrot.slane %v6633, 5
      %v6636 = vor.u32 %v6632, %v6635
      %v6637 = vrot.slane %v6636, 4
      %v6639 = vshll.u32 %v6393, 16
      %v6641 = vrot.slane %v6639, 5
      %v6642 = vsel %vm1066, %v6637, %v6641
      %v6643 = vshrl.u32 %v6393, 16
      %v6645 = vrot.slane %v6643, 4
      %v6646 = vor.u32 %v6645, %v6641
      %v6647 = vrot.slane %v6646, 4
      %v6649 = vshll.u32 %v6394, 16
      %v6651 = vrot.slane %v6649, 5
      %v6652 = vsel %vm1066, %v6647, %v6651
      %v6654 = vshrl.u32 %v6395, 16
      %v6656 = vrot.slane %v6654, 4
      %v6657 = vshll.u32 %v6395, 16
      %v6659 = vrot.slane %v6657, 5
      %v6660 = vor.u32 %v6656, %v6659
      %v6661 = vrot.slane %v6660, 4
      %v6663 = vshll.u32 %v6396, 16
      %v6665 = vrot.slane %v6663, 5
      %v6666 = vsel %vm1066, %v6661, %v6665
      %v6667 = vshrl.u32 %v6396, 16
      %v6669 = vrot.slane %v6667, 4
      %v6670 = vor.u32 %v6669, %v6665
      %v6671 = vrot.slane %v6670, 4
      %v6673 = vshll.u32 %v6397, 16
      %v6675 = vrot.slane %v6673, 5
      %v6676 = vsel %vm1066, %v6671, %v6675
      %v6678 = vshrl.u32 %v6398, 16
      %v6680 = vrot.slane %v6678, 4
      %v6681 = vshll.u32 %v6398, 16
      %v6683 = vrot.slane %v6681, 5
      %v6684 = vor.u32 %v6680, %v6683
      %v6685 = vrot.slane %v6684, 4
      %v6687 = vshll.u32 %v6399, 16
      %v6689 = vrot.slane %v6687, 5
      %v6690 = vsel %vm1066, %v6685, %v6689
      %v6691 = vshrl.u32 %v6399, 16
      %v6693 = vrot.slane %v6691, 4
      %v6694 = vor.u32 %v6693, %v6689
      %v6695 = vrot.slane %v6694, 4
      %v6697 = vshll.u32 %v6400, 16
      %v6699 = vrot.slane %v6697, 5
      %v6700 = vsel %vm1066, %v6695, %v6699
      %v6702 = vshrl.u32 %v6401, 16
      %v6704 = vrot.slane %v6702, 4
      %v6705 = vshll.u32 %v6401, 16
      %v6707 = vrot.slane %v6705, 5
      %v6708 = vor.u32 %v6704, %v6707
      %v6709 = vrot.slane %v6708, 4
      %v6711 = vshll.u32 %v6402, 16
      %v6713 = vrot.slane %v6711, 5
      %v6714 = vsel %vm1066, %v6709, %v6713
      %v6715 = vshrl.u32 %v6402, 16
      %v6717 = vrot.slane %v6715, 4
      %v6718 = vor.u32 %v6717, %v6713
      %v6719 = vrot.slane %v6718, 4
      %v6721 = vshll.u32 %v6403, 16
      %v6723 = vrot.slane %v6721, 5
      %v6724 = vsel %vm1066, %v6719, %v6723
      %v6726 = vshrl.u32 %v6404, 16
      %v6728 = vrot.slane %v6726, 4
      %v6729 = vshll.u32 %v6404, 16
      %v6731 = vrot.slane %v6729, 5
      %v6732 = vor.u32 %v6728, %v6731
      %v6733 = vrot.slane %v6732, 4
      %v6735 = vshll.u32 %v6405, 16
      %v6737 = vrot.slane %v6735, 5
      %v6738 = vsel %vm1066, %v6733, %v6737
      %v6739 = vshrl.u32 %v6405, 16
      %v6741 = vrot.slane %v6739, 4
      %v6742 = vor.u32 %v6741, %v6737
      %v6743 = vrot.slane %v6742, 4
      %v6745 = vshll.u32 %v6406, 16
      %v6747 = vrot.slane %v6745, 5
      %v6748 = vsel %vm1066, %v6743, %v6747
      %v6750 = vshrl.u32 %v6407, 16
      %v6752 = vrot.slane %v6750, 4
      %v6753 = vshll.u32 %v6407, 16
      %v6755 = vrot.slane %v6753, 5
      %v6756 = vor.u32 %v6752, %v6755
      %v6757 = vrot.slane %v6756, 4
      %v6759 = vshll.u32 %v6408, 16
      %v6761 = vrot.slane %v6759, 5
      %v6762 = vsel %vm1066, %v6757, %v6761
      %v6763 = vshrl.u32 %v6408, 16
      %v6765 = vrot.slane %v6763, 4
      %v6766 = vor.u32 %v6765, %v6761
      %v6767 = vrot.slane %v6766, 4
      %v6769 = vshll.u32 %v6409, 16
      %v6771 = vrot.slane %v6769, 5
      %v6772 = vsel %vm1066, %v6767, %v6771
      %v6774 = vshrl.u32 %v6410, 16
      %v6776 = vrot.slane %v6774, 4
      %v6777 = vshll.u32 %v6410, 16
      %v6779 = vrot.slane %v6777, 5
      %v6780 = vor.u32 %v6776, %v6779
      %v6781 = vrot.slane %v6780, 4
      %v6783 = vshll.u32 %v6411, 16
      %v6785 = vrot.slane %v6783, 5
      %v6786 = vsel %vm1066, %v6781, %v6785
      %v6787 = vshrl.u32 %v6411, 16
      %v6789 = vrot.slane %v6787, 4
      %v6790 = vor.u32 %v6789, %v6785
      %v6791 = vrot.slane %v6790, 4
      %v6793 = vshll.u32 %v6412, 16
      %v6795 = vrot.slane %v6793, 5
      %v6796 = vsel %vm1066, %v6791, %v6795
      %6797 = vrot.lane.b32.xlu0 %v6426, 32
      %v6798 = vpop.permute.xlu0 %6797
      %6799 = vrot.lane.b32.xlu0 %v6436, 32
      %v6800 = vpop.permute.xlu0 %6799
      %6801 = vrot.lane.b32.xlu0 %v6450, 32
      %v6802 = vpop.permute.xlu0 %6801
      %6803 = vrot.lane.b32.xlu0 %v6460, 32
      %v6804 = vpop.permute.xlu0 %6803
      %6805 = vrot.lane.b32.xlu0 %v6474, 32
      %v6806 = vpop.permute.xlu0 %6805
      %6807 = vrot.lane.b32.xlu0 %v6484, 32
      %v6808 = vpop.permute.xlu0 %6807
      %6809 = vrot.lane.b32.xlu0 %v6498, 32
      %v6810 = vpop.permute.xlu0 %6809
      %6811 = vrot.lane.b32.xlu0 %v6508, 32
      %v6812 = vpop.permute.xlu0 %6811
      %6813 = vrot.lane.b32.xlu0 %v6522, 32
      %v6814 = vpop.permute.xlu0 %6813
      %6815 = vrot.lane.b32.xlu0 %v6532, 32
      %v6816 = vpop.permute.xlu0 %6815
      %6817 = vrot.lane.b32.xlu0 %v6546, 32
      %v6818 = vpop.permute.xlu0 %6817
      %6819 = vrot.lane.b32.xlu0 %v6556, 32
      %v6820 = vpop.permute.xlu0 %6819
      %6821 = vrot.lane.b32.xlu0 %v6570, 32
      %v6822 = vpop.permute.xlu0 %6821
      %6823 = vrot.lane.b32.xlu0 %v6580, 32
      %v6824 = vpop.permute.xlu0 %6823
      %6825 = vrot.lane.b32.xlu0 %v6594, 32
      %v6826 = vpop.permute.xlu0 %6825
      %6827 = vrot.lane.b32.xlu0 %v6604, 32
      %v6828 = vpop.permute.xlu0 %6827
      %6829 = vrot.lane.b32.xlu0 %v6618, 32
      %v6830 = vpop.permute.xlu0 %6829
      %6831 = vrot.lane.b32.xlu0 %v6628, 32
      %v6832 = vpop.permute.xlu0 %6831
      %6833 = vrot.lane.b32.xlu0 %v6642, 32
      %v6834 = vpop.permute.xlu0 %6833
      %6835 = vrot.lane.b32.xlu0 %v6652, 32
      %v6836 = vpop.permute.xlu0 %6835
      %6837 = vrot.lane.b32.xlu0 %v6666, 32
      %v6838 = vpop.permute.xlu0 %6837
      %6839 = vrot.lane.b32.xlu0 %v6676, 32
      %v6840 = vpop.permute.xlu0 %6839
      %6841 = vrot.lane.b32.xlu0 %v6690, 32
      %v6842 = vpop.permute.xlu0 %6841
      %6843 = vrot.lane.b32.xlu0 %v6700, 32
      %v6844 = vpop.permute.xlu0 %6843
      %6845 = vrot.lane.b32.xlu0 %v6714, 32
      %v6846 = vpop.permute.xlu0 %6845
      %6847 = vrot.lane.b32.xlu0 %v6724, 32
      %v6848 = vpop.permute.xlu0 %6847
      %6849 = vrot.lane.b32.xlu0 %v6738, 32
      %v6850 = vpop.permute.xlu0 %6849
      %6851 = vrot.lane.b32.xlu0 %v6748, 32
      %v6852 = vpop.permute.xlu0 %6851
      %6853 = vrot.lane.b32.xlu0 %v6762, 32
      %v6854 = vpop.permute.xlu0 %6853
      %6855 = vrot.lane.b32.xlu0 %v6772, 32
      %v6856 = vpop.permute.xlu0 %6855
      %6857 = vrot.lane.b32.xlu0 %v6786, 32
      %v6858 = vpop.permute.xlu0 %6857
      %6859 = vrot.lane.b32.xlu0 %v6796, 32
      %v6860 = vpop.permute.xlu0 %6859
      %vm6893 = vcmask 322816
      %6894 = vst.msk [vmem:[#allocation5] sm:$0xf] %vm6893, %v6798
      %6895 = vst.msk [vmem:[#allocation5 + $0x4] sm:$0xf] %vm6893, %v6800
      %6896 = vst.msk [vmem:[#allocation5 + $0x8] sm:$0xf] %vm6893, %v6802
      %6897 = vst.msk [vmem:[#allocation5 + $0xc] sm:$0xf] %vm6893, %v6804
      %6898 = vst.msk [vmem:[#allocation5 + $0x10] sm:$0xf] %vm6893, %v6806
      %6899 = vst.msk [vmem:[#allocation5 + $0x14] sm:$0xf] %vm6893, %v6808
      %6900 = vst.msk [vmem:[#allocation5 + $0x18] sm:$0xf] %vm6893, %v6810
      %6901 = vst.msk [vmem:[#allocation5 + $0x1c] sm:$0xf] %vm6893, %v6812
      %6902 = vst.msk [vmem:[#allocation5 + $0x20] sm:$0xf] %vm6893, %v6814
      %6903 = vst.msk [vmem:[#allocation5 + $0x24] sm:$0xf] %vm6893, %v6816
      %6904 = vst.msk [vmem:[#allocation5 + $0x28] sm:$0xf] %vm6893, %v6818
      %6905 = vst.msk [vmem:[#allocation5 + $0x2c] sm:$0xf] %vm6893, %v6820
      %6906 = vst.msk [vmem:[#allocation5 + $0x30] sm:$0xf] %vm6893, %v6822
      %6907 = vst.msk [vmem:[#allocation5 + $0x34] sm:$0xf] %vm6893, %v6824
      %6908 = vst.msk [vmem:[#allocation5 + $0x38] sm:$0xf] %vm6893, %v6826
      %6909 = vst.msk [vmem:[#allocation5 + $0x3c] sm:$0xf] %vm6893, %v6828
      %6910 = vst.msk [vmem:[#allocation5 + $0x40] sm:$0xf] %vm6893, %v6830
      %6911 = vst.msk [vmem:[#allocation5 + $0x44] sm:$0xf] %vm6893, %v6832
      %6912 = vst.msk [vmem:[#allocation5 + $0x48] sm:$0xf] %vm6893, %v6834
      %6913 = vst.msk [vmem:[#allocation5 + $0x4c] sm:$0xf] %vm6893, %v6836
      %6914 = vst.msk [vmem:[#allocation5 + $0x50] sm:$0xf] %vm6893, %v6838
      %6915 = vst.msk [vmem:[#allocation5 + $0x54] sm:$0xf] %vm6893, %v6840
      %6916 = vst.msk [vmem:[#allocation5 + $0x58] sm:$0xf] %vm6893, %v6842
      %6917 = vst.msk [vmem:[#allocation5 + $0x5c] sm:$0xf] %vm6893, %v6844
      %6918 = vst.msk [vmem:[#allocation5 + $0x60] sm:$0xf] %vm6893, %v6846
      %6919 = vst.msk [vmem:[#allocation5 + $0x64] sm:$0xf] %vm6893, %v6848
      %6920 = vst.msk [vmem:[#allocation5 + $0x68] sm:$0xf] %vm6893, %v6850
      %6921 = vst.msk [vmem:[#allocation5 + $0x6c] sm:$0xf] %vm6893, %v6852
      %6922 = vst.msk [vmem:[#allocation5 + $0x70] sm:$0xf] %vm6893, %v6854
      %6923 = vst.msk [vmem:[#allocation5 + $0x74] sm:$0xf] %vm6893, %v6856
      %6924 = vst.msk [vmem:[#allocation5 + $0x78] sm:$0xf] %vm6893, %v6858
      %6925 = vst.msk [vmem:[#allocation5 + $0x7c] sm:$0xf] %vm6893, %v6860
      %v6926 = vld [vmem:[%s5095] sm:$0xe]
      %v6927 = vld [vmem:[%s5095 + $0x4] sm:$0xf]
      %v6928 = vld [vmem:[%s5095 + $0x8] sm:$0x1]
      %v6929 = vld [vmem:[%s5095 + $0xc] sm:$0xe]
      %v6930 = vld [vmem:[%s5095 + $0x10] sm:$0xf]
      %v6931 = vld [vmem:[%s5095 + $0x14] sm:$0x1]
      %v6932 = vld [vmem:[%s5095 + $0x18] sm:$0xe]
      %v6933 = vld [vmem:[%s5095 + $0x1c] sm:$0xf]
      %v6934 = vld [vmem:[%s5095 + $0x20] sm:$0x1]
      %v6935 = vld [vmem:[%s5095 + $0x24] sm:$0xe]
      %v6936 = vld [vmem:[%s5095 + $0x28] sm:$0xf]
      %v6937 = vld [vmem:[%s5095 + $0x2c] sm:$0x1]
      %v6938 = vld [vmem:[%s5095 + $0x30] sm:$0xe]
      %v6939 = vld [vmem:[%s5095 + $0x34] sm:$0xf]
      %v6940 = vld [vmem:[%s5095 + $0x38] sm:$0x1]
      %v6941 = vld [vmem:[%s5095 + $0x3c] sm:$0xe]
      %v6942 = vld [vmem:[%s5095 + $0x40] sm:$0xf]
      %v6943 = vld [vmem:[%s5095 + $0x44] sm:$0x1]
      %v6944 = vld [vmem:[%s5095 + $0x48] sm:$0xe]
      %v6945 = vld [vmem:[%s5095 + $0x4c] sm:$0xf]
      %v6946 = vld [vmem:[%s5095 + $0x50] sm:$0x1]
      %v6947 = vld [vmem:[%s5095 + $0x54] sm:$0xe]
      %v6948 = vld [vmem:[%s5095 + $0x58] sm:$0xf]
      %v6949 = vld [vmem:[%s5095 + $0x5c] sm:$0x1]
      %v6950 = vld [vmem:[%s5095 + $0x60] sm:$0xe]
      %v6951 = vld [vmem:[%s5095 + $0x64] sm:$0xf]
      %v6952 = vld [vmem:[%s5095 + $0x68] sm:$0x1]
      %v6953 = vld [vmem:[%s5095 + $0x6c] sm:$0xe]
      %v6954 = vld [vmem:[%s5095 + $0x70] sm:$0xf]
      %v6955 = vld [vmem:[%s5095 + $0x74] sm:$0x1]
      %v6956 = vld [vmem:[%s5095 + $0x78] sm:$0xe]
      %v6957 = vld [vmem:[%s5095 + $0x7c] sm:$0xf]
      %v6958 = vld [vmem:[%s5095 + $0x80] sm:$0x1]
      %v6959 = vld [vmem:[%s5095 + $0x84] sm:$0xe]
      %v6960 = vld [vmem:[%s5095 + $0x88] sm:$0xf]
      %v6961 = vld [vmem:[%s5095 + $0x8c] sm:$0x1]
      %v6962 = vld [vmem:[%s5095 + $0x90] sm:$0xe]
      %v6963 = vld [vmem:[%s5095 + $0x94] sm:$0xf]
      %v6964 = vld [vmem:[%s5095 + $0x98] sm:$0x1]
      %v6965 = vld [vmem:[%s5095 + $0x9c] sm:$0xe]
      %v6966 = vld [vmem:[%s5095 + $0xa0] sm:$0xf]
      %v6967 = vld [vmem:[%s5095 + $0xa4] sm:$0x1]
      %v6968 = vld [vmem:[%s5095 + $0xa8] sm:$0xe]
      %v6969 = vld [vmem:[%s5095 + $0xac] sm:$0xf]
      %v6970 = vld [vmem:[%s5095 + $0xb0] sm:$0x1]
      %v6971 = vld [vmem:[%s5095 + $0xb4] sm:$0xe]
      %v6972 = vld [vmem:[%s5095 + $0xb8] sm:$0xf]
      %v6973 = vld [vmem:[%s5095 + $0xbc] sm:$0x1]
      %v7022 = vrot.slane %v6926, 5
      %v7023 = vrot.slane %v7022, 4
      %v7024 = vrot.slane %v6927, 5
      %v7025 = vsel %vm1678, %v7023, %v7024
      %v7026 = vrot.slane %v7024, 4
      %v7027 = vrot.slane %v6928, 5
      %v7028 = vsel %vm1678, %v7026, %v7027
      %v7029 = vrot.slane %v6929, 5
      %v7030 = vrot.slane %v7029, 4
      %v7031 = vrot.slane %v6930, 5
      %v7032 = vsel %vm1678, %v7030, %v7031
      %v7033 = vrot.slane %v7031, 4
      %v7034 = vrot.slane %v6931, 5
      %v7035 = vsel %vm1678, %v7033, %v7034
      %v7036 = vrot.slane %v6932, 5
      %v7037 = vrot.slane %v7036, 4
      %v7038 = vrot.slane %v6933, 5
      %v7039 = vsel %vm1678, %v7037, %v7038
      %v7040 = vrot.slane %v7038, 4
      %v7041 = vrot.slane %v6934, 5
      %v7042 = vsel %vm1678, %v7040, %v7041
      %v7043 = vrot.slane %v6935, 5
      %v7044 = vrot.slane %v7043, 4
      %v7045 = vrot.slane %v6936, 5
      %v7046 = vsel %vm1678, %v7044, %v7045
      %v7047 = vrot.slane %v7045, 4
      %v7048 = vrot.slane %v6937, 5
      %v7049 = vsel %vm1678, %v7047, %v7048
      %v7050 = vrot.slane %v6938, 5
      %v7051 = vrot.slane %v7050, 4
      %v7052 = vrot.slane %v6939, 5
      %v7053 = vsel %vm1678, %v7051, %v7052
      %v7054 = vrot.slane %v7052, 4
      %v7055 = vrot.slane %v6940, 5
      %v7056 = vsel %vm1678, %v7054, %v7055
      %v7057 = vrot.slane %v6941, 5
      %v7058 = vrot.slane %v7057, 4
      %v7059 = vrot.slane %v6942, 5
      %v7060 = vsel %vm1678, %v7058, %v7059
      %v7061 = vrot.slane %v7059, 4
      %v7062 = vrot.slane %v6943, 5
      %v7063 = vsel %vm1678, %v7061, %v7062
      %v7064 = vrot.slane %v6944, 5
      %v7065 = vrot.slane %v7064, 4
      %v7066 = vrot.slane %v6945, 5
      %v7067 = vsel %vm1678, %v7065, %v7066
      %v7068 = vrot.slane %v7066, 4
      %v7069 = vrot.slane %v6946, 5
      %v7070 = vsel %vm1678, %v7068, %v7069
      %v7071 = vrot.slane %v6947, 5
      %v7072 = vrot.slane %v7071, 4
      %v7073 = vrot.slane %v6948, 5
      %v7074 = vsel %vm1678, %v7072, %v7073
      %v7075 = vrot.slane %v7073, 4
      %v7076 = vrot.slane %v6949, 5
      %v7077 = vsel %vm1678, %v7075, %v7076
      %v7078 = vrot.slane %v6950, 5
      %v7079 = vrot.slane %v7078, 4
      %v7080 = vrot.slane %v6951, 5
      %v7081 = vsel %vm1678, %v7079, %v7080
      %v7082 = vrot.slane %v7080, 4
      %v7083 = vrot.slane %v6952, 5
      %v7084 = vsel %vm1678, %v7082, %v7083
      %v7085 = vrot.slane %v6953, 5
      %v7086 = vrot.slane %v7085, 4
      %v7087 = vrot.slane %v6954, 5
      %v7088 = vsel %vm1678, %v7086, %v7087
      %v7089 = vrot.slane %v7087, 4
      %v7090 = vrot.slane %v6955, 5
      %v7091 = vsel %vm1678, %v7089, %v7090
      %v7092 = vrot.slane %v6956, 5
      %v7093 = vrot.slane %v7092, 4
      %v7094 = vrot.slane %v6957, 5
      %v7095 = vsel %vm1678, %v7093, %v7094
      %v7096 = vrot.slane %v7094, 4
      %v7097 = vrot.slane %v6958, 5
      %v7098 = vsel %vm1678, %v7096, %v7097
      %v7099 = vrot.slane %v6959, 5
      %v7100 = vrot.slane %v7099, 4
      %v7101 = vrot.slane %v6960, 5
      %v7102 = vsel %vm1678, %v7100, %v7101
      %v7103 = vrot.slane %v7101, 4
      %v7104 = vrot.slane %v6961, 5
      %v7105 = vsel %vm1678, %v7103, %v7104
      %v7106 = vrot.slane %v6962, 5
      %v7107 = vrot.slane %v7106, 4
      %v7108 = vrot.slane %v6963, 5
      %v7109 = vsel %vm1678, %v7107, %v7108
      %v7110 = vrot.slane %v7108, 4
      %v7111 = vrot.slane %v6964, 5
      %v7112 = vsel %vm1678, %v7110, %v7111
      %v7113 = vrot.slane %v6965, 5
      %v7114 = vrot.slane %v7113, 4
      %v7115 = vrot.slane %v6966, 5
      %v7116 = vsel %vm1678, %v7114, %v7115
      %v7117 = vrot.slane %v7115, 4
      %v7118 = vrot.slane %v6967, 5
      %v7119 = vsel %vm1678, %v7117, %v7118
      %v7120 = vrot.slane %v6968, 5
      %v7121 = vrot.slane %v7120, 4
      %v7122 = vrot.slane %v6969, 5
      %v7123 = vsel %vm1678, %v7121, %v7122
      %v7124 = vrot.slane %v7122, 4
      %v7125 = vrot.slane %v6970, 5
      %v7126 = vsel %vm1678, %v7124, %v7125
      %v7127 = vrot.slane %v6971, 5
      %v7128 = vrot.slane %v7127, 4
      %v7129 = vrot.slane %v6972, 5
      %v7130 = vsel %vm1678, %v7128, %v7129
      %v7131 = vrot.slane %v7129, 4
      %v7132 = vrot.slane %v6973, 5
      %v7133 = vsel %vm1678, %v7131, %v7132
      %7134 = vrot.lane.b32.xlu0 %v7025, 40
      %v7135 = vpop.permute.xlu0 %7134
      %7136 = vrot.lane.b32.xlu0 %v7028, 40
      %v7137 = vpop.permute.xlu0 %7136
      %7138 = vrot.lane.b32.xlu0 %v7032, 40
      %v7139 = vpop.permute.xlu0 %7138
      %7140 = vrot.lane.b32.xlu0 %v7035, 40
      %v7141 = vpop.permute.xlu0 %7140
      %7142 = vrot.lane.b32.xlu0 %v7039, 40
      %v7143 = vpop.permute.xlu0 %7142
      %7144 = vrot.lane.b32.xlu0 %v7042, 40
      %v7145 = vpop.permute.xlu0 %7144
      %7146 = vrot.lane.b32.xlu0 %v7046, 40
      %v7147 = vpop.permute.xlu0 %7146
      %7148 = vrot.lane.b32.xlu0 %v7049, 40
      %v7149 = vpop.permute.xlu0 %7148
      %7150 = vrot.lane.b32.xlu0 %v7053, 40
      %v7151 = vpop.permute.xlu0 %7150
      %7152 = vrot.lane.b32.xlu0 %v7056, 40
      %v7153 = vpop.permute.xlu0 %7152
      %7154 = vrot.lane.b32.xlu0 %v7060, 40
      %v7155 = vpop.permute.xlu0 %7154
      %7156 = vrot.lane.b32.xlu0 %v7063, 40
      %v7157 = vpop.permute.xlu0 %7156
      %7158 = vrot.lane.b32.xlu0 %v7067, 40
      %v7159 = vpop.permute.xlu0 %7158
      %7160 = vrot.lane.b32.xlu0 %v7070, 40
      %v7161 = vpop.permute.xlu0 %7160
      %7162 = vrot.lane.b32.xlu0 %v7074, 40
      %v7163 = vpop.permute.xlu0 %7162
      %7164 = vrot.lane.b32.xlu0 %v7077, 40
      %v7165 = vpop.permute.xlu0 %7164
      %7166 = vrot.lane.b32.xlu0 %v7081, 40
      %v7167 = vpop.permute.xlu0 %7166
      %7168 = vrot.lane.b32.xlu0 %v7084, 40
      %v7169 = vpop.permute.xlu0 %7168
      %7170 = vrot.lane.b32.xlu0 %v7088, 40
      %v7171 = vpop.permute.xlu0 %7170
      %7172 = vrot.lane.b32.xlu0 %v7091, 40
      %v7173 = vpop.permute.xlu0 %7172
      %7174 = vrot.lane.b32.xlu0 %v7095, 40
      %v7175 = vpop.permute.xlu0 %7174
      %7176 = vrot.lane.b32.xlu0 %v7098, 40
      %v7177 = vpop.permute.xlu0 %7176
      %7178 = vrot.lane.b32.xlu0 %v7102, 40
      %v7179 = vpop.permute.xlu0 %7178
      %7180 = vrot.lane.b32.xlu0 %v7105, 40
      %v7181 = vpop.permute.xlu0 %7180
      %7182 = vrot.lane.b32.xlu0 %v7109, 40
      %v7183 = vpop.permute.xlu0 %7182
      %7184 = vrot.lane.b32.xlu0 %v7112, 40
      %v7185 = vpop.permute.xlu0 %7184
      %7186 = vrot.lane.b32.xlu0 %v7116, 40
      %v7187 = vpop.permute.xlu0 %7186
      %7188 = vrot.lane.b32.xlu0 %v7119, 40
      %v7189 = vpop.permute.xlu0 %7188
      %7190 = vrot.lane.b32.xlu0 %v7123, 40
      %v7191 = vpop.permute.xlu0 %7190
      %7192 = vrot.lane.b32.xlu0 %v7126, 40
      %v7193 = vpop.permute.xlu0 %7192
      %7194 = vrot.lane.b32.xlu0 %v7130, 40
      %v7195 = vpop.permute.xlu0 %7194
      %7196 = vrot.lane.b32.xlu0 %v7133, 40
      %v7197 = vpop.permute.xlu0 %7196
      %vm7230 = vcmask 388416
      %7231 = vst.msk [vmem:[#allocation5] sm:$0xf] %vm7230, %v7135
      %7232 = vst.msk [vmem:[#allocation5 + $0x4] sm:$0xf] %vm7230, %v7137
      %7233 = vst.msk [vmem:[#allocation5 + $0x8] sm:$0xf] %vm7230, %v7139
      %7234 = vst.msk [vmem:[#allocation5 + $0xc] sm:$0xf] %vm7230, %v7141
      %7235 = vst.msk [vmem:[#allocation5 + $0x10] sm:$0xf] %vm7230, %v7143
      %7236 = vst.msk [vmem:[#allocation5 + $0x14] sm:$0xf] %vm7230, %v7145
      %7237 = vst.msk [vmem:[#allocation5 + $0x18] sm:$0xf] %vm7230, %v7147
      %7238 = vst.msk [vmem:[#allocation5 + $0x1c] sm:$0xf] %vm7230, %v7149
      %7239 = vst.msk [vmem:[#allocation5 + $0x20] sm:$0xf] %vm7230, %v7151
      %7240 = vst.msk [vmem:[#allocation5 + $0x24] sm:$0xf] %vm7230, %v7153
      %7241 = vst.msk [vmem:[#allocation5 + $0x28] sm:$0xf] %vm7230, %v7155
      %7242 = vst.msk [vmem:[#allocation5 + $0x2c] sm:$0xf] %vm7230, %v7157
      %7243 = vst.msk [vmem:[#allocation5 + $0x30] sm:$0xf] %vm7230, %v7159
      %7244 = vst.msk [vmem:[#allocation5 + $0x34] sm:$0xf] %vm7230, %v7161
      %7245 = vst.msk [vmem:[#allocation5 + $0x38] sm:$0xf] %vm7230, %v7163
      %7246 = vst.msk [vmem:[#allocation5 + $0x3c] sm:$0xf] %vm7230, %v7165
      %7247 = vst.msk [vmem:[#allocation5 + $0x40] sm:$0xf] %vm7230, %v7167
      %7248 = vst.msk [vmem:[#allocation5 + $0x44] sm:$0xf] %vm7230, %v7169
      %7249 = vst.msk [vmem:[#allocation5 + $0x48] sm:$0xf] %vm7230, %v7171
      %7250 = vst.msk [vmem:[#allocation5 + $0x4c] sm:$0xf] %vm7230, %v7173
      %7251 = vst.msk [vmem:[#allocation5 + $0x50] sm:$0xf] %vm7230, %v7175
      %7252 = vst.msk [vmem:[#allocation5 + $0x54] sm:$0xf] %vm7230, %v7177
      %7253 = vst.msk [vmem:[#allocation5 + $0x58] sm:$0xf] %vm7230, %v7179
      %7254 = vst.msk [vmem:[#allocation5 + $0x5c] sm:$0xf] %vm7230, %v7181
      %7255 = vst.msk [vmem:[#allocation5 + $0x60] sm:$0xf] %vm7230, %v7183
      %7256 = vst.msk [vmem:[#allocation5 + $0x64] sm:$0xf] %vm7230, %v7185
      %7257 = vst.msk [vmem:[#allocation5 + $0x68] sm:$0xf] %vm7230, %v7187
      %7258 = vst.msk [vmem:[#allocation5 + $0x6c] sm:$0xf] %vm7230, %v7189
      %7259 = vst.msk [vmem:[#allocation5 + $0x70] sm:$0xf] %vm7230, %v7191
      %7260 = vst.msk [vmem:[#allocation5 + $0x74] sm:$0xf] %vm7230, %v7193
      %7261 = vst.msk [vmem:[#allocation5 + $0x78] sm:$0xf] %vm7230, %v7195
      %7262 = vst.msk [vmem:[#allocation5 + $0x7c] sm:$0xf] %vm7230, %v7197
      %s7263 = scalar_lea.vmem [#allocation3], 24
      %v7264 = vld [vmem:[%s7263] sm:$0xf]
      %v7265 = vld [vmem:[%s7263 + $0x4] sm:$0xf]
      %v7266 = vld [vmem:[%s7263 + $0xc] sm:$0xf]
      %v7267 = vld [vmem:[%s7263 + $0x10] sm:$0xf]
      %v7268 = vld [vmem:[%s7263 + $0x18] sm:$0xf]
      %v7269 = vld [vmem:[%s7263 + $0x1c] sm:$0xf]
      %v7270 = vld [vmem:[%s7263 + $0x24] sm:$0xf]
      %v7271 = vld [vmem:[%s7263 + $0x28] sm:$0xf]
      %v7272 = vld [vmem:[%s7263 + $0x30] sm:$0xf]
      %v7273 = vld [vmem:[%s7263 + $0x34] sm:$0xf]
      %v7274 = vld [vmem:[%s7263 + $0x3c] sm:$0xf]
      %v7275 = vld [vmem:[%s7263 + $0x40] sm:$0xf]
      %v7276 = vld [vmem:[%s7263 + $0x48] sm:$0xf]
      %v7277 = vld [vmem:[%s7263 + $0x4c] sm:$0xf]
      %v7278 = vld [vmem:[%s7263 + $0x54] sm:$0xf]
      %v7279 = vld [vmem:[%s7263 + $0x58] sm:$0xf]
      %v7280 = vld [vmem:[%s7263 + $0x60] sm:$0xf]
      %v7281 = vld [vmem:[%s7263 + $0x64] sm:$0xf]
      %v7282 = vld [vmem:[%s7263 + $0x6c] sm:$0xf]
      %v7283 = vld [vmem:[%s7263 + $0x70] sm:$0xf]
      %v7284 = vld [vmem:[%s7263 + $0x78] sm:$0xf]
      %v7285 = vld [vmem:[%s7263 + $0x7c] sm:$0xf]
      %v7286 = vld [vmem:[%s7263 + $0x84] sm:$0xf]
      %v7287 = vld [vmem:[%s7263 + $0x88] sm:$0xf]
      %v7288 = vld [vmem:[%s7263 + $0x90] sm:$0xf]
      %v7289 = vld [vmem:[%s7263 + $0x94] sm:$0xf]
      %v7290 = vld [vmem:[%s7263 + $0x9c] sm:$0xf]
      %v7291 = vld [vmem:[%s7263 + $0xa0] sm:$0xf]
      %v7292 = vld [vmem:[%s7263 + $0xa8] sm:$0xf]
      %v7293 = vld [vmem:[%s7263 + $0xac] sm:$0xf]
      %v7294 = vld [vmem:[%s7263 + $0xb4] sm:$0xf]
      %v7295 = vld [vmem:[%s7263 + $0xb8] sm:$0xf]
      %7328 = vrot.lane.b32.xlu0 %v7264, 48
      %v7329 = vpop.permute.xlu0 %7328
      %7330 = vrot.lane.b32.xlu0 %v7265, 48
      %v7331 = vpop.permute.xlu0 %7330
      %7332 = vrot.lane.b32.xlu0 %v7266, 48
      %v7333 = vpop.permute.xlu0 %7332
      %7334 = vrot.lane.b32.xlu0 %v7267, 48
      %v7335 = vpop.permute.xlu0 %7334
      %7336 = vrot.lane.b32.xlu0 %v7268, 48
      %v7337 = vpop.permute.xlu0 %7336
      %7338 = vrot.lane.b32.xlu0 %v7269, 48
      %v7339 = vpop.permute.xlu0 %7338
      %7340 = vrot.lane.b32.xlu0 %v7270, 48
      %v7341 = vpop.permute.xlu0 %7340
      %7342 = vrot.lane.b32.xlu0 %v7271, 48
      %v7343 = vpop.permute.xlu0 %7342
      %7344 = vrot.lane.b32.xlu0 %v7272, 48
      %v7345 = vpop.permute.xlu0 %7344
      %7346 = vrot.lane.b32.xlu0 %v7273, 48
      %v7347 = vpop.permute.xlu0 %7346
      %7348 = vrot.lane.b32.xlu0 %v7274, 48
      %v7349 = vpop.permute.xlu0 %7348
      %7350 = vrot.lane.b32.xlu0 %v7275, 48
      %v7351 = vpop.permute.xlu0 %7350
      %7352 = vrot.lane.b32.xlu0 %v7276, 48
      %v7353 = vpop.permute.xlu0 %7352
      %7354 = vrot.lane.b32.xlu0 %v7277, 48
      %v7355 = vpop.permute.xlu0 %7354
      %7356 = vrot.lane.b32.xlu0 %v7278, 48
      %v7357 = vpop.permute.xlu0 %7356
      %7358 = vrot.lane.b32.xlu0 %v7279, 48
      %v7359 = vpop.permute.xlu0 %7358
      %7360 = vrot.lane.b32.xlu0 %v7280, 48
      %v7361 = vpop.permute.xlu0 %7360
      %7362 = vrot.lane.b32.xlu0 %v7281, 48
      %v7363 = vpop.permute.xlu0 %7362
      %7364 = vrot.lane.b32.xlu0 %v7282, 48
      %v7365 = vpop.permute.xlu0 %7364
      %7366 = vrot.lane.b32.xlu0 %v7283, 48
      %v7367 = vpop.permute.xlu0 %7366
      %7368 = vrot.lane.b32.xlu0 %v7284, 48
      %v7369 = vpop.permute.xlu0 %7368
      %7370 = vrot.lane.b32.xlu0 %v7285, 48
      %v7371 = vpop.permute.xlu0 %7370
      %7372 = vrot.lane.b32.xlu0 %v7286, 48
      %v7373 = vpop.permute.xlu0 %7372
      %7374 = vrot.lane.b32.xlu0 %v7287, 48
      %v7375 = vpop.permute.xlu0 %7374
      %7376 = vrot.lane.b32.xlu0 %v7288, 48
      %v7377 = vpop.permute.xlu0 %7376
      %7378 = vrot.lane.b32.xlu0 %v7289, 48
      %v7379 = vpop.permute.xlu0 %7378
      %7380 = vrot.lane.b32.xlu0 %v7290, 48
      %v7381 = vpop.permute.xlu0 %7380
      %7382 = vrot.lane.b32.xlu0 %v7291, 48
      %v7383 = vpop.permute.xlu0 %7382
      %7384 = vrot.lane.b32.xlu0 %v7292, 48
      %v7385 = vpop.permute.xlu0 %7384
      %7386 = vrot.lane.b32.xlu0 %v7293, 48
      %v7387 = vpop.permute.xlu0 %7386
      %7388 = vrot.lane.b32.xlu0 %v7294, 48
      %v7389 = vpop.permute.xlu0 %7388
      %7390 = vrot.lane.b32.xlu0 %v7295, 48
      %v7391 = vpop.permute.xlu0 %7390
      %vm7424 = vcmask 454016
      %7425 = vst.msk [vmem:[#allocation5] sm:$0xf] %vm7424, %v7329
      %7426 = vst.msk [vmem:[#allocation5 + $0x4] sm:$0xf] %vm7424, %v7331
      %7427 = vst.msk [vmem:[#allocation5 + $0x8] sm:$0xf] %vm7424, %v7333
      %7428 = vst.msk [vmem:[#allocation5 + $0xc] sm:$0xf] %vm7424, %v7335
      %7429 = vst.msk [vmem:[#allocation5 + $0x10] sm:$0xf] %vm7424, %v7337
      %7430 = vst.msk [vmem:[#allocation5 + $0x14] sm:$0xf] %vm7424, %v7339
      %7431 = vst.msk [vmem:[#allocation5 + $0x18] sm:$0xf] %vm7424, %v7341
      %7432 = vst.msk [vmem:[#allocation5 + $0x1c] sm:$0xf] %vm7424, %v7343
      %7433 = vst.msk [vmem:[#allocation5 + $0x20] sm:$0xf] %vm7424, %v7345
      %7434 = vst.msk [vmem:[#allocation5 + $0x24] sm:$0xf] %vm7424, %v7347
      %7435 = vst.msk [vmem:[#allocation5 + $0x28] sm:$0xf] %vm7424, %v7349
      %7436 = vst.msk [vmem:[#allocation5 + $0x2c] sm:$0xf] %vm7424, %v7351
      %7437 = vst.msk [vmem:[#allocation5 + $0x30] sm:$0xf] %vm7424, %v7353
      %7438 = vst.msk [vmem:[#allocation5 + $0x34] sm:$0xf] %vm7424, %v7355
      %7439 = vst.msk [vmem:[#allocation5 + $0x38] sm:$0xf] %vm7424, %v7357
      %7440 = vst.msk [vmem:[#allocation5 + $0x3c] sm:$0xf] %vm7424, %v7359
      %7441 = vst.msk [vmem:[#allocation5 + $0x40] sm:$0xf] %vm7424, %v7361
      %7442 = vst.msk [vmem:[#allocation5 + $0x44] sm:$0xf] %vm7424, %v7363
      %7443 = vst.msk [vmem:[#allocation5 + $0x48] sm:$0xf] %vm7424, %v7365
      %7444 = vst.msk [vmem:[#allocation5 + $0x4c] sm:$0xf] %vm7424, %v7367
      %7445 = vst.msk [vmem:[#allocation5 + $0x50] sm:$0xf] %vm7424, %v7369
      %7446 = vst.msk [vmem:[#allocation5 + $0x54] sm:$0xf] %vm7424, %v7371
      %7447 = vst.msk [vmem:[#allocation5 + $0x58] sm:$0xf] %vm7424, %v7373
      %7448 = vst.msk [vmem:[#allocation5 + $0x5c] sm:$0xf] %vm7424, %v7375
      %7449 = vst.msk [vmem:[#allocation5 + $0x60] sm:$0xf] %vm7424, %v7377
      %7450 = vst.msk [vmem:[#allocation5 + $0x64] sm:$0xf] %vm7424, %v7379
      %7451 = vst.msk [vmem:[#allocation5 + $0x68] sm:$0xf] %vm7424, %v7381
      %7452 = vst.msk [vmem:[#allocation5 + $0x6c] sm:$0xf] %vm7424, %v7383
      %7453 = vst.msk [vmem:[#allocation5 + $0x70] sm:$0xf] %vm7424, %v7385
      %7454 = vst.msk [vmem:[#allocation5 + $0x74] sm:$0xf] %vm7424, %v7387
      %7455 = vst.msk [vmem:[#allocation5 + $0x78] sm:$0xf] %vm7424, %v7389
      %7456 = vst.msk [vmem:[#allocation5 + $0x7c] sm:$0xf] %vm7424, %v7391
      %v7457 = vld [vmem:[%s7263] sm:$0xf]
      %v7458 = vld [vmem:[%s7263 + $0x4] sm:$0xf]
      %v7459 = vld [vmem:[%s7263 + $0x8] sm:$0x1]
      %v7460 = vld [vmem:[%s7263 + $0xc] sm:$0xf]
      %v7461 = vld [vmem:[%s7263 + $0x10] sm:$0xf]
      %v7462 = vld [vmem:[%s7263 + $0x14] sm:$0x1]
      %v7463 = vld [vmem:[%s7263 + $0x18] sm:$0xf]
      %v7464 = vld [vmem:[%s7263 + $0x1c] sm:$0xf]
      %v7465 = vld [vmem:[%s7263 + $0x20] sm:$0x1]
      %v7466 = vld [vmem:[%s7263 + $0x24] sm:$0xf]
      %v7467 = vld [vmem:[%s7263 + $0x28] sm:$0xf]
      %v7468 = vld [vmem:[%s7263 + $0x2c] sm:$0x1]
      %v7469 = vld [vmem:[%s7263 + $0x30] sm:$0xf]
      %v7470 = vld [vmem:[%s7263 + $0x34] sm:$0xf]
      %v7471 = vld [vmem:[%s7263 + $0x38] sm:$0x1]
      %v7472 = vld [vmem:[%s7263 + $0x3c] sm:$0xf]
      %v7473 = vld [vmem:[%s7263 + $0x40] sm:$0xf]
      %v7474 = vld [vmem:[%s7263 + $0x44] sm:$0x1]
      %v7475 = vld [vmem:[%s7263 + $0x48] sm:$0xf]
      %v7476 = vld [vmem:[%s7263 + $0x4c] sm:$0xf]
      %v7477 = vld [vmem:[%s7263 + $0x50] sm:$0x1]
      %v7478 = vld [vmem:[%s7263 + $0x54] sm:$0xf]
      %v7479 = vld [vmem:[%s7263 + $0x58] sm:$0xf]
      %v7480 = vld [vmem:[%s7263 + $0x5c] sm:$0x1]
      %v7481 = vld [vmem:[%s7263 + $0x60] sm:$0xf]
      %v7482 = vld [vmem:[%s7263 + $0x64] sm:$0xf]
      %v7483 = vld [vmem:[%s7263 + $0x68] sm:$0x1]
      %v7484 = vld [vmem:[%s7263 + $0x6c] sm:$0xf]
      %v7485 = vld [vmem:[%s7263 + $0x70] sm:$0xf]
      %v7486 = vld [vmem:[%s7263 + $0x74] sm:$0x1]
      %v7487 = vld [vmem:[%s7263 + $0x78] sm:$0xf]
      %v7488 = vld [vmem:[%s7263 + $0x7c] sm:$0xf]
      %v7489 = vld [vmem:[%s7263 + $0x80] sm:$0x1]
      %v7490 = vld [vmem:[%s7263 + $0x84] sm:$0xf]
      %v7491 = vld [vmem:[%s7263 + $0x88] sm:$0xf]
      %v7492 = vld [vmem:[%s7263 + $0x8c] sm:$0x1]
      %v7493 = vld [vmem:[%s7263 + $0x90] sm:$0xf]
      %v7494 = vld [vmem:[%s7263 + $0x94] sm:$0xf]
      %v7495 = vld [vmem:[%s7263 + $0x98] sm:$0x1]
      %v7496 = vld [vmem:[%s7263 + $0x9c] sm:$0xf]
      %v7497 = vld [vmem:[%s7263 + $0xa0] sm:$0xf]
      %v7498 = vld [vmem:[%s7263 + $0xa4] sm:$0x1]
      %v7499 = vld [vmem:[%s7263 + $0xa8] sm:$0xf]
      %v7500 = vld [vmem:[%s7263 + $0xac] sm:$0xf]
      %v7501 = vld [vmem:[%s7263 + $0xb0] sm:$0x1]
      %v7502 = vld [vmem:[%s7263 + $0xb4] sm:$0xf]
      %v7503 = vld [vmem:[%s7263 + $0xb8] sm:$0xf]
      %v7504 = vld [vmem:[%s7263 + $0xbc] sm:$0x1]
      %v7506 = vshrl.u32 %v7457, 16
      %v7508 = vrot.slane %v7506, 4
      %v7509 = vshll.u32 %v7457, 16
      %v7511 = vrot.slane %v7509, 5
      %v7512 = vor.u32 %v7508, %v7511
      %v7513 = vrot.slane %v7512, 4
      %v7515 = vshll.u32 %v7458, 16
      %v7517 = vrot.slane %v7515, 5
      %v7518 = vsel %vm1066, %v7513, %v7517
      %v7519 = vshrl.u32 %v7458, 16
      %v7521 = vrot.slane %v7519, 4
      %v7522 = vor.u32 %v7521, %v7517
      %v7523 = vrot.slane %v7522, 4
      %v7525 = vshll.u32 %v7459, 16
      %v7527 = vrot.slane %v7525, 5
      %v7528 = vsel %vm1066, %v7523, %v7527
      %v7530 = vshrl.u32 %v7460, 16
      %v7532 = vrot.slane %v7530, 4
      %v7533 = vshll.u32 %v7460, 16
      %v7535 = vrot.slane %v7533, 5
      %v7536 = vor.u32 %v7532, %v7535
      %v7537 = vrot.slane %v7536, 4
      %v7539 = vshll.u32 %v7461, 16
      %v7541 = vrot.slane %v7539, 5
      %v7542 = vsel %vm1066, %v7537, %v7541
      %v7543 = vshrl.u32 %v7461, 16
      %v7545 = vrot.slane %v7543, 4
      %v7546 = vor.u32 %v7545, %v7541
      %v7547 = vrot.slane %v7546, 4
      %v7549 = vshll.u32 %v7462, 16
      %v7551 = vrot.slane %v7549, 5
      %v7552 = vsel %vm1066, %v7547, %v7551
      %v7554 = vshrl.u32 %v7463, 16
      %v7556 = vrot.slane %v7554, 4
      %v7557 = vshll.u32 %v7463, 16
      %v7559 = vrot.slane %v7557, 5
      %v7560 = vor.u32 %v7556, %v7559
      %v7561 = vrot.slane %v7560, 4
      %v7563 = vshll.u32 %v7464, 16
      %v7565 = vrot.slane %v7563, 5
      %v7566 = vsel %vm1066, %v7561, %v7565
      %v7567 = vshrl.u32 %v7464, 16
      %v7569 = vrot.slane %v7567, 4
      %v7570 = vor.u32 %v7569, %v7565
      %v7571 = vrot.slane %v7570, 4
      %v7573 = vshll.u32 %v7465, 16
      %v7575 = vrot.slane %v7573, 5
      %v7576 = vsel %vm1066, %v7571, %v7575
      %v7578 = vshrl.u32 %v7466, 16
      %v7580 = vrot.slane %v7578, 4
      %v7581 = vshll.u32 %v7466, 16
      %v7583 = vrot.slane %v7581, 5
      %v7584 = vor.u32 %v7580, %v7583
      %v7585 = vrot.slane %v7584, 4
      %v7587 = vshll.u32 %v7467, 16
      %v7589 = vrot.slane %v7587, 5
      %v7590 = vsel %vm1066, %v7585, %v7589
      %v7591 = vshrl.u32 %v7467, 16
      %v7593 = vrot.slane %v7591, 4
      %v7594 = vor.u32 %v7593, %v7589
      %v7595 = vrot.slane %v7594, 4
      %v7597 = vshll.u32 %v7468, 16
      %v7599 = vrot.slane %v7597, 5
      %v7600 = vsel %vm1066, %v7595, %v7599
      %v7602 = vshrl.u32 %v7469, 16
      %v7604 = vrot.slane %v7602, 4
      %v7605 = vshll.u32 %v7469, 16
      %v7607 = vrot.slane %v7605, 5
      %v7608 = vor.u32 %v7604, %v7607
      %v7609 = vrot.slane %v7608, 4
      %v7611 = vshll.u32 %v7470, 16
      %v7613 = vrot.slane %v7611, 5
      %v7614 = vsel %vm1066, %v7609, %v7613
      %v7615 = vshrl.u32 %v7470, 16
      %v7617 = vrot.slane %v7615, 4
      %v7618 = vor.u32 %v7617, %v7613
      %v7619 = vrot.slane %v7618, 4
      %v7621 = vshll.u32 %v7471, 16
      %v7623 = vrot.slane %v7621, 5
      %v7624 = vsel %vm1066, %v7619, %v7623
      %v7626 = vshrl.u32 %v7472, 16
      %v7628 = vrot.slane %v7626, 4
      %v7629 = vshll.u32 %v7472, 16
      %v7631 = vrot.slane %v7629, 5
      %v7632 = vor.u32 %v7628, %v7631
      %v7633 = vrot.slane %v7632, 4
      %v7635 = vshll.u32 %v7473, 16
      %v7637 = vrot.slane %v7635, 5
      %v7638 = vsel %vm1066, %v7633, %v7637
      %v7639 = vshrl.u32 %v7473, 16
      %v7641 = vrot.slane %v7639, 4
      %v7642 = vor.u32 %v7641, %v7637
      %v7643 = vrot.slane %v7642, 4
      %v7645 = vshll.u32 %v7474, 16
      %v7647 = vrot.slane %v7645, 5
      %v7648 = vsel %vm1066, %v7643, %v7647
      %v7650 = vshrl.u32 %v7475, 16
      %v7652 = vrot.slane %v7650, 4
      %v7653 = vshll.u32 %v7475, 16
      %v7655 = vrot.slane %v7653, 5
      %v7656 = vor.u32 %v7652, %v7655
      %v7657 = vrot.slane %v7656, 4
      %v7659 = vshll.u32 %v7476, 16
      %v7661 = vrot.slane %v7659, 5
      %v7662 = vsel %vm1066, %v7657, %v7661
      %v7663 = vshrl.u32 %v7476, 16
      %v7665 = vrot.slane %v7663, 4
      %v7666 = vor.u32 %v7665, %v7661
      %v7667 = vrot.slane %v7666, 4
      %v7669 = vshll.u32 %v7477, 16
      %v7671 = vrot.slane %v7669, 5
      %v7672 = vsel %vm1066, %v7667, %v7671
      %v7674 = vshrl.u32 %v7478, 16
      %v7676 = vrot.slane %v7674, 4
      %v7677 = vshll.u32 %v7478, 16
      %v7679 = vrot.slane %v7677, 5
      %v7680 = vor.u32 %v7676, %v7679
      %v7681 = vrot.slane %v7680, 4
      %v7683 = vshll.u32 %v7479, 16
      %v7685 = vrot.slane %v7683, 5
      %v7686 = vsel %vm1066, %v7681, %v7685
      %v7687 = vshrl.u32 %v7479, 16
      %v7689 = vrot.slane %v7687, 4
      %v7690 = vor.u32 %v7689, %v7685
      %v7691 = vrot.slane %v7690, 4
      %v7693 = vshll.u32 %v7480, 16
      %v7695 = vrot.slane %v7693, 5
      %v7696 = vsel %vm1066, %v7691, %v7695
      %v7698 = vshrl.u32 %v7481, 16
      %v7700 = vrot.slane %v7698, 4
      %v7701 = vshll.u32 %v7481, 16
      %v7703 = vrot.slane %v7701, 5
      %v7704 = vor.u32 %v7700, %v7703
      %v7705 = vrot.slane %v7704, 4
      %v7707 = vshll.u32 %v7482, 16
      %v7709 = vrot.slane %v7707, 5
      %v7710 = vsel %vm1066, %v7705, %v7709
      %v7711 = vshrl.u32 %v7482, 16
      %v7713 = vrot.slane %v7711, 4
      %v7714 = vor.u32 %v7713, %v7709
      %v7715 = vrot.slane %v7714, 4
      %v7717 = vshll.u32 %v7483, 16
      %v7719 = vrot.slane %v7717, 5
      %v7720 = vsel %vm1066, %v7715, %v7719
      %v7722 = vshrl.u32 %v7484, 16
      %v7724 = vrot.slane %v7722, 4
      %v7725 = vshll.u32 %v7484, 16
      %v7727 = vrot.slane %v7725, 5
      %v7728 = vor.u32 %v7724, %v7727
      %v7729 = vrot.slane %v7728, 4
      %v7731 = vshll.u32 %v7485, 16
      %v7733 = vrot.slane %v7731, 5
      %v7734 = vsel %vm1066, %v7729, %v7733
      %v7735 = vshrl.u32 %v7485, 16
      %v7737 = vrot.slane %v7735, 4
      %v7738 = vor.u32 %v7737, %v7733
      %v7739 = vrot.slane %v7738, 4
      %v7741 = vshll.u32 %v7486, 16
      %v7743 = vrot.slane %v7741, 5
      %v7744 = vsel %vm1066, %v7739, %v7743
      %v7746 = vshrl.u32 %v7487, 16
      %v7748 = vrot.slane %v7746, 4
      %v7749 = vshll.u32 %v7487, 16
      %v7751 = vrot.slane %v7749, 5
      %v7752 = vor.u32 %v7748, %v7751
      %v7753 = vrot.slane %v7752, 4
      %v7755 = vshll.u32 %v7488, 16
      %v7757 = vrot.slane %v7755, 5
      %v7758 = vsel %vm1066, %v7753, %v7757
      %v7759 = vshrl.u32 %v7488, 16
      %v7761 = vrot.slane %v7759, 4
      %v7762 = vor.u32 %v7761, %v7757
      %v7763 = vrot.slane %v7762, 4
      %v7765 = vshll.u32 %v7489, 16
      %v7767 = vrot.slane %v7765, 5
      %v7768 = vsel %vm1066, %v7763, %v7767
      %v7770 = vshrl.u32 %v7490, 16
      %v7772 = vrot.slane %v7770, 4
      %v7773 = vshll.u32 %v7490, 16
      %v7775 = vrot.slane %v7773, 5
      %v7776 = vor.u32 %v7772, %v7775
      %v7777 = vrot.slane %v7776, 4
      %v7779 = vshll.u32 %v7491, 16
      %v7781 = vrot.slane %v7779, 5
      %v7782 = vsel %vm1066, %v7777, %v7781
      %v7783 = vshrl.u32 %v7491, 16
      %v7785 = vrot.slane %v7783, 4
      %v7786 = vor.u32 %v7785, %v7781
      %v7787 = vrot.slane %v7786, 4
      %v7789 = vshll.u32 %v7492, 16
      %v7791 = vrot.slane %v7789, 5
      %v7792 = vsel %vm1066, %v7787, %v7791
      %v7794 = vshrl.u32 %v7493, 16
      %v7796 = vrot.slane %v7794, 4
      %v7797 = vshll.u32 %v7493, 16
      %v7799 = vrot.slane %v7797, 5
      %v7800 = vor.u32 %v7796, %v7799
      %v7801 = vrot.slane %v7800, 4
      %v7803 = vshll.u32 %v7494, 16
      %v7805 = vrot.slane %v7803, 5
      %v7806 = vsel %vm1066, %v7801, %v7805
      %v7807 = vshrl.u32 %v7494, 16
      %v7809 = vrot.slane %v7807, 4
      %v7810 = vor.u32 %v7809, %v7805
      %v7811 = vrot.slane %v7810, 4
      %v7813 = vshll.u32 %v7495, 16
      %v7815 = vrot.slane %v7813, 5
      %v7816 = vsel %vm1066, %v7811, %v7815
      %v7818 = vshrl.u32 %v7496, 16
      %v7820 = vrot.slane %v7818, 4
      %v7821 = vshll.u32 %v7496, 16
      %v7823 = vrot.slane %v7821, 5
      %v7824 = vor.u32 %v7820, %v7823
      %v7825 = vrot.slane %v7824, 4
      %v7827 = vshll.u32 %v7497, 16
      %v7829 = vrot.slane %v7827, 5
      %v7830 = vsel %vm1066, %v7825, %v7829
      %v7831 = vshrl.u32 %v7497, 16
      %v7833 = vrot.slane %v7831, 4
      %v7834 = vor.u32 %v7833, %v7829
      %v7835 = vrot.slane %v7834, 4
      %v7837 = vshll.u32 %v7498, 16
      %v7839 = vrot.slane %v7837, 5
      %v7840 = vsel %vm1066, %v7835, %v7839
      %v7842 = vshrl.u32 %v7499, 16
      %v7844 = vrot.slane %v7842, 4
      %v7845 = vshll.u32 %v7499, 16
      %v7847 = vrot.slane %v7845, 5
      %v7848 = vor.u32 %v7844, %v7847
      %v7849 = vrot.slane %v7848, 4
      %v7851 = vshll.u32 %v7500, 16
      %v7853 = vrot.slane %v7851, 5
      %v7854 = vsel %vm1066, %v7849, %v7853
      %v7855 = vshrl.u32 %v7500, 16
      %v7857 = vrot.slane %v7855, 4
      %v7858 = vor.u32 %v7857, %v7853
      %v7859 = vrot.slane %v7858, 4
      %v7861 = vshll.u32 %v7501, 16
      %v7863 = vrot.slane %v7861, 5
      %v7864 = vsel %vm1066, %v7859, %v7863
      %v7866 = vshrl.u32 %v7502, 16
      %v7868 = vrot.slane %v7866, 4
      %v7869 = vshll.u32 %v7502, 16
      %v7871 = vrot.slane %v7869, 5
      %v7872 = vor.u32 %v7868, %v7871
      %v7873 = vrot.slane %v7872, 4
      %v7875 = vshll.u32 %v7503, 16
      %v7877 = vrot.slane %v7875, 5
      %v7878 = vsel %vm1066, %v7873, %v7877
      %v7879 = vshrl.u32 %v7503, 16
      %v7881 = vrot.slane %v7879, 4
      %v7882 = vor.u32 %v7881, %v7877
      %v7883 = vrot.slane %v7882, 4
      %v7885 = vshll.u32 %v7504, 16
      %v7887 = vrot.slane %v7885, 5
      %v7888 = vsel %vm1066, %v7883, %v7887
      %7889 = vrot.lane.b32.xlu0 %v7518, 56
      %v7890 = vpop.permute.xlu0 %7889
      %7891 = vrot.lane.b32.xlu0 %v7528, 56
      %v7892 = vpop.permute.xlu0 %7891
      %7893 = vrot.lane.b32.xlu0 %v7542, 56
      %v7894 = vpop.permute.xlu0 %7893
      %7895 = vrot.lane.b32.xlu0 %v7552, 56
      %v7896 = vpop.permute.xlu0 %7895
      %7897 = vrot.lane.b32.xlu0 %v7566, 56
      %v7898 = vpop.permute.xlu0 %7897
      %7899 = vrot.lane.b32.xlu0 %v7576, 56
      %v7900 = vpop.permute.xlu0 %7899
      %7901 = vrot.lane.b32.xlu0 %v7590, 56
      %v7902 = vpop.permute.xlu0 %7901
      %7903 = vrot.lane.b32.xlu0 %v7600, 56
      %v7904 = vpop.permute.xlu0 %7903
      %7905 = vrot.lane.b32.xlu0 %v7614, 56
      %v7906 = vpop.permute.xlu0 %7905
      %7907 = vrot.lane.b32.xlu0 %v7624, 56
      %v7908 = vpop.permute.xlu0 %7907
      %7909 = vrot.lane.b32.xlu0 %v7638, 56
      %v7910 = vpop.permute.xlu0 %7909
      %7911 = vrot.lane.b32.xlu0 %v7648, 56
      %v7912 = vpop.permute.xlu0 %7911
      %7913 = vrot.lane.b32.xlu0 %v7662, 56
      %v7914 = vpop.permute.xlu0 %7913
      %7915 = vrot.lane.b32.xlu0 %v7672, 56
      %v7916 = vpop.permute.xlu0 %7915
      %7917 = vrot.lane.b32.xlu0 %v7686, 56
      %v7918 = vpop.permute.xlu0 %7917
      %7919 = vrot.lane.b32.xlu0 %v7696, 56
      %v7920 = vpop.permute.xlu0 %7919
      %7921 = vrot.lane.b32.xlu0 %v7710, 56
      %v7922 = vpop.permute.xlu0 %7921
      %7923 = vrot.lane.b32.xlu0 %v7720, 56
      %v7924 = vpop.permute.xlu0 %7923
      %7925 = vrot.lane.b32.xlu0 %v7734, 56
      %v7926 = vpop.permute.xlu0 %7925
      %7927 = vrot.lane.b32.xlu0 %v7744, 56
      %v7928 = vpop.permute.xlu0 %7927
      %7929 = vrot.lane.b32.xlu0 %v7758, 56
      %v7930 = vpop.permute.xlu0 %7929
      %7931 = vrot.lane.b32.xlu0 %v7768, 56
      %v7932 = vpop.permute.xlu0 %7931
      %7933 = vrot.lane.b32.xlu0 %v7782, 56
      %v7934 = vpop.permute.xlu0 %7933
      %7935 = vrot.lane.b32.xlu0 %v7792, 56
      %v7936 = vpop.permute.xlu0 %7935
      %7937 = vrot.lane.b32.xlu0 %v7806, 56
      %v7938 = vpop.permute.xlu0 %7937
      %7939 = vrot.lane.b32.xlu0 %v7816, 56
      %v7940 = vpop.permute.xlu0 %7939
      %7941 = vrot.lane.b32.xlu0 %v7830, 56
      %v7942 = vpop.permute.xlu0 %7941
      %7943 = vrot.lane.b32.xlu0 %v7840, 56
      %v7944 = vpop.permute.xlu0 %7943
      %7945 = vrot.lane.b32.xlu0 %v7854, 56
      %v7946 = vpop.permute.xlu0 %7945
      %7947 = vrot.lane.b32.xlu0 %v7864, 56
      %v7948 = vpop.permute.xlu0 %7947
      %7949 = vrot.lane.b32.xlu0 %v7878, 56
      %v7950 = vpop.permute.xlu0 %7949
      %7951 = vrot.lane.b32.xlu0 %v7888, 56
      %v7952 = vpop.permute.xlu0 %7951
      %vm7985 = vcmask 519616
      %7986 = vst.msk [vmem:[#allocation5] sm:$0xf] %vm7985, %v7890
      %7987 = vst.msk [vmem:[#allocation5 + $0x4] sm:$0xf] %vm7985, %v7892
      %7988 = vst.msk [vmem:[#allocation5 + $0x8] sm:$0xf] %vm7985, %v7894
      %7989 = vst.msk [vmem:[#allocation5 + $0xc] sm:$0xf] %vm7985, %v7896
      %7990 = vst.msk [vmem:[#allocation5 + $0x10] sm:$0xf] %vm7985, %v7898
      %7991 = vst.msk [vmem:[#allocation5 + $0x14] sm:$0xf] %vm7985, %v7900
      %7992 = vst.msk [vmem:[#allocation5 + $0x18] sm:$0xf] %vm7985, %v7902
      %7993 = vst.msk [vmem:[#allocation5 + $0x1c] sm:$0xf] %vm7985, %v7904
      %7994 = vst.msk [vmem:[#allocation5 + $0x20] sm:$0xf] %vm7985, %v7906
      %7995 = vst.msk [vmem:[#allocation5 + $0x24] sm:$0xf] %vm7985, %v7908
      %7996 = vst.msk [vmem:[#allocation5 + $0x28] sm:$0xf] %vm7985, %v7910
      %7997 = vst.msk [vmem:[#allocation5 + $0x2c] sm:$0xf] %vm7985, %v7912
      %7998 = vst.msk [vmem:[#allocation5 + $0x30] sm:$0xf] %vm7985, %v7914
      %7999 = vst.msk [vmem:[#allocation5 + $0x34] sm:$0xf] %vm7985, %v7916
      %8000 = vst.msk [vmem:[#allocation5 + $0x38] sm:$0xf] %vm7985, %v7918
      %8001 = vst.msk [vmem:[#allocation5 + $0x3c] sm:$0xf] %vm7985, %v7920
      %8002 = vst.msk [vmem:[#allocation5 + $0x40] sm:$0xf] %vm7985, %v7922
      %8003 = vst.msk [vmem:[#allocation5 + $0x44] sm:$0xf] %vm7985, %v7924
      %8004 = vst.msk [vmem:[#allocation5 + $0x48] sm:$0xf] %vm7985, %v7926
      %8005 = vst.msk [vmem:[#allocation5 + $0x4c] sm:$0xf] %vm7985, %v7928
      %8006 = vst.msk [vmem:[#allocation5 + $0x50] sm:$0xf] %vm7985, %v7930
      %8007 = vst.msk [vmem:[#allocation5 + $0x54] sm:$0xf] %vm7985, %v7932
      %8008 = vst.msk [vmem:[#allocation5 + $0x58] sm:$0xf] %vm7985, %v7934
      %8009 = vst.msk [vmem:[#allocation5 + $0x5c] sm:$0xf] %vm7985, %v7936
      %8010 = vst.msk [vmem:[#allocation5 + $0x60] sm:$0xf] %vm7985, %v7938
      %8011 = vst.msk [vmem:[#allocation5 + $0x64] sm:$0xf] %vm7985, %v7940
      %8012 = vst.msk [vmem:[#allocation5 + $0x68] sm:$0xf] %vm7985, %v7942
      %8013 = vst.msk [vmem:[#allocation5 + $0x6c] sm:$0xf] %vm7985, %v7944
      %8014 = vst.msk [vmem:[#allocation5 + $0x70] sm:$0xf] %vm7985, %v7946
      %8015 = vst.msk [vmem:[#allocation5 + $0x74] sm:$0xf] %vm7985, %v7948
      %8016 = vst.msk [vmem:[#allocation5 + $0x78] sm:$0xf] %vm7985, %v7950
      %8017 = vst.msk [vmem:[#allocation5 + $0x7c] sm:$0xf] %vm7985, %v7952
      %v8018 = vld [vmem:[%s7263] sm:$0xe]
      %v8019 = vld [vmem:[%s7263 + $0x4] sm:$0xf]
      %v8020 = vld [vmem:[%s7263 + $0x8] sm:$0x1]
      %v8021 = vld [vmem:[%s7263 + $0xc] sm:$0xe]
      %v8022 = vld [vmem:[%s7263 + $0x10] sm:$0xf]
      %v8023 = vld [vmem:[%s7263 + $0x14] sm:$0x1]
      %v8024 = vld [vmem:[%s7263 + $0x18] sm:$0xe]
      %v8025 = vld [vmem:[%s7263 + $0x1c] sm:$0xf]
      %v8026 = vld [vmem:[%s7263 + $0x20] sm:$0x1]
      %v8027 = vld [vmem:[%s7263 + $0x24] sm:$0xe]
      %v8028 = vld [vmem:[%s7263 + $0x28] sm:$0xf]
      %v8029 = vld [vmem:[%s7263 + $0x2c] sm:$0x1]
      %v8030 = vld [vmem:[%s7263 + $0x30] sm:$0xe]
      %v8031 = vld [vmem:[%s7263 + $0x34] sm:$0xf]
      %v8032 = vld [vmem:[%s7263 + $0x38] sm:$0x1]
      %v8033 = vld [vmem:[%s7263 + $0x3c] sm:$0xe]
      %v8034 = vld [vmem:[%s7263 + $0x40] sm:$0xf]
      %v8035 = vld [vmem:[%s7263 + $0x44] sm:$0x1]
      %v8036 = vld [vmem:[%s7263 + $0x48] sm:$0xe]
      %v8037 = vld [vmem:[%s7263 + $0x4c] sm:$0xf]
      %v8038 = vld [vmem:[%s7263 + $0x50] sm:$0x1]
      %v8039 = vld [vmem:[%s7263 + $0x54] sm:$0xe]
      %v8040 = vld [vmem:[%s7263 + $0x58] sm:$0xf]
      %v8041 = vld [vmem:[%s7263 + $0x5c] sm:$0x1]
      %v8042 = vld [vmem:[%s7263 + $0x60] sm:$0xe]
      %v8043 = vld [vmem:[%s7263 + $0x64] sm:$0xf]
      %v8044 = vld [vmem:[%s7263 + $0x68] sm:$0x1]
      %v8045 = vld [vmem:[%s7263 + $0x6c] sm:$0xe]
      %v8046 = vld [vmem:[%s7263 + $0x70] sm:$0xf]
      %v8047 = vld [vmem:[%s7263 + $0x74] sm:$0x1]
      %v8048 = vld [vmem:[%s7263 + $0x78] sm:$0xe]
      %v8049 = vld [vmem:[%s7263 + $0x7c] sm:$0xf]
      %v8050 = vld [vmem:[%s7263 + $0x80] sm:$0x1]
      %v8051 = vld [vmem:[%s7263 + $0x84] sm:$0xe]
      %v8052 = vld [vmem:[%s7263 + $0x88] sm:$0xf]
      %v8053 = vld [vmem:[%s7263 + $0x8c] sm:$0x1]
      %v8054 = vld [vmem:[%s7263 + $0x90] sm:$0xe]
      %v8055 = vld [vmem:[%s7263 + $0x94] sm:$0xf]
      %v8056 = vld [vmem:[%s7263 + $0x98] sm:$0x1]
      %v8057 = vld [vmem:[%s7263 + $0x9c] sm:$0xe]
      %v8058 = vld [vmem:[%s7263 + $0xa0] sm:$0xf]
      %v8059 = vld [vmem:[%s7263 + $0xa4] sm:$0x1]
      %v8060 = vld [vmem:[%s7263 + $0xa8] sm:$0xe]
      %v8061 = vld [vmem:[%s7263 + $0xac] sm:$0xf]
      %v8062 = vld [vmem:[%s7263 + $0xb0] sm:$0x1]
      %v8063 = vld [vmem:[%s7263 + $0xb4] sm:$0xe]
      %v8064 = vld [vmem:[%s7263 + $0xb8] sm:$0xf]
      %v8065 = vld [vmem:[%s7263 + $0xbc] sm:$0x1]
      %v8114 = vrot.slane %v8018, 5
      %v8115 = vrot.slane %v8114, 4
      %v8116 = vrot.slane %v8019, 5
      %v8117 = vsel %vm1678, %v8115, %v8116
      %v8118 = vrot.slane %v8116, 4
      %v8119 = vrot.slane %v8020, 5
      %v8120 = vsel %vm1678, %v8118, %v8119
      %v8121 = vrot.slane %v8021, 5
      %v8122 = vrot.slane %v8121, 4
      %v8123 = vrot.slane %v8022, 5
      %v8124 = vsel %vm1678, %v8122, %v8123
      %v8125 = vrot.slane %v8123, 4
      %v8126 = vrot.slane %v8023, 5
      %v8127 = vsel %vm1678, %v8125, %v8126
      %v8128 = vrot.slane %v8024, 5
      %v8129 = vrot.slane %v8128, 4
      %v8130 = vrot.slane %v8025, 5
      %v8131 = vsel %vm1678, %v8129, %v8130
      %v8132 = vrot.slane %v8130, 4
      %v8133 = vrot.slane %v8026, 5
      %v8134 = vsel %vm1678, %v8132, %v8133
      %v8135 = vrot.slane %v8027, 5
      %v8136 = vrot.slane %v8135, 4
      %v8137 = vrot.slane %v8028, 5
      %v8138 = vsel %vm1678, %v8136, %v8137
      %v8139 = vrot.slane %v8137, 4
      %v8140 = vrot.slane %v8029, 5
      %v8141 = vsel %vm1678, %v8139, %v8140
      %v8142 = vrot.slane %v8030, 5
      %v8143 = vrot.slane %v8142, 4
      %v8144 = vrot.slane %v8031, 5
      %v8145 = vsel %vm1678, %v8143, %v8144
      %v8146 = vrot.slane %v8144, 4
      %v8147 = vrot.slane %v8032, 5
      %v8148 = vsel %vm1678, %v8146, %v8147
      %v8149 = vrot.slane %v8033, 5
      %v8150 = vrot.slane %v8149, 4
      %v8151 = vrot.slane %v8034, 5
      %v8152 = vsel %vm1678, %v8150, %v8151
      %v8153 = vrot.slane %v8151, 4
      %v8154 = vrot.slane %v8035, 5
      %v8155 = vsel %vm1678, %v8153, %v8154
      %v8156 = vrot.slane %v8036, 5
      %v8157 = vrot.slane %v8156, 4
      %v8158 = vrot.slane %v8037, 5
      %v8159 = vsel %vm1678, %v8157, %v8158
      %v8160 = vrot.slane %v8158, 4
      %v8161 = vrot.slane %v8038, 5
      %v8162 = vsel %vm1678, %v8160, %v8161
      %v8163 = vrot.slane %v8039, 5
      %v8164 = vrot.slane %v8163, 4
      %v8165 = vrot.slane %v8040, 5
      %v8166 = vsel %vm1678, %v8164, %v8165
      %v8167 = vrot.slane %v8165, 4
      %v8168 = vrot.slane %v8041, 5
      %v8169 = vsel %vm1678, %v8167, %v8168
      %v8170 = vrot.slane %v8042, 5
      %v8171 = vrot.slane %v8170, 4
      %v8172 = vrot.slane %v8043, 5
      %v8173 = vsel %vm1678, %v8171, %v8172
      %v8174 = vrot.slane %v8172, 4
      %v8175 = vrot.slane %v8044, 5
      %v8176 = vsel %vm1678, %v8174, %v8175
      %v8177 = vrot.slane %v8045, 5
      %v8178 = vrot.slane %v8177, 4
      %v8179 = vrot.slane %v8046, 5
      %v8180 = vsel %vm1678, %v8178, %v8179
      %v8181 = vrot.slane %v8179, 4
      %v8182 = vrot.slane %v8047, 5
      %v8183 = vsel %vm1678, %v8181, %v8182
      %v8184 = vrot.slane %v8048, 5
      %v8185 = vrot.slane %v8184, 4
      %v8186 = vrot.slane %v8049, 5
      %v8187 = vsel %vm1678, %v8185, %v8186
      %v8188 = vrot.slane %v8186, 4
      %v8189 = vrot.slane %v8050, 5
      %v8190 = vsel %vm1678, %v8188, %v8189
      %v8191 = vrot.slane %v8051, 5
      %v8192 = vrot.slane %v8191, 4
      %v8193 = vrot.slane %v8052, 5
      %v8194 = vsel %vm1678, %v8192, %v8193
      %v8195 = vrot.slane %v8193, 4
      %v8196 = vrot.slane %v8053, 5
      %v8197 = vsel %vm1678, %v8195, %v8196
      %v8198 = vrot.slane %v8054, 5
      %v8199 = vrot.slane %v8198, 4
      %v8200 = vrot.slane %v8055, 5
      %v8201 = vsel %vm1678, %v8199, %v8200
      %v8202 = vrot.slane %v8200, 4
      %v8203 = vrot.slane %v8056, 5
      %v8204 = vsel %vm1678, %v8202, %v8203
      %v8205 = vrot.slane %v8057, 5
      %v8206 = vrot.slane %v8205, 4
      %v8207 = vrot.slane %v8058, 5
      %v8208 = vsel %vm1678, %v8206, %v8207
      %v8209 = vrot.slane %v8207, 4
      %v8210 = vrot.slane %v8059, 5
      %v8211 = vsel %vm1678, %v8209, %v8210
      %v8212 = vrot.slane %v8060, 5
      %v8213 = vrot.slane %v8212, 4
      %v8214 = vrot.slane %v8061, 5
      %v8215 = vsel %vm1678, %v8213, %v8214
      %v8216 = vrot.slane %v8214, 4
      %v8217 = vrot.slane %v8062, 5
      %v8218 = vsel %vm1678, %v8216, %v8217
      %v8219 = vrot.slane %v8063, 5
      %v8220 = vrot.slane %v8219, 4
      %v8221 = vrot.slane %v8064, 5
      %v8222 = vsel %vm1678, %v8220, %v8221
      %v8223 = vrot.slane %v8221, 4
      %v8224 = vrot.slane %v8065, 5
      %v8225 = vsel %vm1678, %v8223, %v8224
      %8226 = vrot.lane.b32.xlu0 %v8117, 64
      %v8227 = vpop.permute.xlu0 %8226
      %8228 = vrot.lane.b32.xlu0 %v8120, 64
      %v8229 = vpop.permute.xlu0 %8228
      %8230 = vrot.lane.b32.xlu0 %v8124, 64
      %v8231 = vpop.permute.xlu0 %8230
      %8232 = vrot.lane.b32.xlu0 %v8127, 64
      %v8233 = vpop.permute.xlu0 %8232
      %8234 = vrot.lane.b32.xlu0 %v8131, 64
      %v8235 = vpop.permute.xlu0 %8234
      %8236 = vrot.lane.b32.xlu0 %v8134, 64
      %v8237 = vpop.permute.xlu0 %8236
      %8238 = vrot.lane.b32.xlu0 %v8138, 64
      %v8239 = vpop.permute.xlu0 %8238
      %8240 = vrot.lane.b32.xlu0 %v8141, 64
      %v8241 = vpop.permute.xlu0 %8240
      %8242 = vrot.lane.b32.xlu0 %v8145, 64
      %v8243 = vpop.permute.xlu0 %8242
      %8244 = vrot.lane.b32.xlu0 %v8148, 64
      %v8245 = vpop.permute.xlu0 %8244
      %8246 = vrot.lane.b32.xlu0 %v8152, 64
      %v8247 = vpop.permute.xlu0 %8246
      %8248 = vrot.lane.b32.xlu0 %v8155, 64
      %v8249 = vpop.permute.xlu0 %8248
      %8250 = vrot.lane.b32.xlu0 %v8159, 64
      %v8251 = vpop.permute.xlu0 %8250
      %8252 = vrot.lane.b32.xlu0 %v8162, 64
      %v8253 = vpop.permute.xlu0 %8252
      %8254 = vrot.lane.b32.xlu0 %v8166, 64
      %v8255 = vpop.permute.xlu0 %8254
      %8256 = vrot.lane.b32.xlu0 %v8169, 64
      %v8257 = vpop.permute.xlu0 %8256
      %8258 = vrot.lane.b32.xlu0 %v8173, 64
      %v8259 = vpop.permute.xlu0 %8258
      %8260 = vrot.lane.b32.xlu0 %v8176, 64
      %v8261 = vpop.permute.xlu0 %8260
      %8262 = vrot.lane.b32.xlu0 %v8180, 64
      %v8263 = vpop.permute.xlu0 %8262
      %8264 = vrot.lane.b32.xlu0 %v8183, 64
      %v8265 = vpop.permute.xlu0 %8264
      %8266 = vrot.lane.b32.xlu0 %v8187, 64
      %v8267 = vpop.permute.xlu0 %8266
      %8268 = vrot.lane.b32.xlu0 %v8190, 64
      %v8269 = vpop.permute.xlu0 %8268
      %8270 = vrot.lane.b32.xlu0 %v8194, 64
      %v8271 = vpop.permute.xlu0 %8270
      %8272 = vrot.lane.b32.xlu0 %v8197, 64
      %v8273 = vpop.permute.xlu0 %8272
      %8274 = vrot.lane.b32.xlu0 %v8201, 64
      %v8275 = vpop.permute.xlu0 %8274
      %8276 = vrot.lane.b32.xlu0 %v8204, 64
      %v8277 = vpop.permute.xlu0 %8276
      %8278 = vrot.lane.b32.xlu0 %v8208, 64
      %v8279 = vpop.permute.xlu0 %8278
      %8280 = vrot.lane.b32.xlu0 %v8211, 64
      %v8281 = vpop.permute.xlu0 %8280
      %8282 = vrot.lane.b32.xlu0 %v8215, 64
      %v8283 = vpop.permute.xlu0 %8282
      %8284 = vrot.lane.b32.xlu0 %v8218, 64
      %v8285 = vpop.permute.xlu0 %8284
      %8286 = vrot.lane.b32.xlu0 %v8222, 64
      %v8287 = vpop.permute.xlu0 %8286
      %8288 = vrot.lane.b32.xlu0 %v8225, 64
      %v8289 = vpop.permute.xlu0 %8288
      %vm8322 = vcmask 585216
      %8323 = vst.msk [vmem:[#allocation5] sm:$0xf] %vm8322, %v8227
      %8324 = vst.msk [vmem:[#allocation5 + $0x4] sm:$0xf] %vm8322, %v8229
      %8325 = vst.msk [vmem:[#allocation5 + $0x8] sm:$0xf] %vm8322, %v8231
      %8326 = vst.msk [vmem:[#allocation5 + $0xc] sm:$0xf] %vm8322, %v8233
      %8327 = vst.msk [vmem:[#allocation5 + $0x10] sm:$0xf] %vm8322, %v8235
      %8328 = vst.msk [vmem:[#allocation5 + $0x14] sm:$0xf] %vm8322, %v8237
      %8329 = vst.msk [vmem:[#allocation5 + $0x18] sm:$0xf] %vm8322, %v8239
      %8330 = vst.msk [vmem:[#allocation5 + $0x1c] sm:$0xf] %vm8322, %v8241
      %8331 = vst.msk [vmem:[#allocation5 + $0x20] sm:$0xf] %vm8322, %v8243
      %8332 = vst.msk [vmem:[#allocation5 + $0x24] sm:$0xf] %vm8322, %v8245
      %8333 = vst.msk [vmem:[#allocation5 + $0x28] sm:$0xf] %vm8322, %v8247
      %8334 = vst.msk [vmem:[#allocation5 + $0x2c] sm:$0xf] %vm8322, %v8249
      %8335 = vst.msk [vmem:[#allocation5 + $0x30] sm:$0xf] %vm8322, %v8251
      %8336 = vst.msk [vmem:[#allocation5 + $0x34] sm:$0xf] %vm8322, %v8253
      %8337 = vst.msk [vmem:[#allocation5 + $0x38] sm:$0xf] %vm8322, %v8255
      %8338 = vst.msk [vmem:[#allocation5 + $0x3c] sm:$0xf] %vm8322, %v8257
      %8339 = vst.msk [vmem:[#allocation5 + $0x40] sm:$0xf] %vm8322, %v8259
      %8340 = vst.msk [vmem:[#allocation5 + $0x44] sm:$0xf] %vm8322, %v8261
      %8341 = vst.msk [vmem:[#allocation5 + $0x48] sm:$0xf] %vm8322, %v8263
      %8342 = vst.msk [vmem:[#allocation5 + $0x4c] sm:$0xf] %vm8322, %v8265
      %8343 = vst.msk [vmem:[#allocation5 + $0x50] sm:$0xf] %vm8322, %v8267
      %8344 = vst.msk [vmem:[#allocation5 + $0x54] sm:$0xf] %vm8322, %v8269
      %8345 = vst.msk [vmem:[#allocation5 + $0x58] sm:$0xf] %vm8322, %v8271
      %8346 = vst.msk [vmem:[#allocation5 + $0x5c] sm:$0xf] %vm8322, %v8273
      %8347 = vst.msk [vmem:[#allocation5 + $0x60] sm:$0xf] %vm8322, %v8275
      %8348 = vst.msk [vmem:[#allocation5 + $0x64] sm:$0xf] %vm8322, %v8277
      %8349 = vst.msk [vmem:[#allocation5 + $0x68] sm:$0xf] %vm8322, %v8279
      %8350 = vst.msk [vmem:[#allocation5 + $0x6c] sm:$0xf] %vm8322, %v8281
      %8351 = vst.msk [vmem:[#allocation5 + $0x70] sm:$0xf] %vm8322, %v8283
      %8352 = vst.msk [vmem:[#allocation5 + $0x74] sm:$0xf] %vm8322, %v8285
      %8353 = vst.msk [vmem:[#allocation5 + $0x78] sm:$0xf] %vm8322, %v8287
      %8354 = vst.msk [vmem:[#allocation5 + $0x7c] sm:$0xf] %vm8322, %v8289
      %v8355 = vld [vmem:[#allocation5] sm:$0xf]
      %v8356 = vld [vmem:[#allocation5 + $0x4] sm:$0xf]
      %v8357 = vld [vmem:[#allocation5 + $0x8] sm:$0xf]
      %v8358 = vld [vmem:[#allocation5 + $0xc] sm:$0xf]
      %v8359 = vld [vmem:[#allocation5 + $0x10] sm:$0xf]
      %v8360 = vld [vmem:[#allocation5 + $0x14] sm:$0xf]
      %v8361 = vld [vmem:[#allocation5 + $0x18] sm:$0xf]
      %v8362 = vld [vmem:[#allocation5 + $0x1c] sm:$0xf]
      %v8363 = vld [vmem:[#allocation5 + $0x20] sm:$0xf]
      %v8364 = vld [vmem:[#allocation5 + $0x24] sm:$0xf]
      %v8365 = vld [vmem:[#allocation5 + $0x28] sm:$0xf]
      %v8366 = vld [vmem:[#allocation5 + $0x2c] sm:$0xf]
      %v8367 = vld [vmem:[#allocation5 + $0x30] sm:$0xf]
      %v8368 = vld [vmem:[#allocation5 + $0x34] sm:$0xf]
      %v8369 = vld [vmem:[#allocation5 + $0x38] sm:$0xf]
      %v8370 = vld [vmem:[#allocation5 + $0x3c] sm:$0xf]
      %v8371 = vld [vmem:[#allocation5 + $0x40] sm:$0xf]
      %v8372 = vld [vmem:[#allocation5 + $0x44] sm:$0xf]
      %v8373 = vld [vmem:[#allocation5 + $0x48] sm:$0xf]
      %v8374 = vld [vmem:[#allocation5 + $0x4c] sm:$0xf]
      %v8375 = vld [vmem:[#allocation5 + $0x50] sm:$0xf]
      %v8376 = vld [vmem:[#allocation5 + $0x54] sm:$0xf]
      %v8377 = vld [vmem:[#allocation5 + $0x58] sm:$0xf]
      %v8378 = vld [vmem:[#allocation5 + $0x5c] sm:$0xf]
      %v8379 = vld [vmem:[#allocation5 + $0x60] sm:$0xf]
      %v8380 = vld [vmem:[#allocation5 + $0x64] sm:$0xf]
      %v8381 = vld [vmem:[#allocation5 + $0x68] sm:$0xf]
      %v8382 = vld [vmem:[#allocation5 + $0x6c] sm:$0xf]
      %v8383 = vld [vmem:[#allocation5 + $0x70] sm:$0xf]
      %v8384 = vld [vmem:[#allocation5 + $0x74] sm:$0xf]
      %v8385 = vld [vmem:[#allocation5 + $0x78] sm:$0xf]
      %v8386 = vld [vmem:[#allocation5 + $0x7c] sm:$0xf]
      %v8387 = vld [vmem:[%s4] sm:$0xf]
      %v8388 = vld [vmem:[%s4 + $0x4] sm:$0xf]
      %v8389 = vld [vmem:[%s4 + $0x8] sm:$0xf]
      %v8390 = vld [vmem:[%s4 + $0xc] sm:$0xf]
      %v8391 = vld [vmem:[%s4 + $0x10] sm:$0xf]
      %v8392 = vld [vmem:[%s4 + $0x14] sm:$0xf]
      %v8393 = vld [vmem:[%s4 + $0x18] sm:$0xf]
      %v8394 = vld [vmem:[%s4 + $0x1c] sm:$0xf]
      %v8395 = vld [vmem:[%s4 + $0x20] sm:$0xf]
      %v8428 = vunpack.c.l.b16 %v8355
      %v8429 = vunpack.c.l.b16 %v8356
      %v8430 = vunpack.c.l.b16 %v8357
      %v8431 = vunpack.c.l.b16 %v8358
      %v8432 = vunpack.c.l.b16 %v8359
      %v8433 = vunpack.c.l.b16 %v8360
      %v8434 = vunpack.c.l.b16 %v8361
      %v8435 = vunpack.c.l.b16 %v8362
      %v8436 = vunpack.c.l.b16 %v8363
      %v8437 = vunpack.c.l.b16 %v8364
      %v8438 = vunpack.c.l.b16 %v8365
      %v8439 = vunpack.c.l.b16 %v8366
      %v8440 = vunpack.c.l.b16 %v8367
      %v8441 = vunpack.c.l.b16 %v8368
      %v8442 = vunpack.c.l.b16 %v8369
      %v8443 = vunpack.c.l.b16 %v8370
      %v8444 = vunpack.c.l.b16 %v8371
      %v8445 = vunpack.c.l.b16 %v8372
      %v8446 = vunpack.c.l.b16 %v8373
      %v8447 = vunpack.c.l.b16 %v8374
      %v8448 = vunpack.c.l.b16 %v8375
      %v8449 = vunpack.c.l.b16 %v8376
      %v8450 = vunpack.c.l.b16 %v8377
      %v8451 = vunpack.c.l.b16 %v8378
      %v8452 = vunpack.c.l.b16 %v8379
      %v8453 = vunpack.c.l.b16 %v8380
      %v8454 = vunpack.c.l.b16 %v8381
      %v8455 = vunpack.c.l.b16 %v8382
      %v8456 = vunpack.c.l.b16 %v8383
      %v8457 = vunpack.c.l.b16 %v8384
      %v8458 = vunpack.c.l.b16 %v8385
      %v8459 = vunpack.c.l.b16 %v8386
      %v8460 = vpack.c.b16 %v8429, %v8428
      %v8461 = vpack.c.b16 %v8431, %v8430
      %v8462 = vpack.c.b16 %v8433, %v8432
      %v8463 = vpack.c.b16 %v8435, %v8434
      %v8464 = vpack.c.b16 %v8437, %v8436
      %v8465 = vpack.c.b16 %v8439, %v8438
      %v8466 = vpack.c.b16 %v8441, %v8440
      %v8467 = vpack.c.b16 %v8443, %v8442
      %v8468 = vpack.c.b16 %v8445, %v8444
      %v8469 = vpack.c.b16 %v8447, %v8446
      %v8470 = vpack.c.b16 %v8449, %v8448
      %v8471 = vpack.c.b16 %v8451, %v8450
      %v8472 = vpack.c.b16 %v8453, %v8452
      %v8473 = vpack.c.b16 %v8455, %v8454
      %v8474 = vpack.c.b16 %v8457, %v8456
      %v8475 = vpack.c.b16 %v8459, %v8458
      %v8485 = vunpack.c.l.b16 %v8387
      %v8486 = vunpack.c.l.b16 %v8388
      %v8487 = vunpack.c.l.b16 %v8389
      %v8488 = vunpack.c.l.b16 %v8390
      %v8489 = vunpack.c.l.b16 %v8391
      %v8490 = vunpack.c.l.b16 %v8392
      %v8491 = vunpack.c.l.b16 %v8393
      %v8492 = vunpack.c.l.b16 %v8394
      %v8493 = vunpack.c.l.b16 %v8395
      %v8494 = vpack.c.b16 %v8486, %v8485
      %v8495 = vpack.c.b16 %v8488, %v8487
      %v8496 = vpack.c.b16 %v8490, %v8489
      %v8497 = vpack.c.b16 %v8492, %v8491
      %v8498 = vpack.c.b16 %v8493, %v8493
      %vm8503 = vcmask 588800
      %v8505 = vsel %vm8503, %v8460, 0
      %v8508 = vsel %vm8503, %v8461, 0
      %v8511 = vsel %vm8503, %v8462, 0
      %v8514 = vsel %vm8503, %v8463, 0
      %v8517 = vsel %vm8503, %v8464, 0
      %v8520 = vsel %vm8503, %v8465, 0
      %v8523 = vsel %vm8503, %v8466, 0
      %v8526 = vsel %vm8503, %v8467, 0
      %v8529 = vsel %vm8503, %v8468, 0
      %v8532 = vsel %vm8503, %v8469, 0
      %v8535 = vsel %vm8503, %v8470, 0
      %v8538 = vsel %vm8503, %v8471, 0
      %v8541 = vsel %vm8503, %v8472, 0
      %v8544 = vsel %vm8503, %v8473, 0
      %v8547 = vsel %vm8503, %v8474, 0
      %v8550 = vsel %vm8503, %v8475, 0
      %vm8552 = vcmask 1043456
      %v8554 = vsel %vm8552, %v8498, 0
      %8556 = vmatprep.subr.bf16.mxu0 0
      %8557 = vmatpush1.bf16.msra.mxu0 0
      %8558 = vmatprep.subr.bf16.mxu0 0
      %8559 = vmatpush1.bf16.msra.mxu0 0
      %8560 = vmatprep.subr.bf16.mxu0 0
      %8561 = vmatpush1.bf16.msra.mxu0 0
      %8562 = vmatprep.subr.bf16.mxu0 0
      %8563 = vmatpush1.bf16.msra.mxu0 %v8554
      %8564 = vmatprep.subr.bf16.mxu0 0
      %8565 = vmatpush1.bf16.msra.mxu0 %v8497
      %8566 = vmatprep.subr.bf16.mxu0 0
      %8567 = vmatpush1.bf16.msra.mxu0 %v8496
      %8568 = vmatprep.subr.bf16.mxu0 0
      %8569 = vmatpush1.bf16.msra.mxu0 %v8495
      %8570 = vmatprep.subr.bf16.mxu0 0
      %8571 = vmatpush1.bf16.msra.mxu0 %v8494
      %8572 = vmatprep.subr.bf16.mxu0 0
      %8573 = vmatpush2.bf16.msra.mxu0 0
      %8574 = vmatprep.subr.bf16.mxu0 0
      %8575 = vmatpush2.bf16.msra.mxu0 0
      %8576 = vmatprep.subr.bf16.mxu0 0
      %8577 = vmatpush2.bf16.msra.mxu0 0
      %8578 = vmatprep.subr.bf16.mxu0 0
      %8579 = vmatpush2.bf16.msra.mxu0 0
      %8580 = vmatprep.subr.bf16.mxu0 0
      %8581 = vmatpush2.bf16.msra.mxu0 0
      %8582 = vmatprep.subr.bf16.mxu0 0
      %8583 = vmatpush2.bf16.msra.mxu0 0
      %8584 = vmatprep.subr.bf16.mxu0 0
      %8585 = vmatpush2.bf16.msra.mxu0 0
      %8586 = vmatprep.subr.bf16.mxu0 0
      %8587 = vmatpush2.bf16.msra.mxu0 0
      %8588 = vmatprep.mubr.bf16.mxu0 0
      %8589 = vmatmul.mubr.bf16.gmra.mxu0 %v8505
      %v8590 = vpop.f32.mrf.mxu0
      %v8591 = vadd.f32 0.0, %v8590
      %v8592 = vpop.f32.mrf.mxu0
      %v8593 = vpop.f32.mrf.mxu0
      %v8594 = vadd.f32 0.0, %v8593
      %v8595 = vpop.f32.mrf.mxu0
      %8596 = vmatprep.mubr.bf16.mxu0 0
      %8597 = vmatmul.mubr.bf16.gmra.mxu0 %v8508
      %v8598 = vpop.f32.mrf.mxu0
      %v8599 = vadd.f32 0.0, %v8598
      %v8600 = vpop.f32.mrf.mxu0
      %v8601 = vpop.f32.mrf.mxu0
      %v8602 = vadd.f32 0.0, %v8601
      %v8603 = vpop.f32.mrf.mxu0
      %8604 = vmatprep.mubr.bf16.mxu0 0
      %8605 = vmatmul.mubr.bf16.gmra.mxu0 %v8511
      %v8606 = vpop.f32.mrf.mxu0
      %v8607 = vadd.f32 0.0, %v8606
      %v8608 = vpop.f32.mrf.mxu0
      %v8609 = vpop.f32.mrf.mxu0
      %v8610 = vadd.f32 0.0, %v8609
      %v8611 = vpop.f32.mrf.mxu0
      %8612 = vmatprep.mubr.bf16.mxu0 0
      %8613 = vmatmul.mubr.bf16.gmra.mxu0 %v8514
      %v8614 = vpop.f32.mrf.mxu0
      %v8615 = vadd.f32 0.0, %v8614
      %v8616 = vpop.f32.mrf.mxu0
      %v8617 = vpop.f32.mrf.mxu0
      %v8618 = vadd.f32 0.0, %v8617
      %v8619 = vpop.f32.mrf.mxu0
      %8620 = vmatprep.mubr.bf16.mxu0 0
      %8621 = vmatmul.mubr.bf16.gmra.mxu0 %v8517
      %v8622 = vpop.f32.mrf.mxu0
      %v8623 = vadd.f32 0.0, %v8622
      %v8624 = vpop.f32.mrf.mxu0
      %v8625 = vpop.f32.mrf.mxu0
      %v8626 = vadd.f32 0.0, %v8625
      %v8627 = vpop.f32.mrf.mxu0
      %8628 = vmatprep.mubr.bf16.mxu0 0
      %8629 = vmatmul.mubr.bf16.gmra.mxu0 %v8520
      %v8630 = vpop.f32.mrf.mxu0
      %v8631 = vadd.f32 0.0, %v8630
      %v8632 = vpop.f32.mrf.mxu0
      %v8633 = vpop.f32.mrf.mxu0
      %v8634 = vadd.f32 0.0, %v8633
      %v8635 = vpop.f32.mrf.mxu0
      %8636 = vmatprep.mubr.bf16.mxu0 0
      %8637 = vmatmul.mubr.bf16.gmra.mxu0 %v8523
      %v8638 = vpop.f32.mrf.mxu0
      %v8639 = vadd.f32 0.0, %v8638
      %v8640 = vpop.f32.mrf.mxu0
      %v8641 = vpop.f32.mrf.mxu0
      %v8642 = vadd.f32 0.0, %v8641
      %v8643 = vpop.f32.mrf.mxu0
      %8644 = vmatprep.mubr.bf16.mxu0 0
      %8645 = vmatmul.mubr.bf16.gmra.mxu0 %v8526
      %v8646 = vpop.f32.mrf.mxu0
      %v8647 = vadd.f32 0.0, %v8646
      %v8648 = vpop.f32.mrf.mxu0
      %v8649 = vpop.f32.mrf.mxu0
      %v8650 = vadd.f32 0.0, %v8649
      %v8651 = vpop.f32.mrf.mxu0
      %8652 = vmatprep.mubr.bf16.mxu0 0
      %8653 = vmatmul.mubr.bf16.gmra.mxu0 %v8529
      %v8654 = vpop.f32.mrf.mxu0
      %v8655 = vadd.f32 0.0, %v8654
      %v8656 = vpop.f32.mrf.mxu0
      %v8657 = vpop.f32.mrf.mxu0
      %v8658 = vadd.f32 0.0, %v8657
      %v8659 = vpop.f32.mrf.mxu0
      %8660 = vmatprep.mubr.bf16.mxu0 0
      %8661 = vmatmul.mubr.bf16.gmra.mxu0 %v8532
      %v8662 = vpop.f32.mrf.mxu0
      %v8663 = vadd.f32 0.0, %v8662
      %v8664 = vpop.f32.mrf.mxu0
      %v8665 = vpop.f32.mrf.mxu0
      %v8666 = vadd.f32 0.0, %v8665
      %v8667 = vpop.f32.mrf.mxu0
      %8668 = vmatprep.mubr.bf16.mxu0 0
      %8669 = vmatmul.mubr.bf16.gmra.mxu0 %v8535
      %v8670 = vpop.f32.mrf.mxu0
      %v8671 = vadd.f32 0.0, %v8670
      %v8672 = vpop.f32.mrf.mxu0
      %v8673 = vpop.f32.mrf.mxu0
      %v8674 = vadd.f32 0.0, %v8673
      %v8675 = vpop.f32.mrf.mxu0
      %8676 = vmatprep.mubr.bf16.mxu0 0
      %8677 = vmatmul.mubr.bf16.gmra.mxu0 %v8538
      %v8678 = vpop.f32.mrf.mxu0
      %v8679 = vadd.f32 0.0, %v8678
      %v8680 = vpop.f32.mrf.mxu0
      %v8681 = vpop.f32.mrf.mxu0
      %v8682 = vadd.f32 0.0, %v8681
      %v8683 = vpop.f32.mrf.mxu0
      %8684 = vmatprep.mubr.bf16.mxu0 0
      %8685 = vmatmul.mubr.bf16.gmra.mxu0 %v8541
      %v8686 = vpop.f32.mrf.mxu0
      %v8687 = vadd.f32 0.0, %v8686
      %v8688 = vpop.f32.mrf.mxu0
      %v8689 = vpop.f32.mrf.mxu0
      %v8690 = vadd.f32 0.0, %v8689
      %v8691 = vpop.f32.mrf.mxu0
      %8692 = vmatprep.mubr.bf16.mxu0 0
      %8693 = vmatmul.mubr.bf16.gmra.mxu0 %v8544
      %v8694 = vpop.f32.mrf.mxu0
      %v8695 = vadd.f32 0.0, %v8694
      %v8696 = vpop.f32.mrf.mxu0
      %v8697 = vpop.f32.mrf.mxu0
      %v8698 = vadd.f32 0.0, %v8697
      %v8699 = vpop.f32.mrf.mxu0
      %8700 = vmatprep.mubr.bf16.mxu0 0
      %8701 = vmatmul.mubr.bf16.gmra.mxu0 %v8547
      %v8702 = vpop.f32.mrf.mxu0
      %v8703 = vadd.f32 0.0, %v8702
      %v8704 = vpop.f32.mrf.mxu0
      %v8705 = vpop.f32.mrf.mxu0
      %v8706 = vadd.f32 0.0, %v8705
      %v8707 = vpop.f32.mrf.mxu0
      %8708 = vmatprep.mubr.bf16.mxu0 0
      %8709 = vmatmul.mubr.bf16.gmra.mxu0 %v8550
      %v8710 = vpop.f32.mrf.mxu0
      %v8711 = vadd.f32 0.0, %v8710
      %v8712 = vpop.f32.mrf.mxu0
      %v8713 = vpop.f32.mrf.mxu0
      %v8714 = vadd.f32 0.0, %v8713
      %v8715 = vpop.f32.mrf.mxu0
      %8716 = vdwg.mxu0
      %v8717 = vld [vmem:[%s5] sm:$0x1]
      %v8719 = vlaneseq
      %v8720 = vshrl.u32 %v8719, 7
      %v8721 = vsub.s32 0, %v8720
      %v8722 = vrot.slane %v8717, %v8721
      %v8724 = vmul.f32 %v8591, %v8722
      %v8725 = vmul.f32 %v8594, %v8722
      %v8726 = vmul.f32 %v8599, %v8722
      %v8727 = vmul.f32 %v8602, %v8722
      %v8728 = vmul.f32 %v8607, %v8722
      %v8729 = vmul.f32 %v8610, %v8722
      %v8730 = vmul.f32 %v8615, %v8722
      %v8731 = vmul.f32 %v8618, %v8722
      %v8732 = vmul.f32 %v8623, %v8722
      %v8733 = vmul.f32 %v8626, %v8722
      %v8734 = vmul.f32 %v8631, %v8722
      %v8735 = vmul.f32 %v8634, %v8722
      %v8736 = vmul.f32 %v8639, %v8722
      %v8737 = vmul.f32 %v8642, %v8722
      %v8738 = vmul.f32 %v8647, %v8722
      %v8739 = vmul.f32 %v8650, %v8722
      %v8740 = vmul.f32 %v8655, %v8722
      %v8741 = vmul.f32 %v8658, %v8722
      %v8742 = vmul.f32 %v8663, %v8722
      %v8743 = vmul.f32 %v8666, %v8722
      %v8744 = vmul.f32 %v8671, %v8722
      %v8745 = vmul.f32 %v8674, %v8722
      %v8746 = vmul.f32 %v8679, %v8722
      %v8747 = vmul.f32 %v8682, %v8722
      %v8748 = vmul.f32 %v8687, %v8722
      %v8749 = vmul.f32 %v8690, %v8722
      %v8750 = vmul.f32 %v8695, %v8722
      %v8751 = vmul.f32 %v8698, %v8722
      %v8752 = vmul.f32 %v8703, %v8722
      %v8753 = vmul.f32 %v8706, %v8722
      %v8754 = vmul.f32 %v8711, %v8722
      %v8755 = vmul.f32 %v8714, %v8722
      %v8756 = vld [vmem:[%s6] sm:$0x1]
      %v8758 = vlaneseq
      %v8759 = vshrl.u32 %v8758, 7
      %v8760 = vsub.s32 0, %v8759
      %v8761 = vrot.slane %v8756, %v8760
      %v8763 = vadd.f32 %v8724, %v8761
      %v8764 = vadd.f32 %v8725, %v8761
      %v8765 = vadd.f32 %v8726, %v8761
      %v8766 = vadd.f32 %v8727, %v8761
      %v8767 = vadd.f32 %v8728, %v8761
      %v8768 = vadd.f32 %v8729, %v8761
      %v8769 = vadd.f32 %v8730, %v8761
      %v8770 = vadd.f32 %v8731, %v8761
      %v8771 = vadd.f32 %v8732, %v8761
      %v8772 = vadd.f32 %v8733, %v8761
      %v8773 = vadd.f32 %v8734, %v8761
      %v8774 = vadd.f32 %v8735, %v8761
      %v8775 = vadd.f32 %v8736, %v8761
      %v8776 = vadd.f32 %v8737, %v8761
      %v8777 = vadd.f32 %v8738, %v8761
      %v8778 = vadd.f32 %v8739, %v8761
      %v8779 = vadd.f32 %v8740, %v8761
      %v8780 = vadd.f32 %v8741, %v8761
      %v8781 = vadd.f32 %v8742, %v8761
      %v8782 = vadd.f32 %v8743, %v8761
      %v8783 = vadd.f32 %v8744, %v8761
      %v8784 = vadd.f32 %v8745, %v8761
      %v8785 = vadd.f32 %v8746, %v8761
      %v8786 = vadd.f32 %v8747, %v8761
      %v8787 = vadd.f32 %v8748, %v8761
      %v8788 = vadd.f32 %v8749, %v8761
      %v8789 = vadd.f32 %v8750, %v8761
      %v8790 = vadd.f32 %v8751, %v8761
      %v8791 = vadd.f32 %v8752, %v8761
      %v8792 = vadd.f32 %v8753, %v8761
      %v8793 = vadd.f32 %v8754, %v8761
      %v8794 = vadd.f32 %v8755, %v8761
      %v8795 = vld [vmem:[%s7] sm:$0x3]
      %v8828 = vunpack.c.l.b16 %v361
      %v8829 = vunpack.c.l.b16 %v362
      %v8830 = vunpack.c.l.b16 %v363
      %v8831 = vunpack.c.l.b16 %v364
      %v8832 = vunpack.c.l.b16 %v365
      %v8833 = vunpack.c.l.b16 %v366
      %v8834 = vunpack.c.l.b16 %v367
      %v8835 = vunpack.c.l.b16 %v368
      %v8836 = vunpack.c.l.b16 %v369
      %v8837 = vunpack.c.l.b16 %v370
      %v8838 = vunpack.c.l.b16 %v371
      %v8839 = vunpack.c.l.b16 %v372
      %v8840 = vunpack.c.l.b16 %v373
      %v8841 = vunpack.c.l.b16 %v374
      %v8842 = vunpack.c.l.b16 %v375
      %v8843 = vunpack.c.l.b16 %v376
      %v8844 = vunpack.c.l.b16 %v377
      %v8845 = vunpack.c.l.b16 %v378
      %v8846 = vunpack.c.l.b16 %v379
      %v8847 = vunpack.c.l.b16 %v380
      %v8848 = vunpack.c.l.b16 %v381
      %v8849 = vunpack.c.l.b16 %v382
      %v8850 = vunpack.c.l.b16 %v383
      %v8851 = vunpack.c.l.b16 %v384
      %v8852 = vunpack.c.l.b16 %v385
      %v8853 = vunpack.c.l.b16 %v386
      %v8854 = vunpack.c.l.b16 %v387
      %v8855 = vunpack.c.l.b16 %v388
      %v8856 = vunpack.c.l.b16 %v389
      %v8857 = vunpack.c.l.b16 %v390
      %v8858 = vunpack.c.l.b16 %v391
      %v8859 = vunpack.c.l.b16 %v392
      %v8860 = vpack.c.b16 %v8829, %v8828
      %v8861 = vpack.c.b16 %v8831, %v8830
      %v8862 = vpack.c.b16 %v8833, %v8832
      %v8863 = vpack.c.b16 %v8835, %v8834
      %v8864 = vpack.c.b16 %v8837, %v8836
      %v8865 = vpack.c.b16 %v8839, %v8838
      %v8866 = vpack.c.b16 %v8841, %v8840
      %v8867 = vpack.c.b16 %v8843, %v8842
      %v8868 = vpack.c.b16 %v8845, %v8844
      %v8869 = vpack.c.b16 %v8847, %v8846
      %v8870 = vpack.c.b16 %v8849, %v8848
      %v8871 = vpack.c.b16 %v8851, %v8850
      %v8872 = vpack.c.b16 %v8853, %v8852
      %v8873 = vpack.c.b16 %v8855, %v8854
      %v8874 = vpack.c.b16 %v8857, %v8856
      %v8875 = vpack.c.b16 %v8859, %v8858
      %vm8876 = vcmask 31744
      %v8878 = vsel %vm8876, %v8860, 0
      %v8881 = vsel %vm8876, %v8861, 0
      %v8884 = vsel %vm8876, %v8862, 0
      %v8887 = vsel %vm8876, %v8863, 0
      %v8890 = vsel %vm8876, %v8864, 0
      %v8893 = vsel %vm8876, %v8865, 0
      %v8896 = vsel %vm8876, %v8866, 0
      %v8899 = vsel %vm8876, %v8867, 0
      %v8902 = vsel %vm8876, %v8868, 0
      %v8905 = vsel %vm8876, %v8869, 0
      %v8908 = vsel %vm8876, %v8870, 0
      %v8911 = vsel %vm8876, %v8871, 0
      %v8914 = vsel %vm8876, %v8872, 0
      %v8917 = vsel %vm8876, %v8873, 0
      %v8920 = vsel %vm8876, %v8874, 0
      %v8923 = vsel %vm8876, %v8875, 0
      %v8926 = vsel %vm4284, %v8795, 0
      %8928 = vmatprep.subr.bf16.mxu0 0
      %8929 = vmatpush1.bf16.msra.mxu0 0
      %8930 = vmatprep.subr.bf16.mxu0 0
      %8931 = vmatpush1.bf16.msra.mxu0 0
      %8932 = vmatprep.subr.bf16.mxu0 0
      %8933 = vmatpush1.bf16.msra.mxu0 0
      %8934 = vmatprep.subr.bf16.mxu0 0
      %8935 = vmatpush1.bf16.msra.mxu0 0
      %8936 = vmatprep.subr.bf16.mxu0 0
      %8937 = vmatpush1.bf16.msra.mxu0 0
      %8938 = vmatprep.subr.bf16.mxu0 0
      %8939 = vmatpush1.bf16.msra.mxu0 0
      %8940 = vmatprep.subr.bf16.mxu0 0
      %8941 = vmatpush1.bf16.msra.mxu0 0
      %8942 = vmatprep.subr.bf16.mxu0 0
      %8943 = vmatpush1.bf16.msra.mxu0 %v8926
      %8944 = vmatprep.subr.bf16.mxu0 0
      %8945 = vmatpush2.bf16.msra.mxu0 0
      %8946 = vmatprep.subr.bf16.mxu0 0
      %8947 = vmatpush2.bf16.msra.mxu0 0
      %8948 = vmatprep.subr.bf16.mxu0 0
      %8949 = vmatpush2.bf16.msra.mxu0 0
      %8950 = vmatprep.subr.bf16.mxu0 0
      %8951 = vmatpush2.bf16.msra.mxu0 0
      %8952 = vmatprep.subr.bf16.mxu0 0
      %8953 = vmatpush2.bf16.msra.mxu0 0
      %8954 = vmatprep.subr.bf16.mxu0 0
      %8955 = vmatpush2.bf16.msra.mxu0 0
      %8956 = vmatprep.subr.bf16.mxu0 0
      %8957 = vmatpush2.bf16.msra.mxu0 0
      %8958 = vmatprep.subr.bf16.mxu0 0
      %8959 = vmatpush2.bf16.msra.mxu0 0
      %8960 = vmatprep.mubr.bf16.mxu0 0
      %8961 = vmatmul.mubr.bf16.gmra.mxu0 %v8878
      %v8962 = vpop.f32.mrf.mxu0
      %v8963 = vadd.f32 0.0, %v8962
      %v8964 = vpop.f32.mrf.mxu0
      %v8965 = vpop.f32.mrf.mxu0
      %v8966 = vadd.f32 0.0, %v8965
      %v8967 = vpop.f32.mrf.mxu0
      %8968 = vmatprep.mubr.bf16.mxu0 0
      %8969 = vmatmul.mubr.bf16.gmra.mxu0 %v8881
      %v8970 = vpop.f32.mrf.mxu0
      %v8971 = vadd.f32 0.0, %v8970
      %v8972 = vpop.f32.mrf.mxu0
      %v8973 = vpop.f32.mrf.mxu0
      %v8974 = vadd.f32 0.0, %v8973
      %v8975 = vpop.f32.mrf.mxu0
      %8976 = vmatprep.mubr.bf16.mxu0 0
      %8977 = vmatmul.mubr.bf16.gmra.mxu0 %v8884
      %v8978 = vpop.f32.mrf.mxu0
      %v8979 = vadd.f32 0.0, %v8978
      %v8980 = vpop.f32.mrf.mxu0
      %v8981 = vpop.f32.mrf.mxu0
      %v8982 = vadd.f32 0.0, %v8981
      %v8983 = vpop.f32.mrf.mxu0
      %8984 = vmatprep.mubr.bf16.mxu0 0
      %8985 = vmatmul.mubr.bf16.gmra.mxu0 %v8887
      %v8986 = vpop.f32.mrf.mxu0
      %v8987 = vadd.f32 0.0, %v8986
      %v8988 = vpop.f32.mrf.mxu0
      %v8989 = vpop.f32.mrf.mxu0
      %v8990 = vadd.f32 0.0, %v8989
      %v8991 = vpop.f32.mrf.mxu0
      %8992 = vmatprep.mubr.bf16.mxu0 0
      %8993 = vmatmul.mubr.bf16.gmra.mxu0 %v8890
      %v8994 = vpop.f32.mrf.mxu0
      %v8995 = vadd.f32 0.0, %v8994
      %v8996 = vpop.f32.mrf.mxu0
      %v8997 = vpop.f32.mrf.mxu0
      %v8998 = vadd.f32 0.0, %v8997
      %v8999 = vpop.f32.mrf.mxu0
      %9000 = vmatprep.mubr.bf16.mxu0 0
      %9001 = vmatmul.mubr.bf16.gmra.mxu0 %v8893
      %v9002 = vpop.f32.mrf.mxu0
      %v9003 = vadd.f32 0.0, %v9002
      %v9004 = vpop.f32.mrf.mxu0
      %v9005 = vpop.f32.mrf.mxu0
      %v9006 = vadd.f32 0.0, %v9005
      %v9007 = vpop.f32.mrf.mxu0
      %9008 = vmatprep.mubr.bf16.mxu0 0
      %9009 = vmatmul.mubr.bf16.gmra.mxu0 %v8896
      %v9010 = vpop.f32.mrf.mxu0
      %v9011 = vadd.f32 0.0, %v9010
      %v9012 = vpop.f32.mrf.mxu0
      %v9013 = vpop.f32.mrf.mxu0
      %v9014 = vadd.f32 0.0, %v9013
      %v9015 = vpop.f32.mrf.mxu0
      %9016 = vmatprep.mubr.bf16.mxu0 0
      %9017 = vmatmul.mubr.bf16.gmra.mxu0 %v8899
      %v9018 = vpop.f32.mrf.mxu0
      %v9019 = vadd.f32 0.0, %v9018
      %v9020 = vpop.f32.mrf.mxu0
      %v9021 = vpop.f32.mrf.mxu0
      %v9022 = vadd.f32 0.0, %v9021
      %v9023 = vpop.f32.mrf.mxu0
      %9024 = vmatprep.mubr.bf16.mxu0 0
      %9025 = vmatmul.mubr.bf16.gmra.mxu0 %v8902
      %v9026 = vpop.f32.mrf.mxu0
      %v9027 = vadd.f32 0.0, %v9026
      %v9028 = vpop.f32.mrf.mxu0
      %v9029 = vpop.f32.mrf.mxu0
      %v9030 = vadd.f32 0.0, %v9029
      %v9031 = vpop.f32.mrf.mxu0
      %9032 = vmatprep.mubr.bf16.mxu0 0
      %9033 = vmatmul.mubr.bf16.gmra.mxu0 %v8905
      %v9034 = vpop.f32.mrf.mxu0
      %v9035 = vadd.f32 0.0, %v9034
      %v9036 = vpop.f32.mrf.mxu0
      %v9037 = vpop.f32.mrf.mxu0
      %v9038 = vadd.f32 0.0, %v9037
      %v9039 = vpop.f32.mrf.mxu0
      %9040 = vmatprep.mubr.bf16.mxu0 0
      %9041 = vmatmul.mubr.bf16.gmra.mxu0 %v8908
      %v9042 = vpop.f32.mrf.mxu0
      %v9043 = vadd.f32 0.0, %v9042
      %v9044 = vpop.f32.mrf.mxu0
      %v9045 = vpop.f32.mrf.mxu0
      %v9046 = vadd.f32 0.0, %v9045
      %v9047 = vpop.f32.mrf.mxu0
      %9048 = vmatprep.mubr.bf16.mxu0 0
      %9049 = vmatmul.mubr.bf16.gmra.mxu0 %v8911
      %v9050 = vpop.f32.mrf.mxu0
      %v9051 = vadd.f32 0.0, %v9050
      %v9052 = vpop.f32.mrf.mxu0
      %v9053 = vpop.f32.mrf.mxu0
      %v9054 = vadd.f32 0.0, %v9053
      %v9055 = vpop.f32.mrf.mxu0
      %9056 = vmatprep.mubr.bf16.mxu0 0
      %9057 = vmatmul.mubr.bf16.gmra.mxu0 %v8914
      %v9058 = vpop.f32.mrf.mxu0
      %v9059 = vadd.f32 0.0, %v9058
      %v9060 = vpop.f32.mrf.mxu0
      %v9061 = vpop.f32.mrf.mxu0
      %v9062 = vadd.f32 0.0, %v9061
      %v9063 = vpop.f32.mrf.mxu0
      %9064 = vmatprep.mubr.bf16.mxu0 0
      %9065 = vmatmul.mubr.bf16.gmra.mxu0 %v8917
      %v9066 = vpop.f32.mrf.mxu0
      %v9067 = vadd.f32 0.0, %v9066
      %v9068 = vpop.f32.mrf.mxu0
      %v9069 = vpop.f32.mrf.mxu0
      %v9070 = vadd.f32 0.0, %v9069
      %v9071 = vpop.f32.mrf.mxu0
      %9072 = vmatprep.mubr.bf16.mxu0 0
      %9073 = vmatmul.mubr.bf16.gmra.mxu0 %v8920
      %v9074 = vpop.f32.mrf.mxu0
      %v9075 = vadd.f32 0.0, %v9074
      %v9076 = vpop.f32.mrf.mxu0
      %v9077 = vpop.f32.mrf.mxu0
      %v9078 = vadd.f32 0.0, %v9077
      %v9079 = vpop.f32.mrf.mxu0
      %9080 = vmatprep.mubr.bf16.mxu0 0
      %9081 = vmatmul.mubr.bf16.gmra.mxu0 %v8923
      %v9082 = vpop.f32.mrf.mxu0
      %v9083 = vadd.f32 0.0, %v9082
      %v9084 = vpop.f32.mrf.mxu0
      %v9085 = vpop.f32.mrf.mxu0
      %v9086 = vadd.f32 0.0, %v9085
      %v9087 = vpop.f32.mrf.mxu0
      %9088 = vdwg.mxu0
      %v9089 = vld [vmem:[%s8] sm:$0x1]
      %v9091 = vlaneseq
      %v9092 = vshrl.u32 %v9091, 7
      %v9093 = vsub.s32 0, %v9092
      %v9094 = vrot.slane %v9089, %v9093
      %v9096 = vmul.f32 %v8963, %v9094
      %v9097 = vmul.f32 %v8966, %v9094
      %v9098 = vmul.f32 %v8971, %v9094
      %v9099 = vmul.f32 %v8974, %v9094
      %v9100 = vmul.f32 %v8979, %v9094
      %v9101 = vmul.f32 %v8982, %v9094
      %v9102 = vmul.f32 %v8987, %v9094
      %v9103 = vmul.f32 %v8990, %v9094
      %v9104 = vmul.f32 %v8995, %v9094
      %v9105 = vmul.f32 %v8998, %v9094
      %v9106 = vmul.f32 %v9003, %v9094
      %v9107 = vmul.f32 %v9006, %v9094
      %v9108 = vmul.f32 %v9011, %v9094
      %v9109 = vmul.f32 %v9014, %v9094
      %v9110 = vmul.f32 %v9019, %v9094
      %v9111 = vmul.f32 %v9022, %v9094
      %v9112 = vmul.f32 %v9027, %v9094
      %v9113 = vmul.f32 %v9030, %v9094
      %v9114 = vmul.f32 %v9035, %v9094
      %v9115 = vmul.f32 %v9038, %v9094
      %v9116 = vmul.f32 %v9043, %v9094
      %v9117 = vmul.f32 %v9046, %v9094
      %v9118 = vmul.f32 %v9051, %v9094
      %v9119 = vmul.f32 %v9054, %v9094
      %v9120 = vmul.f32 %v9059, %v9094
      %v9121 = vmul.f32 %v9062, %v9094
      %v9122 = vmul.f32 %v9067, %v9094
      %v9123 = vmul.f32 %v9070, %v9094
      %v9124 = vmul.f32 %v9075, %v9094
      %v9125 = vmul.f32 %v9078, %v9094
      %v9126 = vmul.f32 %v9083, %v9094
      %v9127 = vmul.f32 %v9086, %v9094
      %v9128 = vld [vmem:[%s9] sm:$0x1]
      %v9130 = vlaneseq
      %v9131 = vshrl.u32 %v9130, 7
      %v9132 = vsub.s32 0, %v9131
      %v9133 = vrot.slane %v9128, %v9132
      %v9135 = vadd.f32 %v9096, %v9133
      %v9136 = vadd.f32 %v9097, %v9133
      %v9137 = vadd.f32 %v9098, %v9133
      %v9138 = vadd.f32 %v9099, %v9133
      %v9139 = vadd.f32 %v9100, %v9133
      %v9140 = vadd.f32 %v9101, %v9133
      %v9141 = vadd.f32 %v9102, %v9133
      %v9142 = vadd.f32 %v9103, %v9133
      %v9143 = vadd.f32 %v9104, %v9133
      %v9144 = vadd.f32 %v9105, %v9133
      %v9145 = vadd.f32 %v9106, %v9133
      %v9146 = vadd.f32 %v9107, %v9133
      %v9147 = vadd.f32 %v9108, %v9133
      %v9148 = vadd.f32 %v9109, %v9133
      %v9149 = vadd.f32 %v9110, %v9133
      %v9150 = vadd.f32 %v9111, %v9133
      %v9151 = vadd.f32 %v9112, %v9133
      %v9152 = vadd.f32 %v9113, %v9133
      %v9153 = vadd.f32 %v9114, %v9133
      %v9154 = vadd.f32 %v9115, %v9133
      %v9155 = vadd.f32 %v9116, %v9133
      %v9156 = vadd.f32 %v9117, %v9133
      %v9157 = vadd.f32 %v9118, %v9133
      %v9158 = vadd.f32 %v9119, %v9133
      %v9159 = vadd.f32 %v9120, %v9133
      %v9160 = vadd.f32 %v9121, %v9133
      %v9161 = vadd.f32 %v9122, %v9133
      %v9162 = vadd.f32 %v9123, %v9133
      %v9163 = vadd.f32 %v9124, %v9133
      %v9164 = vadd.f32 %v9125, %v9133
      %v9165 = vadd.f32 %v9126, %v9133
      %v9166 = vadd.f32 %v9127, %v9133
      %v9167 = vadd.f32 %v8763, %v9135
      %v9168 = vadd.f32 %v8764, %v9136
      %v9169 = vadd.f32 %v8765, %v9137
      %v9170 = vadd.f32 %v8766, %v9138
      %v9171 = vadd.f32 %v8767, %v9139
      %v9172 = vadd.f32 %v8768, %v9140
      %v9173 = vadd.f32 %v8769, %v9141
      %v9174 = vadd.f32 %v8770, %v9142
      %v9175 = vadd.f32 %v8771, %v9143
      %v9176 = vadd.f32 %v8772, %v9144
      %v9177 = vadd.f32 %v8773, %v9145
      %v9178 = vadd.f32 %v8774, %v9146
      %v9179 = vadd.f32 %v8775, %v9147
      %v9180 = vadd.f32 %v8776, %v9148
      %v9181 = vadd.f32 %v8777, %v9149
      %v9182 = vadd.f32 %v8778, %v9150
      %v9183 = vadd.f32 %v8779, %v9151
      %v9184 = vadd.f32 %v8780, %v9152
      %v9185 = vadd.f32 %v8781, %v9153
      %v9186 = vadd.f32 %v8782, %v9154
      %v9187 = vadd.f32 %v8783, %v9155
      %v9188 = vadd.f32 %v8784, %v9156
      %v9189 = vadd.f32 %v8785, %v9157
      %v9190 = vadd.f32 %v8786, %v9158
      %v9191 = vadd.f32 %v8787, %v9159
      %v9192 = vadd.f32 %v8788, %v9160
      %v9193 = vadd.f32 %v8789, %v9161
      %v9194 = vadd.f32 %v8790, %v9162
      %v9195 = vadd.f32 %v8791, %v9163
      %v9196 = vadd.f32 %v8792, %v9164
      %v9197 = vadd.f32 %v8793, %v9165
      %v9198 = vadd.f32 %v8794, %v9166
      %v9199 = vmax.f32 %v9167, 0.0
      %v9200 = vmax.f32 %v9168, 0.0
      %v9201 = vmax.f32 %v9169, 0.0
      %v9202 = vmax.f32 %v9170, 0.0
      %v9203 = vmax.f32 %v9171, 0.0
      %v9204 = vmax.f32 %v9172, 0.0
      %v9205 = vmax.f32 %v9173, 0.0
      %v9206 = vmax.f32 %v9174, 0.0
      %v9207 = vmax.f32 %v9175, 0.0
      %v9208 = vmax.f32 %v9176, 0.0
      %v9209 = vmax.f32 %v9177, 0.0
      %v9210 = vmax.f32 %v9178, 0.0
      %v9211 = vmax.f32 %v9179, 0.0
      %v9212 = vmax.f32 %v9180, 0.0
      %v9213 = vmax.f32 %v9181, 0.0
      %v9214 = vmax.f32 %v9182, 0.0
      %v9215 = vmax.f32 %v9183, 0.0
      %v9216 = vmax.f32 %v9184, 0.0
      %v9217 = vmax.f32 %v9185, 0.0
      %v9218 = vmax.f32 %v9186, 0.0
      %v9219 = vmax.f32 %v9187, 0.0
      %v9220 = vmax.f32 %v9188, 0.0
      %v9221 = vmax.f32 %v9189, 0.0
      %v9222 = vmax.f32 %v9190, 0.0
      %v9223 = vmax.f32 %v9191, 0.0
      %v9224 = vmax.f32 %v9192, 0.0
      %v9225 = vmax.f32 %v9193, 0.0
      %v9226 = vmax.f32 %v9194, 0.0
      %v9227 = vmax.f32 %v9195, 0.0
      %v9228 = vmax.f32 %v9196, 0.0
      %v9229 = vmax.f32 %v9197, 0.0
      %v9230 = vmax.f32 %v9198, 0.0
      %vm9231 = vcmask 64512
      %9232 = vst.msk [vmem:[%s359] sm:$0xff] %vm9231, %v9199
      %9233 = vst.msk [vmem:[%s359 + $0x8] sm:$0xff] %vm9231, %v9200
      %9234 = vst.msk [vmem:[%s359 + $0x10] sm:$0xff] %vm9231, %v9201
      %9235 = vst.msk [vmem:[%s359 + $0x18] sm:$0xff] %vm9231, %v9202
      %9236 = vst.msk [vmem:[%s359 + $0x20] sm:$0xff] %vm9231, %v9203
      %9237 = vst.msk [vmem:[%s359 + $0x28] sm:$0xff] %vm9231, %v9204
      %9238 = vst.msk [vmem:[%s359 + $0x30] sm:$0xff] %vm9231, %v9205
      %9239 = vst.msk [vmem:[%s359 + $0x38] sm:$0xff] %vm9231, %v9206
      %9240 = vst.msk [vmem:[%s359 + $0x40] sm:$0xff] %vm9231, %v9207
      %9241 = vst.msk [vmem:[%s359 + $0x48] sm:$0xff] %vm9231, %v9208
      %9242 = vst.msk [vmem:[%s359 + $0x50] sm:$0xff] %vm9231, %v9209
      %9243 = vst.msk [vmem:[%s359 + $0x58] sm:$0xff] %vm9231, %v9210
      %9244 = vst.msk [vmem:[%s359 + $0x60] sm:$0xff] %vm9231, %v9211
      %9245 = vst.msk [vmem:[%s359 + $0x68] sm:$0xff] %vm9231, %v9212
      %9246 = vst.msk [vmem:[%s359 + $0x70] sm:$0xff] %vm9231, %v9213
      %9247 = vst.msk [vmem:[%s359 + $0x78] sm:$0xff] %vm9231, %v9214
      %9248 = vst.msk [vmem:[%s359 + $0x80] sm:$0xff] %vm9231, %v9215
      %9249 = vst.msk [vmem:[%s359 + $0x88] sm:$0xff] %vm9231, %v9216
      %9250 = vst.msk [vmem:[%s359 + $0x90] sm:$0xff] %vm9231, %v9217
      %9251 = vst.msk [vmem:[%s359 + $0x98] sm:$0xff] %vm9231, %v9218
      %9252 = vst.msk [vmem:[%s359 + $0xa0] sm:$0xff] %vm9231, %v9219
      %9253 = vst.msk [vmem:[%s359 + $0xa8] sm:$0xff] %vm9231, %v9220
      %9254 = vst.msk [vmem:[%s359 + $0xb0] sm:$0xff] %vm9231, %v9221
      %9255 = vst.msk [vmem:[%s359 + $0xb8] sm:$0xff] %vm9231, %v9222
      %9256 = vst.msk [vmem:[%s359 + $0xc0] sm:$0xff] %vm9231, %v9223
      %9257 = vst.msk [vmem:[%s359 + $0xc8] sm:$0xff] %vm9231, %v9224
      %9258 = vst.msk [vmem:[%s359 + $0xd0] sm:$0xff] %vm9231, %v9225
      %9259 = vst.msk [vmem:[%s359 + $0xd8] sm:$0xff] %vm9231, %v9226
      %9260 = vst.msk [vmem:[%s359 + $0xe0] sm:$0xff] %vm9231, %v9227
      %9261 = vst.msk [vmem:[%s359 + $0xe8] sm:$0xff] %vm9231, %v9228
      %9262 = vst.msk [vmem:[%s359 + $0xf0] sm:$0xff] %vm9231, %v9229
      %9263 = vst.msk [vmem:[%s359 + $0xf8] sm:$0xff] %vm9231, %v9230
      %p9264 = scmp.lt.s32.totalorder %s21, 1
      %s9265 = scalar_select %p9264, %s21, 1
      %s9266 = smul.addr %s9265, 32
      %s9267 = smul.addr %s9266, 8
      %s9268 = scalar_lea.vmem %s10, %s9267
      // Predicated region
      $region61: #{residual_block_forward.1} parent=59 // pred_check
        %p9269 = pneg %p254
      $region62: #{residual_block_forward.1} parent=59 // pred_check_branch
        %9271 = sbr.rel (%p9269) target = $region64
      $region63: #{residual_block_forward.1} parent=59 // pred_region
        _
      $region64: #{residual_block_forward.1} parent=59 // pred_fallthru
        _
    $region60: #{residual_block_forward.1} parent=5 // pred_fallthru
      _
    %p9272 = scmp.le.s32.totalorder 2, %s16
    // Predicated region
    $region65: #{residual_block_forward.1} parent=5 // pred_check
      %p9273 = pneg %p9272
    $region66: #{residual_block_forward.1} parent=5 // pred_check_branch
      %9275 = sbr.rel (%p9273) target = $region68
    $region67: #{residual_block_forward.1} parent=5 // pred_region
      %s9276 = ssub.s32 %s16, 2
      // Predicated region
      $region69: #{residual_block_forward.1} parent=67 // pred_check
        %p9277 = pneg %p260
      $region70: #{residual_block_forward.1} parent=67 // pred_check_branch
        %9279 = sbr.rel (%p9277) target = $region72
      $region71: #{residual_block_forward.1} parent=67 // pred_region
        %p9280 = scmp.lt.s32.totalorder %s22, 1
        %s9281 = scalar_select %p9280, %s22, 1
        %s9282 = smul.addr %s9281, 32
        %s9283 = smul.addr %s9282, 8
        %s9284 = scalar_lea.vmem %s10, %s9283
      $region72: #{residual_block_forward.1} parent=67 // pred_fallthru
        _
    $region68: #{residual_block_forward.1} parent=5 // pred_fallthru
      _
  $region6: #{residual_block_forward.1} parent=0 // loop_footer
    %s20 = sadd.s32 1, %s16
  $region7: #{residual_block_forward.1} parent=0 // loop_footer_branch
    %15 = sbr.rel target = $region3
  $region8: #{residual_block_forward.1} parent=0 // loop_exit
    _

</llo_original>
